<compile_context>
chip_gen: v5e
topology: v5e:2x2
jax: 0.10.0
libtpu: 0.0.40
codegen_flags: <defaults>
</compile_context>

<pallas_src>
import math
import functools

import jax
import jax.numpy as jnp
from jax.experimental import pallas as pl
from jax.experimental.pallas import tpu as pltpu

EPS_LN = 1e-5
BF16 = jnp.bfloat16


# ----------------------------------------------------------------------------
# small math helpers (usable inside Pallas kernels)
# ----------------------------------------------------------------------------
def _erf(x):
    # Abramowitz & Stegun 7.1.26, |error| <= 1.5e-7 (effectively exact in f32).
    a1, a2, a3, a4, a5 = 0.254829592, -0.284496736, 1.421413741, -1.453152027, 1.061405429
    p = 0.3275911
    s = jnp.where(x >= 0.0, 1.0, -1.0)
    ax = jnp.abs(x)
    t = 1.0 / (1.0 + p * ax)
    poly = ((((a5 * t + a4) * t + a3) * t + a2) * t + a1) * t
    return s * (1.0 - poly * jnp.exp(-ax * ax))


def _gelu_exact(x):
    # nn.GELU() default is the exact (erf) GELU.
    return 0.5 * x * (1.0 + _erf(x * (1.0 / math.sqrt(2.0))))


def _layernorm(x, gamma, beta):
    mu = jnp.mean(x, axis=-1, keepdims=True)
    var = jnp.mean((x - mu) ** 2, axis=-1, keepdims=True)
    return (x - mu) * jax.lax.rsqrt(var + EPS_LN) * gamma + beta


def _softmax_lastdim(s):
    # explicit max-subtract softmax; reciprocal goes to the EUP slot.
    m = jnp.max(s, axis=-1, keepdims=True)
    e = jnp.exp(s - m)
    denom = jnp.sum(e, axis=-1, keepdims=True)
    return e * pl.reciprocal(denom, approx=True)


# ----------------------------------------------------------------------------
# fused Pallas kernel: norm1 -> merged QKV -> self+mutual attention -> split proj
#                      -> residual -> norm2 -> GEGLU MLP -> residual
# processes Wb windows per grid step.
# ----------------------------------------------------------------------------
def _tmsa_kernel(nH, hd,
                 x_ref, g1_ref, b1_ref,
                 w6_ref, b6_ref, relb_ref,
                 wpm_ref, wps_ref, bp_ref,
                 g2_ref, b2_ref,
                 wfc1_ref, bfc1_ref, wfc2_ref, bfc2_ref,
                 out_ref):
    x = x_ref[...]                          # (Wb, N, C) f32
    Wb, N, C = x.shape
    N2 = N // 2
    T = Wb * N

    # ---- norm1 (per-token, done in 2D) ----
    x2d = x.reshape(T, C)
    xn = _layernorm(x2d, g1_ref[0], b1_ref[0])          # f32

    # ---- merged QKV projection: [self | mutual] in one wide matmul ----
    # bias b6 already contains the folded sine position encoding for the mutual half;
    # the qk scale is folded into the q columns of w6/b6 (no in-kernel scaling).
    qkv = jnp.dot(xn.astype(BF16), w6_ref[...], preferred_element_type=jnp.float32)
    qkv = qkv.reshape(Wb, N, 6 * C) + b6_ref[...]        # (Wb, N, 6C) f32
    qkv_bf = qkv.astype(BF16)                            # single wide cast for MXU operands

    # ---- self attention (with relative position bias), window-batched per head ----
    self_heads = []
    for h in range(nH):
        q = qkv_bf[:, :, h * hd:(h + 1) * hd]
        k = qkv_bf[:, :, C + h * hd:C + (h + 1) * hd]
        v = qkv_bf[:, :, 2 * C + h * hd:2 * C + (h + 1) * hd]
        s = jnp.einsum('bqd,bkd->bqk', q, k,
                       preferred_element_type=jnp.float32)      # (Wb, N, N) f32
        s = s + relb_ref[h]
        p = _softmax_lastdim(s)
        self_heads.append(jnp.einsum('bqk,bkd->bqd', p.astype(BF16), v,
                                     preferred_element_type=jnp.float32))
    x_self = jnp.concatenate(self_heads, axis=-1)        # (Wb, N, C)

    # ---- mutual attention (sine pos enc folded into bias; no rel-pos bias) ----
    off = 3 * C
    mut1, mut2 = [], []
    for h in range(nH):
        q = qkv_bf[:, :, off + h * hd:off + (h + 1) * hd]
        k = qkv_bf[:, :, off + C + h * hd:off + C + (h + 1) * hd]
        v = qkv_bf[:, :, off + 2 * C + h * hd:off + 2 * C + (h + 1) * hd]
        q1, q2 = q[:, :N2], q[:, N2:]
        k1, k2 = k[:, :N2], k[:, N2:]
        v1, v2 = v[:, :N2], v[:, N2:]
        p1 = _softmax_lastdim(jnp.einsum('bqd,bkd->bqk', q2, k1,
                                         preferred_element_type=jnp.float32))
        mut1.append(jnp.einsum('bqk,bkd->bqd', p1.astype(BF16), v1,
                               preferred_element_type=jnp.float32))   # x1_aligned head
        p2 = _softmax_lastdim(jnp.einsum('bqd,bkd->bqk', q1, k2,
                                         preferred_element_type=jnp.float32))
        mut2.append(jnp.einsum('bqk,bkd->bqd', p2.astype(BF16), v2,
                               preferred_element_type=jnp.float32))   # x2_aligned head
    x1_aligned = jnp.concatenate(mut1, axis=-1)          # (Wb, N/2, C)
    x2_aligned = jnp.concatenate(mut2, axis=-1)          # (Wb, N/2, C)
    x_mut = jnp.concatenate([x1_aligned, x2_aligned], axis=1)   # (Wb, N, C)

    # ---- projection: split proj weight -> no (N, 2C) lane concat ----
    proj = (jnp.dot(x_mut.reshape(T, C).astype(BF16), wpm_ref[...],
                    preferred_element_type=jnp.float32)
            + jnp.dot(x_self.reshape(T, C).astype(BF16), wps_ref[...],
                      preferred_element_type=jnp.float32)
            + bp_ref[0])
    x_attn = x2d + proj                                  # residual (drop_path = Identity)

    # ---- fused GEGLU MLP (norm2 + merged fc11/fc12 + gelu gate + fc2 + residual) ----
    hidden = wfc1_ref.shape[1] // 2
    xn2 = _layernorm(x_attn, g2_ref[0], b2_ref[0])
    h12 = jnp.dot(xn2.astype(BF16), wfc1_ref[...],
                  preferred_element_type=jnp.float32) + bfc1_ref[0]   # (T, 2*hidden)
    h1 = h12[:, :hidden]
    h2 = h12[:, hidden:]
    hmid = _gelu_exact(h1) * h2
    y = jnp.dot(hmid.astype(BF16), wfc2_ref[...],
                preferred_element_type=jnp.float32) + bfc2_ref[0]

    out_ref[...] = (x_attn + y).reshape(Wb, N, C)


# ----------------------------------------------------------------------------
# JAX glue: window partition / reverse, position encodings, parameter setup
# ----------------------------------------------------------------------------
def window_partition(x, ws):
    B, D, H, W, C = x.shape
    x = x.reshape(B, D // ws[0], ws[0], H // ws[1], ws[1], W // ws[2], ws[2], C)
    x = jnp.transpose(x, (0, 1, 3, 5, 2, 4, 6, 7))
    return x.reshape(-1, ws[0] * ws[1] * ws[2], C)


def window_reverse(windows, ws, B, D, H, W):
    C = windows.shape[-1]
    x = windows.reshape(B, D // ws[0], H // ws[1], W // ws[2], ws[0], ws[1], ws[2], C)
    x = jnp.transpose(x, (0, 1, 4, 2, 5, 3, 6, 7))
    return x.reshape(B, D, H, W, C)


def get_position_index(ws):
    coords = jnp.stack(jnp.meshgrid(jnp.arange(ws[0]), jnp.arange(ws[1]),
                                    jnp.arange(ws[2]), indexing="ij"))
    cf = coords.reshape(3, -1)
    rel = cf[:, :, None] - cf[:, None, :]
    rel = jnp.transpose(rel, (1, 2, 0))
    rel = rel + jnp.array([ws[0] - 1, ws[1] - 1, ws[2] - 1])
    rel = rel * jnp.array([(2 * ws[1] - 1) * (2 * ws[2] - 1), 2 * ws[2] - 1, 1])
    return rel.sum(-1)                                                       # (N, N) int32


def get_sine_position_encoding(HW, num_pos_feats, temperature=10000.0, normalize=True):
    scale = 2.0 * math.pi
    not_mask = jnp.ones((1, HW[0], HW[1]), jnp.float32)
    y_embed = jnp.cumsum(not_mask, axis=1)
    x_embed = jnp.cumsum(not_mask, axis=2)
    if normalize:
        eps = 1e-6
        y_embed = y_embed / (y_embed[:, -1:, :] + eps) * scale
        x_embed = x_embed / (x_embed[:, :, -1:] + eps) * scale
    dim_t = jnp.arange(num_pos_feats, dtype=jnp.float32)
    dim_t = temperature ** (2.0 * jnp.floor(dim_t / 2.0) / num_pos_feats)
    pos_x = x_embed[:, :, :, None] / dim_t
    pos_y = y_embed[:, :, :, None] / dim_t
    pos_x = jnp.stack((jnp.sin(pos_x[:, :, :, 0::2]), jnp.cos(pos_x[:, :, :, 1::2])),
                      axis=4).reshape(1, HW[0], HW[1], -1)
    pos_y = jnp.stack((jnp.sin(pos_y[:, :, :, 0::2]), jnp.cos(pos_y[:, :, :, 1::2])),
                      axis=4).reshape(1, HW[0], HW[1], -1)
    pos = jnp.concatenate((pos_y, pos_x), axis=3)                            # (1, H, W, 2F)
    return pos.reshape(1, HW[0] * HW[1], -1)                                 # (1, H*W, C)


def init_params(key, dim, num_heads, window_size, mlp_ratio=2.0):
    hidden = int(dim * mlp_ratio)
    n_rel = (2 * window_size[0] - 1) * (2 * window_size[1] - 1) * (2 * window_size[2] - 1)
    ks = jax.random.split(key, 12)

    def lin(k, fan_in, fan_out):
        return jax.random.normal(k, (fan_in, fan_out), jnp.float32) * 0.02

    return {
        "norm1_g": jnp.ones((1, dim), jnp.float32),
        "norm1_b": jnp.zeros((1, dim), jnp.float32),
        "norm2_g": jnp.ones((1, dim), jnp.float32),
        "norm2_b": jnp.zeros((1, dim), jnp.float32),
        "wqkv_self": lin(ks[0], dim, 3 * dim),
        "bqkv_self": jax.random.normal(ks[1], (1, 3 * dim), jnp.float32) * 0.02,
        "wqkv_mut": lin(ks[2], dim, 3 * dim),
        "bqkv_mut": jax.random.normal(ks[3], (1, 3 * dim), jnp.float32) * 0.02,
        "wproj": lin(ks[4], 2 * dim, dim),
        "bproj": jax.random.normal(ks[5], (1, dim), jnp.float32) * 0.02,
        "rel_table": jax.random.normal(ks[6], (n_rel, num_heads), jnp.float32) * 0.02,
        "w_fc11": lin(ks[7], dim, hidden),
        "b_fc11": jax.random.normal(ks[8], (1, hidden), jnp.float32) * 0.02,
        "w_fc12": lin(ks[9], dim, hidden),
        "b_fc12": jax.random.normal(ks[10], (1, hidden), jnp.float32) * 0.02,
        "w_fc2": lin(ks[11], hidden, dim),
        "b_fc2": jnp.zeros((1, dim), jnp.float32),
    }


def _pick_windows_per_block(num_windows, tokens_per_window):
    # biggest divisor of num_windows that keeps the per-step token count reasonable
    # (keeps the grid load-balanced while giving the MXU decent-sized batched matmuls).
    target = max(1, min(16, 1024 // max(1, tokens_per_window)))
    wb = min(num_windows, target)
    while num_windows % wb:
        wb -= 1
    return wb


# ----------------------------------------------------------------------------
# Forward wrapper
# ----------------------------------------------------------------------------
def tmsa_forward(x, params, window_size, num_heads, windows_per_block=None):
    B, D, H, W, C = x.shape
    ws = window_size
    assert D % ws[0] == 0 and H % ws[1] == 0 and W % ws[2] == 0, "pick shapes divisible by window"
    assert ws[0] == 2, "mutual attention (VRT TMSA) requires temporal window size 2"
    N = ws[0] * ws[1] * ws[2]
    nH = num_heads
    hd = C // nH
    scale = hd ** (-0.5)
    hidden = params["w_fc11"].shape[1]

    # ---- window-invariant precomputation (wrapper side; constant-folded under jit) ----
    rel_idx = get_position_index(ws)                                   # (N, N)
    relb = params["rel_table"][rel_idx.reshape(-1)].reshape(N, N, nH)  # (N, N, nH)
    relb = jnp.transpose(relb, (2, 0, 1)).astype(jnp.float32)          # (nH, N, N)

    pos_bias = get_sine_position_encoding(ws[1:], C // 2, normalize=True)   # (1, wh*ww, C)
    posb = jnp.tile(pos_bias, (1, 2, 1))[0].astype(jnp.float32)        # (N, C)

    # merged / pre-folded parameters:
    #   * [self | mutual] qkv weights concatenated to one (C, 6C) matrix,
    #   * sine position encoding folded into the mutual qkv bias,
    #   * qk scale folded into the q columns of weight AND bias,
    #   * bf16 for MXU operands, biases stay f32.
    qcol_scale = jnp.concatenate([
        jnp.full((C,), scale, jnp.float32),        # q_self
        jnp.ones((2 * C,), jnp.float32),           # k_self, v_self
        jnp.full((C,), scale, jnp.float32),        # q_mut
        jnp.ones((2 * C,), jnp.float32),           # k_mut, v_mut
    ])
    w6 = (jnp.concatenate([params["wqkv_self"], params["wqkv_mut"]], axis=1)
          * qcol_scale).astype(BF16)                                   # (C, 6C)
    bqm_eff = posb @ params["wqkv_mut"] + params["bqkv_mut"]           # (N, 3C): folded pos enc
    b6 = (jnp.concatenate([jnp.broadcast_to(params["bqkv_self"], (N, 3 * C)), bqm_eff],
                          axis=-1) * qcol_scale).astype(jnp.float32)   # (N, 6C)
    wp_mut = params["wproj"][:C].astype(BF16)                          # (C, C)
    wp_self = params["wproj"][C:].astype(BF16)                         # (C, C)
    wfc1 = jnp.concatenate([params["w_fc11"], params["w_fc12"]], axis=1).astype(BF16)  # (C, 2*hidden)
    bfc1 = jnp.concatenate([params["b_fc11"], params["b_fc12"]], axis=1)               # (1, 2*hidden)
    wfc2 = params["w_fc2"].astype(BF16)                                # (hidden, C)

    # ---- single fused pallas_call over window blocks ----
    x_windows = window_partition(x, ws)                                # (B_, N, C)
    B_ = x_windows.shape[0]
    Wb = windows_per_block if windows_per_block is not None else _pick_windows_per_block(B_, N)
    assert B_ % Wb == 0

    def full(rank):
        return lambda i: (0,) * rank

    out_windows = pl.pallas_call(
        functools.partial(_tmsa_kernel, nH, hd),
        out_shape=jax.ShapeDtypeStruct((B_, N, C), jnp.float32),
        grid=(B_ // Wb,),
        in_specs=[
            pl.BlockSpec((Wb, N, C), lambda i: (i, 0, 0)),   # x window block
            pl.BlockSpec((1, C), full(2)),                   # norm1 gamma
            pl.BlockSpec((1, C), full(2)),                   # norm1 beta
            pl.BlockSpec((C, 6 * C), full(2)),               # merged qkv weight (self|mut, q pre-scaled)
            pl.BlockSpec((N, 6 * C), full(2)),               # merged qkv bias (pos enc folded, q pre-scaled)
            pl.BlockSpec((nH, N, N), full(3)),               # relative position bias
            pl.BlockSpec((C, C), full(2)),                   # proj weight (mutual half)
            pl.BlockSpec((C, C), full(2)),                   # proj weight (self half)
            pl.BlockSpec((1, C), full(2)),                   # proj bias
            pl.BlockSpec((1, C), full(2)),                   # norm2 gamma
            pl.BlockSpec((1, C), full(2)),                   # norm2 beta
            pl.BlockSpec((C, 2 * hidden), full(2)),          # merged fc11|fc12 weight
            pl.BlockSpec((1, 2 * hidden), full(2)),          # merged fc11|fc12 bias
            pl.BlockSpec((hidden, C), full(2)),              # fc2 weight
            pl.BlockSpec((1, C), full(2)),                   # fc2 bias
        ],
        out_specs=pl.BlockSpec((Wb, N, C), lambda i: (i, 0, 0)),
        compiler_params=pltpu.CompilerParams(dimension_semantics=("parallel",)),
    )(x_windows,
      params["norm1_g"], params["norm1_b"],
      w6, b6, relb, wp_mut, wp_self, params["bproj"],
      params["norm2_g"], params["norm2_b"],
      wfc1, bfc1, wfc2, params["b_fc2"])

    # residuals + FFN are already inside the kernel; reverse windows once at the end.
    return window_reverse(out_windows, ws, B, D, H, W)


# ----------------------------------------------------------------------------
if __name__ == "__main__":
    # small shapes consistent with the module:
    #   dim=32, num_heads=2, window_size=(2,4,4) (mutual attn => temporal window 2),
    #   input (B, D, H, W, C) = (2, 2, 8, 8, 32)  ->  8 windows of N=32 tokens,
    #   processed as one window-block of Wb=8 per grid step.
    dim, num_heads = 32, 2
    window_size = (2, 4, 4)
    B, D, H, W = 2, 2, 8, 8

    key = jax.random.PRNGKey(0)
    kx, kp = jax.random.split(key)
    x = jax.random.normal(kx, (B, D, H, W, dim), jnp.float32)
    params = init_params(kp, dim, num_heads, window_size, mlp_ratio=2.0)

    fwd = jax.jit(lambda x: tmsa_forward(x, params, window_size, num_heads))
    out = jax.block_until_ready(fwd(x))

    assert out.shape == (B, D, H, W, dim)
    assert bool(jnp.isfinite(out).all())
    print("KERNEL_OK")
</pallas_src>

<mosaic_0001>
module attributes {stable_mosaic.version = 11 : i64} {
  func.func @_tmsa_kernel(%arg0: i32, %arg1: memref<8x32x32xf32, #tpu.memory_space<vmem>>, %arg2: memref<1x32xf32, #tpu.memory_space<vmem>>, %arg3: memref<1x32xf32, #tpu.memory_space<vmem>>, %arg4: memref<32x192xbf16, #tpu.memory_space<vmem>>, %arg5: memref<32x192xf32, #tpu.memory_space<vmem>>, %arg6: memref<2x32x32xf32, #tpu.memory_space<vmem>>, %arg7: memref<32x32xbf16, #tpu.memory_space<vmem>>, %arg8: memref<32x32xbf16, #tpu.memory_space<vmem>>, %arg9: memref<1x32xf32, #tpu.memory_space<vmem>>, %arg10: memref<1x32xf32, #tpu.memory_space<vmem>>, %arg11: memref<1x32xf32, #tpu.memory_space<vmem>>, %arg12: memref<32x128xbf16, #tpu.memory_space<vmem>>, %arg13: memref<1x128xf32, #tpu.memory_space<vmem>>, %arg14: memref<64x32xbf16, #tpu.memory_space<vmem>>, %arg15: memref<1x32xf32, #tpu.memory_space<vmem>>, %arg16: memref<8x32x32xf32, #tpu.memory_space<vmem>>) attributes {dimension_semantics = [#tpu.dimension_semantics<parallel>], iteration_bounds = array<i64: 1>, scalar_prefetch = 0 : i64, scratch_operands = 0 : i64, tpu.core_type = #tpu.core_type<tc>, window_params = [{transform_indices = @transform_0, window_bounds = array<i64: 8, 32, 32>}, {pipeline_mode = #tpu.pipeline_mode<synchronous>, transform_indices = @transform_1, window_bounds = array<i64: 1, 32>}, {pipeline_mode = #tpu.pipeline_mode<synchronous>, transform_indices = @transform_2, window_bounds = array<i64: 1, 32>}, {pipeline_mode = #tpu.pipeline_mode<synchronous>, transform_indices = @transform_3, window_bounds = array<i64: 32, 192>}, {pipeline_mode = #tpu.pipeline_mode<synchronous>, transform_indices = @transform_4, window_bounds = array<i64: 32, 192>}, {pipeline_mode = #tpu.pipeline_mode<synchronous>, transform_indices = @transform_5, window_bounds = array<i64: 2, 32, 32>}, {pipeline_mode = #tpu.pipeline_mode<synchronous>, transform_indices = @transform_6, window_bounds = array<i64: 32, 32>}, {pipeline_mode = #tpu.pipeline_mode<synchronous>, transform_indices = @transform_7, window_bounds = array<i64: 32, 32>}, {pipeline_mode = #tpu.pipeline_mode<synchronous>, transform_indices = @transform_8, window_bounds = array<i64: 1, 32>}, {pipeline_mode = #tpu.pipeline_mode<synchronous>, transform_indices = @transform_9, window_bounds = array<i64: 1, 32>}, {pipeline_mode = #tpu.pipeline_mode<synchronous>, transform_indices = @transform_10, window_bounds = array<i64: 1, 32>}, {pipeline_mode = #tpu.pipeline_mode<synchronous>, transform_indices = @transform_11, window_bounds = array<i64: 32, 128>}, {pipeline_mode = #tpu.pipeline_mode<synchronous>, transform_indices = @transform_12, window_bounds = array<i64: 1, 128>}, {pipeline_mode = #tpu.pipeline_mode<synchronous>, transform_indices = @transform_13, window_bounds = array<i64: 64, 32>}, {pipeline_mode = #tpu.pipeline_mode<synchronous>, transform_indices = @transform_14, window_bounds = array<i64: 1, 32>}, {transform_indices = @transform_15, window_bounds = array<i64: 8, 32, 32>}]} {
    %c0 = arith.constant 0 : index
    %c0_0 = arith.constant 0 : index
    %c0_1 = arith.constant 0 : index
    %0 = vector.load %arg1[%c0, %c0_0, %c0_1] : memref<8x32x32xf32, #tpu.memory_space<vmem>>, vector<8x32x32xf32>
    %1 = vector.shape_cast %0 : vector<8x32x32xf32> to vector<256x32xf32>
    %c0_2 = arith.constant 0 : index
    %c0_3 = arith.constant 0 : index
    %2 = vector.load %arg2[%c0_2, %c0_3] : memref<1x32xf32, #tpu.memory_space<vmem>>, vector<1x32xf32>
    %3 = vector.shape_cast %2 : vector<1x32xf32> to vector<32xf32>
    %c0_4 = arith.constant 0 : index
    %c0_5 = arith.constant 0 : index
    %4 = vector.load %arg3[%c0_4, %c0_5] : memref<1x32xf32, #tpu.memory_space<vmem>>, vector<1x32xf32>
    %5 = vector.shape_cast %4 : vector<1x32xf32> to vector<32xf32>
    %cst = arith.constant dense<0.000000e+00> : vector<256xf32>
    %6 = vector.multi_reduction <add>, %1, %cst [1] : vector<256x32xf32> to vector<256xf32>
    %7 = vector.shape_cast %6 : vector<256xf32> to vector<256x1xf32>
    %cst_6 = arith.constant 3.200000e+01 : f32
    %8 = vector.broadcast %cst_6 : f32 to vector<256x1xf32>
    %9 = arith.divf %7, %8 : vector<256x1xf32>
    %10 = vector.broadcast %9 : vector<256x1xf32> to vector<256x32xf32>
    %11 = arith.subf %1, %10 : vector<256x32xf32>
    %12 = arith.mulf %11, %11 : vector<256x32xf32>
    %cst_7 = arith.constant dense<0.000000e+00> : vector<256xf32>
    %13 = vector.multi_reduction <add>, %12, %cst_7 [1] : vector<256x32xf32> to vector<256xf32>
    %14 = vector.shape_cast %13 : vector<256xf32> to vector<256x1xf32>
    %cst_8 = arith.constant 3.200000e+01 : f32
    %15 = vector.broadcast %cst_8 : f32 to vector<256x1xf32>
    %16 = arith.divf %14, %15 : vector<256x1xf32>
    %17 = vector.broadcast %9 : vector<256x1xf32> to vector<256x32xf32>
    %18 = arith.subf %1, %17 : vector<256x32xf32>
    %cst_9 = arith.constant 9.99999974E-6 : f32
    %19 = vector.broadcast %cst_9 : f32 to vector<256x1xf32>
    %20 = arith.addf %16, %19 : vector<256x1xf32>
    %21 = math.rsqrt %20 : vector<256x1xf32>
    %22 = vector.broadcast %21 : vector<256x1xf32> to vector<256x32xf32>
    %23 = arith.mulf %18, %22 : vector<256x32xf32>
    %24 = vector.shape_cast %3 : vector<32xf32> to vector<1x32xf32>
    %25 = vector.broadcast %24 : vector<1x32xf32> to vector<256x32xf32>
    %26 = arith.mulf %23, %25 : vector<256x32xf32>
    %27 = vector.shape_cast %5 : vector<32xf32> to vector<1x32xf32>
    %28 = vector.broadcast %27 : vector<1x32xf32> to vector<256x32xf32>
    %29 = arith.addf %26, %28 : vector<256x32xf32>
    %30 = arith.truncf %29 : vector<256x32xf32> to vector<256x32xbf16>
    %c0_10 = arith.constant 0 : index
    %c0_11 = arith.constant 0 : index
    %31 = vector.load %arg4[%c0_10, %c0_11] : memref<32x192xbf16, #tpu.memory_space<vmem>>, vector<32x192xbf16>
    %cst_12 = arith.constant dense<0.000000e+00> : vector<256x192xf32>
    %32 = tpu.matmul %30, %31, %cst_12 {dimension_numbers = #tpu.dot_dimension_numbers<[1], [0], [0], [1], [0, 0, 1, 1], [], []>} : vector<256x32xbf16>, vector<32x192xbf16>, vector<256x192xf32> -> vector<256x192xf32>
    %33 = vector.shape_cast %32 : vector<256x192xf32> to vector<8x32x192xf32>
    %c0_13 = arith.constant 0 : index
    %c0_14 = arith.constant 0 : index
    %34 = vector.load %arg5[%c0_13, %c0_14] : memref<32x192xf32, #tpu.memory_space<vmem>>, vector<32x192xf32>
    %35 = vector.shape_cast %34 : vector<32x192xf32> to vector<1x32x192xf32>
    %36 = vector.broadcast %35 : vector<1x32x192xf32> to vector<8x32x192xf32>
    %37 = arith.addf %33, %36 : vector<8x32x192xf32>
    %38 = arith.truncf %37 : vector<8x32x192xf32> to vector<8x32x192xbf16>
    %39 = vector.extract_strided_slice %38 {offsets = [0, 0, 0], sizes = [8, 32, 16], strides = [1, 1, 1]} : vector<8x32x192xbf16> to vector<8x32x16xbf16>
    %40 = vector.extract_strided_slice %38 {offsets = [0, 0, 32], sizes = [8, 32, 16], strides = [1, 1, 1]} : vector<8x32x192xbf16> to vector<8x32x16xbf16>
    %41 = vector.extract_strided_slice %38 {offsets = [0, 0, 64], sizes = [8, 32, 16], strides = [1, 1, 1]} : vector<8x32x192xbf16> to vector<8x32x16xbf16>
    "tpu.trace_start"() <{level = 10 : i32, message = "bqd,bkd->bqk"}> : () -> ()
    %cst_15 = arith.constant dense<0.000000e+00> : vector<8x32x32xf32>
    %42 = tpu.matmul %39, %40, %cst_15 {dimension_numbers = #tpu.dot_dimension_numbers<[2], [2], [1], [1], [0, 0, 0, 1, 1, 1], [0], [0]>} : vector<8x32x16xbf16>, vector<8x32x16xbf16>, vector<8x32x32xf32> -> vector<8x32x32xf32>
    "tpu.trace_stop"() : () -> ()
    %c0_16 = arith.constant 0 : index
    %c0_17 = arith.constant 0 : index
    %c0_18 = arith.constant 0 : index
    %43 = vector.load %arg6[%c0_16, %c0_17, %c0_18] : memref<2x32x32xf32, #tpu.memory_space<vmem>>, vector<1x32x32xf32>
    %44 = vector.shape_cast %43 : vector<1x32x32xf32> to vector<32x32xf32>
    %45 = vector.shape_cast %44 : vector<32x32xf32> to vector<1x32x32xf32>
    %46 = vector.broadcast %45 : vector<1x32x32xf32> to vector<8x32x32xf32>
    %47 = arith.addf %42, %46 : vector<8x32x32xf32>
    %cst_19 = arith.constant dense<0xFF800000> : vector<8x32xf32>
    %48 = vector.multi_reduction <maximumf>, %47, %cst_19 [2] : vector<8x32x32xf32> to vector<8x32xf32>
    %49 = vector.shape_cast %48 : vector<8x32xf32> to vector<8x32x1xf32>
    %50 = vector.broadcast %49 : vector<8x32x1xf32> to vector<8x32x32xf32>
    %51 = arith.subf %47, %50 : vector<8x32x32xf32>
    %52 = math.exp %51 : vector<8x32x32xf32>
    %cst_20 = arith.constant dense<0.000000e+00> : vector<8x32xf32>
    %53 = vector.multi_reduction <add>, %52, %cst_20 [2] : vector<8x32x32xf32> to vector<8x32xf32>
    %54 = vector.shape_cast %53 : vector<8x32xf32> to vector<8x32x1xf32>
    %55 = tpu.reciprocal %54 {approx = true} : vector<8x32x1xf32> -> vector<8x32x1xf32>
    %56 = vector.broadcast %55 : vector<8x32x1xf32> to vector<8x32x32xf32>
    %57 = arith.mulf %52, %56 : vector<8x32x32xf32>
    %58 = arith.truncf %57 : vector<8x32x32xf32> to vector<8x32x32xbf16>
    "tpu.trace_start"() <{level = 10 : i32, message = "bqk,bkd->bqd"}> : () -> ()
    %cst_21 = arith.constant dense<0.000000e+00> : vector<8x32x16xf32>
    %59 = tpu.matmul %58, %41, %cst_21 {dimension_numbers = #tpu.dot_dimension_numbers<[2], [1], [1], [2], [0, 0, 0, 1, 1, 2], [0], [0]>} : vector<8x32x32xbf16>, vector<8x32x16xbf16>, vector<8x32x16xf32> -> vector<8x32x16xf32>
    "tpu.trace_stop"() : () -> ()
    %60 = vector.extract_strided_slice %38 {offsets = [0, 0, 16], sizes = [8, 32, 16], strides = [1, 1, 1]} : vector<8x32x192xbf16> to vector<8x32x16xbf16>
    %61 = vector.extract_strided_slice %38 {offsets = [0, 0, 48], sizes = [8, 32, 16], strides = [1, 1, 1]} : vector<8x32x192xbf16> to vector<8x32x16xbf16>
    %62 = vector.extract_strided_slice %38 {offsets = [0, 0, 80], sizes = [8, 32, 16], strides = [1, 1, 1]} : vector<8x32x192xbf16> to vector<8x32x16xbf16>
    "tpu.trace_start"() <{level = 10 : i32, message = "bqd,bkd->bqk"}> : () -> ()
    %cst_22 = arith.constant dense<0.000000e+00> : vector<8x32x32xf32>
    %63 = tpu.matmul %60, %61, %cst_22 {dimension_numbers = #tpu.dot_dimension_numbers<[2], [2], [1], [1], [0, 0, 0, 1, 1, 1], [0], [0]>} : vector<8x32x16xbf16>, vector<8x32x16xbf16>, vector<8x32x32xf32> -> vector<8x32x32xf32>
    "tpu.trace_stop"() : () -> ()
    %c1 = arith.constant 1 : index
    %c0_23 = arith.constant 0 : index
    %c0_24 = arith.constant 0 : index
    %64 = vector.load %arg6[%c1, %c0_23, %c0_24] : memref<2x32x32xf32, #tpu.memory_space<vmem>>, vector<1x32x32xf32>
    %65 = vector.shape_cast %64 : vector<1x32x32xf32> to vector<32x32xf32>
    %66 = vector.shape_cast %65 : vector<32x32xf32> to vector<1x32x32xf32>
    %67 = vector.broadcast %66 : vector<1x32x32xf32> to vector<8x32x32xf32>
    %68 = arith.addf %63, %67 : vector<8x32x32xf32>
    %cst_25 = arith.constant dense<0xFF800000> : vector<8x32xf32>
    %69 = vector.multi_reduction <maximumf>, %68, %cst_25 [2] : vector<8x32x32xf32> to vector<8x32xf32>
    %70 = vector.shape_cast %69 : vector<8x32xf32> to vector<8x32x1xf32>
    %71 = vector.broadcast %70 : vector<8x32x1xf32> to vector<8x32x32xf32>
    %72 = arith.subf %68, %71 : vector<8x32x32xf32>
    %73 = math.exp %72 : vector<8x32x32xf32>
    %cst_26 = arith.constant dense<0.000000e+00> : vector<8x32xf32>
    %74 = vector.multi_reduction <add>, %73, %cst_26 [2] : vector<8x32x32xf32> to vector<8x32xf32>
    %75 = vector.shape_cast %74 : vector<8x32xf32> to vector<8x32x1xf32>
    %76 = tpu.reciprocal %75 {approx = true} : vector<8x32x1xf32> -> vector<8x32x1xf32>
    %77 = vector.broadcast %76 : vector<8x32x1xf32> to vector<8x32x32xf32>
    %78 = arith.mulf %73, %77 : vector<8x32x32xf32>
    %79 = arith.truncf %78 : vector<8x32x32xf32> to vector<8x32x32xbf16>
    "tpu.trace_start"() <{level = 10 : i32, message = "bqk,bkd->bqd"}> : () -> ()
    %cst_27 = arith.constant dense<0.000000e+00> : vector<8x32x16xf32>
    %80 = tpu.matmul %79, %62, %cst_27 {dimension_numbers = #tpu.dot_dimension_numbers<[2], [1], [1], [2], [0, 0, 0, 1, 1, 2], [0], [0]>} : vector<8x32x32xbf16>, vector<8x32x16xbf16>, vector<8x32x16xf32> -> vector<8x32x16xf32>
    "tpu.trace_stop"() : () -> ()
    %81 = tpu.concatenate %59, %80 in 2 : vector<8x32x16xf32>, vector<8x32x16xf32> -> vector<8x32x32xf32>
    %82 = vector.extract_strided_slice %38 {offsets = [0, 0, 96], sizes = [8, 32, 16], strides = [1, 1, 1]} : vector<8x32x192xbf16> to vector<8x32x16xbf16>
    %83 = vector.extract_strided_slice %38 {offsets = [0, 0, 128], sizes = [8, 32, 16], strides = [1, 1, 1]} : vector<8x32x192xbf16> to vector<8x32x16xbf16>
    %84 = vector.extract_strided_slice %38 {offsets = [0, 0, 160], sizes = [8, 32, 16], strides = [1, 1, 1]} : vector<8x32x192xbf16> to vector<8x32x16xbf16>
    %85 = vector.extract_strided_slice %82 {offsets = [0, 0, 0], sizes = [8, 16, 16], strides = [1, 1, 1]} : vector<8x32x16xbf16> to vector<8x16x16xbf16>
    %86 = vector.extract_strided_slice %82 {offsets = [0, 16, 0], sizes = [8, 16, 16], strides = [1, 1, 1]} : vector<8x32x16xbf16> to vector<8x16x16xbf16>
    %87 = vector.extract_strided_slice %83 {offsets = [0, 0, 0], sizes = [8, 16, 16], strides = [1, 1, 1]} : vector<8x32x16xbf16> to vector<8x16x16xbf16>
    %88 = vector.extract_strided_slice %83 {offsets = [0, 16, 0], sizes = [8, 16, 16], strides = [1, 1, 1]} : vector<8x32x16xbf16> to vector<8x16x16xbf16>
    %89 = vector.extract_strided_slice %84 {offsets = [0, 0, 0], sizes = [8, 16, 16], strides = [1, 1, 1]} : vector<8x32x16xbf16> to vector<8x16x16xbf16>
    %90 = vector.extract_strided_slice %84 {offsets = [0, 16, 0], sizes = [8, 16, 16], strides = [1, 1, 1]} : vector<8x32x16xbf16> to vector<8x16x16xbf16>
    "tpu.trace_start"() <{level = 10 : i32, message = "bqd,bkd->bqk"}> : () -> ()
    %cst_28 = arith.constant dense<0.000000e+00> : vector<8x16x16xf32>
    %91 = tpu.matmul %86, %87, %cst_28 {dimension_numbers = #tpu.dot_dimension_numbers<[2], [2], [1], [1], [0, 0, 0, 1, 1, 1], [0], [0]>} : vector<8x16x16xbf16>, vector<8x16x16xbf16>, vector<8x16x16xf32> -> vector<8x16x16xf32>
    "tpu.trace_stop"() : () -> ()
    %cst_29 = arith.constant dense<0xFF800000> : vector<8x16xf32>
    %92 = vector.multi_reduction <maximumf>, %91, %cst_29 [2] : vector<8x16x16xf32> to vector<8x16xf32>
    %93 = vector.shape_cast %92 : vector<8x16xf32> to vector<8x16x1xf32>
    %94 = vector.broadcast %93 : vector<8x16x1xf32> to vector<8x16x16xf32>
    %95 = arith.subf %91, %94 : vector<8x16x16xf32>
    %96 = math.exp %95 : vector<8x16x16xf32>
    %cst_30 = arith.constant dense<0.000000e+00> : vector<8x16xf32>
    %97 = vector.multi_reduction <add>, %96, %cst_30 [2] : vector<8x16x16xf32> to vector<8x16xf32>
    %98 = vector.shape_cast %97 : vector<8x16xf32> to vector<8x16x1xf32>
    %99 = tpu.reciprocal %98 {approx = true} : vector<8x16x1xf32> -> vector<8x16x1xf32>
    %100 = vector.broadcast %99 : vector<8x16x1xf32> to vector<8x16x16xf32>
    %101 = arith.mulf %96, %100 : vector<8x16x16xf32>
    %102 = arith.truncf %101 : vector<8x16x16xf32> to vector<8x16x16xbf16>
    "tpu.trace_start"() <{level = 10 : i32, message = "bqk,bkd->bqd"}> : () -> ()
    %cst_31 = arith.constant dense<0.000000e+00> : vector<8x16x16xf32>
    %103 = tpu.matmul %102, %89, %cst_31 {dimension_numbers = #tpu.dot_dimension_numbers<[2], [1], [1], [2], [0, 0, 0, 1, 1, 2], [0], [0]>} : vector<8x16x16xbf16>, vector<8x16x16xbf16>, vector<8x16x16xf32> -> vector<8x16x16xf32>
    "tpu.trace_stop"() : () -> ()
    "tpu.trace_start"() <{level = 10 : i32, message = "bqd,bkd->bqk"}> : () -> ()
    %cst_32 = arith.constant dense<0.000000e+00> : vector<8x16x16xf32>
    %104 = tpu.matmul %85, %88, %cst_32 {dimension_numbers = #tpu.dot_dimension_numbers<[2], [2], [1], [1], [0, 0, 0, 1, 1, 1], [0], [0]>} : vector<8x16x16xbf16>, vector<8x16x16xbf16>, vector<8x16x16xf32> -> vector<8x16x16xf32>
    "tpu.trace_stop"() : () -> ()
    %cst_33 = arith.constant dense<0xFF800000> : vector<8x16xf32>
    %105 = vector.multi_reduction <maximumf>, %104, %cst_33 [2] : vector<8x16x16xf32> to vector<8x16xf32>
    %106 = vector.shape_cast %105 : vector<8x16xf32> to vector<8x16x1xf32>
    %107 = vector.broadcast %106 : vector<8x16x1xf32> to vector<8x16x16xf32>
    %108 = arith.subf %104, %107 : vector<8x16x16xf32>
    %109 = math.exp %108 : vector<8x16x16xf32>
    %cst_34 = arith.constant dense<0.000000e+00> : vector<8x16xf32>
    %110 = vector.multi_reduction <add>, %109, %cst_34 [2] : vector<8x16x16xf32> to vector<8x16xf32>
    %111 = vector.shape_cast %110 : vector<8x16xf32> to vector<8x16x1xf32>
    %112 = tpu.reciprocal %111 {approx = true} : vector<8x16x1xf32> -> vector<8x16x1xf32>
    %113 = vector.broadcast %112 : vector<8x16x1xf32> to vector<8x16x16xf32>
    %114 = arith.mulf %109, %113 : vector<8x16x16xf32>
    %115 = arith.truncf %114 : vector<8x16x16xf32> to vector<8x16x16xbf16>
    "tpu.trace_start"() <{level = 10 : i32, message = "bqk,bkd->bqd"}> : () -> ()
    %cst_35 = arith.constant dense<0.000000e+00> : vector<8x16x16xf32>
    %116 = tpu.matmul %115, %90, %cst_35 {dimension_numbers = #tpu.dot_dimension_numbers<[2], [1], [1], [2], [0, 0, 0, 1, 1, 2], [0], [0]>} : vector<8x16x16xbf16>, vector<8x16x16xbf16>, vector<8x16x16xf32> -> vector<8x16x16xf32>
    "tpu.trace_stop"() : () -> ()
    %117 = vector.extract_strided_slice %38 {offsets = [0, 0, 112], sizes = [8, 32, 16], strides = [1, 1, 1]} : vector<8x32x192xbf16> to vector<8x32x16xbf16>
    %118 = vector.extract_strided_slice %38 {offsets = [0, 0, 144], sizes = [8, 32, 16], strides = [1, 1, 1]} : vector<8x32x192xbf16> to vector<8x32x16xbf16>
    %119 = vector.extract_strided_slice %38 {offsets = [0, 0, 176], sizes = [8, 32, 16], strides = [1, 1, 1]} : vector<8x32x192xbf16> to vector<8x32x16xbf16>
    %120 = vector.extract_strided_slice %117 {offsets = [0, 0, 0], sizes = [8, 16, 16], strides = [1, 1, 1]} : vector<8x32x16xbf16> to vector<8x16x16xbf16>
    %121 = vector.extract_strided_slice %117 {offsets = [0, 16, 0], sizes = [8, 16, 16], strides = [1, 1, 1]} : vector<8x32x16xbf16> to vector<8x16x16xbf16>
    %122 = vector.extract_strided_slice %118 {offsets = [0, 0, 0], sizes = [8, 16, 16], strides = [1, 1, 1]} : vector<8x32x16xbf16> to vector<8x16x16xbf16>
    %123 = vector.extract_strided_slice %118 {offsets = [0, 16, 0], sizes = [8, 16, 16], strides = [1, 1, 1]} : vector<8x32x16xbf16> to vector<8x16x16xbf16>
    %124 = vector.extract_strided_slice %119 {offsets = [0, 0, 0], sizes = [8, 16, 16], strides = [1, 1, 1]} : vector<8x32x16xbf16> to vector<8x16x16xbf16>
    %125 = vector.extract_strided_slice %119 {offsets = [0, 16, 0], sizes = [8, 16, 16], strides = [1, 1, 1]} : vector<8x32x16xbf16> to vector<8x16x16xbf16>
    "tpu.trace_start"() <{level = 10 : i32, message = "bqd,bkd->bqk"}> : () -> ()
    %cst_36 = arith.constant dense<0.000000e+00> : vector<8x16x16xf32>
    %126 = tpu.matmul %121, %122, %cst_36 {dimension_numbers = #tpu.dot_dimension_numbers<[2], [2], [1], [1], [0, 0, 0, 1, 1, 1], [0], [0]>} : vector<8x16x16xbf16>, vector<8x16x16xbf16>, vector<8x16x16xf32> -> vector<8x16x16xf32>
    "tpu.trace_stop"() : () -> ()
    %cst_37 = arith.constant dense<0xFF800000> : vector<8x16xf32>
    %127 = vector.multi_reduction <maximumf>, %126, %cst_37 [2] : vector<8x16x16xf32> to vector<8x16xf32>
    %128 = vector.shape_cast %127 : vector<8x16xf32> to vector<8x16x1xf32>
    %129 = vector.broadcast %128 : vector<8x16x1xf32> to vector<8x16x16xf32>
    %130 = arith.subf %126, %129 : vector<8x16x16xf32>
    %131 = math.exp %130 : vector<8x16x16xf32>
    %cst_38 = arith.constant dense<0.000000e+00> : vector<8x16xf32>
    %132 = vector.multi_reduction <add>, %131, %cst_38 [2] : vector<8x16x16xf32> to vector<8x16xf32>
    %133 = vector.shape_cast %132 : vector<8x16xf32> to vector<8x16x1xf32>
    %134 = tpu.reciprocal %133 {approx = true} : vector<8x16x1xf32> -> vector<8x16x1xf32>
    %135 = vector.broadcast %134 : vector<8x16x1xf32> to vector<8x16x16xf32>
    %136 = arith.mulf %131, %135 : vector<8x16x16xf32>
    %137 = arith.truncf %136 : vector<8x16x16xf32> to vector<8x16x16xbf16>
    "tpu.trace_start"() <{level = 10 : i32, message = "bqk,bkd->bqd"}> : () -> ()
    %cst_39 = arith.constant dense<0.000000e+00> : vector<8x16x16xf32>
    %138 = tpu.matmul %137, %124, %cst_39 {dimension_numbers = #tpu.dot_dimension_numbers<[2], [1], [1], [2], [0, 0, 0, 1, 1, 2], [0], [0]>} : vector<8x16x16xbf16>, vector<8x16x16xbf16>, vector<8x16x16xf32> -> vector<8x16x16xf32>
    "tpu.trace_stop"() : () -> ()
    "tpu.trace_start"() <{level = 10 : i32, message = "bqd,bkd->bqk"}> : () -> ()
    %cst_40 = arith.constant dense<0.000000e+00> : vector<8x16x16xf32>
    %139 = tpu.matmul %120, %123, %cst_40 {dimension_numbers = #tpu.dot_dimension_numbers<[2], [2], [1], [1], [0, 0, 0, 1, 1, 1], [0], [0]>} : vector<8x16x16xbf16>, vector<8x16x16xbf16>, vector<8x16x16xf32> -> vector<8x16x16xf32>
    "tpu.trace_stop"() : () -> ()
    %cst_41 = arith.constant dense<0xFF800000> : vector<8x16xf32>
    %140 = vector.multi_reduction <maximumf>, %139, %cst_41 [2] : vector<8x16x16xf32> to vector<8x16xf32>
    %141 = vector.shape_cast %140 : vector<8x16xf32> to vector<8x16x1xf32>
    %142 = vector.broadcast %141 : vector<8x16x1xf32> to vector<8x16x16xf32>
    %143 = arith.subf %139, %142 : vector<8x16x16xf32>
    %144 = math.exp %143 : vector<8x16x16xf32>
    %cst_42 = arith.constant dense<0.000000e+00> : vector<8x16xf32>
    %145 = vector.multi_reduction <add>, %144, %cst_42 [2] : vector<8x16x16xf32> to vector<8x16xf32>
    %146 = vector.shape_cast %145 : vector<8x16xf32> to vector<8x16x1xf32>
    %147 = tpu.reciprocal %146 {approx = true} : vector<8x16x1xf32> -> vector<8x16x1xf32>
    %148 = vector.broadcast %147 : vector<8x16x1xf32> to vector<8x16x16xf32>
    %149 = arith.mulf %144, %148 : vector<8x16x16xf32>
    %150 = arith.truncf %149 : vector<8x16x16xf32> to vector<8x16x16xbf16>
    "tpu.trace_start"() <{level = 10 : i32, message = "bqk,bkd->bqd"}> : () -> ()
    %cst_43 = arith.constant dense<0.000000e+00> : vector<8x16x16xf32>
    %151 = tpu.matmul %150, %125, %cst_43 {dimension_numbers = #tpu.dot_dimension_numbers<[2], [1], [1], [2], [0, 0, 0, 1, 1, 2], [0], [0]>} : vector<8x16x16xbf16>, vector<8x16x16xbf16>, vector<8x16x16xf32> -> vector<8x16x16xf32>
    "tpu.trace_stop"() : () -> ()
    %152 = tpu.concatenate %103, %138 in 2 : vector<8x16x16xf32>, vector<8x16x16xf32> -> vector<8x16x32xf32>
    %153 = tpu.concatenate %116, %151 in 2 : vector<8x16x16xf32>, vector<8x16x16xf32> -> vector<8x16x32xf32>
    %154 = tpu.concatenate %152, %153 in 1 : vector<8x16x32xf32>, vector<8x16x32xf32> -> vector<8x32x32xf32>
    %155 = vector.shape_cast %154 : vector<8x32x32xf32> to vector<256x32xf32>
    %156 = arith.truncf %155 : vector<256x32xf32> to vector<256x32xbf16>
    %c0_44 = arith.constant 0 : index
    %c0_45 = arith.constant 0 : index
    %157 = vector.load %arg7[%c0_44, %c0_45] : memref<32x32xbf16, #tpu.memory_space<vmem>>, vector<32x32xbf16>
    %cst_46 = arith.constant dense<0.000000e+00> : vector<256x32xf32>
    %158 = tpu.matmul %156, %157, %cst_46 {dimension_numbers = #tpu.dot_dimension_numbers<[1], [0], [0], [1], [0, 0, 1, 1], [], []>} : vector<256x32xbf16>, vector<32x32xbf16>, vector<256x32xf32> -> vector<256x32xf32>
    %159 = vector.shape_cast %81 : vector<8x32x32xf32> to vector<256x32xf32>
    %160 = arith.truncf %159 : vector<256x32xf32> to vector<256x32xbf16>
    %c0_47 = arith.constant 0 : index
    %c0_48 = arith.constant 0 : index
    %161 = vector.load %arg8[%c0_47, %c0_48] : memref<32x32xbf16, #tpu.memory_space<vmem>>, vector<32x32xbf16>
    %cst_49 = arith.constant dense<0.000000e+00> : vector<256x32xf32>
    %162 = tpu.matmul %160, %161, %cst_49 {dimension_numbers = #tpu.dot_dimension_numbers<[1], [0], [0], [1], [0, 0, 1, 1], [], []>} : vector<256x32xbf16>, vector<32x32xbf16>, vector<256x32xf32> -> vector<256x32xf32>
    %163 = arith.addf %158, %162 : vector<256x32xf32>
    %c0_50 = arith.constant 0 : index
    %c0_51 = arith.constant 0 : index
    %164 = vector.load %arg9[%c0_50, %c0_51] : memref<1x32xf32, #tpu.memory_space<vmem>>, vector<1x32xf32>
    %165 = vector.shape_cast %164 : vector<1x32xf32> to vector<32xf32>
    %166 = vector.shape_cast %165 : vector<32xf32> to vector<1x32xf32>
    %167 = vector.broadcast %166 : vector<1x32xf32> to vector<256x32xf32>
    %168 = arith.addf %163, %167 : vector<256x32xf32>
    %169 = arith.addf %1, %168 : vector<256x32xf32>
    %c0_52 = arith.constant 0 : index
    %c0_53 = arith.constant 0 : index
    %170 = vector.load %arg10[%c0_52, %c0_53] : memref<1x32xf32, #tpu.memory_space<vmem>>, vector<1x32xf32>
    %171 = vector.shape_cast %170 : vector<1x32xf32> to vector<32xf32>
    %c0_54 = arith.constant 0 : index
    %c0_55 = arith.constant 0 : index
    %172 = vector.load %arg11[%c0_54, %c0_55] : memref<1x32xf32, #tpu.memory_space<vmem>>, vector<1x32xf32>
    %173 = vector.shape_cast %172 : vector<1x32xf32> to vector<32xf32>
    %cst_56 = arith.constant dense<0.000000e+00> : vector<256xf32>
    %174 = vector.multi_reduction <add>, %169, %cst_56 [1] : vector<256x32xf32> to vector<256xf32>
    %175 = vector.shape_cast %174 : vector<256xf32> to vector<256x1xf32>
    %cst_57 = arith.constant 3.200000e+01 : f32
    %176 = vector.broadcast %cst_57 : f32 to vector<256x1xf32>
    %177 = arith.divf %175, %176 : vector<256x1xf32>
    %178 = vector.broadcast %177 : vector<256x1xf32> to vector<256x32xf32>
    %179 = arith.subf %169, %178 : vector<256x32xf32>
    %180 = arith.mulf %179, %179 : vector<256x32xf32>
    %cst_58 = arith.constant dense<0.000000e+00> : vector<256xf32>
    %181 = vector.multi_reduction <add>, %180, %cst_58 [1] : vector<256x32xf32> to vector<256xf32>
    %182 = vector.shape_cast %181 : vector<256xf32> to vector<256x1xf32>
    %cst_59 = arith.constant 3.200000e+01 : f32
    %183 = vector.broadcast %cst_59 : f32 to vector<256x1xf32>
    %184 = arith.divf %182, %183 : vector<256x1xf32>
    %185 = vector.broadcast %177 : vector<256x1xf32> to vector<256x32xf32>
    %186 = arith.subf %169, %185 : vector<256x32xf32>
    %cst_60 = arith.constant 9.99999974E-6 : f32
    %187 = vector.broadcast %cst_60 : f32 to vector<256x1xf32>
    %188 = arith.addf %184, %187 : vector<256x1xf32>
    %189 = math.rsqrt %188 : vector<256x1xf32>
    %190 = vector.broadcast %189 : vector<256x1xf32> to vector<256x32xf32>
    %191 = arith.mulf %186, %190 : vector<256x32xf32>
    %192 = vector.shape_cast %171 : vector<32xf32> to vector<1x32xf32>
    %193 = vector.broadcast %192 : vector<1x32xf32> to vector<256x32xf32>
    %194 = arith.mulf %191, %193 : vector<256x32xf32>
    %195 = vector.shape_cast %173 : vector<32xf32> to vector<1x32xf32>
    %196 = vector.broadcast %195 : vector<1x32xf32> to vector<256x32xf32>
    %197 = arith.addf %194, %196 : vector<256x32xf32>
    %198 = arith.truncf %197 : vector<256x32xf32> to vector<256x32xbf16>
    %c0_61 = arith.constant 0 : index
    %c0_62 = arith.constant 0 : index
    %199 = vector.load %arg12[%c0_61, %c0_62] : memref<32x128xbf16, #tpu.memory_space<vmem>>, vector<32x128xbf16>
    %cst_63 = arith.constant dense<0.000000e+00> : vector<256x128xf32>
    %200 = tpu.matmul %198, %199, %cst_63 {dimension_numbers = #tpu.dot_dimension_numbers<[1], [0], [0], [1], [0, 0, 1, 1], [], []>} : vector<256x32xbf16>, vector<32x128xbf16>, vector<256x128xf32> -> vector<256x128xf32>
    %c0_64 = arith.constant 0 : index
    %c0_65 = arith.constant 0 : index
    %201 = vector.load %arg13[%c0_64, %c0_65] : memref<1x128xf32, #tpu.memory_space<vmem>>, vector<1x128xf32>
    %202 = vector.shape_cast %201 : vector<1x128xf32> to vector<128xf32>
    %203 = vector.shape_cast %202 : vector<128xf32> to vector<1x128xf32>
    %204 = vector.broadcast %203 : vector<1x128xf32> to vector<256x128xf32>
    %205 = arith.addf %200, %204 : vector<256x128xf32>
    %206 = vector.extract_strided_slice %205 {offsets = [0, 0], sizes = [256, 64], strides = [1, 1]} : vector<256x128xf32> to vector<256x64xf32>
    %207 = vector.extract_strided_slice %205 {offsets = [0, 64], sizes = [256, 64], strides = [1, 1]} : vector<256x128xf32> to vector<256x64xf32>
    %cst_66 = arith.constant 5.000000e-01 : f32
    %208 = vector.broadcast %cst_66 : f32 to vector<256x64xf32>
    %209 = arith.mulf %208, %206 : vector<256x64xf32>
    %cst_67 = arith.constant 0.707106769 : f32
    %210 = vector.broadcast %cst_67 : f32 to vector<256x64xf32>
    %211 = arith.mulf %206, %210 : vector<256x64xf32>
    %cst_68 = arith.constant 0.000000e+00 : f32
    %212 = vector.broadcast %cst_68 : f32 to vector<256x64xf32>
    %213 = arith.cmpf oge, %211, %212 : vector<256x64xf32>
    %cst_69 = arith.constant 1.000000e+00 : f32
    %cst_70 = arith.constant -1.000000e+00 : f32
    %214 = vector.broadcast %cst_69 : f32 to vector<256x64xf32>
    %215 = vector.broadcast %cst_70 : f32 to vector<256x64xf32>
    %216 = arith.select %213, %214, %215 : vector<256x64xi1>, vector<256x64xf32>
    %217 = math.absf %211 : vector<256x64xf32>
    %cst_71 = arith.constant 0.327591091 : f32
    %218 = vector.broadcast %cst_71 : f32 to vector<256x64xf32>
    %219 = arith.mulf %218, %217 : vector<256x64xf32>
    %cst_72 = arith.constant 1.000000e+00 : f32
    %220 = vector.broadcast %cst_72 : f32 to vector<256x64xf32>
    %221 = arith.addf %220, %219 : vector<256x64xf32>
    %cst_73 = arith.constant 1.000000e+00 : f32
    %222 = vector.broadcast %cst_73 : f32 to vector<256x64xf32>
    %223 = arith.divf %222, %221 : vector<256x64xf32>
    %cst_74 = arith.constant 1.06140542 : f32
    %224 = vector.broadcast %cst_74 : f32 to vector<256x64xf32>
    %225 = arith.mulf %224, %223 : vector<256x64xf32>
    %cst_75 = arith.constant -1.45315206 : f32
    %226 = vector.broadcast %cst_75 : f32 to vector<256x64xf32>
    %227 = arith.addf %225, %226 : vector<256x64xf32>
    %228 = arith.mulf %227, %223 : vector<256x64xf32>
    %cst_76 = arith.constant 1.42141378 : f32
    %229 = vector.broadcast %cst_76 : f32 to vector<256x64xf32>
    %230 = arith.addf %228, %229 : vector<256x64xf32>
    %231 = arith.mulf %230, %223 : vector<256x64xf32>
    %cst_77 = arith.constant -0.284496725 : f32
    %232 = vector.broadcast %cst_77 : f32 to vector<256x64xf32>
    %233 = arith.addf %231, %232 : vector<256x64xf32>
    %234 = arith.mulf %233, %223 : vector<256x64xf32>
    %cst_78 = arith.constant 0.254829586 : f32
    %235 = vector.broadcast %cst_78 : f32 to vector<256x64xf32>
    %236 = arith.addf %234, %235 : vector<256x64xf32>
    %237 = arith.mulf %236, %223 : vector<256x64xf32>
    %cst_79 = arith.constant 0.000000e+00 : f32
    %238 = vector.broadcast %cst_79 : f32 to vector<256x64xf32>
    %239 = arith.subf %238, %217 : vector<256x64xf32>
    %240 = arith.mulf %239, %217 : vector<256x64xf32>
    %241 = math.exp %240 : vector<256x64xf32>
    %242 = arith.mulf %237, %241 : vector<256x64xf32>
    %cst_80 = arith.constant 1.000000e+00 : f32
    %243 = vector.broadcast %cst_80 : f32 to vector<256x64xf32>
    %244 = arith.subf %243, %242 : vector<256x64xf32>
    %245 = arith.mulf %216, %244 : vector<256x64xf32>
    %cst_81 = arith.constant 1.000000e+00 : f32
    %246 = vector.broadcast %cst_81 : f32 to vector<256x64xf32>
    %247 = arith.addf %246, %245 : vector<256x64xf32>
    %248 = arith.mulf %209, %247 : vector<256x64xf32>
    %249 = arith.mulf %248, %207 : vector<256x64xf32>
    %250 = arith.truncf %249 : vector<256x64xf32> to vector<256x64xbf16>
    %c0_82 = arith.constant 0 : index
    %c0_83 = arith.constant 0 : index
    %251 = vector.load %arg14[%c0_82, %c0_83] : memref<64x32xbf16, #tpu.memory_space<vmem>>, vector<64x32xbf16>
    %cst_84 = arith.constant dense<0.000000e+00> : vector<256x32xf32>
    %252 = tpu.matmul %250, %251, %cst_84 {dimension_numbers = #tpu.dot_dimension_numbers<[1], [0], [0], [1], [0, 0, 1, 1], [], []>} : vector<256x64xbf16>, vector<64x32xbf16>, vector<256x32xf32> -> vector<256x32xf32>
    %c0_85 = arith.constant 0 : index
    %c0_86 = arith.constant 0 : index
    %253 = vector.load %arg15[%c0_85, %c0_86] : memref<1x32xf32, #tpu.memory_space<vmem>>, vector<1x32xf32>
    %254 = vector.shape_cast %253 : vector<1x32xf32> to vector<32xf32>
    %255 = vector.shape_cast %254 : vector<32xf32> to vector<1x32xf32>
    %256 = vector.broadcast %255 : vector<1x32xf32> to vector<256x32xf32>
    %257 = arith.addf %252, %256 : vector<256x32xf32>
    %258 = arith.addf %169, %257 : vector<256x32xf32>
    %259 = vector.shape_cast %258 : vector<256x32xf32> to vector<8x32x32xf32>
    %c0_87 = arith.constant 0 : index
    %c0_88 = arith.constant 0 : index
    %c0_89 = arith.constant 0 : index
    %260 = vector.load %arg16[%c0_87, %c0_88, %c0_89] : memref<8x32x32xf32, #tpu.memory_space<vmem>>, vector<8x32x32xf32>
    tpu.vector_store %arg16[%c0_87, %c0_88, %c0_89], %259 {strides = array<i32>} : memref<8x32x32xf32, #tpu.memory_space<vmem>>, vector<8x32x32xf32>,
    return
  }
  func.func @transform_0(%arg0: i32) -> (i32, i32, i32) {
    %c0_i32 = arith.constant 0 : i32
    %c0_i32_0 = arith.constant 0 : i32
    %c0_i32_1 = arith.constant 0 : i32
    return %arg0, %c0_i32, %c0_i32_0 : i32, i32, i32
  }
  func.func @transform_1(%arg0: i32) -> (i32, i32) {
    %c0_i32 = arith.constant 0 : i32
    %c0_i32_0 = arith.constant 0 : i32
    %c0_i32_1 = arith.constant 0 : i32
    return %c0_i32, %c0_i32_0 : i32, i32
  }
  func.func @transform_2(%arg0: i32) -> (i32, i32) {
    %c0_i32 = arith.constant 0 : i32
    %c0_i32_0 = arith.constant 0 : i32
    %c0_i32_1 = arith.constant 0 : i32
    return %c0_i32, %c0_i32_0 : i32, i32
  }
  func.func @transform_3(%arg0: i32) -> (i32, i32) {
    %c0_i32 = arith.constant 0 : i32
    %c0_i32_0 = arith.constant 0 : i32
    %c0_i32_1 = arith.constant 0 : i32
    return %c0_i32, %c0_i32_0 : i32, i32
  }
  func.func @transform_4(%arg0: i32) -> (i32, i32) {
    %c0_i32 = arith.constant 0 : i32
    %c0_i32_0 = arith.constant 0 : i32
    %c0_i32_1 = arith.constant 0 : i32
    return %c0_i32, %c0_i32_0 : i32, i32
  }
  func.func @transform_5(%arg0: i32) -> (i32, i32, i32) {
    %c0_i32 = arith.constant 0 : i32
    %c0_i32_0 = arith.constant 0 : i32
    %c0_i32_1 = arith.constant 0 : i32
    %c0_i32_2 = arith.constant 0 : i32
    return %c0_i32, %c0_i32_0, %c0_i32_1 : i32, i32, i32
  }
  func.func @transform_6(%arg0: i32) -> (i32, i32) {
    %c0_i32 = arith.constant 0 : i32
    %c0_i32_0 = arith.constant 0 : i32
    %c0_i32_1 = arith.constant 0 : i32
    return %c0_i32, %c0_i32_0 : i32, i32
  }
  func.func @transform_7(%arg0: i32) -> (i32, i32) {
    %c0_i32 = arith.constant 0 : i32
    %c0_i32_0 = arith.constant 0 : i32
    %c0_i32_1 = arith.constant 0 : i32
    return %c0_i32, %c0_i32_0 : i32, i32
  }
  func.func @transform_8(%arg0: i32) -> (i32, i32) {
    %c0_i32 = arith.constant 0 : i32
    %c0_i32_0 = arith.constant 0 : i32
    %c0_i32_1 = arith.constant 0 : i32
    return %c0_i32, %c0_i32_0 : i32, i32
  }
  func.func @transform_9(%arg0: i32) -> (i32, i32) {
    %c0_i32 = arith.constant 0 : i32
    %c0_i32_0 = arith.constant 0 : i32
    %c0_i32_1 = arith.constant 0 : i32
    return %c0_i32, %c0_i32_0 : i32, i32
  }
  func.func @transform_10(%arg0: i32) -> (i32, i32) {
    %c0_i32 = arith.constant 0 : i32
    %c0_i32_0 = arith.constant 0 : i32
    %c0_i32_1 = arith.constant 0 : i32
    return %c0_i32, %c0_i32_0 : i32, i32
  }
  func.func @transform_11(%arg0: i32) -> (i32, i32) {
    %c0_i32 = arith.constant 0 : i32
    %c0_i32_0 = arith.constant 0 : i32
    %c0_i32_1 = arith.constant 0 : i32
    return %c0_i32, %c0_i32_0 : i32, i32
  }
  func.func @transform_12(%arg0: i32) -> (i32, i32) {
    %c0_i32 = arith.constant 0 : i32
    %c0_i32_0 = arith.constant 0 : i32
    %c0_i32_1 = arith.constant 0 : i32
    return %c0_i32, %c0_i32_0 : i32, i32
  }
  func.func @transform_13(%arg0: i32) -> (i32, i32) {
    %c0_i32 = arith.constant 0 : i32
    %c0_i32_0 = arith.constant 0 : i32
    %c0_i32_1 = arith.constant 0 : i32
    return %c0_i32, %c0_i32_0 : i32, i32
  }
  func.func @transform_14(%arg0: i32) -> (i32, i32) {
    %c0_i32 = arith.constant 0 : i32
    %c0_i32_0 = arith.constant 0 : i32
    %c0_i32_1 = arith.constant 0 : i32
    return %c0_i32, %c0_i32_0 : i32, i32
  }
  func.func @transform_15(%arg0: i32) -> (i32, i32, i32) {
    %c0_i32 = arith.constant 0 : i32
    %c0_i32_0 = arith.constant 0 : i32
    %c0_i32_1 = arith.constant 0 : i32
    return %arg0, %c0_i32, %c0_i32_0 : i32, i32, i32
  }
}

</mosaic_0001>

<llo_original>
// kernel: sub.8
$region0: #{sub.8}
  %s0 = inlined_call_operand.vmem [shape: s32[3,2,4,4], index: 0, kind: input, shape index: {}]
  %s1 = inlined_call_operand.vmem [shape: s32[3,32], index: 1, kind: output, shape index: {}]
  $region1: #{sub.8} parent=0
    #allocation0 [shape = 'u8[4096]{0}', space=vmem, size = 0x1000, scoped, tag = 'scoped mem for output reshape']
    #allocation1 [shape = 'u8[24576]{0}', space=vmem, size = 0x6000, scoped, tag = 'scoped mem for input reshape']
    %s3 = ssub.s32 16, 1
    %s4 = scalar_lea.vmem %s0, 20
    %v5 = vld [vmem:[%s4] sm:%s3]
    %s6 = scalar_lea.vmem [#allocation1], 40
    %7 = vst [vmem:[%s6] sm:%s3] %v5
    %s8 = scalar_lea.vmem %s0, 16
    %v9 = vld [vmem:[%s8] sm:%s3]
    %s10 = scalar_lea.vmem [#allocation1], 32
    %11 = vst [vmem:[%s10] sm:%s3] %v9
    %s12 = scalar_lea.vmem %s0, 12
    %v13 = vld [vmem:[%s12] sm:%s3]
    %s14 = scalar_lea.vmem [#allocation1], 24
    %15 = vst [vmem:[%s14] sm:%s3] %v13
    %s16 = scalar_lea.vmem %s0, 8
    %v17 = vld [vmem:[%s16] sm:%s3]
    %s18 = scalar_lea.vmem [#allocation1], 16
    %19 = vst [vmem:[%s18] sm:%s3] %v17
    %s20 = scalar_lea.vmem %s0, 4
    %v21 = vld [vmem:[%s20] sm:%s3]
    %s22 = scalar_lea.vmem [#allocation1], 8
    %23 = vst [vmem:[%s22] sm:%s3] %v21
    %v24 = vld [vmem:[%s0] sm:%s3]
    %25 = vst [vmem:[#allocation1] sm:%s3] %v24
    %s26 = smov 3
    %v27 = vld [vmem:[#allocation1] ss:$16 sm:%s26]
    %s28 = scalar_lea.vmem [#allocation1], 30
    %v29 = vld [vmem:[%s28] sm:$0x4]
    %vm30 = vcmask 1042434
    %v31 = vsel %vm30, %v29, %v27
    %vm32 = vcmask 31744
    %33 = vst.msk [vmem:[#allocation0] sm:$0x7] %vm32, %v31
    %s34 = scalar_lea.vmem [#allocation1], 11
    %s35 = smov 3
    %v36 = vld [vmem:[%s34] ss:$16 sm:%s35]
    %s37 = scalar_lea.vmem [#allocation1], 41
    %v38 = vld [vmem:[%s37] sm:$0x4]
    %vm39 = vcmask 1042434
    %v40 = vsel %vm39, %v38, %v36
    %41 = vrot.lane.b32.xlu0 %v40, 28
    %v42 = vpop.permute.xlu0 %41
    %vm43 = vcmask 261344
    %44 = vst.msk [vmem:[#allocation0] sm:$0x7] %vm43, %v42
    %s45 = scalar_lea.vmem [#allocation1], 10
    %s46 = smov 3
    %v47 = vld [vmem:[%s45] ss:$16 sm:%s46]
    %s48 = scalar_lea.vmem [#allocation1], 40
    %v49 = vld [vmem:[%s48] sm:$0x4]
    %vm50 = vcmask 1042434
    %v51 = vsel %vm50, %v49, %v47
    %52 = vrot.lane.b32.xlu0 %v51, 24
    %v53 = vpop.permute.xlu0 %52
    %vm54 = vcmask 228544
    %55 = vst.msk [vmem:[#allocation0] sm:$0x7] %vm54, %v53
    %s56 = scalar_lea.vmem [#allocation1], 9
    %s57 = smov 3
    %v58 = vld [vmem:[%s56] ss:$16 sm:%s57]
    %s59 = scalar_lea.vmem [#allocation1], 39
    %v60 = vld [vmem:[%s59] sm:$0x4]
    %vm61 = vcmask 1042434
    %v62 = vsel %vm61, %v60, %v58
    %63 = vrot.lane.b32.xlu0 %v62, 20
    %v64 = vpop.permute.xlu0 %63
    %vm65 = vcmask 195744
    %66 = vst.msk [vmem:[#allocation0] sm:$0x7] %vm65, %v64
    %s67 = scalar_lea.vmem [#allocation1], 8
    %s68 = smov 3
    %v69 = vld [vmem:[%s67] ss:$16 sm:%s68]
    %s70 = scalar_lea.vmem [#allocation1], 38
    %v71 = vld [vmem:[%s70] sm:$0x4]
    %vm72 = vcmask 1042434
    %v73 = vsel %vm72, %v71, %v69
    %74 = vrot.lane.b32.xlu0 %v73, 16
    %v75 = vpop.permute.xlu0 %74
    %vm76 = vcmask 162944
    %77 = vst.msk [vmem:[#allocation0] sm:$0x7] %vm76, %v75
    %s78 = scalar_lea.vmem [#allocation1], 3
    %s79 = smov 3
    %v80 = vld [vmem:[%s78] ss:$16 sm:%s79]
    %s81 = scalar_lea.vmem [#allocation1], 33
    %v82 = vld [vmem:[%s81] sm:$0x4]
    %vm83 = vcmask 1042434
    %v84 = vsel %vm83, %v82, %v80
    %85 = vrot.lane.b32.xlu0 %v84, 12
    %v86 = vpop.permute.xlu0 %85
    %vm87 = vcmask 130144
    %88 = vst.msk [vmem:[#allocation0] sm:$0x7] %vm87, %v86
    %s89 = scalar_lea.vmem [#allocation1], 2
    %s90 = smov 3
    %v91 = vld [vmem:[%s89] ss:$16 sm:%s90]
    %s92 = scalar_lea.vmem [#allocation1], 32
    %v93 = vld [vmem:[%s92] sm:$0x4]
    %vm94 = vcmask 1042434
    %v95 = vsel %vm94, %v93, %v91
    %96 = vrot.lane.b32.xlu0 %v95, 8
    %v97 = vpop.permute.xlu0 %96
    %vm98 = vcmask 97344
    %99 = vst.msk [vmem:[#allocation0] sm:$0x7] %vm98, %v97
    %s100 = scalar_lea.vmem [#allocation1], 1
    %s101 = smov 3
    %v102 = vld [vmem:[%s100] ss:$16 sm:%s101]
    %s103 = scalar_lea.vmem [#allocation1], 31
    %v104 = vld [vmem:[%s103] sm:$0x4]
    %vm105 = vcmask 1042434
    %v106 = vsel %vm105, %v104, %v102
    %107 = vrot.lane.b32.xlu0 %v106, 4
    %v108 = vpop.permute.xlu0 %107
    %vm109 = vcmask 64544
    %110 = vst.msk [vmem:[#allocation0] sm:$0x7] %vm109, %v108
    %s112 = ssub.s32 16, 1
    %v113 = vld [vmem:[#allocation0] sm:%s112]
    %s115 = ssub.s32 16, 1
    %116 = vst [vmem:[%s1] sm:%s115] %v113

// kernel: _lambda_.1
$region0: #{_lambda_.1}
  #allocation0 [shape = 'u32[]', space=smem, size = 0x4, offset = 0x4, fixed_abs, tag = 'smem constant byte address 0x4 - core index']
  #allocation1 [shape = 'u32[72,128]{1,0:T(1,128)}', space=vmem, size = 0x9000, scoped, tag = 'internal scratch']
  %s0 = inlined_call_operand.vmem [shape: f32[8,32,32], index: 0, kind: input, shape index: {}]
  %s1 = inlined_call_operand.vmem [shape: f32[1,32], index: 1, kind: input, shape index: {}, may-alias: {1,9}]
  %s2 = inlined_call_operand.vmem [shape: f32[1,32], index: 2, kind: input, shape index: {}, may-alias: {2,10,14}]
  %s3 = inlined_call_operand.vmem [shape: bf16[32,192], index: 3, kind: input, shape index: {}]
  %s4 = inlined_call_operand.vmem [shape: f32[32,192], index: 4, kind: input, shape index: {}]
  %s5 = inlined_call_operand.vmem [shape: f32[2,32,32], index: 5, kind: input, shape index: {}]
  %s6 = inlined_call_operand.vmem [shape: bf16[32,32], index: 6, kind: input, shape index: {}]
  %s7 = inlined_call_operand.vmem [shape: bf16[32,32], index: 7, kind: input, shape index: {}]
  %s8 = inlined_call_operand.vmem [shape: f32[1,32], index: 8, kind: input, shape index: {}]
  %s9 = inlined_call_operand.vmem [shape: f32[1,32], index: 9, kind: input, shape index: {}, may-alias: {1,9}]
  %s10 = inlined_call_operand.vmem [shape: f32[1,32], index: 10, kind: input, shape index: {}, may-alias: {2,10,14}]
  %s11 = inlined_call_operand.vmem [shape: bf16[32,128], index: 11, kind: input, shape index: {}]
  %s12 = inlined_call_operand.vmem [shape: f32[1,128], index: 12, kind: input, shape index: {}]
  %s13 = inlined_call_operand.vmem [shape: bf16[64,32], index: 13, kind: input, shape index: {}]
  %s14 = inlined_call_operand.vmem [shape: f32[1,32], index: 14, kind: input, shape index: {}, may-alias: {2,10,14}]
  %s15 = inlined_call_operand.vmem [shape: f32[8,32,32], index: 15, kind: output, shape index: {}]
  %s16 = sld [smem:[#allocation0]]
  $region70: #{_lambda_.1} parent=0
    _
  %s18 = ssub.s32 1, %s16
  %s19 = scalar_select 0, %s18, %s16
  // Predicated region
  $region2: #{_lambda_.1} parent=0 // pred_check
    _
  $region3: #{_lambda_.1} parent=0 // pred_check_branch
    %21 = sbr.rel (0) target = $region5
  $region4: #{_lambda_.1} parent=0 // pred_region
    _
  $region5: #{_lambda_.1} parent=0 // pred_fallthru
    _
  // Predicated region
  $region6: #{_lambda_.1} parent=0 // pred_check
    _
  $region7: #{_lambda_.1} parent=0 // pred_check_branch
    %23 = sbr.rel (0) target = $region9
  $region8: #{_lambda_.1} parent=0 // pred_region
    _
  $region9: #{_lambda_.1} parent=0 // pred_fallthru
    _
  // Predicated region
  $region10: #{_lambda_.1} parent=0 // pred_check
    _
  $region11: #{_lambda_.1} parent=0 // pred_check_branch
    %25 = sbr.rel (0) target = $region13
  $region12: #{_lambda_.1} parent=0 // pred_region
    _
  $region13: #{_lambda_.1} parent=0 // pred_fallthru
    _
  // Predicated region
  $region14: #{_lambda_.1} parent=0 // pred_check
    _
  $region15: #{_lambda_.1} parent=0 // pred_check_branch
    %27 = sbr.rel (0) target = $region17
  $region16: #{_lambda_.1} parent=0 // pred_region
    _
  $region17: #{_lambda_.1} parent=0 // pred_fallthru
    _
  // Predicated region
  $region18: #{_lambda_.1} parent=0 // pred_check
    _
  $region19: #{_lambda_.1} parent=0 // pred_check_branch
    %29 = sbr.rel (0) target = $region21
  $region20: #{_lambda_.1} parent=0 // pred_region
    _
  $region21: #{_lambda_.1} parent=0 // pred_fallthru
    _
  // Predicated region
  $region22: #{_lambda_.1} parent=0 // pred_check
    _
  $region23: #{_lambda_.1} parent=0 // pred_check_branch
    %31 = sbr.rel (0) target = $region25
  $region24: #{_lambda_.1} parent=0 // pred_region
    _
  $region25: #{_lambda_.1} parent=0 // pred_fallthru
    _
  // Predicated region
  $region26: #{_lambda_.1} parent=0 // pred_check
    _
  $region27: #{_lambda_.1} parent=0 // pred_check_branch
    %33 = sbr.rel (0) target = $region29
  $region28: #{_lambda_.1} parent=0 // pred_region
    _
  $region29: #{_lambda_.1} parent=0 // pred_fallthru
    _
  // Predicated region
  $region30: #{_lambda_.1} parent=0 // pred_check
    _
  $region31: #{_lambda_.1} parent=0 // pred_check_branch
    %35 = sbr.rel (0) target = $region33
  $region32: #{_lambda_.1} parent=0 // pred_region
    _
  $region33: #{_lambda_.1} parent=0 // pred_fallthru
    _
  // Predicated region
  $region34: #{_lambda_.1} parent=0 // pred_check
    _
  $region35: #{_lambda_.1} parent=0 // pred_check_branch
    %37 = sbr.rel (0) target = $region37
  $region36: #{_lambda_.1} parent=0 // pred_region
    _
  $region37: #{_lambda_.1} parent=0 // pred_fallthru
    _
  // Predicated region
  $region38: #{_lambda_.1} parent=0 // pred_check
    _
  $region39: #{_lambda_.1} parent=0 // pred_check_branch
    %39 = sbr.rel (0) target = $region41
  $region40: #{_lambda_.1} parent=0 // pred_region
    _
  $region41: #{_lambda_.1} parent=0 // pred_fallthru
    _
  // Predicated region
  $region42: #{_lambda_.1} parent=0 // pred_check
    _
  $region43: #{_lambda_.1} parent=0 // pred_check_branch
    %41 = sbr.rel (0) target = $region45
  $region44: #{_lambda_.1} parent=0 // pred_region
    _
  $region45: #{_lambda_.1} parent=0 // pred_fallthru
    _
  // Predicated region
  $region46: #{_lambda_.1} parent=0 // pred_check
    _
  $region47: #{_lambda_.1} parent=0 // pred_check_branch
    %43 = sbr.rel (0) target = $region49
  $region48: #{_lambda_.1} parent=0 // pred_region
    _
  $region49: #{_lambda_.1} parent=0 // pred_fallthru
    _
  // Predicated region
  $region50: #{_lambda_.1} parent=0 // pred_check
    _
  $region51: #{_lambda_.1} parent=0 // pred_check_branch
    %45 = sbr.rel (0) target = $region53
  $region52: #{_lambda_.1} parent=0 // pred_region
    _
  $region53: #{_lambda_.1} parent=0 // pred_fallthru
    _
  // Predicated region
  $region54: #{_lambda_.1} parent=0 // pred_check
    _
  $region55: #{_lambda_.1} parent=0 // pred_check_branch
    %47 = sbr.rel (0) target = $region57
  $region56: #{_lambda_.1} parent=0 // pred_region
    _
  $region57: #{_lambda_.1} parent=0 // pred_fallthru
    _
  // Predicated region
  $region58: #{_lambda_.1} parent=0 // pred_check
    _
  $region59: #{_lambda_.1} parent=0 // pred_check_branch
    %49 = sbr.rel (0) target = $region61
  $region60: #{_lambda_.1} parent=0 // pred_region
    _
  $region61: #{_lambda_.1} parent=0 // pred_fallthru
    _
  %v51 = vld [vmem:[%s0] sm:$0xff]
  %v52 = vld [vmem:[%s0 + $0x8] sm:$0xff]
  %v53 = vld [vmem:[%s0 + $0x10] sm:$0xff]
  %v54 = vld [vmem:[%s0 + $0x18] sm:$0xff]
  %v55 = vld [vmem:[%s0 + $0x20] sm:$0xff]
  %v56 = vld [vmem:[%s0 + $0x28] sm:$0xff]
  %v57 = vld [vmem:[%s0 + $0x30] sm:$0xff]
  %v58 = vld [vmem:[%s0 + $0x38] sm:$0xff]
  %v59 = vld [vmem:[%s0 + $0x40] sm:$0xff]
  %v60 = vld [vmem:[%s0 + $0x48] sm:$0xff]
  %v61 = vld [vmem:[%s0 + $0x50] sm:$0xff]
  %v62 = vld [vmem:[%s0 + $0x58] sm:$0xff]
  %v63 = vld [vmem:[%s0 + $0x60] sm:$0xff]
  %v64 = vld [vmem:[%s0 + $0x68] sm:$0xff]
  %v65 = vld [vmem:[%s0 + $0x70] sm:$0xff]
  %v66 = vld [vmem:[%s0 + $0x78] sm:$0xff]
  %v67 = vld [vmem:[%s0 + $0x80] sm:$0xff]
  %v68 = vld [vmem:[%s0 + $0x88] sm:$0xff]
  %v69 = vld [vmem:[%s0 + $0x90] sm:$0xff]
  %v70 = vld [vmem:[%s0 + $0x98] sm:$0xff]
  %v71 = vld [vmem:[%s0 + $0xa0] sm:$0xff]
  %v72 = vld [vmem:[%s0 + $0xa8] sm:$0xff]
  %v73 = vld [vmem:[%s0 + $0xb0] sm:$0xff]
  %v74 = vld [vmem:[%s0 + $0xb8] sm:$0xff]
  %v75 = vld [vmem:[%s0 + $0xc0] sm:$0xff]
  %v76 = vld [vmem:[%s0 + $0xc8] sm:$0xff]
  %v77 = vld [vmem:[%s0 + $0xd0] sm:$0xff]
  %v78 = vld [vmem:[%s0 + $0xd8] sm:$0xff]
  %v79 = vld [vmem:[%s0 + $0xe0] sm:$0xff]
  %v80 = vld [vmem:[%s0 + $0xe8] sm:$0xff]
  %v81 = vld [vmem:[%s0 + $0xf0] sm:$0xff]
  %v82 = vld [vmem:[%s0 + $0xf8] sm:$0xff]
  %v83 = vld [vmem:[%s1] sm:$0x1]
  %v84 = vld [vmem:[%s2] sm:$0x1]
  %vm85 = vcmask 261120
  %v86 = vsel %vm85, %v51, 0.0
  %87 = vadd.xlane.f32.xlu0 %v86
  %v88 = vpop.xlane.xlu0 %87
  %v89 = vsel %vm85, %v52, 0.0
  %90 = vadd.xlane.f32.xlu0 %v89
  %v91 = vpop.xlane.xlu0 %90
  %v92 = vsel %vm85, %v53, 0.0
  %93 = vadd.xlane.f32.xlu0 %v92
  %v94 = vpop.xlane.xlu0 %93
  %v95 = vsel %vm85, %v54, 0.0
  %96 = vadd.xlane.f32.xlu0 %v95
  %v97 = vpop.xlane.xlu0 %96
  %v98 = vsel %vm85, %v55, 0.0
  %99 = vadd.xlane.f32.xlu0 %v98
  %v100 = vpop.xlane.xlu0 %99
  %v101 = vsel %vm85, %v56, 0.0
  %102 = vadd.xlane.f32.xlu0 %v101
  %v103 = vpop.xlane.xlu0 %102
  %v104 = vsel %vm85, %v57, 0.0
  %105 = vadd.xlane.f32.xlu0 %v104
  %v106 = vpop.xlane.xlu0 %105
  %v107 = vsel %vm85, %v58, 0.0
  %108 = vadd.xlane.f32.xlu0 %v107
  %v109 = vpop.xlane.xlu0 %108
  %v110 = vsel %vm85, %v59, 0.0
  %111 = vadd.xlane.f32.xlu0 %v110
  %v112 = vpop.xlane.xlu0 %111
  %v113 = vsel %vm85, %v60, 0.0
  %114 = vadd.xlane.f32.xlu0 %v113
  %v115 = vpop.xlane.xlu0 %114
  %v116 = vsel %vm85, %v61, 0.0
  %117 = vadd.xlane.f32.xlu0 %v116
  %v118 = vpop.xlane.xlu0 %117
  %v119 = vsel %vm85, %v62, 0.0
  %120 = vadd.xlane.f32.xlu0 %v119
  %v121 = vpop.xlane.xlu0 %120
  %v122 = vsel %vm85, %v63, 0.0
  %123 = vadd.xlane.f32.xlu0 %v122
  %v124 = vpop.xlane.xlu0 %123
  %v125 = vsel %vm85, %v64, 0.0
  %126 = vadd.xlane.f32.xlu0 %v125
  %v127 = vpop.xlane.xlu0 %126
  %v128 = vsel %vm85, %v65, 0.0
  %129 = vadd.xlane.f32.xlu0 %v128
  %v130 = vpop.xlane.xlu0 %129
  %v131 = vsel %vm85, %v66, 0.0
  %132 = vadd.xlane.f32.xlu0 %v131
  %v133 = vpop.xlane.xlu0 %132
  %v134 = vsel %vm85, %v67, 0.0
  %135 = vadd.xlane.f32.xlu0 %v134
  %v136 = vpop.xlane.xlu0 %135
  %v137 = vsel %vm85, %v68, 0.0
  %138 = vadd.xlane.f32.xlu0 %v137
  %v139 = vpop.xlane.xlu0 %138
  %v140 = vsel %vm85, %v69, 0.0
  %141 = vadd.xlane.f32.xlu0 %v140
  %v142 = vpop.xlane.xlu0 %141
  %v143 = vsel %vm85, %v70, 0.0
  %144 = vadd.xlane.f32.xlu0 %v143
  %v145 = vpop.xlane.xlu0 %144
  %v146 = vsel %vm85, %v71, 0.0
  %147 = vadd.xlane.f32.xlu0 %v146
  %v148 = vpop.xlane.xlu0 %147
  %v149 = vsel %vm85, %v72, 0.0
  %150 = vadd.xlane.f32.xlu0 %v149
  %v151 = vpop.xlane.xlu0 %150
  %v152 = vsel %vm85, %v73, 0.0
  %153 = vadd.xlane.f32.xlu0 %v152
  %v154 = vpop.xlane.xlu0 %153
  %v155 = vsel %vm85, %v74, 0.0
  %156 = vadd.xlane.f32.xlu0 %v155
  %v157 = vpop.xlane.xlu0 %156
  %v158 = vsel %vm85, %v75, 0.0
  %159 = vadd.xlane.f32.xlu0 %v158
  %v160 = vpop.xlane.xlu0 %159
  %v161 = vsel %vm85, %v76, 0.0
  %162 = vadd.xlane.f32.xlu0 %v161
  %v163 = vpop.xlane.xlu0 %162
  %v164 = vsel %vm85, %v77, 0.0
  %165 = vadd.xlane.f32.xlu0 %v164
  %v166 = vpop.xlane.xlu0 %165
  %v167 = vsel %vm85, %v78, 0.0
  %168 = vadd.xlane.f32.xlu0 %v167
  %v169 = vpop.xlane.xlu0 %168
  %v170 = vsel %vm85, %v79, 0.0
  %171 = vadd.xlane.f32.xlu0 %v170
  %v172 = vpop.xlane.xlu0 %171
  %v173 = vsel %vm85, %v80, 0.0
  %174 = vadd.xlane.f32.xlu0 %v173
  %v175 = vpop.xlane.xlu0 %174
  %v176 = vsel %vm85, %v81, 0.0
  %177 = vadd.xlane.f32.xlu0 %v176
  %v178 = vpop.xlane.xlu0 %177
  %v179 = vsel %vm85, %v82, 0.0
  %180 = vadd.xlane.f32.xlu0 %v179
  %v181 = vpop.xlane.xlu0 %180
  %v182 = vrcp.pop 32.0
  %v183 = vmul.f32 32.0, %v182
  %v184 = vsub.f32 1.0, %v183
  %v185 = vmul.f32 %v182, %v184
  %v186 = vadd.f32 %v182, %v185
  %vm187 = vweird.f32 %v182
  %v188 = vsel %vm187, %v182, %v186
  %v189 = vmul.f32 %v88, %v188
  %v190 = vmul.f32 %v91, %v188
  %v191 = vmul.f32 %v94, %v188
  %v192 = vmul.f32 %v97, %v188
  %v193 = vmul.f32 %v100, %v188
  %v194 = vmul.f32 %v103, %v188
  %v195 = vmul.f32 %v106, %v188
  %v196 = vmul.f32 %v109, %v188
  %v197 = vmul.f32 %v112, %v188
  %v198 = vmul.f32 %v115, %v188
  %v199 = vmul.f32 %v118, %v188
  %v200 = vmul.f32 %v121, %v188
  %v201 = vmul.f32 %v124, %v188
  %v202 = vmul.f32 %v127, %v188
  %v203 = vmul.f32 %v130, %v188
  %v204 = vmul.f32 %v133, %v188
  %v205 = vmul.f32 %v136, %v188
  %v206 = vmul.f32 %v139, %v188
  %v207 = vmul.f32 %v142, %v188
  %v208 = vmul.f32 %v145, %v188
  %v209 = vmul.f32 %v148, %v188
  %v210 = vmul.f32 %v151, %v188
  %v211 = vmul.f32 %v154, %v188
  %v212 = vmul.f32 %v157, %v188
  %v213 = vmul.f32 %v160, %v188
  %v214 = vmul.f32 %v163, %v188
  %v215 = vmul.f32 %v166, %v188
  %v216 = vmul.f32 %v169, %v188
  %v217 = vmul.f32 %v172, %v188
  %v218 = vmul.f32 %v175, %v188
  %v219 = vmul.f32 %v178, %v188
  %v220 = vmul.f32 %v181, %v188
  %v221 = vsub.f32 %v51, %v189
  %v222 = vsub.f32 %v52, %v190
  %v223 = vsub.f32 %v53, %v191
  %v224 = vsub.f32 %v54, %v192
  %v225 = vsub.f32 %v55, %v193
  %v226 = vsub.f32 %v56, %v194
  %v227 = vsub.f32 %v57, %v195
  %v228 = vsub.f32 %v58, %v196
  %v229 = vsub.f32 %v59, %v197
  %v230 = vsub.f32 %v60, %v198
  %v231 = vsub.f32 %v61, %v199
  %v232 = vsub.f32 %v62, %v200
  %v233 = vsub.f32 %v63, %v201
  %v234 = vsub.f32 %v64, %v202
  %v235 = vsub.f32 %v65, %v203
  %v236 = vsub.f32 %v66, %v204
  %v237 = vsub.f32 %v67, %v205
  %v238 = vsub.f32 %v68, %v206
  %v239 = vsub.f32 %v69, %v207
  %v240 = vsub.f32 %v70, %v208
  %v241 = vsub.f32 %v71, %v209
  %v242 = vsub.f32 %v72, %v210
  %v243 = vsub.f32 %v73, %v211
  %v244 = vsub.f32 %v74, %v212
  %v245 = vsub.f32 %v75, %v213
  %v246 = vsub.f32 %v76, %v214
  %v247 = vsub.f32 %v77, %v215
  %v248 = vsub.f32 %v78, %v216
  %v249 = vsub.f32 %v79, %v217
  %v250 = vsub.f32 %v80, %v218
  %v251 = vsub.f32 %v81, %v219
  %v252 = vsub.f32 %v82, %v220
  %v253 = vmul.f32 %v221, %v221
  %v254 = vmul.f32 %v222, %v222
  %v255 = vmul.f32 %v223, %v223
  %v256 = vmul.f32 %v224, %v224
  %v257 = vmul.f32 %v225, %v225
  %v258 = vmul.f32 %v226, %v226
  %v259 = vmul.f32 %v227, %v227
  %v260 = vmul.f32 %v228, %v228
  %v261 = vmul.f32 %v229, %v229
  %v262 = vmul.f32 %v230, %v230
  %v263 = vmul.f32 %v231, %v231
  %v264 = vmul.f32 %v232, %v232
  %v265 = vmul.f32 %v233, %v233
  %v266 = vmul.f32 %v234, %v234
  %v267 = vmul.f32 %v235, %v235
  %v268 = vmul.f32 %v236, %v236
  %v269 = vmul.f32 %v237, %v237
  %v270 = vmul.f32 %v238, %v238
  %v271 = vmul.f32 %v239, %v239
  %v272 = vmul.f32 %v240, %v240
  %v273 = vmul.f32 %v241, %v241
  %v274 = vmul.f32 %v242, %v242
  %v275 = vmul.f32 %v243, %v243
  %v276 = vmul.f32 %v244, %v244
  %v277 = vmul.f32 %v245, %v245
  %v278 = vmul.f32 %v246, %v246
  %v279 = vmul.f32 %v247, %v247
  %v280 = vmul.f32 %v248, %v248
  %v281 = vmul.f32 %v249, %v249
  %v282 = vmul.f32 %v250, %v250
  %v283 = vmul.f32 %v251, %v251
  %v284 = vmul.f32 %v252, %v252
  %v285 = vsel %vm85, %v253, 0.0
  %286 = vadd.xlane.f32.xlu0 %v285
  %v287 = vpop.xlane.xlu0 %286
  %v288 = vsel %vm85, %v254, 0.0
  %289 = vadd.xlane.f32.xlu0 %v288
  %v290 = vpop.xlane.xlu0 %289
  %v291 = vsel %vm85, %v255, 0.0
  %292 = vadd.xlane.f32.xlu0 %v291
  %v293 = vpop.xlane.xlu0 %292
  %v294 = vsel %vm85, %v256, 0.0
  %295 = vadd.xlane.f32.xlu0 %v294
  %v296 = vpop.xlane.xlu0 %295
  %v297 = vsel %vm85, %v257, 0.0
  %298 = vadd.xlane.f32.xlu0 %v297
  %v299 = vpop.xlane.xlu0 %298
  %v300 = vsel %vm85, %v258, 0.0
  %301 = vadd.xlane.f32.xlu0 %v300
  %v302 = vpop.xlane.xlu0 %301
  %v303 = vsel %vm85, %v259, 0.0
  %304 = vadd.xlane.f32.xlu0 %v303
  %v305 = vpop.xlane.xlu0 %304
  %v306 = vsel %vm85, %v260, 0.0
  %307 = vadd.xlane.f32.xlu0 %v306
  %v308 = vpop.xlane.xlu0 %307
  %v309 = vsel %vm85, %v261, 0.0
  %310 = vadd.xlane.f32.xlu0 %v309
  %v311 = vpop.xlane.xlu0 %310
  %v312 = vsel %vm85, %v262, 0.0
  %313 = vadd.xlane.f32.xlu0 %v312
  %v314 = vpop.xlane.xlu0 %313
  %v315 = vsel %vm85, %v263, 0.0
  %316 = vadd.xlane.f32.xlu0 %v315
  %v317 = vpop.xlane.xlu0 %316
  %v318 = vsel %vm85, %v264, 0.0
  %319 = vadd.xlane.f32.xlu0 %v318
  %v320 = vpop.xlane.xlu0 %319
  %v321 = vsel %vm85, %v265, 0.0
  %322 = vadd.xlane.f32.xlu0 %v321
  %v323 = vpop.xlane.xlu0 %322
  %v324 = vsel %vm85, %v266, 0.0
  %325 = vadd.xlane.f32.xlu0 %v324
  %v326 = vpop.xlane.xlu0 %325
  %v327 = vsel %vm85, %v267, 0.0
  %328 = vadd.xlane.f32.xlu0 %v327
  %v329 = vpop.xlane.xlu0 %328
  %v330 = vsel %vm85, %v268, 0.0
  %331 = vadd.xlane.f32.xlu0 %v330
  %v332 = vpop.xlane.xlu0 %331
  %v333 = vsel %vm85, %v269, 0.0
  %334 = vadd.xlane.f32.xlu0 %v333
  %v335 = vpop.xlane.xlu0 %334
  %v336 = vsel %vm85, %v270, 0.0
  %337 = vadd.xlane.f32.xlu0 %v336
  %v338 = vpop.xlane.xlu0 %337
  %v339 = vsel %vm85, %v271, 0.0
  %340 = vadd.xlane.f32.xlu0 %v339
  %v341 = vpop.xlane.xlu0 %340
  %v342 = vsel %vm85, %v272, 0.0
  %343 = vadd.xlane.f32.xlu0 %v342
  %v344 = vpop.xlane.xlu0 %343
  %v345 = vsel %vm85, %v273, 0.0
  %346 = vadd.xlane.f32.xlu0 %v345
  %v347 = vpop.xlane.xlu0 %346
  %v348 = vsel %vm85, %v274, 0.0
  %349 = vadd.xlane.f32.xlu0 %v348
  %v350 = vpop.xlane.xlu0 %349
  %v351 = vsel %vm85, %v275, 0.0
  %352 = vadd.xlane.f32.xlu0 %v351
  %v353 = vpop.xlane.xlu0 %352
  %v354 = vsel %vm85, %v276, 0.0
  %355 = vadd.xlane.f32.xlu0 %v354
  %v356 = vpop.xlane.xlu0 %355
  %v357 = vsel %vm85, %v277, 0.0
  %358 = vadd.xlane.f32.xlu0 %v357
  %v359 = vpop.xlane.xlu0 %358
  %v360 = vsel %vm85, %v278, 0.0
  %361 = vadd.xlane.f32.xlu0 %v360
  %v362 = vpop.xlane.xlu0 %361
  %v363 = vsel %vm85, %v279, 0.0
  %364 = vadd.xlane.f32.xlu0 %v363
  %v365 = vpop.xlane.xlu0 %364
  %v366 = vsel %vm85, %v280, 0.0
  %367 = vadd.xlane.f32.xlu0 %v366
  %v368 = vpop.xlane.xlu0 %367
  %v369 = vsel %vm85, %v281, 0.0
  %370 = vadd.xlane.f32.xlu0 %v369
  %v371 = vpop.xlane.xlu0 %370
  %v372 = vsel %vm85, %v282, 0.0
  %373 = vadd.xlane.f32.xlu0 %v372
  %v374 = vpop.xlane.xlu0 %373
  %v375 = vsel %vm85, %v283, 0.0
  %376 = vadd.xlane.f32.xlu0 %v375
  %v377 = vpop.xlane.xlu0 %376
  %v378 = vsel %vm85, %v284, 0.0
  %379 = vadd.xlane.f32.xlu0 %v378
  %v380 = vpop.xlane.xlu0 %379
  %v381 = vmul.f32 %v287, %v188
  %v382 = vmul.f32 %v290, %v188
  %v383 = vmul.f32 %v293, %v188
  %v384 = vmul.f32 %v296, %v188
  %v385 = vmul.f32 %v299, %v188
  %v386 = vmul.f32 %v302, %v188
  %v387 = vmul.f32 %v305, %v188
  %v388 = vmul.f32 %v308, %v188
  %v389 = vmul.f32 %v311, %v188
  %v390 = vmul.f32 %v314, %v188
  %v391 = vmul.f32 %v317, %v188
  %v392 = vmul.f32 %v320, %v188
  %v393 = vmul.f32 %v323, %v188
  %v394 = vmul.f32 %v326, %v188
  %v395 = vmul.f32 %v329, %v188
  %v396 = vmul.f32 %v332, %v188
  %v397 = vmul.f32 %v335, %v188
  %v398 = vmul.f32 %v338, %v188
  %v399 = vmul.f32 %v341, %v188
  %v400 = vmul.f32 %v344, %v188
  %v401 = vmul.f32 %v347, %v188
  %v402 = vmul.f32 %v350, %v188
  %v403 = vmul.f32 %v353, %v188
  %v404 = vmul.f32 %v356, %v188
  %v405 = vmul.f32 %v359, %v188
  %v406 = vmul.f32 %v362, %v188
  %v407 = vmul.f32 %v365, %v188
  %v408 = vmul.f32 %v368, %v188
  %v409 = vmul.f32 %v371, %v188
  %v410 = vmul.f32 %v374, %v188
  %v411 = vmul.f32 %v377, %v188
  %v412 = vmul.f32 %v380, %v188
  %v413 = vadd.f32 %v381, 1e-05
  %v414 = vadd.f32 %v382, 1e-05
  %v415 = vadd.f32 %v383, 1e-05
  %v416 = vadd.f32 %v384, 1e-05
  %v417 = vadd.f32 %v385, 1e-05
  %v418 = vadd.f32 %v386, 1e-05
  %v419 = vadd.f32 %v387, 1e-05
  %v420 = vadd.f32 %v388, 1e-05
  %v421 = vadd.f32 %v389, 1e-05
  %v422 = vadd.f32 %v390, 1e-05
  %v423 = vadd.f32 %v391, 1e-05
  %v424 = vadd.f32 %v392, 1e-05
  %v425 = vadd.f32 %v393, 1e-05
  %v426 = vadd.f32 %v394, 1e-05
  %v427 = vadd.f32 %v395, 1e-05
  %v428 = vadd.f32 %v396, 1e-05
  %v429 = vadd.f32 %v397, 1e-05
  %v430 = vadd.f32 %v398, 1e-05
  %v431 = vadd.f32 %v399, 1e-05
  %v432 = vadd.f32 %v400, 1e-05
  %v433 = vadd.f32 %v401, 1e-05
  %v434 = vadd.f32 %v402, 1e-05
  %v435 = vadd.f32 %v403, 1e-05
  %v436 = vadd.f32 %v404, 1e-05
  %v437 = vadd.f32 %v405, 1e-05
  %v438 = vadd.f32 %v406, 1e-05
  %v439 = vadd.f32 %v407, 1e-05
  %v440 = vadd.f32 %v408, 1e-05
  %v441 = vadd.f32 %v409, 1e-05
  %v442 = vadd.f32 %v410, 1e-05
  %v443 = vadd.f32 %v411, 1e-05
  %v444 = vadd.f32 %v412, 1e-05
  %v445 = vrsqrt.pop %v413
  %v446 = vmul.f32 %v445, %v413
  %v447 = vmul.f32 %v446, %v445
  %v448 = vmul.f32 0.5, %v447
  %v449 = vsub.f32 1.5, %v448
  %v450 = vmul.f32 %v445, %v449
  %vm451 = vweird.f32 %v413
  %vm452 = vweird.f32 %v445
  %vm453 = vmor %vm451, %vm452
  %v454 = vsel %vm453, %v445, %v450
  %v455 = vrsqrt.pop %v414
  %v456 = vmul.f32 %v455, %v414
  %v457 = vmul.f32 %v456, %v455
  %v458 = vmul.f32 0.5, %v457
  %v459 = vsub.f32 1.5, %v458
  %v460 = vmul.f32 %v455, %v459
  %vm461 = vweird.f32 %v414
  %vm462 = vweird.f32 %v455
  %vm463 = vmor %vm461, %vm462
  %v464 = vsel %vm463, %v455, %v460
  %v465 = vrsqrt.pop %v415
  %v466 = vmul.f32 %v465, %v415
  %v467 = vmul.f32 %v466, %v465
  %v468 = vmul.f32 0.5, %v467
  %v469 = vsub.f32 1.5, %v468
  %v470 = vmul.f32 %v465, %v469
  %vm471 = vweird.f32 %v415
  %vm472 = vweird.f32 %v465
  %vm473 = vmor %vm471, %vm472
  %v474 = vsel %vm473, %v465, %v470
  %v475 = vrsqrt.pop %v416
  %v476 = vmul.f32 %v475, %v416
  %v477 = vmul.f32 %v476, %v475
  %v478 = vmul.f32 0.5, %v477
  %v479 = vsub.f32 1.5, %v478
  %v480 = vmul.f32 %v475, %v479
  %vm481 = vweird.f32 %v416
  %vm482 = vweird.f32 %v475
  %vm483 = vmor %vm481, %vm482
  %v484 = vsel %vm483, %v475, %v480
  %v485 = vrsqrt.pop %v417
  %v486 = vmul.f32 %v485, %v417
  %v487 = vmul.f32 %v486, %v485
  %v488 = vmul.f32 0.5, %v487
  %v489 = vsub.f32 1.5, %v488
  %v490 = vmul.f32 %v485, %v489
  %vm491 = vweird.f32 %v417
  %vm492 = vweird.f32 %v485
  %vm493 = vmor %vm491, %vm492
  %v494 = vsel %vm493, %v485, %v490
  %v495 = vrsqrt.pop %v418
  %v496 = vmul.f32 %v495, %v418
  %v497 = vmul.f32 %v496, %v495
  %v498 = vmul.f32 0.5, %v497
  %v499 = vsub.f32 1.5, %v498
  %v500 = vmul.f32 %v495, %v499
  %vm501 = vweird.f32 %v418
  %vm502 = vweird.f32 %v495
  %vm503 = vmor %vm501, %vm502
  %v504 = vsel %vm503, %v495, %v500
  %v505 = vrsqrt.pop %v419
  %v506 = vmul.f32 %v505, %v419
  %v507 = vmul.f32 %v506, %v505
  %v508 = vmul.f32 0.5, %v507
  %v509 = vsub.f32 1.5, %v508
  %v510 = vmul.f32 %v505, %v509
  %vm511 = vweird.f32 %v419
  %vm512 = vweird.f32 %v505
  %vm513 = vmor %vm511, %vm512
  %v514 = vsel %vm513, %v505, %v510
  %v515 = vrsqrt.pop %v420
  %v516 = vmul.f32 %v515, %v420
  %v517 = vmul.f32 %v516, %v515
  %v518 = vmul.f32 0.5, %v517
  %v519 = vsub.f32 1.5, %v518
  %v520 = vmul.f32 %v515, %v519
  %vm521 = vweird.f32 %v420
  %vm522 = vweird.f32 %v515
  %vm523 = vmor %vm521, %vm522
  %v524 = vsel %vm523, %v515, %v520
  %v525 = vrsqrt.pop %v421
  %v526 = vmul.f32 %v525, %v421
  %v527 = vmul.f32 %v526, %v525
  %v528 = vmul.f32 0.5, %v527
  %v529 = vsub.f32 1.5, %v528
  %v530 = vmul.f32 %v525, %v529
  %vm531 = vweird.f32 %v421
  %vm532 = vweird.f32 %v525
  %vm533 = vmor %vm531, %vm532
  %v534 = vsel %vm533, %v525, %v530
  %v535 = vrsqrt.pop %v422
  %v536 = vmul.f32 %v535, %v422
  %v537 = vmul.f32 %v536, %v535
  %v538 = vmul.f32 0.5, %v537
  %v539 = vsub.f32 1.5, %v538
  %v540 = vmul.f32 %v535, %v539
  %vm541 = vweird.f32 %v422
  %vm542 = vweird.f32 %v535
  %vm543 = vmor %vm541, %vm542
  %v544 = vsel %vm543, %v535, %v540
  %v545 = vrsqrt.pop %v423
  %v546 = vmul.f32 %v545, %v423
  %v547 = vmul.f32 %v546, %v545
  %v548 = vmul.f32 0.5, %v547
  %v549 = vsub.f32 1.5, %v548
  %v550 = vmul.f32 %v545, %v549
  %vm551 = vweird.f32 %v423
  %vm552 = vweird.f32 %v545
  %vm553 = vmor %vm551, %vm552
  %v554 = vsel %vm553, %v545, %v550
  %v555 = vrsqrt.pop %v424
  %v556 = vmul.f32 %v555, %v424
  %v557 = vmul.f32 %v556, %v555
  %v558 = vmul.f32 0.5, %v557
  %v559 = vsub.f32 1.5, %v558
  %v560 = vmul.f32 %v555, %v559
  %vm561 = vweird.f32 %v424
  %vm562 = vweird.f32 %v555
  %vm563 = vmor %vm561, %vm562
  %v564 = vsel %vm563, %v555, %v560
  %v565 = vrsqrt.pop %v425
  %v566 = vmul.f32 %v565, %v425
  %v567 = vmul.f32 %v566, %v565
  %v568 = vmul.f32 0.5, %v567
  %v569 = vsub.f32 1.5, %v568
  %v570 = vmul.f32 %v565, %v569
  %vm571 = vweird.f32 %v425
  %vm572 = vweird.f32 %v565
  %vm573 = vmor %vm571, %vm572
  %v574 = vsel %vm573, %v565, %v570
  %v575 = vrsqrt.pop %v426
  %v576 = vmul.f32 %v575, %v426
  %v577 = vmul.f32 %v576, %v575
  %v578 = vmul.f32 0.5, %v577
  %v579 = vsub.f32 1.5, %v578
  %v580 = vmul.f32 %v575, %v579
  %vm581 = vweird.f32 %v426
  %vm582 = vweird.f32 %v575
  %vm583 = vmor %vm581, %vm582
  %v584 = vsel %vm583, %v575, %v580
  %v585 = vrsqrt.pop %v427
  %v586 = vmul.f32 %v585, %v427
  %v587 = vmul.f32 %v586, %v585
  %v588 = vmul.f32 0.5, %v587
  %v589 = vsub.f32 1.5, %v588
  %v590 = vmul.f32 %v585, %v589
  %vm591 = vweird.f32 %v427
  %vm592 = vweird.f32 %v585
  %vm593 = vmor %vm591, %vm592
  %v594 = vsel %vm593, %v585, %v590
  %v595 = vrsqrt.pop %v428
  %v596 = vmul.f32 %v595, %v428
  %v597 = vmul.f32 %v596, %v595
  %v598 = vmul.f32 0.5, %v597
  %v599 = vsub.f32 1.5, %v598
  %v600 = vmul.f32 %v595, %v599
  %vm601 = vweird.f32 %v428
  %vm602 = vweird.f32 %v595
  %vm603 = vmor %vm601, %vm602
  %v604 = vsel %vm603, %v595, %v600
  %v605 = vrsqrt.pop %v429
  %v606 = vmul.f32 %v605, %v429
  %v607 = vmul.f32 %v606, %v605
  %v608 = vmul.f32 0.5, %v607
  %v609 = vsub.f32 1.5, %v608
  %v610 = vmul.f32 %v605, %v609
  %vm611 = vweird.f32 %v429
  %vm612 = vweird.f32 %v605
  %vm613 = vmor %vm611, %vm612
  %v614 = vsel %vm613, %v605, %v610
  %v615 = vrsqrt.pop %v430
  %v616 = vmul.f32 %v615, %v430
  %v617 = vmul.f32 %v616, %v615
  %v618 = vmul.f32 0.5, %v617
  %v619 = vsub.f32 1.5, %v618
  %v620 = vmul.f32 %v615, %v619
  %vm621 = vweird.f32 %v430
  %vm622 = vweird.f32 %v615
  %vm623 = vmor %vm621, %vm622
  %v624 = vsel %vm623, %v615, %v620
  %v625 = vrsqrt.pop %v431
  %v626 = vmul.f32 %v625, %v431
  %v627 = vmul.f32 %v626, %v625
  %v628 = vmul.f32 0.5, %v627
  %v629 = vsub.f32 1.5, %v628
  %v630 = vmul.f32 %v625, %v629
  %vm631 = vweird.f32 %v431
  %vm632 = vweird.f32 %v625
  %vm633 = vmor %vm631, %vm632
  %v634 = vsel %vm633, %v625, %v630
  %v635 = vrsqrt.pop %v432
  %v636 = vmul.f32 %v635, %v432
  %v637 = vmul.f32 %v636, %v635
  %v638 = vmul.f32 0.5, %v637
  %v639 = vsub.f32 1.5, %v638
  %v640 = vmul.f32 %v635, %v639
  %vm641 = vweird.f32 %v432
  %vm642 = vweird.f32 %v635
  %vm643 = vmor %vm641, %vm642
  %v644 = vsel %vm643, %v635, %v640
  %v645 = vrsqrt.pop %v433
  %v646 = vmul.f32 %v645, %v433
  %v647 = vmul.f32 %v646, %v645
  %v648 = vmul.f32 0.5, %v647
  %v649 = vsub.f32 1.5, %v648
  %v650 = vmul.f32 %v645, %v649
  %vm651 = vweird.f32 %v433
  %vm652 = vweird.f32 %v645
  %vm653 = vmor %vm651, %vm652
  %v654 = vsel %vm653, %v645, %v650
  %v655 = vrsqrt.pop %v434
  %v656 = vmul.f32 %v655, %v434
  %v657 = vmul.f32 %v656, %v655
  %v658 = vmul.f32 0.5, %v657
  %v659 = vsub.f32 1.5, %v658
  %v660 = vmul.f32 %v655, %v659
  %vm661 = vweird.f32 %v434
  %vm662 = vweird.f32 %v655
  %vm663 = vmor %vm661, %vm662
  %v664 = vsel %vm663, %v655, %v660
  %v665 = vrsqrt.pop %v435
  %v666 = vmul.f32 %v665, %v435
  %v667 = vmul.f32 %v666, %v665
  %v668 = vmul.f32 0.5, %v667
  %v669 = vsub.f32 1.5, %v668
  %v670 = vmul.f32 %v665, %v669
  %vm671 = vweird.f32 %v435
  %vm672 = vweird.f32 %v665
  %vm673 = vmor %vm671, %vm672
  %v674 = vsel %vm673, %v665, %v670
  %v675 = vrsqrt.pop %v436
  %v676 = vmul.f32 %v675, %v436
  %v677 = vmul.f32 %v676, %v675
  %v678 = vmul.f32 0.5, %v677
  %v679 = vsub.f32 1.5, %v678
  %v680 = vmul.f32 %v675, %v679
  %vm681 = vweird.f32 %v436
  %vm682 = vweird.f32 %v675
  %vm683 = vmor %vm681, %vm682
  %v684 = vsel %vm683, %v675, %v680
  %v685 = vrsqrt.pop %v437
  %v686 = vmul.f32 %v685, %v437
  %v687 = vmul.f32 %v686, %v685
  %v688 = vmul.f32 0.5, %v687
  %v689 = vsub.f32 1.5, %v688
  %v690 = vmul.f32 %v685, %v689
  %vm691 = vweird.f32 %v437
  %vm692 = vweird.f32 %v685
  %vm693 = vmor %vm691, %vm692
  %v694 = vsel %vm693, %v685, %v690
  %v695 = vrsqrt.pop %v438
  %v696 = vmul.f32 %v695, %v438
  %v697 = vmul.f32 %v696, %v695
  %v698 = vmul.f32 0.5, %v697
  %v699 = vsub.f32 1.5, %v698
  %v700 = vmul.f32 %v695, %v699
  %vm701 = vweird.f32 %v438
  %vm702 = vweird.f32 %v695
  %vm703 = vmor %vm701, %vm702
  %v704 = vsel %vm703, %v695, %v700
  %v705 = vrsqrt.pop %v439
  %v706 = vmul.f32 %v705, %v439
  %v707 = vmul.f32 %v706, %v705
  %v708 = vmul.f32 0.5, %v707
  %v709 = vsub.f32 1.5, %v708
  %v710 = vmul.f32 %v705, %v709
  %vm711 = vweird.f32 %v439
  %vm712 = vweird.f32 %v705
  %vm713 = vmor %vm711, %vm712
  %v714 = vsel %vm713, %v705, %v710
  %v715 = vrsqrt.pop %v440
  %v716 = vmul.f32 %v715, %v440
  %v717 = vmul.f32 %v716, %v715
  %v718 = vmul.f32 0.5, %v717
  %v719 = vsub.f32 1.5, %v718
  %v720 = vmul.f32 %v715, %v719
  %vm721 = vweird.f32 %v440
  %vm722 = vweird.f32 %v715
  %vm723 = vmor %vm721, %vm722
  %v724 = vsel %vm723, %v715, %v720
  %v725 = vrsqrt.pop %v441
  %v726 = vmul.f32 %v725, %v441
  %v727 = vmul.f32 %v726, %v725
  %v728 = vmul.f32 0.5, %v727
  %v729 = vsub.f32 1.5, %v728
  %v730 = vmul.f32 %v725, %v729
  %vm731 = vweird.f32 %v441
  %vm732 = vweird.f32 %v725
  %vm733 = vmor %vm731, %vm732
  %v734 = vsel %vm733, %v725, %v730
  %v735 = vrsqrt.pop %v442
  %v736 = vmul.f32 %v735, %v442
  %v737 = vmul.f32 %v736, %v735
  %v738 = vmul.f32 0.5, %v737
  %v739 = vsub.f32 1.5, %v738
  %v740 = vmul.f32 %v735, %v739
  %vm741 = vweird.f32 %v442
  %vm742 = vweird.f32 %v735
  %vm743 = vmor %vm741, %vm742
  %v744 = vsel %vm743, %v735, %v740
  %v745 = vrsqrt.pop %v443
  %v746 = vmul.f32 %v745, %v443
  %v747 = vmul.f32 %v746, %v745
  %v748 = vmul.f32 0.5, %v747
  %v749 = vsub.f32 1.5, %v748
  %v750 = vmul.f32 %v745, %v749
  %vm751 = vweird.f32 %v443
  %vm752 = vweird.f32 %v745
  %vm753 = vmor %vm751, %vm752
  %v754 = vsel %vm753, %v745, %v750
  %v755 = vrsqrt.pop %v444
  %v756 = vmul.f32 %v755, %v444
  %v757 = vmul.f32 %v756, %v755
  %v758 = vmul.f32 0.5, %v757
  %v759 = vsub.f32 1.5, %v758
  %v760 = vmul.f32 %v755, %v759
  %vm761 = vweird.f32 %v444
  %vm762 = vweird.f32 %v755
  %vm763 = vmor %vm761, %vm762
  %v764 = vsel %vm763, %v755, %v760
  %v765 = vmul.f32 %v221, %v454
  %v766 = vmul.f32 %v222, %v464
  %v767 = vmul.f32 %v223, %v474
  %v768 = vmul.f32 %v224, %v484
  %v769 = vmul.f32 %v225, %v494
  %v770 = vmul.f32 %v226, %v504
  %v771 = vmul.f32 %v227, %v514
  %v772 = vmul.f32 %v228, %v524
  %v773 = vmul.f32 %v229, %v534
  %v774 = vmul.f32 %v230, %v544
  %v775 = vmul.f32 %v231, %v554
  %v776 = vmul.f32 %v232, %v564
  %v777 = vmul.f32 %v233, %v574
  %v778 = vmul.f32 %v234, %v584
  %v779 = vmul.f32 %v235, %v594
  %v780 = vmul.f32 %v236, %v604
  %v781 = vmul.f32 %v237, %v614
  %v782 = vmul.f32 %v238, %v624
  %v783 = vmul.f32 %v239, %v634
  %v784 = vmul.f32 %v240, %v644
  %v785 = vmul.f32 %v241, %v654
  %v786 = vmul.f32 %v242, %v664
  %v787 = vmul.f32 %v243, %v674
  %v788 = vmul.f32 %v244, %v684
  %v789 = vmul.f32 %v245, %v694
  %v790 = vmul.f32 %v246, %v704
  %v791 = vmul.f32 %v247, %v714
  %v792 = vmul.f32 %v248, %v724
  %v793 = vmul.f32 %v249, %v734
  %v794 = vmul.f32 %v250, %v744
  %v795 = vmul.f32 %v251, %v754
  %v796 = vmul.f32 %v252, %v764
  %v798 = vperm.slane %v83, 0
  %v800 = vmul.f32 %v765, %v798
  %v801 = vmul.f32 %v766, %v798
  %v802 = vmul.f32 %v767, %v798
  %v803 = vmul.f32 %v768, %v798
  %v804 = vmul.f32 %v769, %v798
  %v805 = vmul.f32 %v770, %v798
  %v806 = vmul.f32 %v771, %v798
  %v807 = vmul.f32 %v772, %v798
  %v808 = vmul.f32 %v773, %v798
  %v809 = vmul.f32 %v774, %v798
  %v810 = vmul.f32 %v775, %v798
  %v811 = vmul.f32 %v776, %v798
  %v812 = vmul.f32 %v777, %v798
  %v813 = vmul.f32 %v778, %v798
  %v814 = vmul.f32 %v779, %v798
  %v815 = vmul.f32 %v780, %v798
  %v816 = vmul.f32 %v781, %v798
  %v817 = vmul.f32 %v782, %v798
  %v818 = vmul.f32 %v783, %v798
  %v819 = vmul.f32 %v784, %v798
  %v820 = vmul.f32 %v785, %v798
  %v821 = vmul.f32 %v786, %v798
  %v822 = vmul.f32 %v787, %v798
  %v823 = vmul.f32 %v788, %v798
  %v824 = vmul.f32 %v789, %v798
  %v825 = vmul.f32 %v790, %v798
  %v826 = vmul.f32 %v791, %v798
  %v827 = vmul.f32 %v792, %v798
  %v828 = vmul.f32 %v793, %v798
  %v829 = vmul.f32 %v794, %v798
  %v830 = vmul.f32 %v795, %v798
  %v831 = vmul.f32 %v796, %v798
  %v833 = vperm.slane %v84, 0
  %v835 = vadd.f32 %v800, %v833
  %v836 = vadd.f32 %v801, %v833
  %v837 = vadd.f32 %v802, %v833
  %v838 = vadd.f32 %v803, %v833
  %v839 = vadd.f32 %v804, %v833
  %v840 = vadd.f32 %v805, %v833
  %v841 = vadd.f32 %v806, %v833
  %v842 = vadd.f32 %v807, %v833
  %v843 = vadd.f32 %v808, %v833
  %v844 = vadd.f32 %v809, %v833
  %v845 = vadd.f32 %v810, %v833
  %v846 = vadd.f32 %v811, %v833
  %v847 = vadd.f32 %v812, %v833
  %v848 = vadd.f32 %v813, %v833
  %v849 = vadd.f32 %v814, %v833
  %v850 = vadd.f32 %v815, %v833
  %v851 = vadd.f32 %v816, %v833
  %v852 = vadd.f32 %v817, %v833
  %v853 = vadd.f32 %v818, %v833
  %v854 = vadd.f32 %v819, %v833
  %v855 = vadd.f32 %v820, %v833
  %v856 = vadd.f32 %v821, %v833
  %v857 = vadd.f32 %v822, %v833
  %v858 = vadd.f32 %v823, %v833
  %v859 = vadd.f32 %v824, %v833
  %v860 = vadd.f32 %v825, %v833
  %v861 = vadd.f32 %v826, %v833
  %v862 = vadd.f32 %v827, %v833
  %v863 = vadd.f32 %v828, %v833
  %v864 = vadd.f32 %v829, %v833
  %v865 = vadd.f32 %v830, %v833
  %v866 = vadd.f32 %v831, %v833
  %v867 = vpack.c.bf16 %v836, %v835
  %v868 = vpack.c.bf16 %v838, %v837
  %v869 = vpack.c.bf16 %v840, %v839
  %v870 = vpack.c.bf16 %v842, %v841
  %v871 = vpack.c.bf16 %v844, %v843
  %v872 = vpack.c.bf16 %v846, %v845
  %v873 = vpack.c.bf16 %v848, %v847
  %v874 = vpack.c.bf16 %v850, %v849
  %v875 = vpack.c.bf16 %v852, %v851
  %v876 = vpack.c.bf16 %v854, %v853
  %v877 = vpack.c.bf16 %v856, %v855
  %v878 = vpack.c.bf16 %v858, %v857
  %v879 = vpack.c.bf16 %v860, %v859
  %v880 = vpack.c.bf16 %v862, %v861
  %v881 = vpack.c.bf16 %v864, %v863
  %v882 = vpack.c.bf16 %v866, %v865
  %v883 = vld [vmem:[%s3] sm:$0xff]
  %v884 = vld [vmem:[%s3 + $0x8] sm:$0xff]
  %v885 = vld [vmem:[%s3 + $0x10] sm:$0xff]
  %v886 = vld [vmem:[%s3 + $0x18] sm:$0xff]
  %v891 = vunpack.c.l.b16 %v883
  %v892 = vunpack.c.h.b16 %v883
  %v893 = vunpack.c.l.b16 %v884
  %v894 = vunpack.c.h.b16 %v884
  %v895 = vunpack.c.l.b16 %v885
  %v896 = vunpack.c.h.b16 %v885
  %v897 = vunpack.c.l.b16 %v886
  %v898 = vunpack.c.h.b16 %v886
  %v899 = vpack.c.b16 %v893, %v891
  %v900 = vpack.c.b16 %v894, %v892
  %v901 = vpack.c.b16 %v897, %v895
  %v902 = vpack.c.b16 %v898, %v896
  %v908 = vsel %vm85, %v867, 0
  %v911 = vsel %vm85, %v868, 0
  %v914 = vsel %vm85, %v869, 0
  %v917 = vsel %vm85, %v870, 0
  %v920 = vsel %vm85, %v871, 0
  %v923 = vsel %vm85, %v872, 0
  %v926 = vsel %vm85, %v873, 0
  %v929 = vsel %vm85, %v874, 0
  %v932 = vsel %vm85, %v875, 0
  %v935 = vsel %vm85, %v876, 0
  %v938 = vsel %vm85, %v877, 0
  %v941 = vsel %vm85, %v878, 0
  %v944 = vsel %vm85, %v879, 0
  %v947 = vsel %vm85, %v880, 0
  %v950 = vsel %vm85, %v881, 0
  %v953 = vsel %vm85, %v882, 0
  %955 = vmatpush.bf16.msra.mxu0 0
  %956 = vmatpush.bf16.msra.mxu0 0
  %957 = vmatpush.bf16.msra.mxu0 0
  %958 = vmatpush.bf16.msra.mxu0 0
  %959 = vmatpush.bf16.msra.mxu0 0
  %960 = vmatpush.bf16.msra.mxu0 0
  %961 = vmatpush.bf16.msra.mxu0 %v901
  %962 = vmatpush.bf16.msra.mxu0 %v899
  %963 = vmatmul.bf16.gmra.mxu0 %v908
  %v964 = vpop.f32.mrf.mxu0
  %v965 = vadd.f32 0.0, %v964
  %v966 = vpop.f32.mrf.mxu0
  %v967 = vadd.f32 0.0, %v966
  %968 = vmatmul.bf16.gmra.mxu0 %v911
  %v969 = vpop.f32.mrf.mxu0
  %v970 = vadd.f32 0.0, %v969
  %v971 = vpop.f32.mrf.mxu0
  %v972 = vadd.f32 0.0, %v971
  %973 = vmatmul.bf16.gmra.mxu0 %v914
  %v974 = vpop.f32.mrf.mxu0
  %v975 = vadd.f32 0.0, %v974
  %v976 = vpop.f32.mrf.mxu0
  %v977 = vadd.f32 0.0, %v976
  %978 = vmatmul.bf16.gmra.mxu0 %v917
  %v979 = vpop.f32.mrf.mxu0
  %v980 = vadd.f32 0.0, %v979
  %v981 = vpop.f32.mrf.mxu0
  %v982 = vadd.f32 0.0, %v981
  %983 = vmatmul.bf16.gmra.mxu0 %v920
  %v984 = vpop.f32.mrf.mxu0
  %v985 = vadd.f32 0.0, %v984
  %v986 = vpop.f32.mrf.mxu0
  %v987 = vadd.f32 0.0, %v986
  %988 = vmatmul.bf16.gmra.mxu0 %v923
  %v989 = vpop.f32.mrf.mxu0
  %v990 = vadd.f32 0.0, %v989
  %v991 = vpop.f32.mrf.mxu0
  %v992 = vadd.f32 0.0, %v991
  %993 = vmatmul.bf16.gmra.mxu0 %v926
  %v994 = vpop.f32.mrf.mxu0
  %v995 = vadd.f32 0.0, %v994
  %v996 = vpop.f32.mrf.mxu0
  %v997 = vadd.f32 0.0, %v996
  %998 = vmatmul.bf16.gmra.mxu0 %v929
  %v999 = vpop.f32.mrf.mxu0
  %v1000 = vadd.f32 0.0, %v999
  %v1001 = vpop.f32.mrf.mxu0
  %v1002 = vadd.f32 0.0, %v1001
  %1003 = vmatmul.bf16.gmra.mxu0 %v932
  %v1004 = vpop.f32.mrf.mxu0
  %v1005 = vadd.f32 0.0, %v1004
  %v1006 = vpop.f32.mrf.mxu0
  %v1007 = vadd.f32 0.0, %v1006
  %1008 = vmatmul.bf16.gmra.mxu0 %v935
  %v1009 = vpop.f32.mrf.mxu0
  %v1010 = vadd.f32 0.0, %v1009
  %v1011 = vpop.f32.mrf.mxu0
  %v1012 = vadd.f32 0.0, %v1011
  %1013 = vmatmul.bf16.gmra.mxu0 %v938
  %v1014 = vpop.f32.mrf.mxu0
  %v1015 = vadd.f32 0.0, %v1014
  %v1016 = vpop.f32.mrf.mxu0
  %v1017 = vadd.f32 0.0, %v1016
  %1018 = vmatmul.bf16.gmra.mxu0 %v941
  %v1019 = vpop.f32.mrf.mxu0
  %v1020 = vadd.f32 0.0, %v1019
  %v1021 = vpop.f32.mrf.mxu0
  %v1022 = vadd.f32 0.0, %v1021
  %1023 = vmatmul.bf16.gmra.mxu0 %v944
  %v1024 = vpop.f32.mrf.mxu0
  %v1025 = vadd.f32 0.0, %v1024
  %v1026 = vpop.f32.mrf.mxu0
  %v1027 = vadd.f32 0.0, %v1026
  %1028 = vmatmul.bf16.gmra.mxu0 %v947
  %v1029 = vpop.f32.mrf.mxu0
  %v1030 = vadd.f32 0.0, %v1029
  %v1031 = vpop.f32.mrf.mxu0
  %v1032 = vadd.f32 0.0, %v1031
  %1033 = vmatmul.bf16.gmra.mxu0 %v950
  %v1034 = vpop.f32.mrf.mxu0
  %v1035 = vadd.f32 0.0, %v1034
  %v1036 = vpop.f32.mrf.mxu0
  %v1037 = vadd.f32 0.0, %v1036
  %1038 = vmatmul.bf16.gmra.mxu0 %v953
  %v1039 = vpop.f32.mrf.mxu0
  %v1040 = vadd.f32 0.0, %v1039
  %v1041 = vpop.f32.mrf.mxu0
  %v1042 = vadd.f32 0.0, %v1041
  %1043 = vdwg.mxu0
  %1044 = vmatpush.bf16.msra.mxu0 0
  %1045 = vmatpush.bf16.msra.mxu0 0
  %1046 = vmatpush.bf16.msra.mxu0 0
  %1047 = vmatpush.bf16.msra.mxu0 0
  %1048 = vmatpush.bf16.msra.mxu0 0
  %1049 = vmatpush.bf16.msra.mxu0 0
  %1050 = vmatpush.bf16.msra.mxu0 %v902
  %1051 = vmatpush.bf16.msra.mxu0 %v900
  %1052 = vmatmul.bf16.gmra.mxu0 %v908
  %v1053 = vpop.f32.mrf.mxu0
  %v1054 = vadd.f32 0.0, %v1053
  %v1055 = vpop.f32.mrf.mxu0
  %v1056 = vadd.f32 0.0, %v1055
  %1057 = vmatmul.bf16.gmra.mxu0 %v911
  %v1058 = vpop.f32.mrf.mxu0
  %v1059 = vadd.f32 0.0, %v1058
  %v1060 = vpop.f32.mrf.mxu0
  %v1061 = vadd.f32 0.0, %v1060
  %1062 = vmatmul.bf16.gmra.mxu0 %v914
  %v1063 = vpop.f32.mrf.mxu0
  %v1064 = vadd.f32 0.0, %v1063
  %v1065 = vpop.f32.mrf.mxu0
  %v1066 = vadd.f32 0.0, %v1065
  %1067 = vmatmul.bf16.gmra.mxu0 %v917
  %v1068 = vpop.f32.mrf.mxu0
  %v1069 = vadd.f32 0.0, %v1068
  %v1070 = vpop.f32.mrf.mxu0
  %v1071 = vadd.f32 0.0, %v1070
  %1072 = vmatmul.bf16.gmra.mxu0 %v920
  %v1073 = vpop.f32.mrf.mxu0
  %v1074 = vadd.f32 0.0, %v1073
  %v1075 = vpop.f32.mrf.mxu0
  %v1076 = vadd.f32 0.0, %v1075
  %1077 = vmatmul.bf16.gmra.mxu0 %v923
  %v1078 = vpop.f32.mrf.mxu0
  %v1079 = vadd.f32 0.0, %v1078
  %v1080 = vpop.f32.mrf.mxu0
  %v1081 = vadd.f32 0.0, %v1080
  %1082 = vmatmul.bf16.gmra.mxu0 %v926
  %v1083 = vpop.f32.mrf.mxu0
  %v1084 = vadd.f32 0.0, %v1083
  %v1085 = vpop.f32.mrf.mxu0
  %v1086 = vadd.f32 0.0, %v1085
  %1087 = vmatmul.bf16.gmra.mxu0 %v929
  %v1088 = vpop.f32.mrf.mxu0
  %v1089 = vadd.f32 0.0, %v1088
  %v1090 = vpop.f32.mrf.mxu0
  %v1091 = vadd.f32 0.0, %v1090
  %1092 = vmatmul.bf16.gmra.mxu0 %v932
  %v1093 = vpop.f32.mrf.mxu0
  %v1094 = vadd.f32 0.0, %v1093
  %v1095 = vpop.f32.mrf.mxu0
  %v1096 = vadd.f32 0.0, %v1095
  %1097 = vmatmul.bf16.gmra.mxu0 %v935
  %v1098 = vpop.f32.mrf.mxu0
  %v1099 = vadd.f32 0.0, %v1098
  %v1100 = vpop.f32.mrf.mxu0
  %v1101 = vadd.f32 0.0, %v1100
  %1102 = vmatmul.bf16.gmra.mxu0 %v938
  %v1103 = vpop.f32.mrf.mxu0
  %v1104 = vadd.f32 0.0, %v1103
  %v1105 = vpop.f32.mrf.mxu0
  %v1106 = vadd.f32 0.0, %v1105
  %1107 = vmatmul.bf16.gmra.mxu0 %v941
  %v1108 = vpop.f32.mrf.mxu0
  %v1109 = vadd.f32 0.0, %v1108
  %v1110 = vpop.f32.mrf.mxu0
  %v1111 = vadd.f32 0.0, %v1110
  %1112 = vmatmul.bf16.gmra.mxu0 %v944
  %v1113 = vpop.f32.mrf.mxu0
  %v1114 = vadd.f32 0.0, %v1113
  %v1115 = vpop.f32.mrf.mxu0
  %v1116 = vadd.f32 0.0, %v1115
  %1117 = vmatmul.bf16.gmra.mxu0 %v947
  %v1118 = vpop.f32.mrf.mxu0
  %v1119 = vadd.f32 0.0, %v1118
  %v1120 = vpop.f32.mrf.mxu0
  %v1121 = vadd.f32 0.0, %v1120
  %1122 = vmatmul.bf16.gmra.mxu0 %v950
  %v1123 = vpop.f32.mrf.mxu0
  %v1124 = vadd.f32 0.0, %v1123
  %v1125 = vpop.f32.mrf.mxu0
  %v1126 = vadd.f32 0.0, %v1125
  %1127 = vmatmul.bf16.gmra.mxu0 %v953
  %v1128 = vpop.f32.mrf.mxu0
  %v1129 = vadd.f32 0.0, %v1128
  %v1130 = vpop.f32.mrf.mxu0
  %v1131 = vadd.f32 0.0, %v1130
  %1132 = vdwg.mxu0
  %v1133 = vld [vmem:[%s4] sm:$0xff]
  %v1134 = vld [vmem:[%s4 + $0x8] sm:$0xff]
  %v1135 = vld [vmem:[%s4 + $0x10] sm:$0xff]
  %v1136 = vld [vmem:[%s4 + $0x18] sm:$0xff]
  %v1137 = vld [vmem:[%s4 + $0x20] sm:$0xff]
  %v1138 = vld [vmem:[%s4 + $0x28] sm:$0xff]
  %v1139 = vld [vmem:[%s4 + $0x30] sm:$0xff]
  %v1140 = vld [vmem:[%s4 + $0x38] sm:$0xff]
  %v1141 = vadd.f32 %v965, %v1133
  %v1142 = vadd.f32 %v1054, %v1134
  %v1143 = vadd.f32 %v967, %v1135
  %v1144 = vadd.f32 %v1056, %v1136
  %v1145 = vadd.f32 %v970, %v1137
  %v1146 = vadd.f32 %v1059, %v1138
  %v1147 = vadd.f32 %v972, %v1139
  %v1148 = vadd.f32 %v1061, %v1140
  %v1149 = vadd.f32 %v975, %v1133
  %v1150 = vadd.f32 %v1064, %v1134
  %v1151 = vadd.f32 %v977, %v1135
  %v1152 = vadd.f32 %v1066, %v1136
  %v1153 = vadd.f32 %v980, %v1137
  %v1154 = vadd.f32 %v1069, %v1138
  %v1155 = vadd.f32 %v982, %v1139
  %v1156 = vadd.f32 %v1071, %v1140
  %v1157 = vadd.f32 %v985, %v1133
  %v1158 = vadd.f32 %v1074, %v1134
  %v1159 = vadd.f32 %v987, %v1135
  %v1160 = vadd.f32 %v1076, %v1136
  %v1161 = vadd.f32 %v990, %v1137
  %v1162 = vadd.f32 %v1079, %v1138
  %v1163 = vadd.f32 %v992, %v1139
  %v1164 = vadd.f32 %v1081, %v1140
  %v1165 = vadd.f32 %v995, %v1133
  %v1166 = vadd.f32 %v1084, %v1134
  %v1167 = vadd.f32 %v997, %v1135
  %v1168 = vadd.f32 %v1086, %v1136
  %v1169 = vadd.f32 %v1000, %v1137
  %v1170 = vadd.f32 %v1089, %v1138
  %v1171 = vadd.f32 %v1002, %v1139
  %v1172 = vadd.f32 %v1091, %v1140
  %v1173 = vadd.f32 %v1005, %v1133
  %v1174 = vadd.f32 %v1094, %v1134
  %v1175 = vadd.f32 %v1007, %v1135
  %v1176 = vadd.f32 %v1096, %v1136
  %v1177 = vadd.f32 %v1010, %v1137
  %v1178 = vadd.f32 %v1099, %v1138
  %v1179 = vadd.f32 %v1012, %v1139
  %v1180 = vadd.f32 %v1101, %v1140
  %v1181 = vadd.f32 %v1015, %v1133
  %v1182 = vadd.f32 %v1104, %v1134
  %v1183 = vadd.f32 %v1017, %v1135
  %v1184 = vadd.f32 %v1106, %v1136
  %v1185 = vadd.f32 %v1020, %v1137
  %v1186 = vadd.f32 %v1109, %v1138
  %v1187 = vadd.f32 %v1022, %v1139
  %v1188 = vadd.f32 %v1111, %v1140
  %v1189 = vadd.f32 %v1025, %v1133
  %v1190 = vadd.f32 %v1114, %v1134
  %v1191 = vadd.f32 %v1027, %v1135
  %v1192 = vadd.f32 %v1116, %v1136
  %v1193 = vadd.f32 %v1030, %v1137
  %v1194 = vadd.f32 %v1119, %v1138
  %v1195 = vadd.f32 %v1032, %v1139
  %v1196 = vadd.f32 %v1121, %v1140
  %v1197 = vadd.f32 %v1035, %v1133
  %v1198 = vadd.f32 %v1124, %v1134
  %v1199 = vadd.f32 %v1037, %v1135
  %v1200 = vadd.f32 %v1126, %v1136
  %v1201 = vadd.f32 %v1040, %v1137
  %v1202 = vadd.f32 %v1129, %v1138
  %v1203 = vadd.f32 %v1042, %v1139
  %v1204 = vadd.f32 %v1131, %v1140
  %v1205 = vpack.c.bf16 %v1142, %v1141
  %v1206 = vpack.c.bf16 %v1144, %v1143
  %v1207 = vpack.c.bf16 %v1146, %v1145
  %v1208 = vpack.c.bf16 %v1148, %v1147
  %v1209 = vpack.c.bf16 %v1150, %v1149
  %v1210 = vpack.c.bf16 %v1152, %v1151
  %v1211 = vpack.c.bf16 %v1154, %v1153
  %v1212 = vpack.c.bf16 %v1156, %v1155
  %v1213 = vpack.c.bf16 %v1158, %v1157
  %v1214 = vpack.c.bf16 %v1160, %v1159
  %v1215 = vpack.c.bf16 %v1162, %v1161
  %v1216 = vpack.c.bf16 %v1164, %v1163
  %v1217 = vpack.c.bf16 %v1166, %v1165
  %v1218 = vpack.c.bf16 %v1168, %v1167
  %v1219 = vpack.c.bf16 %v1170, %v1169
  %v1220 = vpack.c.bf16 %v1172, %v1171
  %v1221 = vpack.c.bf16 %v1174, %v1173
  %v1222 = vpack.c.bf16 %v1176, %v1175
  %v1223 = vpack.c.bf16 %v1178, %v1177
  %v1224 = vpack.c.bf16 %v1180, %v1179
  %v1225 = vpack.c.bf16 %v1182, %v1181
  %v1226 = vpack.c.bf16 %v1184, %v1183
  %v1227 = vpack.c.bf16 %v1186, %v1185
  %v1228 = vpack.c.bf16 %v1188, %v1187
  %v1229 = vpack.c.bf16 %v1190, %v1189
  %v1230 = vpack.c.bf16 %v1192, %v1191
  %v1231 = vpack.c.bf16 %v1194, %v1193
  %v1232 = vpack.c.bf16 %v1196, %v1195
  %v1233 = vpack.c.bf16 %v1198, %v1197
  %v1234 = vpack.c.bf16 %v1200, %v1199
  %v1235 = vpack.c.bf16 %v1202, %v1201
  %v1236 = vpack.c.bf16 %v1204, %v1203
  %v1237 = vld [vmem:[%s5] sm:$0xff]
  %v1238 = vld [vmem:[%s5 + $0x8] sm:$0xff]
  %v1239 = vld [vmem:[%s5 + $0x10] sm:$0xff]
  %v1240 = vld [vmem:[%s5 + $0x18] sm:$0xff]
  %v1245 = vunpack.c.l.b16 %v1205
  %v1246 = vunpack.c.l.b16 %v1206
  %v1247 = vunpack.c.l.b16 %v1207
  %v1248 = vunpack.c.l.b16 %v1208
  %v1249 = vpack.c.b16 %v1246, %v1245
  %v1250 = vpack.c.b16 %v1248, %v1247
  %1251 = vrot.lane.b32.xlu0 %v1249, 96
  %v1252 = vpop.permute.xlu0 %1251
  %1253 = vrot.lane.b32.xlu0 %v1250, 96
  %v1254 = vpop.permute.xlu0 %1253
  %vm1255 = vcmask 130048
  %v1257 = vsel %vm1255, %v1249, 0
  %v1260 = vsel %vm1255, %v1250, 0
  %v1263 = vsel %vm1255, %v1252, 0
  %v1266 = vsel %vm1255, %v1254, 0
  %1268 = vmatpush.bf16.xpose.msra.mxu0 0
  %1269 = vmatpush.bf16.xpose.msra.mxu0 0
  %1270 = vmatpush.bf16.xpose.msra.mxu0 0
  %1271 = vmatpush.bf16.xpose.msra.mxu0 0
  %1272 = vmatpush.bf16.xpose.msra.mxu0 0
  %1273 = vmatpush.bf16.xpose.msra.mxu0 0
  %1274 = vmatpush.bf16.xpose.msra.mxu0 %v1266
  %1275 = vmatpush.bf16.xpose.msra.mxu0 %v1263
  %1276 = vmatmul.bf16.gmra.mxu0 %v1257
  %v1277 = vpop.f32.mrf.mxu0
  %v1278 = vadd.f32 %v1237, %v1277
  %v1279 = vpop.f32.mrf.mxu0
  %v1280 = vadd.f32 %v1238, %v1279
  %1281 = vmatmul.bf16.gmra.mxu0 %v1260
  %v1282 = vpop.f32.mrf.mxu0
  %v1283 = vadd.f32 %v1239, %v1282
  %v1284 = vpop.f32.mrf.mxu0
  %v1285 = vadd.f32 %v1240, %v1284
  %1286 = vdwg.mxu0
  %v1291 = vunpack.c.l.b16 %v1209
  %v1292 = vunpack.c.l.b16 %v1210
  %v1293 = vunpack.c.l.b16 %v1211
  %v1294 = vunpack.c.l.b16 %v1212
  %v1295 = vpack.c.b16 %v1292, %v1291
  %v1296 = vpack.c.b16 %v1294, %v1293
  %1297 = vrot.lane.b32.xlu0 %v1295, 96
  %v1298 = vpop.permute.xlu0 %1297
  %1299 = vrot.lane.b32.xlu0 %v1296, 96
  %v1300 = vpop.permute.xlu0 %1299
  %v1302 = vsel %vm1255, %v1295, 0
  %v1305 = vsel %vm1255, %v1296, 0
  %v1308 = vsel %vm1255, %v1298, 0
  %v1311 = vsel %vm1255, %v1300, 0
  %1313 = vmatpush.bf16.xpose.msra.mxu0 0
  %1314 = vmatpush.bf16.xpose.msra.mxu0 0
  %1315 = vmatpush.bf16.xpose.msra.mxu0 0
  %1316 = vmatpush.bf16.xpose.msra.mxu0 0
  %1317 = vmatpush.bf16.xpose.msra.mxu0 0
  %1318 = vmatpush.bf16.xpose.msra.mxu0 0
  %1319 = vmatpush.bf16.xpose.msra.mxu0 %v1311
  %1320 = vmatpush.bf16.xpose.msra.mxu0 %v1308
  %1321 = vmatmul.bf16.gmra.mxu0 %v1302
  %v1322 = vpop.f32.mrf.mxu0
  %v1323 = vadd.f32 %v1237, %v1322
  %v1324 = vpop.f32.mrf.mxu0
  %v1325 = vadd.f32 %v1238, %v1324
  %1326 = vmatmul.bf16.gmra.mxu0 %v1305
  %v1327 = vpop.f32.mrf.mxu0
  %v1328 = vadd.f32 %v1239, %v1327
  %v1329 = vpop.f32.mrf.mxu0
  %v1330 = vadd.f32 %v1240, %v1329
  %1331 = vdwg.mxu0
  %v1336 = vunpack.c.l.b16 %v1213
  %v1337 = vunpack.c.l.b16 %v1214
  %v1338 = vunpack.c.l.b16 %v1215
  %v1339 = vunpack.c.l.b16 %v1216
  %v1340 = vpack.c.b16 %v1337, %v1336
  %v1341 = vpack.c.b16 %v1339, %v1338
  %1342 = vrot.lane.b32.xlu0 %v1340, 96
  %v1343 = vpop.permute.xlu0 %1342
  %1344 = vrot.lane.b32.xlu0 %v1341, 96
  %v1345 = vpop.permute.xlu0 %1344
  %v1347 = vsel %vm1255, %v1340, 0
  %v1350 = vsel %vm1255, %v1341, 0
  %v1353 = vsel %vm1255, %v1343, 0
  %v1356 = vsel %vm1255, %v1345, 0
  %1358 = vmatpush.bf16.xpose.msra.mxu0 0
  %1359 = vmatpush.bf16.xpose.msra.mxu0 0
  %1360 = vmatpush.bf16.xpose.msra.mxu0 0
  %1361 = vmatpush.bf16.xpose.msra.mxu0 0
  %1362 = vmatpush.bf16.xpose.msra.mxu0 0
  %1363 = vmatpush.bf16.xpose.msra.mxu0 0
  %1364 = vmatpush.bf16.xpose.msra.mxu0 %v1356
  %1365 = vmatpush.bf16.xpose.msra.mxu0 %v1353
  %1366 = vmatmul.bf16.gmra.mxu0 %v1347
  %v1367 = vpop.f32.mrf.mxu0
  %v1368 = vadd.f32 %v1237, %v1367
  %v1369 = vpop.f32.mrf.mxu0
  %v1370 = vadd.f32 %v1238, %v1369
  %1371 = vmatmul.bf16.gmra.mxu0 %v1350
  %v1372 = vpop.f32.mrf.mxu0
  %v1373 = vadd.f32 %v1239, %v1372
  %v1374 = vpop.f32.mrf.mxu0
  %v1375 = vadd.f32 %v1240, %v1374
  %1376 = vdwg.mxu0
  %v1381 = vunpack.c.l.b16 %v1217
  %v1382 = vunpack.c.l.b16 %v1218
  %v1383 = vunpack.c.l.b16 %v1219
  %v1384 = vunpack.c.l.b16 %v1220
  %v1385 = vpack.c.b16 %v1382, %v1381
  %v1386 = vpack.c.b16 %v1384, %v1383
  %1387 = vrot.lane.b32.xlu0 %v1385, 96
  %v1388 = vpop.permute.xlu0 %1387
  %1389 = vrot.lane.b32.xlu0 %v1386, 96
  %v1390 = vpop.permute.xlu0 %1389
  %v1392 = vsel %vm1255, %v1385, 0
  %v1395 = vsel %vm1255, %v1386, 0
  %v1398 = vsel %vm1255, %v1388, 0
  %v1401 = vsel %vm1255, %v1390, 0
  %1403 = vmatpush.bf16.xpose.msra.mxu0 0
  %1404 = vmatpush.bf16.xpose.msra.mxu0 0
  %1405 = vmatpush.bf16.xpose.msra.mxu0 0
  %1406 = vmatpush.bf16.xpose.msra.mxu0 0
  %1407 = vmatpush.bf16.xpose.msra.mxu0 0
  %1408 = vmatpush.bf16.xpose.msra.mxu0 0
  %1409 = vmatpush.bf16.xpose.msra.mxu0 %v1401
  %1410 = vmatpush.bf16.xpose.msra.mxu0 %v1398
  %1411 = vmatmul.bf16.gmra.mxu0 %v1392
  %v1412 = vpop.f32.mrf.mxu0
  %v1413 = vadd.f32 %v1237, %v1412
  %v1414 = vpop.f32.mrf.mxu0
  %v1415 = vadd.f32 %v1238, %v1414
  %1416 = vmatmul.bf16.gmra.mxu0 %v1395
  %v1417 = vpop.f32.mrf.mxu0
  %v1418 = vadd.f32 %v1239, %v1417
  %v1419 = vpop.f32.mrf.mxu0
  %v1420 = vadd.f32 %v1240, %v1419
  %1421 = vdwg.mxu0
  %v1426 = vunpack.c.l.b16 %v1221
  %v1427 = vunpack.c.l.b16 %v1222
  %v1428 = vunpack.c.l.b16 %v1223
  %v1429 = vunpack.c.l.b16 %v1224
  %v1430 = vpack.c.b16 %v1427, %v1426
  %v1431 = vpack.c.b16 %v1429, %v1428
  %1432 = vrot.lane.b32.xlu0 %v1430, 96
  %v1433 = vpop.permute.xlu0 %1432
  %1434 = vrot.lane.b32.xlu0 %v1431, 96
  %v1435 = vpop.permute.xlu0 %1434
  %v1437 = vsel %vm1255, %v1430, 0
  %v1440 = vsel %vm1255, %v1431, 0
  %v1443 = vsel %vm1255, %v1433, 0
  %v1446 = vsel %vm1255, %v1435, 0
  %1448 = vmatpush.bf16.xpose.msra.mxu0 0
  %1449 = vmatpush.bf16.xpose.msra.mxu0 0
  %1450 = vmatpush.bf16.xpose.msra.mxu0 0
  %1451 = vmatpush.bf16.xpose.msra.mxu0 0
  %1452 = vmatpush.bf16.xpose.msra.mxu0 0
  %1453 = vmatpush.bf16.xpose.msra.mxu0 0
  %1454 = vmatpush.bf16.xpose.msra.mxu0 %v1446
  %1455 = vmatpush.bf16.xpose.msra.mxu0 %v1443
  %1456 = vmatmul.bf16.gmra.mxu0 %v1437
  %v1457 = vpop.f32.mrf.mxu0
  %v1458 = vadd.f32 %v1237, %v1457
  %v1459 = vpop.f32.mrf.mxu0
  %v1460 = vadd.f32 %v1238, %v1459
  %1461 = vmatmul.bf16.gmra.mxu0 %v1440
  %v1462 = vpop.f32.mrf.mxu0
  %v1463 = vadd.f32 %v1239, %v1462
  %v1464 = vpop.f32.mrf.mxu0
  %v1465 = vadd.f32 %v1240, %v1464
  %1466 = vdwg.mxu0
  %v1471 = vunpack.c.l.b16 %v1225
  %v1472 = vunpack.c.l.b16 %v1226
  %v1473 = vunpack.c.l.b16 %v1227
  %v1474 = vunpack.c.l.b16 %v1228
  %v1475 = vpack.c.b16 %v1472, %v1471
  %v1476 = vpack.c.b16 %v1474, %v1473
  %1477 = vrot.lane.b32.xlu0 %v1475, 96
  %v1478 = vpop.permute.xlu0 %1477
  %1479 = vrot.lane.b32.xlu0 %v1476, 96
  %v1480 = vpop.permute.xlu0 %1479
  %v1482 = vsel %vm1255, %v1475, 0
  %v1485 = vsel %vm1255, %v1476, 0
  %v1488 = vsel %vm1255, %v1478, 0
  %v1491 = vsel %vm1255, %v1480, 0
  %1493 = vmatpush.bf16.xpose.msra.mxu0 0
  %1494 = vmatpush.bf16.xpose.msra.mxu0 0
  %1495 = vmatpush.bf16.xpose.msra.mxu0 0
  %1496 = vmatpush.bf16.xpose.msra.mxu0 0
  %1497 = vmatpush.bf16.xpose.msra.mxu0 0
  %1498 = vmatpush.bf16.xpose.msra.mxu0 0
  %1499 = vmatpush.bf16.xpose.msra.mxu0 %v1491
  %1500 = vmatpush.bf16.xpose.msra.mxu0 %v1488
  %1501 = vmatmul.bf16.gmra.mxu0 %v1482
  %v1502 = vpop.f32.mrf.mxu0
  %v1503 = vadd.f32 %v1237, %v1502
  %v1504 = vpop.f32.mrf.mxu0
  %v1505 = vadd.f32 %v1238, %v1504
  %1506 = vmatmul.bf16.gmra.mxu0 %v1485
  %v1507 = vpop.f32.mrf.mxu0
  %v1508 = vadd.f32 %v1239, %v1507
  %v1509 = vpop.f32.mrf.mxu0
  %v1510 = vadd.f32 %v1240, %v1509
  %1511 = vdwg.mxu0
  %v1516 = vunpack.c.l.b16 %v1229
  %v1517 = vunpack.c.l.b16 %v1230
  %v1518 = vunpack.c.l.b16 %v1231
  %v1519 = vunpack.c.l.b16 %v1232
  %v1520 = vpack.c.b16 %v1517, %v1516
  %v1521 = vpack.c.b16 %v1519, %v1518
  %1522 = vrot.lane.b32.xlu0 %v1520, 96
  %v1523 = vpop.permute.xlu0 %1522
  %1524 = vrot.lane.b32.xlu0 %v1521, 96
  %v1525 = vpop.permute.xlu0 %1524
  %v1527 = vsel %vm1255, %v1520, 0
  %v1530 = vsel %vm1255, %v1521, 0
  %v1533 = vsel %vm1255, %v1523, 0
  %v1536 = vsel %vm1255, %v1525, 0
  %1538 = vmatpush.bf16.xpose.msra.mxu0 0
  %1539 = vmatpush.bf16.xpose.msra.mxu0 0
  %1540 = vmatpush.bf16.xpose.msra.mxu0 0
  %1541 = vmatpush.bf16.xpose.msra.mxu0 0
  %1542 = vmatpush.bf16.xpose.msra.mxu0 0
  %1543 = vmatpush.bf16.xpose.msra.mxu0 0
  %1544 = vmatpush.bf16.xpose.msra.mxu0 %v1536
  %1545 = vmatpush.bf16.xpose.msra.mxu0 %v1533
  %1546 = vmatmul.bf16.gmra.mxu0 %v1527
  %v1547 = vpop.f32.mrf.mxu0
  %v1548 = vadd.f32 %v1237, %v1547
  %v1549 = vpop.f32.mrf.mxu0
  %v1550 = vadd.f32 %v1238, %v1549
  %1551 = vmatmul.bf16.gmra.mxu0 %v1530
  %v1552 = vpop.f32.mrf.mxu0
  %v1553 = vadd.f32 %v1239, %v1552
  %v1554 = vpop.f32.mrf.mxu0
  %v1555 = vadd.f32 %v1240, %v1554
  %1556 = vdwg.mxu0
  %v1561 = vunpack.c.l.b16 %v1233
  %v1562 = vunpack.c.l.b16 %v1234
  %v1563 = vunpack.c.l.b16 %v1235
  %v1564 = vunpack.c.l.b16 %v1236
  %v1565 = vpack.c.b16 %v1562, %v1561
  %v1566 = vpack.c.b16 %v1564, %v1563
  %1567 = vrot.lane.b32.xlu0 %v1565, 96
  %v1568 = vpop.permute.xlu0 %1567
  %1569 = vrot.lane.b32.xlu0 %v1566, 96
  %v1570 = vpop.permute.xlu0 %1569
  %v1572 = vsel %vm1255, %v1565, 0
  %v1575 = vsel %vm1255, %v1566, 0
  %v1578 = vsel %vm1255, %v1568, 0
  %v1581 = vsel %vm1255, %v1570, 0
  %1583 = vmatpush.bf16.xpose.msra.mxu0 0
  %1584 = vmatpush.bf16.xpose.msra.mxu0 0
  %1585 = vmatpush.bf16.xpose.msra.mxu0 0
  %1586 = vmatpush.bf16.xpose.msra.mxu0 0
  %1587 = vmatpush.bf16.xpose.msra.mxu0 0
  %1588 = vmatpush.bf16.xpose.msra.mxu0 0
  %1589 = vmatpush.bf16.xpose.msra.mxu0 %v1581
  %1590 = vmatpush.bf16.xpose.msra.mxu0 %v1578
  %1591 = vmatmul.bf16.gmra.mxu0 %v1572
  %v1592 = vpop.f32.mrf.mxu0
  %v1593 = vadd.f32 %v1237, %v1592
  %v1594 = vpop.f32.mrf.mxu0
  %v1595 = vadd.f32 %v1238, %v1594
  %1596 = vmatmul.bf16.gmra.mxu0 %v1575
  %v1597 = vpop.f32.mrf.mxu0
  %v1598 = vadd.f32 %v1239, %v1597
  %v1599 = vpop.f32.mrf.mxu0
  %v1600 = vadd.f32 %v1240, %v1599
  %1601 = vdwg.mxu0
  %v1602 = vsel %vm85, %v1278, -inf
  %1603 = vmax.xlane.f32.xlu0 %v1602
  %v1604 = vpop.xlane.xlu0 %1603
  %v1605 = vsel %vm85, %v1280, -inf
  %1606 = vmax.xlane.f32.xlu0 %v1605
  %v1607 = vpop.xlane.xlu0 %1606
  %v1608 = vsel %vm85, %v1283, -inf
  %1609 = vmax.xlane.f32.xlu0 %v1608
  %v1610 = vpop.xlane.xlu0 %1609
  %v1611 = vsel %vm85, %v1285, -inf
  %1612 = vmax.xlane.f32.xlu0 %v1611
  %v1613 = vpop.xlane.xlu0 %1612
  %v1614 = vsel %vm85, %v1323, -inf
  %1615 = vmax.xlane.f32.xlu0 %v1614
  %v1616 = vpop.xlane.xlu0 %1615
  %v1617 = vsel %vm85, %v1325, -inf
  %1618 = vmax.xlane.f32.xlu0 %v1617
  %v1619 = vpop.xlane.xlu0 %1618
  %v1620 = vsel %vm85, %v1328, -inf
  %1621 = vmax.xlane.f32.xlu0 %v1620
  %v1622 = vpop.xlane.xlu0 %1621
  %v1623 = vsel %vm85, %v1330, -inf
  %1624 = vmax.xlane.f32.xlu0 %v1623
  %v1625 = vpop.xlane.xlu0 %1624
  %v1626 = vsel %vm85, %v1368, -inf
  %1627 = vmax.xlane.f32.xlu0 %v1626
  %v1628 = vpop.xlane.xlu0 %1627
  %v1629 = vsel %vm85, %v1370, -inf
  %1630 = vmax.xlane.f32.xlu0 %v1629
  %v1631 = vpop.xlane.xlu0 %1630
  %v1632 = vsel %vm85, %v1373, -inf
  %1633 = vmax.xlane.f32.xlu0 %v1632
  %v1634 = vpop.xlane.xlu0 %1633
  %v1635 = vsel %vm85, %v1375, -inf
  %1636 = vmax.xlane.f32.xlu0 %v1635
  %v1637 = vpop.xlane.xlu0 %1636
  %v1638 = vsel %vm85, %v1413, -inf
  %1639 = vmax.xlane.f32.xlu0 %v1638
  %v1640 = vpop.xlane.xlu0 %1639
  %v1641 = vsel %vm85, %v1415, -inf
  %1642 = vmax.xlane.f32.xlu0 %v1641
  %v1643 = vpop.xlane.xlu0 %1642
  %v1644 = vsel %vm85, %v1418, -inf
  %1645 = vmax.xlane.f32.xlu0 %v1644
  %v1646 = vpop.xlane.xlu0 %1645
  %v1647 = vsel %vm85, %v1420, -inf
  %1648 = vmax.xlane.f32.xlu0 %v1647
  %v1649 = vpop.xlane.xlu0 %1648
  %v1650 = vsel %vm85, %v1458, -inf
  %1651 = vmax.xlane.f32.xlu0 %v1650
  %v1652 = vpop.xlane.xlu0 %1651
  %v1653 = vsel %vm85, %v1460, -inf
  %1654 = vmax.xlane.f32.xlu0 %v1653
  %v1655 = vpop.xlane.xlu0 %1654
  %v1656 = vsel %vm85, %v1463, -inf
  %1657 = vmax.xlane.f32.xlu0 %v1656
  %v1658 = vpop.xlane.xlu0 %1657
  %v1659 = vsel %vm85, %v1465, -inf
  %1660 = vmax.xlane.f32.xlu0 %v1659
  %v1661 = vpop.xlane.xlu0 %1660
  %v1662 = vsel %vm85, %v1503, -inf
  %1663 = vmax.xlane.f32.xlu0 %v1662
  %v1664 = vpop.xlane.xlu0 %1663
  %v1665 = vsel %vm85, %v1505, -inf
  %1666 = vmax.xlane.f32.xlu0 %v1665
  %v1667 = vpop.xlane.xlu0 %1666
  %v1668 = vsel %vm85, %v1508, -inf
  %1669 = vmax.xlane.f32.xlu0 %v1668
  %v1670 = vpop.xlane.xlu0 %1669
  %v1671 = vsel %vm85, %v1510, -inf
  %1672 = vmax.xlane.f32.xlu0 %v1671
  %v1673 = vpop.xlane.xlu0 %1672
  %v1674 = vsel %vm85, %v1548, -inf
  %1675 = vmax.xlane.f32.xlu0 %v1674
  %v1676 = vpop.xlane.xlu0 %1675
  %v1677 = vsel %vm85, %v1550, -inf
  %1678 = vmax.xlane.f32.xlu0 %v1677
  %v1679 = vpop.xlane.xlu0 %1678
  %v1680 = vsel %vm85, %v1553, -inf
  %1681 = vmax.xlane.f32.xlu0 %v1680
  %v1682 = vpop.xlane.xlu0 %1681
  %v1683 = vsel %vm85, %v1555, -inf
  %1684 = vmax.xlane.f32.xlu0 %v1683
  %v1685 = vpop.xlane.xlu0 %1684
  %v1686 = vsel %vm85, %v1593, -inf
  %1687 = vmax.xlane.f32.xlu0 %v1686
  %v1688 = vpop.xlane.xlu0 %1687
  %v1689 = vsel %vm85, %v1595, -inf
  %1690 = vmax.xlane.f32.xlu0 %v1689
  %v1691 = vpop.xlane.xlu0 %1690
  %v1692 = vsel %vm85, %v1598, -inf
  %1693 = vmax.xlane.f32.xlu0 %v1692
  %v1694 = vpop.xlane.xlu0 %1693
  %v1695 = vsel %vm85, %v1600, -inf
  %1696 = vmax.xlane.f32.xlu0 %v1695
  %v1697 = vpop.xlane.xlu0 %1696
  %v1698 = vsub.f32 %v1278, %v1604
  %v1699 = vsub.f32 %v1280, %v1607
  %v1700 = vsub.f32 %v1283, %v1610
  %v1701 = vsub.f32 %v1285, %v1613
  %v1702 = vsub.f32 %v1323, %v1616
  %v1703 = vsub.f32 %v1325, %v1619
  %v1704 = vsub.f32 %v1328, %v1622
  %v1705 = vsub.f32 %v1330, %v1625
  %v1706 = vsub.f32 %v1368, %v1628
  %v1707 = vsub.f32 %v1370, %v1631
  %v1708 = vsub.f32 %v1373, %v1634
  %v1709 = vsub.f32 %v1375, %v1637
  %v1710 = vsub.f32 %v1413, %v1640
  %v1711 = vsub.f32 %v1415, %v1643
  %v1712 = vsub.f32 %v1418, %v1646
  %v1713 = vsub.f32 %v1420, %v1649
  %v1714 = vsub.f32 %v1458, %v1652
  %v1715 = vsub.f32 %v1460, %v1655
  %v1716 = vsub.f32 %v1463, %v1658
  %v1717 = vsub.f32 %v1465, %v1661
  %v1718 = vsub.f32 %v1503, %v1664
  %v1719 = vsub.f32 %v1505, %v1667
  %v1720 = vsub.f32 %v1508, %v1670
  %v1721 = vsub.f32 %v1510, %v1673
  %v1722 = vsub.f32 %v1548, %v1676
  %v1723 = vsub.f32 %v1550, %v1679
  %v1724 = vsub.f32 %v1553, %v1682
  %v1725 = vsub.f32 %v1555, %v1685
  %v1726 = vsub.f32 %v1593, %v1688
  %v1727 = vsub.f32 %v1595, %v1691
  %v1728 = vsub.f32 %v1598, %v1694
  %v1729 = vsub.f32 %v1600, %v1697
  %v1730 = vmul.f32 %v1698, 1.442695
  %v1731 = vpow.pop %v1730
  %v1732 = vmul.f32 %v1699, 1.442695
  %v1733 = vpow.pop %v1732
  %v1734 = vmul.f32 %v1700, 1.442695
  %v1735 = vpow.pop %v1734
  %v1736 = vmul.f32 %v1701, 1.442695
  %v1737 = vpow.pop %v1736
  %v1738 = vmul.f32 %v1702, 1.442695
  %v1739 = vpow.pop %v1738
  %v1740 = vmul.f32 %v1703, 1.442695
  %v1741 = vpow.pop %v1740
  %v1742 = vmul.f32 %v1704, 1.442695
  %v1743 = vpow.pop %v1742
  %v1744 = vmul.f32 %v1705, 1.442695
  %v1745 = vpow.pop %v1744
  %v1746 = vmul.f32 %v1706, 1.442695
  %v1747 = vpow.pop %v1746
  %v1748 = vmul.f32 %v1707, 1.442695
  %v1749 = vpow.pop %v1748
  %v1750 = vmul.f32 %v1708, 1.442695
  %v1751 = vpow.pop %v1750
  %v1752 = vmul.f32 %v1709, 1.442695
  %v1753 = vpow.pop %v1752
  %v1754 = vmul.f32 %v1710, 1.442695
  %v1755 = vpow.pop %v1754
  %v1756 = vmul.f32 %v1711, 1.442695
  %v1757 = vpow.pop %v1756
  %v1758 = vmul.f32 %v1712, 1.442695
  %v1759 = vpow.pop %v1758
  %v1760 = vmul.f32 %v1713, 1.442695
  %v1761 = vpow.pop %v1760
  %v1762 = vmul.f32 %v1714, 1.442695
  %v1763 = vpow.pop %v1762
  %v1764 = vmul.f32 %v1715, 1.442695
  %v1765 = vpow.pop %v1764
  %v1766 = vmul.f32 %v1716, 1.442695
  %v1767 = vpow.pop %v1766
  %v1768 = vmul.f32 %v1717, 1.442695
  %v1769 = vpow.pop %v1768
  %v1770 = vmul.f32 %v1718, 1.442695
  %v1771 = vpow.pop %v1770
  %v1772 = vmul.f32 %v1719, 1.442695
  %v1773 = vpow.pop %v1772
  %v1774 = vmul.f32 %v1720, 1.442695
  %v1775 = vpow.pop %v1774
  %v1776 = vmul.f32 %v1721, 1.442695
  %v1777 = vpow.pop %v1776
  %v1778 = vmul.f32 %v1722, 1.442695
  %v1779 = vpow.pop %v1778
  %v1780 = vmul.f32 %v1723, 1.442695
  %v1781 = vpow.pop %v1780
  %v1782 = vmul.f32 %v1724, 1.442695
  %v1783 = vpow.pop %v1782
  %v1784 = vmul.f32 %v1725, 1.442695
  %v1785 = vpow.pop %v1784
  %v1786 = vmul.f32 %v1726, 1.442695
  %v1787 = vpow.pop %v1786
  %v1788 = vmul.f32 %v1727, 1.442695
  %v1789 = vpow.pop %v1788
  %v1790 = vmul.f32 %v1728, 1.442695
  %v1791 = vpow.pop %v1790
  %v1792 = vmul.f32 %v1729, 1.442695
  %v1793 = vpow.pop %v1792
  %v1794 = vsel %vm85, %v1731, 0.0
  %1795 = vadd.xlane.f32.xlu0 %v1794
  %v1796 = vpop.xlane.xlu0 %1795
  %v1797 = vsel %vm85, %v1733, 0.0
  %1798 = vadd.xlane.f32.xlu0 %v1797
  %v1799 = vpop.xlane.xlu0 %1798
  %v1800 = vsel %vm85, %v1735, 0.0
  %1801 = vadd.xlane.f32.xlu0 %v1800
  %v1802 = vpop.xlane.xlu0 %1801
  %v1803 = vsel %vm85, %v1737, 0.0
  %1804 = vadd.xlane.f32.xlu0 %v1803
  %v1805 = vpop.xlane.xlu0 %1804
  %v1806 = vsel %vm85, %v1739, 0.0
  %1807 = vadd.xlane.f32.xlu0 %v1806
  %v1808 = vpop.xlane.xlu0 %1807
  %v1809 = vsel %vm85, %v1741, 0.0
  %1810 = vadd.xlane.f32.xlu0 %v1809
  %v1811 = vpop.xlane.xlu0 %1810
  %v1812 = vsel %vm85, %v1743, 0.0
  %1813 = vadd.xlane.f32.xlu0 %v1812
  %v1814 = vpop.xlane.xlu0 %1813
  %v1815 = vsel %vm85, %v1745, 0.0
  %1816 = vadd.xlane.f32.xlu0 %v1815
  %v1817 = vpop.xlane.xlu0 %1816
  %v1818 = vsel %vm85, %v1747, 0.0
  %1819 = vadd.xlane.f32.xlu0 %v1818
  %v1820 = vpop.xlane.xlu0 %1819
  %v1821 = vsel %vm85, %v1749, 0.0
  %1822 = vadd.xlane.f32.xlu0 %v1821
  %v1823 = vpop.xlane.xlu0 %1822
  %v1824 = vsel %vm85, %v1751, 0.0
  %1825 = vadd.xlane.f32.xlu0 %v1824
  %v1826 = vpop.xlane.xlu0 %1825
  %v1827 = vsel %vm85, %v1753, 0.0
  %1828 = vadd.xlane.f32.xlu0 %v1827
  %v1829 = vpop.xlane.xlu0 %1828
  %v1830 = vsel %vm85, %v1755, 0.0
  %1831 = vadd.xlane.f32.xlu0 %v1830
  %v1832 = vpop.xlane.xlu0 %1831
  %v1833 = vsel %vm85, %v1757, 0.0
  %1834 = vadd.xlane.f32.xlu0 %v1833
  %v1835 = vpop.xlane.xlu0 %1834
  %v1836 = vsel %vm85, %v1759, 0.0
  %1837 = vadd.xlane.f32.xlu0 %v1836
  %v1838 = vpop.xlane.xlu0 %1837
  %v1839 = vsel %vm85, %v1761, 0.0
  %1840 = vadd.xlane.f32.xlu0 %v1839
  %v1841 = vpop.xlane.xlu0 %1840
  %v1842 = vsel %vm85, %v1763, 0.0
  %1843 = vadd.xlane.f32.xlu0 %v1842
  %v1844 = vpop.xlane.xlu0 %1843
  %v1845 = vsel %vm85, %v1765, 0.0
  %1846 = vadd.xlane.f32.xlu0 %v1845
  %v1847 = vpop.xlane.xlu0 %1846
  %v1848 = vsel %vm85, %v1767, 0.0
  %1849 = vadd.xlane.f32.xlu0 %v1848
  %v1850 = vpop.xlane.xlu0 %1849
  %v1851 = vsel %vm85, %v1769, 0.0
  %1852 = vadd.xlane.f32.xlu0 %v1851
  %v1853 = vpop.xlane.xlu0 %1852
  %v1854 = vsel %vm85, %v1771, 0.0
  %1855 = vadd.xlane.f32.xlu0 %v1854
  %v1856 = vpop.xlane.xlu0 %1855
  %v1857 = vsel %vm85, %v1773, 0.0
  %1858 = vadd.xlane.f32.xlu0 %v1857
  %v1859 = vpop.xlane.xlu0 %1858
  %v1860 = vsel %vm85, %v1775, 0.0
  %1861 = vadd.xlane.f32.xlu0 %v1860
  %v1862 = vpop.xlane.xlu0 %1861
  %v1863 = vsel %vm85, %v1777, 0.0
  %1864 = vadd.xlane.f32.xlu0 %v1863
  %v1865 = vpop.xlane.xlu0 %1864
  %v1866 = vsel %vm85, %v1779, 0.0
  %1867 = vadd.xlane.f32.xlu0 %v1866
  %v1868 = vpop.xlane.xlu0 %1867
  %v1869 = vsel %vm85, %v1781, 0.0
  %1870 = vadd.xlane.f32.xlu0 %v1869
  %v1871 = vpop.xlane.xlu0 %1870
  %v1872 = vsel %vm85, %v1783, 0.0
  %1873 = vadd.xlane.f32.xlu0 %v1872
  %v1874 = vpop.xlane.xlu0 %1873
  %v1875 = vsel %vm85, %v1785, 0.0
  %1876 = vadd.xlane.f32.xlu0 %v1875
  %v1877 = vpop.xlane.xlu0 %1876
  %v1878 = vsel %vm85, %v1787, 0.0
  %1879 = vadd.xlane.f32.xlu0 %v1878
  %v1880 = vpop.xlane.xlu0 %1879
  %v1881 = vsel %vm85, %v1789, 0.0
  %1882 = vadd.xlane.f32.xlu0 %v1881
  %v1883 = vpop.xlane.xlu0 %1882
  %v1884 = vsel %vm85, %v1791, 0.0
  %1885 = vadd.xlane.f32.xlu0 %v1884
  %v1886 = vpop.xlane.xlu0 %1885
  %v1887 = vsel %vm85, %v1793, 0.0
  %1888 = vadd.xlane.f32.xlu0 %v1887
  %v1889 = vpop.xlane.xlu0 %1888
  %v1890 = vrcp.pop %v1796
  %v1891 = vrcp.pop %v1799
  %v1892 = vrcp.pop %v1802
  %v1893 = vrcp.pop %v1805
  %v1894 = vrcp.pop %v1808
  %v1895 = vrcp.pop %v1811
  %v1896 = vrcp.pop %v1814
  %v1897 = vrcp.pop %v1817
  %v1898 = vrcp.pop %v1820
  %v1899 = vrcp.pop %v1823
  %v1900 = vrcp.pop %v1826
  %v1901 = vrcp.pop %v1829
  %v1902 = vrcp.pop %v1832
  %v1903 = vrcp.pop %v1835
  %v1904 = vrcp.pop %v1838
  %v1905 = vrcp.pop %v1841
  %v1906 = vrcp.pop %v1844
  %v1907 = vrcp.pop %v1847
  %v1908 = vrcp.pop %v1850
  %v1909 = vrcp.pop %v1853
  %v1910 = vrcp.pop %v1856
  %v1911 = vrcp.pop %v1859
  %v1912 = vrcp.pop %v1862
  %v1913 = vrcp.pop %v1865
  %v1914 = vrcp.pop %v1868
  %v1915 = vrcp.pop %v1871
  %v1916 = vrcp.pop %v1874
  %v1917 = vrcp.pop %v1877
  %v1918 = vrcp.pop %v1880
  %v1919 = vrcp.pop %v1883
  %v1920 = vrcp.pop %v1886
  %v1921 = vrcp.pop %v1889
  %v1922 = vmul.f32 %v1731, %v1890
  %v1923 = vmul.f32 %v1733, %v1891
  %v1924 = vmul.f32 %v1735, %v1892
  %v1925 = vmul.f32 %v1737, %v1893
  %v1926 = vmul.f32 %v1739, %v1894
  %v1927 = vmul.f32 %v1741, %v1895
  %v1928 = vmul.f32 %v1743, %v1896
  %v1929 = vmul.f32 %v1745, %v1897
  %v1930 = vmul.f32 %v1747, %v1898
  %v1931 = vmul.f32 %v1749, %v1899
  %v1932 = vmul.f32 %v1751, %v1900
  %v1933 = vmul.f32 %v1753, %v1901
  %v1934 = vmul.f32 %v1755, %v1902
  %v1935 = vmul.f32 %v1757, %v1903
  %v1936 = vmul.f32 %v1759, %v1904
  %v1937 = vmul.f32 %v1761, %v1905
  %v1938 = vmul.f32 %v1763, %v1906
  %v1939 = vmul.f32 %v1765, %v1907
  %v1940 = vmul.f32 %v1767, %v1908
  %v1941 = vmul.f32 %v1769, %v1909
  %v1942 = vmul.f32 %v1771, %v1910
  %v1943 = vmul.f32 %v1773, %v1911
  %v1944 = vmul.f32 %v1775, %v1912
  %v1945 = vmul.f32 %v1777, %v1913
  %v1946 = vmul.f32 %v1779, %v1914
  %v1947 = vmul.f32 %v1781, %v1915
  %v1948 = vmul.f32 %v1783, %v1916
  %v1949 = vmul.f32 %v1785, %v1917
  %v1950 = vmul.f32 %v1787, %v1918
  %v1951 = vmul.f32 %v1789, %v1919
  %v1952 = vmul.f32 %v1791, %v1920
  %v1953 = vmul.f32 %v1793, %v1921
  %v1954 = vpack.c.bf16 %v1922, %v1922
  %v1955 = vpack.c.bf16 %v1923, %v1923
  %v1956 = vpack.c.bf16 %v1924, %v1924
  %v1957 = vpack.c.bf16 %v1925, %v1925
  %v1958 = vpack.c.bf16 %v1926, %v1926
  %v1959 = vpack.c.bf16 %v1927, %v1927
  %v1960 = vpack.c.bf16 %v1928, %v1928
  %v1961 = vpack.c.bf16 %v1929, %v1929
  %v1962 = vpack.c.bf16 %v1930, %v1930
  %v1963 = vpack.c.bf16 %v1931, %v1931
  %v1964 = vpack.c.bf16 %v1932, %v1932
  %v1965 = vpack.c.bf16 %v1933, %v1933
  %v1966 = vpack.c.bf16 %v1934, %v1934
  %v1967 = vpack.c.bf16 %v1935, %v1935
  %v1968 = vpack.c.bf16 %v1936, %v1936
  %v1969 = vpack.c.bf16 %v1937, %v1937
  %v1970 = vpack.c.bf16 %v1938, %v1938
  %v1971 = vpack.c.bf16 %v1939, %v1939
  %v1972 = vpack.c.bf16 %v1940, %v1940
  %v1973 = vpack.c.bf16 %v1941, %v1941
  %v1974 = vpack.c.bf16 %v1942, %v1942
  %v1975 = vpack.c.bf16 %v1943, %v1943
  %v1976 = vpack.c.bf16 %v1944, %v1944
  %v1977 = vpack.c.bf16 %v1945, %v1945
  %v1978 = vpack.c.bf16 %v1946, %v1946
  %v1979 = vpack.c.bf16 %v1947, %v1947
  %v1980 = vpack.c.bf16 %v1948, %v1948
  %v1981 = vpack.c.bf16 %v1949, %v1949
  %v1982 = vpack.c.bf16 %v1950, %v1950
  %v1983 = vpack.c.bf16 %v1951, %v1951
  %v1984 = vpack.c.bf16 %v1952, %v1952
  %v1985 = vpack.c.bf16 %v1953, %v1953
  %v1990 = vunpack.c.l.b16 %v1954
  %v1991 = vunpack.c.l.b16 %v1955
  %v1992 = vunpack.c.l.b16 %v1956
  %v1993 = vunpack.c.l.b16 %v1957
  %v1994 = vpack.c.b16 %v1991, %v1990
  %v1995 = vpack.c.b16 %v1993, %v1992
  %1996 = vrot.lane.b32.xlu0 %v1249, 64
  %v1997 = vpop.permute.xlu0 %1996
  %1998 = vrot.lane.b32.xlu0 %v1250, 64
  %v1999 = vpop.permute.xlu0 %1998
  %v2003 = vsel %vm85, %v1994, 0
  %v2006 = vsel %vm85, %v1995, 0
  %2008 = vmatpush.bf16.msra.mxu0 0
  %2009 = vmatpush.bf16.msra.mxu0 0
  %2010 = vmatpush.bf16.msra.mxu0 0
  %2011 = vmatpush.bf16.msra.mxu0 0
  %2012 = vmatpush.bf16.msra.mxu0 0
  %2013 = vmatpush.bf16.msra.mxu0 0
  %2014 = vmatpush.bf16.msra.mxu0 %v1999
  %2015 = vmatpush.bf16.msra.mxu0 %v1997
  %2016 = vmatmul.bf16.gmra.mxu0 %v2003
  %v2017 = vpop.f32.mrf.mxu0
  %v2018 = vadd.f32 0.0, %v2017
  %v2019 = vpop.f32.mrf.mxu0
  %v2020 = vadd.f32 0.0, %v2019
  %2021 = vmatmul.bf16.gmra.mxu0 %v2006
  %v2022 = vpop.f32.mrf.mxu0
  %v2023 = vadd.f32 0.0, %v2022
  %v2024 = vpop.f32.mrf.mxu0
  %v2025 = vadd.f32 0.0, %v2024
  %2026 = vdwg.mxu0
  %v2031 = vunpack.c.l.b16 %v1958
  %v2032 = vunpack.c.l.b16 %v1959
  %v2033 = vunpack.c.l.b16 %v1960
  %v2034 = vunpack.c.l.b16 %v1961
  %v2035 = vpack.c.b16 %v2032, %v2031
  %v2036 = vpack.c.b16 %v2034, %v2033
  %2037 = vrot.lane.b32.xlu0 %v1295, 64
  %v2038 = vpop.permute.xlu0 %2037
  %2039 = vrot.lane.b32.xlu0 %v1296, 64
  %v2040 = vpop.permute.xlu0 %2039
  %v2044 = vsel %vm85, %v2035, 0
  %v2047 = vsel %vm85, %v2036, 0
  %2049 = vmatpush.bf16.msra.mxu0 0
  %2050 = vmatpush.bf16.msra.mxu0 0
  %2051 = vmatpush.bf16.msra.mxu0 0
  %2052 = vmatpush.bf16.msra.mxu0 0
  %2053 = vmatpush.bf16.msra.mxu0 0
  %2054 = vmatpush.bf16.msra.mxu0 0
  %2055 = vmatpush.bf16.msra.mxu0 %v2040
  %2056 = vmatpush.bf16.msra.mxu0 %v2038
  %2057 = vmatmul.bf16.gmra.mxu0 %v2044
  %v2058 = vpop.f32.mrf.mxu0
  %v2059 = vadd.f32 0.0, %v2058
  %v2060 = vpop.f32.mrf.mxu0
  %v2061 = vadd.f32 0.0, %v2060
  %2062 = vmatmul.bf16.gmra.mxu0 %v2047
  %v2063 = vpop.f32.mrf.mxu0
  %v2064 = vadd.f32 0.0, %v2063
  %v2065 = vpop.f32.mrf.mxu0
  %v2066 = vadd.f32 0.0, %v2065
  %2067 = vdwg.mxu0
  %v2072 = vunpack.c.l.b16 %v1962
  %v2073 = vunpack.c.l.b16 %v1963
  %v2074 = vunpack.c.l.b16 %v1964
  %v2075 = vunpack.c.l.b16 %v1965
  %v2076 = vpack.c.b16 %v2073, %v2072
  %v2077 = vpack.c.b16 %v2075, %v2074
  %2078 = vrot.lane.b32.xlu0 %v1340, 64
  %v2079 = vpop.permute.xlu0 %2078
  %2080 = vrot.lane.b32.xlu0 %v1341, 64
  %v2081 = vpop.permute.xlu0 %2080
  %v2085 = vsel %vm85, %v2076, 0
  %v2088 = vsel %vm85, %v2077, 0
  %2090 = vmatpush.bf16.msra.mxu0 0
  %2091 = vmatpush.bf16.msra.mxu0 0
  %2092 = vmatpush.bf16.msra.mxu0 0
  %2093 = vmatpush.bf16.msra.mxu0 0
  %2094 = vmatpush.bf16.msra.mxu0 0
  %2095 = vmatpush.bf16.msra.mxu0 0
  %2096 = vmatpush.bf16.msra.mxu0 %v2081
  %2097 = vmatpush.bf16.msra.mxu0 %v2079
  %2098 = vmatmul.bf16.gmra.mxu0 %v2085
  %v2099 = vpop.f32.mrf.mxu0
  %v2100 = vadd.f32 0.0, %v2099
  %v2101 = vpop.f32.mrf.mxu0
  %v2102 = vadd.f32 0.0, %v2101
  %2103 = vmatmul.bf16.gmra.mxu0 %v2088
  %v2104 = vpop.f32.mrf.mxu0
  %v2105 = vadd.f32 0.0, %v2104
  %v2106 = vpop.f32.mrf.mxu0
  %v2107 = vadd.f32 0.0, %v2106
  %2108 = vdwg.mxu0
  %v2113 = vunpack.c.l.b16 %v1966
  %v2114 = vunpack.c.l.b16 %v1967
  %v2115 = vunpack.c.l.b16 %v1968
  %v2116 = vunpack.c.l.b16 %v1969
  %v2117 = vpack.c.b16 %v2114, %v2113
  %v2118 = vpack.c.b16 %v2116, %v2115
  %2119 = vrot.lane.b32.xlu0 %v1385, 64
  %v2120 = vpop.permute.xlu0 %2119
  %2121 = vrot.lane.b32.xlu0 %v1386, 64
  %v2122 = vpop.permute.xlu0 %2121
  %v2126 = vsel %vm85, %v2117, 0
  %v2129 = vsel %vm85, %v2118, 0
  %2131 = vmatpush.bf16.msra.mxu0 0
  %2132 = vmatpush.bf16.msra.mxu0 0
  %2133 = vmatpush.bf16.msra.mxu0 0
  %2134 = vmatpush.bf16.msra.mxu0 0
  %2135 = vmatpush.bf16.msra.mxu0 0
  %2136 = vmatpush.bf16.msra.mxu0 0
  %2137 = vmatpush.bf16.msra.mxu0 %v2122
  %2138 = vmatpush.bf16.msra.mxu0 %v2120
  %2139 = vmatmul.bf16.gmra.mxu0 %v2126
  %v2140 = vpop.f32.mrf.mxu0
  %v2141 = vadd.f32 0.0, %v2140
  %v2142 = vpop.f32.mrf.mxu0
  %v2143 = vadd.f32 0.0, %v2142
  %2144 = vmatmul.bf16.gmra.mxu0 %v2129
  %v2145 = vpop.f32.mrf.mxu0
  %v2146 = vadd.f32 0.0, %v2145
  %v2147 = vpop.f32.mrf.mxu0
  %v2148 = vadd.f32 0.0, %v2147
  %2149 = vdwg.mxu0
  %v2154 = vunpack.c.l.b16 %v1970
  %v2155 = vunpack.c.l.b16 %v1971
  %v2156 = vunpack.c.l.b16 %v1972
  %v2157 = vunpack.c.l.b16 %v1973
  %v2158 = vpack.c.b16 %v2155, %v2154
  %v2159 = vpack.c.b16 %v2157, %v2156
  %2160 = vrot.lane.b32.xlu0 %v1430, 64
  %v2161 = vpop.permute.xlu0 %2160
  %2162 = vrot.lane.b32.xlu0 %v1431, 64
  %v2163 = vpop.permute.xlu0 %2162
  %v2167 = vsel %vm85, %v2158, 0
  %v2170 = vsel %vm85, %v2159, 0
  %2172 = vmatpush.bf16.msra.mxu0 0
  %2173 = vmatpush.bf16.msra.mxu0 0
  %2174 = vmatpush.bf16.msra.mxu0 0
  %2175 = vmatpush.bf16.msra.mxu0 0
  %2176 = vmatpush.bf16.msra.mxu0 0
  %2177 = vmatpush.bf16.msra.mxu0 0
  %2178 = vmatpush.bf16.msra.mxu0 %v2163
  %2179 = vmatpush.bf16.msra.mxu0 %v2161
  %2180 = vmatmul.bf16.gmra.mxu0 %v2167
  %v2181 = vpop.f32.mrf.mxu0
  %v2182 = vadd.f32 0.0, %v2181
  %v2183 = vpop.f32.mrf.mxu0
  %v2184 = vadd.f32 0.0, %v2183
  %2185 = vmatmul.bf16.gmra.mxu0 %v2170
  %v2186 = vpop.f32.mrf.mxu0
  %v2187 = vadd.f32 0.0, %v2186
  %v2188 = vpop.f32.mrf.mxu0
  %v2189 = vadd.f32 0.0, %v2188
  %2190 = vdwg.mxu0
  %v2195 = vunpack.c.l.b16 %v1974
  %v2196 = vunpack.c.l.b16 %v1975
  %v2197 = vunpack.c.l.b16 %v1976
  %v2198 = vunpack.c.l.b16 %v1977
  %v2199 = vpack.c.b16 %v2196, %v2195
  %v2200 = vpack.c.b16 %v2198, %v2197
  %2201 = vrot.lane.b32.xlu0 %v1475, 64
  %v2202 = vpop.permute.xlu0 %2201
  %2203 = vrot.lane.b32.xlu0 %v1476, 64
  %v2204 = vpop.permute.xlu0 %2203
  %v2208 = vsel %vm85, %v2199, 0
  %v2211 = vsel %vm85, %v2200, 0
  %2213 = vmatpush.bf16.msra.mxu0 0
  %2214 = vmatpush.bf16.msra.mxu0 0
  %2215 = vmatpush.bf16.msra.mxu0 0
  %2216 = vmatpush.bf16.msra.mxu0 0
  %2217 = vmatpush.bf16.msra.mxu0 0
  %2218 = vmatpush.bf16.msra.mxu0 0
  %2219 = vmatpush.bf16.msra.mxu0 %v2204
  %2220 = vmatpush.bf16.msra.mxu0 %v2202
  %2221 = vmatmul.bf16.gmra.mxu0 %v2208
  %v2222 = vpop.f32.mrf.mxu0
  %v2223 = vadd.f32 0.0, %v2222
  %v2224 = vpop.f32.mrf.mxu0
  %v2225 = vadd.f32 0.0, %v2224
  %2226 = vmatmul.bf16.gmra.mxu0 %v2211
  %v2227 = vpop.f32.mrf.mxu0
  %v2228 = vadd.f32 0.0, %v2227
  %v2229 = vpop.f32.mrf.mxu0
  %v2230 = vadd.f32 0.0, %v2229
  %2231 = vdwg.mxu0
  %v2236 = vunpack.c.l.b16 %v1978
  %v2237 = vunpack.c.l.b16 %v1979
  %v2238 = vunpack.c.l.b16 %v1980
  %v2239 = vunpack.c.l.b16 %v1981
  %v2240 = vpack.c.b16 %v2237, %v2236
  %v2241 = vpack.c.b16 %v2239, %v2238
  %2242 = vrot.lane.b32.xlu0 %v1520, 64
  %v2243 = vpop.permute.xlu0 %2242
  %2244 = vrot.lane.b32.xlu0 %v1521, 64
  %v2245 = vpop.permute.xlu0 %2244
  %v2249 = vsel %vm85, %v2240, 0
  %v2252 = vsel %vm85, %v2241, 0
  %2254 = vmatpush.bf16.msra.mxu0 0
  %2255 = vmatpush.bf16.msra.mxu0 0
  %2256 = vmatpush.bf16.msra.mxu0 0
  %2257 = vmatpush.bf16.msra.mxu0 0
  %2258 = vmatpush.bf16.msra.mxu0 0
  %2259 = vmatpush.bf16.msra.mxu0 0
  %2260 = vmatpush.bf16.msra.mxu0 %v2245
  %2261 = vmatpush.bf16.msra.mxu0 %v2243
  %2262 = vmatmul.bf16.gmra.mxu0 %v2249
  %v2263 = vpop.f32.mrf.mxu0
  %v2264 = vadd.f32 0.0, %v2263
  %v2265 = vpop.f32.mrf.mxu0
  %v2266 = vadd.f32 0.0, %v2265
  %2267 = vmatmul.bf16.gmra.mxu0 %v2252
  %v2268 = vpop.f32.mrf.mxu0
  %v2269 = vadd.f32 0.0, %v2268
  %v2270 = vpop.f32.mrf.mxu0
  %v2271 = vadd.f32 0.0, %v2270
  %2272 = vdwg.mxu0
  %v2277 = vunpack.c.l.b16 %v1982
  %v2278 = vunpack.c.l.b16 %v1983
  %v2279 = vunpack.c.l.b16 %v1984
  %v2280 = vunpack.c.l.b16 %v1985
  %v2281 = vpack.c.b16 %v2278, %v2277
  %v2282 = vpack.c.b16 %v2280, %v2279
  %2283 = vrot.lane.b32.xlu0 %v1565, 64
  %v2284 = vpop.permute.xlu0 %2283
  %2285 = vrot.lane.b32.xlu0 %v1566, 64
  %v2286 = vpop.permute.xlu0 %2285
  %v2290 = vsel %vm85, %v2281, 0
  %v2293 = vsel %vm85, %v2282, 0
  %2295 = vmatpush.bf16.msra.mxu0 0
  %2296 = vmatpush.bf16.msra.mxu0 0
  %2297 = vmatpush.bf16.msra.mxu0 0
  %2298 = vmatpush.bf16.msra.mxu0 0
  %2299 = vmatpush.bf16.msra.mxu0 0
  %2300 = vmatpush.bf16.msra.mxu0 0
  %2301 = vmatpush.bf16.msra.mxu0 %v2286
  %2302 = vmatpush.bf16.msra.mxu0 %v2284
  %2303 = vmatmul.bf16.gmra.mxu0 %v2290
  %v2304 = vpop.f32.mrf.mxu0
  %v2305 = vadd.f32 0.0, %v2304
  %v2306 = vpop.f32.mrf.mxu0
  %v2307 = vadd.f32 0.0, %v2306
  %2308 = vmatmul.bf16.gmra.mxu0 %v2293
  %v2309 = vpop.f32.mrf.mxu0
  %v2310 = vadd.f32 0.0, %v2309
  %v2311 = vpop.f32.mrf.mxu0
  %v2312 = vadd.f32 0.0, %v2311
  %2313 = vdwg.mxu0
  %s2314 = scalar_lea.vmem %s5, 32
  %v2315 = vld [vmem:[%s2314] sm:$0xff]
  %v2316 = vld [vmem:[%s2314 + $0x8] sm:$0xff]
  %v2317 = vld [vmem:[%s2314 + $0x10] sm:$0xff]
  %v2318 = vld [vmem:[%s2314 + $0x18] sm:$0xff]
  %2319 = vrot.lane.b32.xlu0 %v1249, 112
  %v2320 = vpop.permute.xlu0 %2319
  %2321 = vrot.lane.b32.xlu0 %v1250, 112
  %v2322 = vpop.permute.xlu0 %2321
  %2323 = vrot.lane.b32.xlu0 %v1249, 80
  %v2324 = vpop.permute.xlu0 %2323
  %2325 = vrot.lane.b32.xlu0 %v1250, 80
  %v2326 = vpop.permute.xlu0 %2325
  %v2328 = vsel %vm1255, %v2320, 0
  %v2331 = vsel %vm1255, %v2322, 0
  %v2334 = vsel %vm1255, %v2324, 0
  %v2337 = vsel %vm1255, %v2326, 0
  %2339 = vmatpush.bf16.xpose.msra.mxu0 0
  %2340 = vmatpush.bf16.xpose.msra.mxu0 0
  %2341 = vmatpush.bf16.xpose.msra.mxu0 0
  %2342 = vmatpush.bf16.xpose.msra.mxu0 0
  %2343 = vmatpush.bf16.xpose.msra.mxu0 0
  %2344 = vmatpush.bf16.xpose.msra.mxu0 0
  %2345 = vmatpush.bf16.xpose.msra.mxu0 %v2337
  %2346 = vmatpush.bf16.xpose.msra.mxu0 %v2334
  %2347 = vmatmul.bf16.gmra.mxu0 %v2328
  %v2348 = vpop.f32.mrf.mxu0
  %v2349 = vadd.f32 %v2315, %v2348
  %v2350 = vpop.f32.mrf.mxu0
  %v2351 = vadd.f32 %v2316, %v2350
  %2352 = vmatmul.bf16.gmra.mxu0 %v2331
  %v2353 = vpop.f32.mrf.mxu0
  %v2354 = vadd.f32 %v2317, %v2353
  %v2355 = vpop.f32.mrf.mxu0
  %v2356 = vadd.f32 %v2318, %v2355
  %2357 = vdwg.mxu0
  %2358 = vrot.lane.b32.xlu0 %v1295, 112
  %v2359 = vpop.permute.xlu0 %2358
  %2360 = vrot.lane.b32.xlu0 %v1296, 112
  %v2361 = vpop.permute.xlu0 %2360
  %2362 = vrot.lane.b32.xlu0 %v1295, 80
  %v2363 = vpop.permute.xlu0 %2362
  %2364 = vrot.lane.b32.xlu0 %v1296, 80
  %v2365 = vpop.permute.xlu0 %2364
  %v2367 = vsel %vm1255, %v2359, 0
  %v2370 = vsel %vm1255, %v2361, 0
  %v2373 = vsel %vm1255, %v2363, 0
  %v2376 = vsel %vm1255, %v2365, 0
  %2378 = vmatpush.bf16.xpose.msra.mxu0 0
  %2379 = vmatpush.bf16.xpose.msra.mxu0 0
  %2380 = vmatpush.bf16.xpose.msra.mxu0 0
  %2381 = vmatpush.bf16.xpose.msra.mxu0 0
  %2382 = vmatpush.bf16.xpose.msra.mxu0 0
  %2383 = vmatpush.bf16.xpose.msra.mxu0 0
  %2384 = vmatpush.bf16.xpose.msra.mxu0 %v2376
  %2385 = vmatpush.bf16.xpose.msra.mxu0 %v2373
  %2386 = vmatmul.bf16.gmra.mxu0 %v2367
  %v2387 = vpop.f32.mrf.mxu0
  %v2388 = vadd.f32 %v2315, %v2387
  %v2389 = vpop.f32.mrf.mxu0
  %v2390 = vadd.f32 %v2316, %v2389
  %2391 = vmatmul.bf16.gmra.mxu0 %v2370
  %v2392 = vpop.f32.mrf.mxu0
  %v2393 = vadd.f32 %v2317, %v2392
  %v2394 = vpop.f32.mrf.mxu0
  %v2395 = vadd.f32 %v2318, %v2394
  %2396 = vdwg.mxu0
  %2397 = vrot.lane.b32.xlu0 %v1340, 112
  %v2398 = vpop.permute.xlu0 %2397
  %2399 = vrot.lane.b32.xlu0 %v1341, 112
  %v2400 = vpop.permute.xlu0 %2399
  %2401 = vrot.lane.b32.xlu0 %v1340, 80
  %v2402 = vpop.permute.xlu0 %2401
  %2403 = vrot.lane.b32.xlu0 %v1341, 80
  %v2404 = vpop.permute.xlu0 %2403
  %v2406 = vsel %vm1255, %v2398, 0
  %v2409 = vsel %vm1255, %v2400, 0
  %v2412 = vsel %vm1255, %v2402, 0
  %v2415 = vsel %vm1255, %v2404, 0
  %2417 = vmatpush.bf16.xpose.msra.mxu0 0
  %2418 = vmatpush.bf16.xpose.msra.mxu0 0
  %2419 = vmatpush.bf16.xpose.msra.mxu0 0
  %2420 = vmatpush.bf16.xpose.msra.mxu0 0
  %2421 = vmatpush.bf16.xpose.msra.mxu0 0
  %2422 = vmatpush.bf16.xpose.msra.mxu0 0
  %2423 = vmatpush.bf16.xpose.msra.mxu0 %v2415
  %2424 = vmatpush.bf16.xpose.msra.mxu0 %v2412
  %2425 = vmatmul.bf16.gmra.mxu0 %v2406
  %v2426 = vpop.f32.mrf.mxu0
  %v2427 = vadd.f32 %v2315, %v2426
  %v2428 = vpop.f32.mrf.mxu0
  %v2429 = vadd.f32 %v2316, %v2428
  %2430 = vmatmul.bf16.gmra.mxu0 %v2409
  %v2431 = vpop.f32.mrf.mxu0
  %v2432 = vadd.f32 %v2317, %v2431
  %v2433 = vpop.f32.mrf.mxu0
  %v2434 = vadd.f32 %v2318, %v2433
  %2435 = vdwg.mxu0
  %2436 = vrot.lane.b32.xlu0 %v1385, 112
  %v2437 = vpop.permute.xlu0 %2436
  %2438 = vrot.lane.b32.xlu0 %v1386, 112
  %v2439 = vpop.permute.xlu0 %2438
  %2440 = vrot.lane.b32.xlu0 %v1385, 80
  %v2441 = vpop.permute.xlu0 %2440
  %2442 = vrot.lane.b32.xlu0 %v1386, 80
  %v2443 = vpop.permute.xlu0 %2442
  %v2445 = vsel %vm1255, %v2437, 0
  %v2448 = vsel %vm1255, %v2439, 0
  %v2451 = vsel %vm1255, %v2441, 0
  %v2454 = vsel %vm1255, %v2443, 0
  %2456 = vmatpush.bf16.xpose.msra.mxu0 0
  %2457 = vmatpush.bf16.xpose.msra.mxu0 0
  %2458 = vmatpush.bf16.xpose.msra.mxu0 0
  %2459 = vmatpush.bf16.xpose.msra.mxu0 0
  %2460 = vmatpush.bf16.xpose.msra.mxu0 0
  %2461 = vmatpush.bf16.xpose.msra.mxu0 0
  %2462 = vmatpush.bf16.xpose.msra.mxu0 %v2454
  %2463 = vmatpush.bf16.xpose.msra.mxu0 %v2451
  %2464 = vmatmul.bf16.gmra.mxu0 %v2445
  %v2465 = vpop.f32.mrf.mxu0
  %v2466 = vadd.f32 %v2315, %v2465
  %v2467 = vpop.f32.mrf.mxu0
  %v2468 = vadd.f32 %v2316, %v2467
  %2469 = vmatmul.bf16.gmra.mxu0 %v2448
  %v2470 = vpop.f32.mrf.mxu0
  %v2471 = vadd.f32 %v2317, %v2470
  %v2472 = vpop.f32.mrf.mxu0
  %v2473 = vadd.f32 %v2318, %v2472
  %2474 = vdwg.mxu0
  %2475 = vrot.lane.b32.xlu0 %v1430, 112
  %v2476 = vpop.permute.xlu0 %2475
  %2477 = vrot.lane.b32.xlu0 %v1431, 112
  %v2478 = vpop.permute.xlu0 %2477
  %2479 = vrot.lane.b32.xlu0 %v1430, 80
  %v2480 = vpop.permute.xlu0 %2479
  %2481 = vrot.lane.b32.xlu0 %v1431, 80
  %v2482 = vpop.permute.xlu0 %2481
  %v2484 = vsel %vm1255, %v2476, 0
  %v2487 = vsel %vm1255, %v2478, 0
  %v2490 = vsel %vm1255, %v2480, 0
  %v2493 = vsel %vm1255, %v2482, 0
  %2495 = vmatpush.bf16.xpose.msra.mxu0 0
  %2496 = vmatpush.bf16.xpose.msra.mxu0 0
  %2497 = vmatpush.bf16.xpose.msra.mxu0 0
  %2498 = vmatpush.bf16.xpose.msra.mxu0 0
  %2499 = vmatpush.bf16.xpose.msra.mxu0 0
  %2500 = vmatpush.bf16.xpose.msra.mxu0 0
  %2501 = vmatpush.bf16.xpose.msra.mxu0 %v2493
  %2502 = vmatpush.bf16.xpose.msra.mxu0 %v2490
  %2503 = vmatmul.bf16.gmra.mxu0 %v2484
  %v2504 = vpop.f32.mrf.mxu0
  %v2505 = vadd.f32 %v2315, %v2504
  %v2506 = vpop.f32.mrf.mxu0
  %v2507 = vadd.f32 %v2316, %v2506
  %2508 = vmatmul.bf16.gmra.mxu0 %v2487
  %v2509 = vpop.f32.mrf.mxu0
  %v2510 = vadd.f32 %v2317, %v2509
  %v2511 = vpop.f32.mrf.mxu0
  %v2512 = vadd.f32 %v2318, %v2511
  %2513 = vdwg.mxu0
  %2514 = vrot.lane.b32.xlu0 %v1475, 112
  %v2515 = vpop.permute.xlu0 %2514
  %2516 = vrot.lane.b32.xlu0 %v1476, 112
  %v2517 = vpop.permute.xlu0 %2516
  %2518 = vrot.lane.b32.xlu0 %v1475, 80
  %v2519 = vpop.permute.xlu0 %2518
  %2520 = vrot.lane.b32.xlu0 %v1476, 80
  %v2521 = vpop.permute.xlu0 %2520
  %v2523 = vsel %vm1255, %v2515, 0
  %v2526 = vsel %vm1255, %v2517, 0
  %v2529 = vsel %vm1255, %v2519, 0
  %v2532 = vsel %vm1255, %v2521, 0
  %2534 = vmatpush.bf16.xpose.msra.mxu0 0
  %2535 = vmatpush.bf16.xpose.msra.mxu0 0
  %2536 = vmatpush.bf16.xpose.msra.mxu0 0
  %2537 = vmatpush.bf16.xpose.msra.mxu0 0
  %2538 = vmatpush.bf16.xpose.msra.mxu0 0
  %2539 = vmatpush.bf16.xpose.msra.mxu0 0
  %2540 = vmatpush.bf16.xpose.msra.mxu0 %v2532
  %2541 = vmatpush.bf16.xpose.msra.mxu0 %v2529
  %2542 = vmatmul.bf16.gmra.mxu0 %v2523
  %v2543 = vpop.f32.mrf.mxu0
  %v2544 = vadd.f32 %v2315, %v2543
  %v2545 = vpop.f32.mrf.mxu0
  %v2546 = vadd.f32 %v2316, %v2545
  %2547 = vmatmul.bf16.gmra.mxu0 %v2526
  %v2548 = vpop.f32.mrf.mxu0
  %v2549 = vadd.f32 %v2317, %v2548
  %v2550 = vpop.f32.mrf.mxu0
  %v2551 = vadd.f32 %v2318, %v2550
  %2552 = vdwg.mxu0
  %2553 = vrot.lane.b32.xlu0 %v1520, 112
  %v2554 = vpop.permute.xlu0 %2553
  %2555 = vrot.lane.b32.xlu0 %v1521, 112
  %v2556 = vpop.permute.xlu0 %2555
  %2557 = vrot.lane.b32.xlu0 %v1520, 80
  %v2558 = vpop.permute.xlu0 %2557
  %2559 = vrot.lane.b32.xlu0 %v1521, 80
  %v2560 = vpop.permute.xlu0 %2559
  %v2562 = vsel %vm1255, %v2554, 0
  %v2565 = vsel %vm1255, %v2556, 0
  %v2568 = vsel %vm1255, %v2558, 0
  %v2571 = vsel %vm1255, %v2560, 0
  %2573 = vmatpush.bf16.xpose.msra.mxu0 0
  %2574 = vmatpush.bf16.xpose.msra.mxu0 0
  %2575 = vmatpush.bf16.xpose.msra.mxu0 0
  %2576 = vmatpush.bf16.xpose.msra.mxu0 0
  %2577 = vmatpush.bf16.xpose.msra.mxu0 0
  %2578 = vmatpush.bf16.xpose.msra.mxu0 0
  %2579 = vmatpush.bf16.xpose.msra.mxu0 %v2571
  %2580 = vmatpush.bf16.xpose.msra.mxu0 %v2568
  %2581 = vmatmul.bf16.gmra.mxu0 %v2562
  %v2582 = vpop.f32.mrf.mxu0
  %v2583 = vadd.f32 %v2315, %v2582
  %v2584 = vpop.f32.mrf.mxu0
  %v2585 = vadd.f32 %v2316, %v2584
  %2586 = vmatmul.bf16.gmra.mxu0 %v2565
  %v2587 = vpop.f32.mrf.mxu0
  %v2588 = vadd.f32 %v2317, %v2587
  %v2589 = vpop.f32.mrf.mxu0
  %v2590 = vadd.f32 %v2318, %v2589
  %2591 = vdwg.mxu0
  %2592 = vrot.lane.b32.xlu0 %v1565, 112
  %v2593 = vpop.permute.xlu0 %2592
  %2594 = vrot.lane.b32.xlu0 %v1566, 112
  %v2595 = vpop.permute.xlu0 %2594
  %2596 = vrot.lane.b32.xlu0 %v1565, 80
  %v2597 = vpop.permute.xlu0 %2596
  %2598 = vrot.lane.b32.xlu0 %v1566, 80
  %v2599 = vpop.permute.xlu0 %2598
  %v2601 = vsel %vm1255, %v2593, 0
  %v2604 = vsel %vm1255, %v2595, 0
  %v2607 = vsel %vm1255, %v2597, 0
  %v2610 = vsel %vm1255, %v2599, 0
  %2612 = vmatpush.bf16.xpose.msra.mxu0 0
  %2613 = vmatpush.bf16.xpose.msra.mxu0 0
  %2614 = vmatpush.bf16.xpose.msra.mxu0 0
  %2615 = vmatpush.bf16.xpose.msra.mxu0 0
  %2616 = vmatpush.bf16.xpose.msra.mxu0 0
  %2617 = vmatpush.bf16.xpose.msra.mxu0 0
  %2618 = vmatpush.bf16.xpose.msra.mxu0 %v2610
  %2619 = vmatpush.bf16.xpose.msra.mxu0 %v2607
  %2620 = vmatmul.bf16.gmra.mxu0 %v2601
  %v2621 = vpop.f32.mrf.mxu0
  %v2622 = vadd.f32 %v2315, %v2621
  %v2623 = vpop.f32.mrf.mxu0
  %v2624 = vadd.f32 %v2316, %v2623
  %2625 = vmatmul.bf16.gmra.mxu0 %v2604
  %v2626 = vpop.f32.mrf.mxu0
  %v2627 = vadd.f32 %v2317, %v2626
  %v2628 = vpop.f32.mrf.mxu0
  %v2629 = vadd.f32 %v2318, %v2628
  %2630 = vdwg.mxu0
  %v2631 = vsel %vm85, %v2349, -inf
  %2632 = vmax.xlane.f32.xlu0 %v2631
  %v2633 = vpop.xlane.xlu0 %2632
  %v2634 = vsel %vm85, %v2351, -inf
  %2635 = vmax.xlane.f32.xlu0 %v2634
  %v2636 = vpop.xlane.xlu0 %2635
  %v2637 = vsel %vm85, %v2354, -inf
  %2638 = vmax.xlane.f32.xlu0 %v2637
  %v2639 = vpop.xlane.xlu0 %2638
  %v2640 = vsel %vm85, %v2356, -inf
  %2641 = vmax.xlane.f32.xlu0 %v2640
  %v2642 = vpop.xlane.xlu0 %2641
  %v2643 = vsel %vm85, %v2388, -inf
  %2644 = vmax.xlane.f32.xlu0 %v2643
  %v2645 = vpop.xlane.xlu0 %2644
  %v2646 = vsel %vm85, %v2390, -inf
  %2647 = vmax.xlane.f32.xlu0 %v2646
  %v2648 = vpop.xlane.xlu0 %2647
  %v2649 = vsel %vm85, %v2393, -inf
  %2650 = vmax.xlane.f32.xlu0 %v2649
  %v2651 = vpop.xlane.xlu0 %2650
  %v2652 = vsel %vm85, %v2395, -inf
  %2653 = vmax.xlane.f32.xlu0 %v2652
  %v2654 = vpop.xlane.xlu0 %2653
  %v2655 = vsel %vm85, %v2427, -inf
  %2656 = vmax.xlane.f32.xlu0 %v2655
  %v2657 = vpop.xlane.xlu0 %2656
  %v2658 = vsel %vm85, %v2429, -inf
  %2659 = vmax.xlane.f32.xlu0 %v2658
  %v2660 = vpop.xlane.xlu0 %2659
  %v2661 = vsel %vm85, %v2432, -inf
  %2662 = vmax.xlane.f32.xlu0 %v2661
  %v2663 = vpop.xlane.xlu0 %2662
  %v2664 = vsel %vm85, %v2434, -inf
  %2665 = vmax.xlane.f32.xlu0 %v2664
  %v2666 = vpop.xlane.xlu0 %2665
  %v2667 = vsel %vm85, %v2466, -inf
  %2668 = vmax.xlane.f32.xlu0 %v2667
  %v2669 = vpop.xlane.xlu0 %2668
  %v2670 = vsel %vm85, %v2468, -inf
  %2671 = vmax.xlane.f32.xlu0 %v2670
  %v2672 = vpop.xlane.xlu0 %2671
  %v2673 = vsel %vm85, %v2471, -inf
  %2674 = vmax.xlane.f32.xlu0 %v2673
  %v2675 = vpop.xlane.xlu0 %2674
  %v2676 = vsel %vm85, %v2473, -inf
  %2677 = vmax.xlane.f32.xlu0 %v2676
  %v2678 = vpop.xlane.xlu0 %2677
  %v2679 = vsel %vm85, %v2505, -inf
  %2680 = vmax.xlane.f32.xlu0 %v2679
  %v2681 = vpop.xlane.xlu0 %2680
  %v2682 = vsel %vm85, %v2507, -inf
  %2683 = vmax.xlane.f32.xlu0 %v2682
  %v2684 = vpop.xlane.xlu0 %2683
  %v2685 = vsel %vm85, %v2510, -inf
  %2686 = vmax.xlane.f32.xlu0 %v2685
  %v2687 = vpop.xlane.xlu0 %2686
  %v2688 = vsel %vm85, %v2512, -inf
  %2689 = vmax.xlane.f32.xlu0 %v2688
  %v2690 = vpop.xlane.xlu0 %2689
  %v2691 = vsel %vm85, %v2544, -inf
  %2692 = vmax.xlane.f32.xlu0 %v2691
  %v2693 = vpop.xlane.xlu0 %2692
  %v2694 = vsel %vm85, %v2546, -inf
  %2695 = vmax.xlane.f32.xlu0 %v2694
  %v2696 = vpop.xlane.xlu0 %2695
  %v2697 = vsel %vm85, %v2549, -inf
  %2698 = vmax.xlane.f32.xlu0 %v2697
  %v2699 = vpop.xlane.xlu0 %2698
  %v2700 = vsel %vm85, %v2551, -inf
  %2701 = vmax.xlane.f32.xlu0 %v2700
  %v2702 = vpop.xlane.xlu0 %2701
  %v2703 = vsel %vm85, %v2583, -inf
  %2704 = vmax.xlane.f32.xlu0 %v2703
  %v2705 = vpop.xlane.xlu0 %2704
  %v2706 = vsel %vm85, %v2585, -inf
  %2707 = vmax.xlane.f32.xlu0 %v2706
  %v2708 = vpop.xlane.xlu0 %2707
  %v2709 = vsel %vm85, %v2588, -inf
  %2710 = vmax.xlane.f32.xlu0 %v2709
  %v2711 = vpop.xlane.xlu0 %2710
  %v2712 = vsel %vm85, %v2590, -inf
  %2713 = vmax.xlane.f32.xlu0 %v2712
  %v2714 = vpop.xlane.xlu0 %2713
  %v2715 = vsel %vm85, %v2622, -inf
  %2716 = vmax.xlane.f32.xlu0 %v2715
  %v2717 = vpop.xlane.xlu0 %2716
  %v2718 = vsel %vm85, %v2624, -inf
  %2719 = vmax.xlane.f32.xlu0 %v2718
  %v2720 = vpop.xlane.xlu0 %2719
  %v2721 = vsel %vm85, %v2627, -inf
  %2722 = vmax.xlane.f32.xlu0 %v2721
  %v2723 = vpop.xlane.xlu0 %2722
  %v2724 = vsel %vm85, %v2629, -inf
  %2725 = vmax.xlane.f32.xlu0 %v2724
  %v2726 = vpop.xlane.xlu0 %2725
  %v2727 = vsub.f32 %v2349, %v2633
  %v2728 = vsub.f32 %v2351, %v2636
  %v2729 = vsub.f32 %v2354, %v2639
  %v2730 = vsub.f32 %v2356, %v2642
  %v2731 = vsub.f32 %v2388, %v2645
  %v2732 = vsub.f32 %v2390, %v2648
  %v2733 = vsub.f32 %v2393, %v2651
  %v2734 = vsub.f32 %v2395, %v2654
  %v2735 = vsub.f32 %v2427, %v2657
  %v2736 = vsub.f32 %v2429, %v2660
  %v2737 = vsub.f32 %v2432, %v2663
  %v2738 = vsub.f32 %v2434, %v2666
  %v2739 = vsub.f32 %v2466, %v2669
  %v2740 = vsub.f32 %v2468, %v2672
  %v2741 = vsub.f32 %v2471, %v2675
  %v2742 = vsub.f32 %v2473, %v2678
  %v2743 = vsub.f32 %v2505, %v2681
  %v2744 = vsub.f32 %v2507, %v2684
  %v2745 = vsub.f32 %v2510, %v2687
  %v2746 = vsub.f32 %v2512, %v2690
  %v2747 = vsub.f32 %v2544, %v2693
  %v2748 = vsub.f32 %v2546, %v2696
  %v2749 = vsub.f32 %v2549, %v2699
  %v2750 = vsub.f32 %v2551, %v2702
  %v2751 = vsub.f32 %v2583, %v2705
  %v2752 = vsub.f32 %v2585, %v2708
  %v2753 = vsub.f32 %v2588, %v2711
  %v2754 = vsub.f32 %v2590, %v2714
  %v2755 = vsub.f32 %v2622, %v2717
  %v2756 = vsub.f32 %v2624, %v2720
  %v2757 = vsub.f32 %v2627, %v2723
  %v2758 = vsub.f32 %v2629, %v2726
  %v2759 = vmul.f32 %v2727, 1.442695
  %v2760 = vpow.pop %v2759
  %v2761 = vmul.f32 %v2728, 1.442695
  %v2762 = vpow.pop %v2761
  %v2763 = vmul.f32 %v2729, 1.442695
  %v2764 = vpow.pop %v2763
  %v2765 = vmul.f32 %v2730, 1.442695
  %v2766 = vpow.pop %v2765
  %v2767 = vmul.f32 %v2731, 1.442695
  %v2768 = vpow.pop %v2767
  %v2769 = vmul.f32 %v2732, 1.442695
  %v2770 = vpow.pop %v2769
  %v2771 = vmul.f32 %v2733, 1.442695
  %v2772 = vpow.pop %v2771
  %v2773 = vmul.f32 %v2734, 1.442695
  %v2774 = vpow.pop %v2773
  %v2775 = vmul.f32 %v2735, 1.442695
  %v2776 = vpow.pop %v2775
  %v2777 = vmul.f32 %v2736, 1.442695
  %v2778 = vpow.pop %v2777
  %v2779 = vmul.f32 %v2737, 1.442695
  %v2780 = vpow.pop %v2779
  %v2781 = vmul.f32 %v2738, 1.442695
  %v2782 = vpow.pop %v2781
  %v2783 = vmul.f32 %v2739, 1.442695
  %v2784 = vpow.pop %v2783
  %v2785 = vmul.f32 %v2740, 1.442695
  %v2786 = vpow.pop %v2785
  %v2787 = vmul.f32 %v2741, 1.442695
  %v2788 = vpow.pop %v2787
  %v2789 = vmul.f32 %v2742, 1.442695
  %v2790 = vpow.pop %v2789
  %v2791 = vmul.f32 %v2743, 1.442695
  %v2792 = vpow.pop %v2791
  %v2793 = vmul.f32 %v2744, 1.442695
  %v2794 = vpow.pop %v2793
  %v2795 = vmul.f32 %v2745, 1.442695
  %v2796 = vpow.pop %v2795
  %v2797 = vmul.f32 %v2746, 1.442695
  %v2798 = vpow.pop %v2797
  %v2799 = vmul.f32 %v2747, 1.442695
  %v2800 = vpow.pop %v2799
  %v2801 = vmul.f32 %v2748, 1.442695
  %v2802 = vpow.pop %v2801
  %v2803 = vmul.f32 %v2749, 1.442695
  %v2804 = vpow.pop %v2803
  %v2805 = vmul.f32 %v2750, 1.442695
  %v2806 = vpow.pop %v2805
  %v2807 = vmul.f32 %v2751, 1.442695
  %v2808 = vpow.pop %v2807
  %v2809 = vmul.f32 %v2752, 1.442695
  %v2810 = vpow.pop %v2809
  %v2811 = vmul.f32 %v2753, 1.442695
  %v2812 = vpow.pop %v2811
  %v2813 = vmul.f32 %v2754, 1.442695
  %v2814 = vpow.pop %v2813
  %v2815 = vmul.f32 %v2755, 1.442695
  %v2816 = vpow.pop %v2815
  %v2817 = vmul.f32 %v2756, 1.442695
  %v2818 = vpow.pop %v2817
  %v2819 = vmul.f32 %v2757, 1.442695
  %v2820 = vpow.pop %v2819
  %v2821 = vmul.f32 %v2758, 1.442695
  %v2822 = vpow.pop %v2821
  %v2823 = vsel %vm85, %v2760, 0.0
  %2824 = vadd.xlane.f32.xlu0 %v2823
  %v2825 = vpop.xlane.xlu0 %2824
  %v2826 = vsel %vm85, %v2762, 0.0
  %2827 = vadd.xlane.f32.xlu0 %v2826
  %v2828 = vpop.xlane.xlu0 %2827
  %v2829 = vsel %vm85, %v2764, 0.0
  %2830 = vadd.xlane.f32.xlu0 %v2829
  %v2831 = vpop.xlane.xlu0 %2830
  %v2832 = vsel %vm85, %v2766, 0.0
  %2833 = vadd.xlane.f32.xlu0 %v2832
  %v2834 = vpop.xlane.xlu0 %2833
  %v2835 = vsel %vm85, %v2768, 0.0
  %2836 = vadd.xlane.f32.xlu0 %v2835
  %v2837 = vpop.xlane.xlu0 %2836
  %v2838 = vsel %vm85, %v2770, 0.0
  %2839 = vadd.xlane.f32.xlu0 %v2838
  %v2840 = vpop.xlane.xlu0 %2839
  %v2841 = vsel %vm85, %v2772, 0.0
  %2842 = vadd.xlane.f32.xlu0 %v2841
  %v2843 = vpop.xlane.xlu0 %2842
  %v2844 = vsel %vm85, %v2774, 0.0
  %2845 = vadd.xlane.f32.xlu0 %v2844
  %v2846 = vpop.xlane.xlu0 %2845
  %v2847 = vsel %vm85, %v2776, 0.0
  %2848 = vadd.xlane.f32.xlu0 %v2847
  %v2849 = vpop.xlane.xlu0 %2848
  %v2850 = vsel %vm85, %v2778, 0.0
  %2851 = vadd.xlane.f32.xlu0 %v2850
  %v2852 = vpop.xlane.xlu0 %2851
  %v2853 = vsel %vm85, %v2780, 0.0
  %2854 = vadd.xlane.f32.xlu0 %v2853
  %v2855 = vpop.xlane.xlu0 %2854
  %v2856 = vsel %vm85, %v2782, 0.0
  %2857 = vadd.xlane.f32.xlu0 %v2856
  %v2858 = vpop.xlane.xlu0 %2857
  %v2859 = vsel %vm85, %v2784, 0.0
  %2860 = vadd.xlane.f32.xlu0 %v2859
  %v2861 = vpop.xlane.xlu0 %2860
  %v2862 = vsel %vm85, %v2786, 0.0
  %2863 = vadd.xlane.f32.xlu0 %v2862
  %v2864 = vpop.xlane.xlu0 %2863
  %v2865 = vsel %vm85, %v2788, 0.0
  %2866 = vadd.xlane.f32.xlu0 %v2865
  %v2867 = vpop.xlane.xlu0 %2866
  %v2868 = vsel %vm85, %v2790, 0.0
  %2869 = vadd.xlane.f32.xlu0 %v2868
  %v2870 = vpop.xlane.xlu0 %2869
  %v2871 = vsel %vm85, %v2792, 0.0
  %2872 = vadd.xlane.f32.xlu0 %v2871
  %v2873 = vpop.xlane.xlu0 %2872
  %v2874 = vsel %vm85, %v2794, 0.0
  %2875 = vadd.xlane.f32.xlu0 %v2874
  %v2876 = vpop.xlane.xlu0 %2875
  %v2877 = vsel %vm85, %v2796, 0.0
  %2878 = vadd.xlane.f32.xlu0 %v2877
  %v2879 = vpop.xlane.xlu0 %2878
  %v2880 = vsel %vm85, %v2798, 0.0
  %2881 = vadd.xlane.f32.xlu0 %v2880
  %v2882 = vpop.xlane.xlu0 %2881
  %v2883 = vsel %vm85, %v2800, 0.0
  %2884 = vadd.xlane.f32.xlu0 %v2883
  %v2885 = vpop.xlane.xlu0 %2884
  %v2886 = vsel %vm85, %v2802, 0.0
  %2887 = vadd.xlane.f32.xlu0 %v2886
  %v2888 = vpop.xlane.xlu0 %2887
  %v2889 = vsel %vm85, %v2804, 0.0
  %2890 = vadd.xlane.f32.xlu0 %v2889
  %v2891 = vpop.xlane.xlu0 %2890
  %v2892 = vsel %vm85, %v2806, 0.0
  %2893 = vadd.xlane.f32.xlu0 %v2892
  %v2894 = vpop.xlane.xlu0 %2893
  %v2895 = vsel %vm85, %v2808, 0.0
  %2896 = vadd.xlane.f32.xlu0 %v2895
  %v2897 = vpop.xlane.xlu0 %2896
  %v2898 = vsel %vm85, %v2810, 0.0
  %2899 = vadd.xlane.f32.xlu0 %v2898
  %v2900 = vpop.xlane.xlu0 %2899
  %v2901 = vsel %vm85, %v2812, 0.0
  %2902 = vadd.xlane.f32.xlu0 %v2901
  %v2903 = vpop.xlane.xlu0 %2902
  %v2904 = vsel %vm85, %v2814, 0.0
  %2905 = vadd.xlane.f32.xlu0 %v2904
  %v2906 = vpop.xlane.xlu0 %2905
  %v2907 = vsel %vm85, %v2816, 0.0
  %2908 = vadd.xlane.f32.xlu0 %v2907
  %v2909 = vpop.xlane.xlu0 %2908
  %v2910 = vsel %vm85, %v2818, 0.0
  %2911 = vadd.xlane.f32.xlu0 %v2910
  %v2912 = vpop.xlane.xlu0 %2911
  %v2913 = vsel %vm85, %v2820, 0.0
  %2914 = vadd.xlane.f32.xlu0 %v2913
  %v2915 = vpop.xlane.xlu0 %2914
  %v2916 = vsel %vm85, %v2822, 0.0
  %2917 = vadd.xlane.f32.xlu0 %v2916
  %v2918 = vpop.xlane.xlu0 %2917
  %v2919 = vrcp.pop %v2825
  %v2920 = vrcp.pop %v2828
  %v2921 = vrcp.pop %v2831
  %v2922 = vrcp.pop %v2834
  %v2923 = vrcp.pop %v2837
  %v2924 = vrcp.pop %v2840
  %v2925 = vrcp.pop %v2843
  %v2926 = vrcp.pop %v2846
  %v2927 = vrcp.pop %v2849
  %v2928 = vrcp.pop %v2852
  %v2929 = vrcp.pop %v2855
  %v2930 = vrcp.pop %v2858
  %v2931 = vrcp.pop %v2861
  %v2932 = vrcp.pop %v2864
  %v2933 = vrcp.pop %v2867
  %v2934 = vrcp.pop %v2870
  %v2935 = vrcp.pop %v2873
  %v2936 = vrcp.pop %v2876
  %v2937 = vrcp.pop %v2879
  %v2938 = vrcp.pop %v2882
  %v2939 = vrcp.pop %v2885
  %v2940 = vrcp.pop %v2888
  %v2941 = vrcp.pop %v2891
  %v2942 = vrcp.pop %v2894
  %v2943 = vrcp.pop %v2897
  %v2944 = vrcp.pop %v2900
  %v2945 = vrcp.pop %v2903
  %v2946 = vrcp.pop %v2906
  %v2947 = vrcp.pop %v2909
  %v2948 = vrcp.pop %v2912
  %v2949 = vrcp.pop %v2915
  %v2950 = vrcp.pop %v2918
  %v2951 = vmul.f32 %v2760, %v2919
  %v2952 = vmul.f32 %v2762, %v2920
  %v2953 = vmul.f32 %v2764, %v2921
  %v2954 = vmul.f32 %v2766, %v2922
  %v2955 = vmul.f32 %v2768, %v2923
  %v2956 = vmul.f32 %v2770, %v2924
  %v2957 = vmul.f32 %v2772, %v2925
  %v2958 = vmul.f32 %v2774, %v2926
  %v2959 = vmul.f32 %v2776, %v2927
  %v2960 = vmul.f32 %v2778, %v2928
  %v2961 = vmul.f32 %v2780, %v2929
  %v2962 = vmul.f32 %v2782, %v2930
  %v2963 = vmul.f32 %v2784, %v2931
  %v2964 = vmul.f32 %v2786, %v2932
  %v2965 = vmul.f32 %v2788, %v2933
  %v2966 = vmul.f32 %v2790, %v2934
  %v2967 = vmul.f32 %v2792, %v2935
  %v2968 = vmul.f32 %v2794, %v2936
  %v2969 = vmul.f32 %v2796, %v2937
  %v2970 = vmul.f32 %v2798, %v2938
  %v2971 = vmul.f32 %v2800, %v2939
  %v2972 = vmul.f32 %v2802, %v2940
  %v2973 = vmul.f32 %v2804, %v2941
  %v2974 = vmul.f32 %v2806, %v2942
  %v2975 = vmul.f32 %v2808, %v2943
  %v2976 = vmul.f32 %v2810, %v2944
  %v2977 = vmul.f32 %v2812, %v2945
  %v2978 = vmul.f32 %v2814, %v2946
  %v2979 = vmul.f32 %v2816, %v2947
  %v2980 = vmul.f32 %v2818, %v2948
  %v2981 = vmul.f32 %v2820, %v2949
  %v2982 = vmul.f32 %v2822, %v2950
  %v2983 = vpack.c.bf16 %v2951, %v2951
  %v2984 = vpack.c.bf16 %v2952, %v2952
  %v2985 = vpack.c.bf16 %v2953, %v2953
  %v2986 = vpack.c.bf16 %v2954, %v2954
  %v2987 = vpack.c.bf16 %v2955, %v2955
  %v2988 = vpack.c.bf16 %v2956, %v2956
  %v2989 = vpack.c.bf16 %v2957, %v2957
  %v2990 = vpack.c.bf16 %v2958, %v2958
  %v2991 = vpack.c.bf16 %v2959, %v2959
  %v2992 = vpack.c.bf16 %v2960, %v2960
  %v2993 = vpack.c.bf16 %v2961, %v2961
  %v2994 = vpack.c.bf16 %v2962, %v2962
  %v2995 = vpack.c.bf16 %v2963, %v2963
  %v2996 = vpack.c.bf16 %v2964, %v2964
  %v2997 = vpack.c.bf16 %v2965, %v2965
  %v2998 = vpack.c.bf16 %v2966, %v2966
  %v2999 = vpack.c.bf16 %v2967, %v2967
  %v3000 = vpack.c.bf16 %v2968, %v2968
  %v3001 = vpack.c.bf16 %v2969, %v2969
  %v3002 = vpack.c.bf16 %v2970, %v2970
  %v3003 = vpack.c.bf16 %v2971, %v2971
  %v3004 = vpack.c.bf16 %v2972, %v2972
  %v3005 = vpack.c.bf16 %v2973, %v2973
  %v3006 = vpack.c.bf16 %v2974, %v2974
  %v3007 = vpack.c.bf16 %v2975, %v2975
  %v3008 = vpack.c.bf16 %v2976, %v2976
  %v3009 = vpack.c.bf16 %v2977, %v2977
  %v3010 = vpack.c.bf16 %v2978, %v2978
  %v3011 = vpack.c.bf16 %v2979, %v2979
  %v3012 = vpack.c.bf16 %v2980, %v2980
  %v3013 = vpack.c.bf16 %v2981, %v2981
  %v3014 = vpack.c.bf16 %v2982, %v2982
  %v3019 = vunpack.c.l.b16 %v2983
  %v3020 = vunpack.c.l.b16 %v2984
  %v3021 = vunpack.c.l.b16 %v2985
  %v3022 = vunpack.c.l.b16 %v2986
  %v3023 = vpack.c.b16 %v3020, %v3019
  %v3024 = vpack.c.b16 %v3022, %v3021
  %3025 = vrot.lane.b32.xlu0 %v1249, 48
  %v3026 = vpop.permute.xlu0 %3025
  %3027 = vrot.lane.b32.xlu0 %v1250, 48
  %v3028 = vpop.permute.xlu0 %3027
  %v3032 = vsel %vm85, %v3023, 0
  %v3035 = vsel %vm85, %v3024, 0
  %3037 = vmatpush.bf16.msra.mxu0 0
  %3038 = vmatpush.bf16.msra.mxu0 0
  %3039 = vmatpush.bf16.msra.mxu0 0
  %3040 = vmatpush.bf16.msra.mxu0 0
  %3041 = vmatpush.bf16.msra.mxu0 0
  %3042 = vmatpush.bf16.msra.mxu0 0
  %3043 = vmatpush.bf16.msra.mxu0 %v3028
  %3044 = vmatpush.bf16.msra.mxu0 %v3026
  %3045 = vmatmul.bf16.gmra.mxu0 %v3032
  %v3046 = vpop.f32.mrf.mxu0
  %v3047 = vadd.f32 0.0, %v3046
  %v3048 = vpop.f32.mrf.mxu0
  %v3049 = vadd.f32 0.0, %v3048
  %3050 = vmatmul.bf16.gmra.mxu0 %v3035
  %v3051 = vpop.f32.mrf.mxu0
  %v3052 = vadd.f32 0.0, %v3051
  %v3053 = vpop.f32.mrf.mxu0
  %v3054 = vadd.f32 0.0, %v3053
  %3055 = vdwg.mxu0
  %v3060 = vunpack.c.l.b16 %v2987
  %v3061 = vunpack.c.l.b16 %v2988
  %v3062 = vunpack.c.l.b16 %v2989
  %v3063 = vunpack.c.l.b16 %v2990
  %v3064 = vpack.c.b16 %v3061, %v3060
  %v3065 = vpack.c.b16 %v3063, %v3062
  %3066 = vrot.lane.b32.xlu0 %v1295, 48
  %v3067 = vpop.permute.xlu0 %3066
  %3068 = vrot.lane.b32.xlu0 %v1296, 48
  %v3069 = vpop.permute.xlu0 %3068
  %v3073 = vsel %vm85, %v3064, 0
  %v3076 = vsel %vm85, %v3065, 0
  %3078 = vmatpush.bf16.msra.mxu0 0
  %3079 = vmatpush.bf16.msra.mxu0 0
  %3080 = vmatpush.bf16.msra.mxu0 0
  %3081 = vmatpush.bf16.msra.mxu0 0
  %3082 = vmatpush.bf16.msra.mxu0 0
  %3083 = vmatpush.bf16.msra.mxu0 0
  %3084 = vmatpush.bf16.msra.mxu0 %v3069
  %3085 = vmatpush.bf16.msra.mxu0 %v3067
  %3086 = vmatmul.bf16.gmra.mxu0 %v3073
  %v3087 = vpop.f32.mrf.mxu0
  %v3088 = vadd.f32 0.0, %v3087
  %v3089 = vpop.f32.mrf.mxu0
  %v3090 = vadd.f32 0.0, %v3089
  %3091 = vmatmul.bf16.gmra.mxu0 %v3076
  %v3092 = vpop.f32.mrf.mxu0
  %v3093 = vadd.f32 0.0, %v3092
  %v3094 = vpop.f32.mrf.mxu0
  %v3095 = vadd.f32 0.0, %v3094
  %3096 = vdwg.mxu0
  %v3101 = vunpack.c.l.b16 %v2991
  %v3102 = vunpack.c.l.b16 %v2992
  %v3103 = vunpack.c.l.b16 %v2993
  %v3104 = vunpack.c.l.b16 %v2994
  %v3105 = vpack.c.b16 %v3102, %v3101
  %v3106 = vpack.c.b16 %v3104, %v3103
  %3107 = vrot.lane.b32.xlu0 %v1340, 48
  %v3108 = vpop.permute.xlu0 %3107
  %3109 = vrot.lane.b32.xlu0 %v1341, 48
  %v3110 = vpop.permute.xlu0 %3109
  %v3114 = vsel %vm85, %v3105, 0
  %v3117 = vsel %vm85, %v3106, 0
  %3119 = vmatpush.bf16.msra.mxu0 0
  %3120 = vmatpush.bf16.msra.mxu0 0
  %3121 = vmatpush.bf16.msra.mxu0 0
  %3122 = vmatpush.bf16.msra.mxu0 0
  %3123 = vmatpush.bf16.msra.mxu0 0
  %3124 = vmatpush.bf16.msra.mxu0 0
  %3125 = vmatpush.bf16.msra.mxu0 %v3110
  %3126 = vmatpush.bf16.msra.mxu0 %v3108
  %3127 = vmatmul.bf16.gmra.mxu0 %v3114
  %v3128 = vpop.f32.mrf.mxu0
  %v3129 = vadd.f32 0.0, %v3128
  %v3130 = vpop.f32.mrf.mxu0
  %v3131 = vadd.f32 0.0, %v3130
  %3132 = vmatmul.bf16.gmra.mxu0 %v3117
  %v3133 = vpop.f32.mrf.mxu0
  %v3134 = vadd.f32 0.0, %v3133
  %v3135 = vpop.f32.mrf.mxu0
  %v3136 = vadd.f32 0.0, %v3135
  %3137 = vdwg.mxu0
  %v3142 = vunpack.c.l.b16 %v2995
  %v3143 = vunpack.c.l.b16 %v2996
  %v3144 = vunpack.c.l.b16 %v2997
  %v3145 = vunpack.c.l.b16 %v2998
  %v3146 = vpack.c.b16 %v3143, %v3142
  %v3147 = vpack.c.b16 %v3145, %v3144
  %3148 = vrot.lane.b32.xlu0 %v1385, 48
  %v3149 = vpop.permute.xlu0 %3148
  %3150 = vrot.lane.b32.xlu0 %v1386, 48
  %v3151 = vpop.permute.xlu0 %3150
  %v3155 = vsel %vm85, %v3146, 0
  %v3158 = vsel %vm85, %v3147, 0
  %3160 = vmatpush.bf16.msra.mxu0 0
  %3161 = vmatpush.bf16.msra.mxu0 0
  %3162 = vmatpush.bf16.msra.mxu0 0
  %3163 = vmatpush.bf16.msra.mxu0 0
  %3164 = vmatpush.bf16.msra.mxu0 0
  %3165 = vmatpush.bf16.msra.mxu0 0
  %3166 = vmatpush.bf16.msra.mxu0 %v3151
  %3167 = vmatpush.bf16.msra.mxu0 %v3149
  %3168 = vmatmul.bf16.gmra.mxu0 %v3155
  %v3169 = vpop.f32.mrf.mxu0
  %v3170 = vadd.f32 0.0, %v3169
  %v3171 = vpop.f32.mrf.mxu0
  %v3172 = vadd.f32 0.0, %v3171
  %3173 = vmatmul.bf16.gmra.mxu0 %v3158
  %v3174 = vpop.f32.mrf.mxu0
  %v3175 = vadd.f32 0.0, %v3174
  %v3176 = vpop.f32.mrf.mxu0
  %v3177 = vadd.f32 0.0, %v3176
  %3178 = vdwg.mxu0
  %v3183 = vunpack.c.l.b16 %v2999
  %v3184 = vunpack.c.l.b16 %v3000
  %v3185 = vunpack.c.l.b16 %v3001
  %v3186 = vunpack.c.l.b16 %v3002
  %v3187 = vpack.c.b16 %v3184, %v3183
  %v3188 = vpack.c.b16 %v3186, %v3185
  %3189 = vrot.lane.b32.xlu0 %v1430, 48
  %v3190 = vpop.permute.xlu0 %3189
  %3191 = vrot.lane.b32.xlu0 %v1431, 48
  %v3192 = vpop.permute.xlu0 %3191
  %v3196 = vsel %vm85, %v3187, 0
  %v3199 = vsel %vm85, %v3188, 0
  %3201 = vmatpush.bf16.msra.mxu0 0
  %3202 = vmatpush.bf16.msra.mxu0 0
  %3203 = vmatpush.bf16.msra.mxu0 0
  %3204 = vmatpush.bf16.msra.mxu0 0
  %3205 = vmatpush.bf16.msra.mxu0 0
  %3206 = vmatpush.bf16.msra.mxu0 0
  %3207 = vmatpush.bf16.msra.mxu0 %v3192
  %3208 = vmatpush.bf16.msra.mxu0 %v3190
  %3209 = vmatmul.bf16.gmra.mxu0 %v3196
  %v3210 = vpop.f32.mrf.mxu0
  %v3211 = vadd.f32 0.0, %v3210
  %v3212 = vpop.f32.mrf.mxu0
  %v3213 = vadd.f32 0.0, %v3212
  %3214 = vmatmul.bf16.gmra.mxu0 %v3199
  %v3215 = vpop.f32.mrf.mxu0
  %v3216 = vadd.f32 0.0, %v3215
  %v3217 = vpop.f32.mrf.mxu0
  %v3218 = vadd.f32 0.0, %v3217
  %3219 = vdwg.mxu0
  %v3224 = vunpack.c.l.b16 %v3003
  %v3225 = vunpack.c.l.b16 %v3004
  %v3226 = vunpack.c.l.b16 %v3005
  %v3227 = vunpack.c.l.b16 %v3006
  %v3228 = vpack.c.b16 %v3225, %v3224
  %v3229 = vpack.c.b16 %v3227, %v3226
  %3230 = vrot.lane.b32.xlu0 %v1475, 48
  %v3231 = vpop.permute.xlu0 %3230
  %3232 = vrot.lane.b32.xlu0 %v1476, 48
  %v3233 = vpop.permute.xlu0 %3232
  %v3237 = vsel %vm85, %v3228, 0
  %v3240 = vsel %vm85, %v3229, 0
  %3242 = vmatpush.bf16.msra.mxu0 0
  %3243 = vmatpush.bf16.msra.mxu0 0
  %3244 = vmatpush.bf16.msra.mxu0 0
  %3245 = vmatpush.bf16.msra.mxu0 0
  %3246 = vmatpush.bf16.msra.mxu0 0
  %3247 = vmatpush.bf16.msra.mxu0 0
  %3248 = vmatpush.bf16.msra.mxu0 %v3233
  %3249 = vmatpush.bf16.msra.mxu0 %v3231
  %3250 = vmatmul.bf16.gmra.mxu0 %v3237
  %v3251 = vpop.f32.mrf.mxu0
  %v3252 = vadd.f32 0.0, %v3251
  %v3253 = vpop.f32.mrf.mxu0
  %v3254 = vadd.f32 0.0, %v3253
  %3255 = vmatmul.bf16.gmra.mxu0 %v3240
  %v3256 = vpop.f32.mrf.mxu0
  %v3257 = vadd.f32 0.0, %v3256
  %v3258 = vpop.f32.mrf.mxu0
  %v3259 = vadd.f32 0.0, %v3258
  %3260 = vdwg.mxu0
  %v3265 = vunpack.c.l.b16 %v3007
  %v3266 = vunpack.c.l.b16 %v3008
  %v3267 = vunpack.c.l.b16 %v3009
  %v3268 = vunpack.c.l.b16 %v3010
  %v3269 = vpack.c.b16 %v3266, %v3265
  %v3270 = vpack.c.b16 %v3268, %v3267
  %3271 = vrot.lane.b32.xlu0 %v1520, 48
  %v3272 = vpop.permute.xlu0 %3271
  %3273 = vrot.lane.b32.xlu0 %v1521, 48
  %v3274 = vpop.permute.xlu0 %3273
  %v3278 = vsel %vm85, %v3269, 0
  %v3281 = vsel %vm85, %v3270, 0
  %3283 = vmatpush.bf16.msra.mxu0 0
  %3284 = vmatpush.bf16.msra.mxu0 0
  %3285 = vmatpush.bf16.msra.mxu0 0
  %3286 = vmatpush.bf16.msra.mxu0 0
  %3287 = vmatpush.bf16.msra.mxu0 0
  %3288 = vmatpush.bf16.msra.mxu0 0
  %3289 = vmatpush.bf16.msra.mxu0 %v3274
  %3290 = vmatpush.bf16.msra.mxu0 %v3272
  %3291 = vmatmul.bf16.gmra.mxu0 %v3278
  %v3292 = vpop.f32.mrf.mxu0
  %v3293 = vadd.f32 0.0, %v3292
  %v3294 = vpop.f32.mrf.mxu0
  %v3295 = vadd.f32 0.0, %v3294
  %3296 = vmatmul.bf16.gmra.mxu0 %v3281
  %v3297 = vpop.f32.mrf.mxu0
  %v3298 = vadd.f32 0.0, %v3297
  %v3299 = vpop.f32.mrf.mxu0
  %v3300 = vadd.f32 0.0, %v3299
  %3301 = vdwg.mxu0
  %v3306 = vunpack.c.l.b16 %v3011
  %v3307 = vunpack.c.l.b16 %v3012
  %v3308 = vunpack.c.l.b16 %v3013
  %v3309 = vunpack.c.l.b16 %v3014
  %v3310 = vpack.c.b16 %v3307, %v3306
  %v3311 = vpack.c.b16 %v3309, %v3308
  %3312 = vrot.lane.b32.xlu0 %v1565, 48
  %v3313 = vpop.permute.xlu0 %3312
  %3314 = vrot.lane.b32.xlu0 %v1566, 48
  %v3315 = vpop.permute.xlu0 %3314
  %v3319 = vsel %vm85, %v3310, 0
  %v3322 = vsel %vm85, %v3311, 0
  %3324 = vmatpush.bf16.msra.mxu0 0
  %3325 = vmatpush.bf16.msra.mxu0 0
  %3326 = vmatpush.bf16.msra.mxu0 0
  %3327 = vmatpush.bf16.msra.mxu0 0
  %3328 = vmatpush.bf16.msra.mxu0 0
  %3329 = vmatpush.bf16.msra.mxu0 0
  %3330 = vmatpush.bf16.msra.mxu0 %v3315
  %3331 = vmatpush.bf16.msra.mxu0 %v3313
  %3332 = vmatmul.bf16.gmra.mxu0 %v3319
  %v3333 = vpop.f32.mrf.mxu0
  %v3334 = vadd.f32 0.0, %v3333
  %v3335 = vpop.f32.mrf.mxu0
  %v3336 = vadd.f32 0.0, %v3335
  %3337 = vmatmul.bf16.gmra.mxu0 %v3322
  %v3338 = vpop.f32.mrf.mxu0
  %v3339 = vadd.f32 0.0, %v3338
  %v3340 = vpop.f32.mrf.mxu0
  %v3341 = vadd.f32 0.0, %v3340
  %3342 = vdwg.mxu0
  %3375 = vrot.lane.b32.xlu0 %v3047, 16
  %v3376 = vpop.permute.xlu0 %3375
  %3377 = vrot.lane.b32.xlu0 %v3049, 16
  %v3378 = vpop.permute.xlu0 %3377
  %3379 = vrot.lane.b32.xlu0 %v3052, 16
  %v3380 = vpop.permute.xlu0 %3379
  %3381 = vrot.lane.b32.xlu0 %v3054, 16
  %v3382 = vpop.permute.xlu0 %3381
  %3383 = vrot.lane.b32.xlu0 %v3088, 16
  %v3384 = vpop.permute.xlu0 %3383
  %3385 = vrot.lane.b32.xlu0 %v3090, 16
  %v3386 = vpop.permute.xlu0 %3385
  %3387 = vrot.lane.b32.xlu0 %v3093, 16
  %v3388 = vpop.permute.xlu0 %3387
  %3389 = vrot.lane.b32.xlu0 %v3095, 16
  %v3390 = vpop.permute.xlu0 %3389
  %3391 = vrot.lane.b32.xlu0 %v3129, 16
  %v3392 = vpop.permute.xlu0 %3391
  %3393 = vrot.lane.b32.xlu0 %v3131, 16
  %v3394 = vpop.permute.xlu0 %3393
  %3395 = vrot.lane.b32.xlu0 %v3134, 16
  %v3396 = vpop.permute.xlu0 %3395
  %3397 = vrot.lane.b32.xlu0 %v3136, 16
  %v3398 = vpop.permute.xlu0 %3397
  %3399 = vrot.lane.b32.xlu0 %v3170, 16
  %v3400 = vpop.permute.xlu0 %3399
  %3401 = vrot.lane.b32.xlu0 %v3172, 16
  %v3402 = vpop.permute.xlu0 %3401
  %3403 = vrot.lane.b32.xlu0 %v3175, 16
  %v3404 = vpop.permute.xlu0 %3403
  %3405 = vrot.lane.b32.xlu0 %v3177, 16
  %v3406 = vpop.permute.xlu0 %3405
  %3407 = vrot.lane.b32.xlu0 %v3211, 16
  %v3408 = vpop.permute.xlu0 %3407
  %3409 = vrot.lane.b32.xlu0 %v3213, 16
  %v3410 = vpop.permute.xlu0 %3409
  %3411 = vrot.lane.b32.xlu0 %v3216, 16
  %v3412 = vpop.permute.xlu0 %3411
  %3413 = vrot.lane.b32.xlu0 %v3218, 16
  %v3414 = vpop.permute.xlu0 %3413
  %3415 = vrot.lane.b32.xlu0 %v3252, 16
  %v3416 = vpop.permute.xlu0 %3415
  %3417 = vrot.lane.b32.xlu0 %v3254, 16
  %v3418 = vpop.permute.xlu0 %3417
  %3419 = vrot.lane.b32.xlu0 %v3257, 16
  %v3420 = vpop.permute.xlu0 %3419
  %3421 = vrot.lane.b32.xlu0 %v3259, 16
  %v3422 = vpop.permute.xlu0 %3421
  %3423 = vrot.lane.b32.xlu0 %v3293, 16
  %v3424 = vpop.permute.xlu0 %3423
  %3425 = vrot.lane.b32.xlu0 %v3295, 16
  %v3426 = vpop.permute.xlu0 %3425
  %3427 = vrot.lane.b32.xlu0 %v3298, 16
  %v3428 = vpop.permute.xlu0 %3427
  %3429 = vrot.lane.b32.xlu0 %v3300, 16
  %v3430 = vpop.permute.xlu0 %3429
  %3431 = vrot.lane.b32.xlu0 %v3334, 16
  %v3432 = vpop.permute.xlu0 %3431
  %3433 = vrot.lane.b32.xlu0 %v3336, 16
  %v3434 = vpop.permute.xlu0 %3433
  %3435 = vrot.lane.b32.xlu0 %v3339, 16
  %v3436 = vpop.permute.xlu0 %3435
  %3437 = vrot.lane.b32.xlu0 %v3341, 16
  %v3438 = vpop.permute.xlu0 %3437
  %v3471 = vsel %vm1255, %v2018, %v3376
  %v3472 = vsel %vm1255, %v2020, %v3378
  %v3473 = vsel %vm1255, %v2023, %v3380
  %v3474 = vsel %vm1255, %v2025, %v3382
  %v3475 = vsel %vm1255, %v2059, %v3384
  %v3476 = vsel %vm1255, %v2061, %v3386
  %v3477 = vsel %vm1255, %v2064, %v3388
  %v3478 = vsel %vm1255, %v2066, %v3390
  %v3479 = vsel %vm1255, %v2100, %v3392
  %v3480 = vsel %vm1255, %v2102, %v3394
  %v3481 = vsel %vm1255, %v2105, %v3396
  %v3482 = vsel %vm1255, %v2107, %v3398
  %v3483 = vsel %vm1255, %v2141, %v3400
  %v3484 = vsel %vm1255, %v2143, %v3402
  %v3485 = vsel %vm1255, %v2146, %v3404
  %v3486 = vsel %vm1255, %v2148, %v3406
  %v3487 = vsel %vm1255, %v2182, %v3408
  %v3488 = vsel %vm1255, %v2184, %v3410
  %v3489 = vsel %vm1255, %v2187, %v3412
  %v3490 = vsel %vm1255, %v2189, %v3414
  %v3491 = vsel %vm1255, %v2223, %v3416
  %v3492 = vsel %vm1255, %v2225, %v3418
  %v3493 = vsel %vm1255, %v2228, %v3420
  %v3494 = vsel %vm1255, %v2230, %v3422
  %v3495 = vsel %vm1255, %v2264, %v3424
  %v3496 = vsel %vm1255, %v2266, %v3426
  %v3497 = vsel %vm1255, %v2269, %v3428
  %v3498 = vsel %vm1255, %v2271, %v3430
  %v3499 = vsel %vm1255, %v2305, %v3432
  %v3500 = vsel %vm1255, %v2307, %v3434
  %v3501 = vsel %vm1255, %v2310, %v3436
  %v3502 = vsel %vm1255, %v2312, %v3438
  %v3503 = vrot.slane %v1205, 4
  %v3504 = vrot.slane %v1206, 4
  %3505 = vrot.lane.b32.xlu0 %v1250, 32
  %v3506 = vpop.permute.xlu0 %3505
  %v3507 = vunpack.c.l.b16 %v3503
  %v3508 = vunpack.c.l.b16 %v3504
  %v3509 = vpack.c.b16 %v3508, %v3507
  %v3511 = vsel %vm1255, %v3506, 0
  %v3514 = vsel %vm1255, %v3509, 0
  %3516 = vmatpush.bf16.xpose.msra.mxu0 0
  %3517 = vmatpush.bf16.xpose.msra.mxu0 0
  %3518 = vmatpush.bf16.xpose.msra.mxu0 0
  %3519 = vmatpush.bf16.xpose.msra.mxu0 0
  %3520 = vmatpush.bf16.xpose.msra.mxu0 0
  %3521 = vmatpush.bf16.xpose.msra.mxu0 0
  %3522 = vmatpush.bf16.xpose.msra.mxu0 0
  %3523 = vmatpush.bf16.xpose.msra.mxu0 %v3514
  %3524 = vmatmul.bf16.gmra.mxu0 %v3511
  %v3525 = vpop.f32.mrf.mxu0
  %v3526 = vadd.f32 0.0, %v3525
  %v3527 = vpop.f32.mrf.mxu0
  %v3528 = vadd.f32 0.0, %v3527
  %3529 = vdwg.mxu0
  %v3530 = vrot.slane %v1209, 4
  %v3531 = vrot.slane %v1210, 4
  %3532 = vrot.lane.b32.xlu0 %v1296, 32
  %v3533 = vpop.permute.xlu0 %3532
  %v3534 = vunpack.c.l.b16 %v3530
  %v3535 = vunpack.c.l.b16 %v3531
  %v3536 = vpack.c.b16 %v3535, %v3534
  %v3538 = vsel %vm1255, %v3533, 0
  %v3541 = vsel %vm1255, %v3536, 0
  %3543 = vmatpush.bf16.xpose.msra.mxu0 0
  %3544 = vmatpush.bf16.xpose.msra.mxu0 0
  %3545 = vmatpush.bf16.xpose.msra.mxu0 0
  %3546 = vmatpush.bf16.xpose.msra.mxu0 0
  %3547 = vmatpush.bf16.xpose.msra.mxu0 0
  %3548 = vmatpush.bf16.xpose.msra.mxu0 0
  %3549 = vmatpush.bf16.xpose.msra.mxu0 0
  %3550 = vmatpush.bf16.xpose.msra.mxu0 %v3541
  %3551 = vmatmul.bf16.gmra.mxu0 %v3538
  %v3552 = vpop.f32.mrf.mxu0
  %v3553 = vadd.f32 0.0, %v3552
  %v3554 = vpop.f32.mrf.mxu0
  %v3555 = vadd.f32 0.0, %v3554
  %3556 = vdwg.mxu0
  %v3557 = vrot.slane %v1213, 4
  %v3558 = vrot.slane %v1214, 4
  %3559 = vrot.lane.b32.xlu0 %v1341, 32
  %v3560 = vpop.permute.xlu0 %3559
  %v3561 = vunpack.c.l.b16 %v3557
  %v3562 = vunpack.c.l.b16 %v3558
  %v3563 = vpack.c.b16 %v3562, %v3561
  %v3565 = vsel %vm1255, %v3560, 0
  %v3568 = vsel %vm1255, %v3563, 0
  %3570 = vmatpush.bf16.xpose.msra.mxu0 0
  %3571 = vmatpush.bf16.xpose.msra.mxu0 0
  %3572 = vmatpush.bf16.xpose.msra.mxu0 0
  %3573 = vmatpush.bf16.xpose.msra.mxu0 0
  %3574 = vmatpush.bf16.xpose.msra.mxu0 0
  %3575 = vmatpush.bf16.xpose.msra.mxu0 0
  %3576 = vmatpush.bf16.xpose.msra.mxu0 0
  %3577 = vmatpush.bf16.xpose.msra.mxu0 %v3568
  %3578 = vmatmul.bf16.gmra.mxu0 %v3565
  %v3579 = vpop.f32.mrf.mxu0
  %v3580 = vadd.f32 0.0, %v3579
  %v3581 = vpop.f32.mrf.mxu0
  %v3582 = vadd.f32 0.0, %v3581
  %3583 = vdwg.mxu0
  %v3584 = vrot.slane %v1217, 4
  %v3585 = vrot.slane %v1218, 4
  %3586 = vrot.lane.b32.xlu0 %v1386, 32
  %v3587 = vpop.permute.xlu0 %3586
  %v3588 = vunpack.c.l.b16 %v3584
  %v3589 = vunpack.c.l.b16 %v3585
  %v3590 = vpack.c.b16 %v3589, %v3588
  %v3592 = vsel %vm1255, %v3587, 0
  %v3595 = vsel %vm1255, %v3590, 0
  %3597 = vmatpush.bf16.xpose.msra.mxu0 0
  %3598 = vmatpush.bf16.xpose.msra.mxu0 0
  %3599 = vmatpush.bf16.xpose.msra.mxu0 0
  %3600 = vmatpush.bf16.xpose.msra.mxu0 0
  %3601 = vmatpush.bf16.xpose.msra.mxu0 0
  %3602 = vmatpush.bf16.xpose.msra.mxu0 0
  %3603 = vmatpush.bf16.xpose.msra.mxu0 0
  %3604 = vmatpush.bf16.xpose.msra.mxu0 %v3595
  %3605 = vmatmul.bf16.gmra.mxu0 %v3592
  %v3606 = vpop.f32.mrf.mxu0
  %v3607 = vadd.f32 0.0, %v3606
  %v3608 = vpop.f32.mrf.mxu0
  %v3609 = vadd.f32 0.0, %v3608
  %3610 = vdwg.mxu0
  %v3611 = vrot.slane %v1221, 4
  %v3612 = vrot.slane %v1222, 4
  %3613 = vrot.lane.b32.xlu0 %v1431, 32
  %v3614 = vpop.permute.xlu0 %3613
  %v3615 = vunpack.c.l.b16 %v3611
  %v3616 = vunpack.c.l.b16 %v3612
  %v3617 = vpack.c.b16 %v3616, %v3615
  %v3619 = vsel %vm1255, %v3614, 0
  %v3622 = vsel %vm1255, %v3617, 0
  %3624 = vmatpush.bf16.xpose.msra.mxu0 0
  %3625 = vmatpush.bf16.xpose.msra.mxu0 0
  %3626 = vmatpush.bf16.xpose.msra.mxu0 0
  %3627 = vmatpush.bf16.xpose.msra.mxu0 0
  %3628 = vmatpush.bf16.xpose.msra.mxu0 0
  %3629 = vmatpush.bf16.xpose.msra.mxu0 0
  %3630 = vmatpush.bf16.xpose.msra.mxu0 0
  %3631 = vmatpush.bf16.xpose.msra.mxu0 %v3622
  %3632 = vmatmul.bf16.gmra.mxu0 %v3619
  %v3633 = vpop.f32.mrf.mxu0
  %v3634 = vadd.f32 0.0, %v3633
  %v3635 = vpop.f32.mrf.mxu0
  %v3636 = vadd.f32 0.0, %v3635
  %3637 = vdwg.mxu0
  %v3638 = vrot.slane %v1225, 4
  %v3639 = vrot.slane %v1226, 4
  %3640 = vrot.lane.b32.xlu0 %v1476, 32
  %v3641 = vpop.permute.xlu0 %3640
  %v3642 = vunpack.c.l.b16 %v3638
  %v3643 = vunpack.c.l.b16 %v3639
  %v3644 = vpack.c.b16 %v3643, %v3642
  %v3646 = vsel %vm1255, %v3641, 0
  %v3649 = vsel %vm1255, %v3644, 0
  %3651 = vmatpush.bf16.xpose.msra.mxu0 0
  %3652 = vmatpush.bf16.xpose.msra.mxu0 0
  %3653 = vmatpush.bf16.xpose.msra.mxu0 0
  %3654 = vmatpush.bf16.xpose.msra.mxu0 0
  %3655 = vmatpush.bf16.xpose.msra.mxu0 0
  %3656 = vmatpush.bf16.xpose.msra.mxu0 0
  %3657 = vmatpush.bf16.xpose.msra.mxu0 0
  %3658 = vmatpush.bf16.xpose.msra.mxu0 %v3649
  %3659 = vmatmul.bf16.gmra.mxu0 %v3646
  %v3660 = vpop.f32.mrf.mxu0
  %v3661 = vadd.f32 0.0, %v3660
  %v3662 = vpop.f32.mrf.mxu0
  %v3663 = vadd.f32 0.0, %v3662
  %3664 = vdwg.mxu0
  %v3665 = vrot.slane %v1229, 4
  %v3666 = vrot.slane %v1230, 4
  %3667 = vrot.lane.b32.xlu0 %v1521, 32
  %v3668 = vpop.permute.xlu0 %3667
  %v3669 = vunpack.c.l.b16 %v3665
  %v3670 = vunpack.c.l.b16 %v3666
  %v3671 = vpack.c.b16 %v3670, %v3669
  %v3673 = vsel %vm1255, %v3668, 0
  %v3676 = vsel %vm1255, %v3671, 0
  %3678 = vmatpush.bf16.xpose.msra.mxu0 0
  %3679 = vmatpush.bf16.xpose.msra.mxu0 0
  %3680 = vmatpush.bf16.xpose.msra.mxu0 0
  %3681 = vmatpush.bf16.xpose.msra.mxu0 0
  %3682 = vmatpush.bf16.xpose.msra.mxu0 0
  %3683 = vmatpush.bf16.xpose.msra.mxu0 0
  %3684 = vmatpush.bf16.xpose.msra.mxu0 0
  %3685 = vmatpush.bf16.xpose.msra.mxu0 %v3676
  %3686 = vmatmul.bf16.gmra.mxu0 %v3673
  %v3687 = vpop.f32.mrf.mxu0
  %v3688 = vadd.f32 0.0, %v3687
  %v3689 = vpop.f32.mrf.mxu0
  %v3690 = vadd.f32 0.0, %v3689
  %3691 = vdwg.mxu0
  %v3692 = vrot.slane %v1233, 4
  %v3693 = vrot.slane %v1234, 4
  %3694 = vrot.lane.b32.xlu0 %v1566, 32
  %v3695 = vpop.permute.xlu0 %3694
  %v3696 = vunpack.c.l.b16 %v3692
  %v3697 = vunpack.c.l.b16 %v3693
  %v3698 = vpack.c.b16 %v3697, %v3696
  %v3700 = vsel %vm1255, %v3695, 0
  %v3703 = vsel %vm1255, %v3698, 0
  %3705 = vmatpush.bf16.xpose.msra.mxu0 0
  %3706 = vmatpush.bf16.xpose.msra.mxu0 0
  %3707 = vmatpush.bf16.xpose.msra.mxu0 0
  %3708 = vmatpush.bf16.xpose.msra.mxu0 0
  %3709 = vmatpush.bf16.xpose.msra.mxu0 0
  %3710 = vmatpush.bf16.xpose.msra.mxu0 0
  %3711 = vmatpush.bf16.xpose.msra.mxu0 0
  %3712 = vmatpush.bf16.xpose.msra.mxu0 %v3703
  %3713 = vmatmul.bf16.gmra.mxu0 %v3700
  %v3714 = vpop.f32.mrf.mxu0
  %v3715 = vadd.f32 0.0, %v3714
  %v3716 = vpop.f32.mrf.mxu0
  %v3717 = vadd.f32 0.0, %v3716
  %3718 = vdwg.mxu0
  %v3719 = vsel %vm1255, %v3526, -inf
  %3720 = vmax.xlane.f32.xlu0 %v3719
  %v3721 = vpop.xlane.xlu0 %3720
  %v3722 = vsel %vm1255, %v3528, -inf
  %3723 = vmax.xlane.f32.xlu0 %v3722
  %v3724 = vpop.xlane.xlu0 %3723
  %v3725 = vsel %vm1255, %v3553, -inf
  %3726 = vmax.xlane.f32.xlu0 %v3725
  %v3727 = vpop.xlane.xlu0 %3726
  %v3728 = vsel %vm1255, %v3555, -inf
  %3729 = vmax.xlane.f32.xlu0 %v3728
  %v3730 = vpop.xlane.xlu0 %3729
  %v3731 = vsel %vm1255, %v3580, -inf
  %3732 = vmax.xlane.f32.xlu0 %v3731
  %v3733 = vpop.xlane.xlu0 %3732
  %v3734 = vsel %vm1255, %v3582, -inf
  %3735 = vmax.xlane.f32.xlu0 %v3734
  %v3736 = vpop.xlane.xlu0 %3735
  %v3737 = vsel %vm1255, %v3607, -inf
  %3738 = vmax.xlane.f32.xlu0 %v3737
  %v3739 = vpop.xlane.xlu0 %3738
  %v3740 = vsel %vm1255, %v3609, -inf
  %3741 = vmax.xlane.f32.xlu0 %v3740
  %v3742 = vpop.xlane.xlu0 %3741
  %v3743 = vsel %vm1255, %v3634, -inf
  %3744 = vmax.xlane.f32.xlu0 %v3743
  %v3745 = vpop.xlane.xlu0 %3744
  %v3746 = vsel %vm1255, %v3636, -inf
  %3747 = vmax.xlane.f32.xlu0 %v3746
  %v3748 = vpop.xlane.xlu0 %3747
  %v3749 = vsel %vm1255, %v3661, -inf
  %3750 = vmax.xlane.f32.xlu0 %v3749
  %v3751 = vpop.xlane.xlu0 %3750
  %v3752 = vsel %vm1255, %v3663, -inf
  %3753 = vmax.xlane.f32.xlu0 %v3752
  %v3754 = vpop.xlane.xlu0 %3753
  %v3755 = vsel %vm1255, %v3688, -inf
  %3756 = vmax.xlane.f32.xlu0 %v3755
  %v3757 = vpop.xlane.xlu0 %3756
  %v3758 = vsel %vm1255, %v3690, -inf
  %3759 = vmax.xlane.f32.xlu0 %v3758
  %v3760 = vpop.xlane.xlu0 %3759
  %v3761 = vsel %vm1255, %v3715, -inf
  %3762 = vmax.xlane.f32.xlu0 %v3761
  %v3763 = vpop.xlane.xlu0 %3762
  %v3764 = vsel %vm1255, %v3717, -inf
  %3765 = vmax.xlane.f32.xlu0 %v3764
  %v3766 = vpop.xlane.xlu0 %3765
  %v3767 = vsub.f32 %v3526, %v3721
  %v3768 = vsub.f32 %v3528, %v3724
  %v3769 = vsub.f32 %v3553, %v3727
  %v3770 = vsub.f32 %v3555, %v3730
  %v3771 = vsub.f32 %v3580, %v3733
  %v3772 = vsub.f32 %v3582, %v3736
  %v3773 = vsub.f32 %v3607, %v3739
  %v3774 = vsub.f32 %v3609, %v3742
  %v3775 = vsub.f32 %v3634, %v3745
  %v3776 = vsub.f32 %v3636, %v3748
  %v3777 = vsub.f32 %v3661, %v3751
  %v3778 = vsub.f32 %v3663, %v3754
  %v3779 = vsub.f32 %v3688, %v3757
  %v3780 = vsub.f32 %v3690, %v3760
  %v3781 = vsub.f32 %v3715, %v3763
  %v3782 = vsub.f32 %v3717, %v3766
  %v3783 = vmul.f32 %v3767, 1.442695
  %v3784 = vpow.pop %v3783
  %v3785 = vmul.f32 %v3768, 1.442695
  %v3786 = vpow.pop %v3785
  %v3787 = vmul.f32 %v3769, 1.442695
  %v3788 = vpow.pop %v3787
  %v3789 = vmul.f32 %v3770, 1.442695
  %v3790 = vpow.pop %v3789
  %v3791 = vmul.f32 %v3771, 1.442695
  %v3792 = vpow.pop %v3791
  %v3793 = vmul.f32 %v3772, 1.442695
  %v3794 = vpow.pop %v3793
  %v3795 = vmul.f32 %v3773, 1.442695
  %v3796 = vpow.pop %v3795
  %v3797 = vmul.f32 %v3774, 1.442695
  %v3798 = vpow.pop %v3797
  %v3799 = vmul.f32 %v3775, 1.442695
  %v3800 = vpow.pop %v3799
  %v3801 = vmul.f32 %v3776, 1.442695
  %v3802 = vpow.pop %v3801
  %v3803 = vmul.f32 %v3777, 1.442695
  %v3804 = vpow.pop %v3803
  %v3805 = vmul.f32 %v3778, 1.442695
  %v3806 = vpow.pop %v3805
  %v3807 = vmul.f32 %v3779, 1.442695
  %v3808 = vpow.pop %v3807
  %v3809 = vmul.f32 %v3780, 1.442695
  %v3810 = vpow.pop %v3809
  %v3811 = vmul.f32 %v3781, 1.442695
  %v3812 = vpow.pop %v3811
  %v3813 = vmul.f32 %v3782, 1.442695
  %v3814 = vpow.pop %v3813
  %v3815 = vsel %vm1255, %v3784, 0.0
  %3816 = vadd.xlane.f32.xlu0 %v3815
  %v3817 = vpop.xlane.xlu0 %3816
  %v3818 = vsel %vm1255, %v3786, 0.0
  %3819 = vadd.xlane.f32.xlu0 %v3818
  %v3820 = vpop.xlane.xlu0 %3819
  %v3821 = vsel %vm1255, %v3788, 0.0
  %3822 = vadd.xlane.f32.xlu0 %v3821
  %v3823 = vpop.xlane.xlu0 %3822
  %v3824 = vsel %vm1255, %v3790, 0.0
  %3825 = vadd.xlane.f32.xlu0 %v3824
  %v3826 = vpop.xlane.xlu0 %3825
  %v3827 = vsel %vm1255, %v3792, 0.0
  %3828 = vadd.xlane.f32.xlu0 %v3827
  %v3829 = vpop.xlane.xlu0 %3828
  %v3830 = vsel %vm1255, %v3794, 0.0
  %3831 = vadd.xlane.f32.xlu0 %v3830
  %v3832 = vpop.xlane.xlu0 %3831
  %v3833 = vsel %vm1255, %v3796, 0.0
  %3834 = vadd.xlane.f32.xlu0 %v3833
  %v3835 = vpop.xlane.xlu0 %3834
  %v3836 = vsel %vm1255, %v3798, 0.0
  %3837 = vadd.xlane.f32.xlu0 %v3836
  %v3838 = vpop.xlane.xlu0 %3837
  %v3839 = vsel %vm1255, %v3800, 0.0
  %3840 = vadd.xlane.f32.xlu0 %v3839
  %v3841 = vpop.xlane.xlu0 %3840
  %v3842 = vsel %vm1255, %v3802, 0.0
  %3843 = vadd.xlane.f32.xlu0 %v3842
  %v3844 = vpop.xlane.xlu0 %3843
  %v3845 = vsel %vm1255, %v3804, 0.0
  %3846 = vadd.xlane.f32.xlu0 %v3845
  %v3847 = vpop.xlane.xlu0 %3846
  %v3848 = vsel %vm1255, %v3806, 0.0
  %3849 = vadd.xlane.f32.xlu0 %v3848
  %v3850 = vpop.xlane.xlu0 %3849
  %v3851 = vsel %vm1255, %v3808, 0.0
  %3852 = vadd.xlane.f32.xlu0 %v3851
  %v3853 = vpop.xlane.xlu0 %3852
  %v3854 = vsel %vm1255, %v3810, 0.0
  %3855 = vadd.xlane.f32.xlu0 %v3854
  %v3856 = vpop.xlane.xlu0 %3855
  %v3857 = vsel %vm1255, %v3812, 0.0
  %3858 = vadd.xlane.f32.xlu0 %v3857
  %v3859 = vpop.xlane.xlu0 %3858
  %v3860 = vsel %vm1255, %v3814, 0.0
  %3861 = vadd.xlane.f32.xlu0 %v3860
  %v3862 = vpop.xlane.xlu0 %3861
  %v3863 = vrcp.pop %v3817
  %v3864 = vrcp.pop %v3820
  %v3865 = vrcp.pop %v3823
  %v3866 = vrcp.pop %v3826
  %v3867 = vrcp.pop %v3829
  %v3868 = vrcp.pop %v3832
  %v3869 = vrcp.pop %v3835
  %v3870 = vrcp.pop %v3838
  %v3871 = vrcp.pop %v3841
  %v3872 = vrcp.pop %v3844
  %v3873 = vrcp.pop %v3847
  %v3874 = vrcp.pop %v3850
  %v3875 = vrcp.pop %v3853
  %v3876 = vrcp.pop %v3856
  %v3877 = vrcp.pop %v3859
  %v3878 = vrcp.pop %v3862
  %v3879 = vmul.f32 %v3784, %v3863
  %v3880 = vmul.f32 %v3786, %v3864
  %v3881 = vmul.f32 %v3788, %v3865
  %v3882 = vmul.f32 %v3790, %v3866
  %v3883 = vmul.f32 %v3792, %v3867
  %v3884 = vmul.f32 %v3794, %v3868
  %v3885 = vmul.f32 %v3796, %v3869
  %v3886 = vmul.f32 %v3798, %v3870
  %v3887 = vmul.f32 %v3800, %v3871
  %v3888 = vmul.f32 %v3802, %v3872
  %v3889 = vmul.f32 %v3804, %v3873
  %v3890 = vmul.f32 %v3806, %v3874
  %v3891 = vmul.f32 %v3808, %v3875
  %v3892 = vmul.f32 %v3810, %v3876
  %v3893 = vmul.f32 %v3812, %v3877
  %v3894 = vmul.f32 %v3814, %v3878
  %v3895 = vpack.c.bf16 %v3879, %v3879
  %v3896 = vpack.c.bf16 %v3880, %v3880
  %v3897 = vpack.c.bf16 %v3881, %v3881
  %v3898 = vpack.c.bf16 %v3882, %v3882
  %v3899 = vpack.c.bf16 %v3883, %v3883
  %v3900 = vpack.c.bf16 %v3884, %v3884
  %v3901 = vpack.c.bf16 %v3885, %v3885
  %v3902 = vpack.c.bf16 %v3886, %v3886
  %v3903 = vpack.c.bf16 %v3887, %v3887
  %v3904 = vpack.c.bf16 %v3888, %v3888
  %v3905 = vpack.c.bf16 %v3889, %v3889
  %v3906 = vpack.c.bf16 %v3890, %v3890
  %v3907 = vpack.c.bf16 %v3891, %v3891
  %v3908 = vpack.c.bf16 %v3892, %v3892
  %v3909 = vpack.c.bf16 %v3893, %v3893
  %v3910 = vpack.c.bf16 %v3894, %v3894
  %3911 = vrot.lane.b32.xlu0 %v1205, 96
  %v3912 = vpop.permute.xlu0 %3911
  %3913 = vrot.lane.b32.xlu0 %v1206, 96
  %v3914 = vpop.permute.xlu0 %3913
  %v3915 = vrot.slane %v3912, 4
  %v3916 = vrot.slane %v3914, 4
  %v3919 = vunpack.c.l.b16 %v3895
  %v3920 = vunpack.c.l.b16 %v3896
  %v3921 = vpack.c.b16 %v3920, %v3919
  %v3922 = vunpack.c.l.b16 %v3915
  %v3923 = vunpack.c.l.b16 %v3916
  %v3924 = vpack.c.b16 %v3923, %v3922
  %v3927 = vsel %vm1255, %v3921, 0
  %3929 = vmatpush.bf16.msra.mxu0 0
  %3930 = vmatpush.bf16.msra.mxu0 0
  %3931 = vmatpush.bf16.msra.mxu0 0
  %3932 = vmatpush.bf16.msra.mxu0 0
  %3933 = vmatpush.bf16.msra.mxu0 0
  %3934 = vmatpush.bf16.msra.mxu0 0
  %3935 = vmatpush.bf16.msra.mxu0 0
  %3936 = vmatpush.bf16.msra.mxu0 %v3924
  %3937 = vmatmul.bf16.gmra.mxu0 %v3927
  %v3938 = vpop.f32.mrf.mxu0
  %v3939 = vadd.f32 0.0, %v3938
  %v3940 = vpop.f32.mrf.mxu0
  %v3941 = vadd.f32 0.0, %v3940
  %3942 = vdwg.mxu0
  %3943 = vrot.lane.b32.xlu0 %v1209, 96
  %v3944 = vpop.permute.xlu0 %3943
  %3945 = vrot.lane.b32.xlu0 %v1210, 96
  %v3946 = vpop.permute.xlu0 %3945
  %v3947 = vrot.slane %v3944, 4
  %v3948 = vrot.slane %v3946, 4
  %v3951 = vunpack.c.l.b16 %v3897
  %v3952 = vunpack.c.l.b16 %v3898
  %v3953 = vpack.c.b16 %v3952, %v3951
  %v3954 = vunpack.c.l.b16 %v3947
  %v3955 = vunpack.c.l.b16 %v3948
  %v3956 = vpack.c.b16 %v3955, %v3954
  %v3959 = vsel %vm1255, %v3953, 0
  %3961 = vmatpush.bf16.msra.mxu0 0
  %3962 = vmatpush.bf16.msra.mxu0 0
  %3963 = vmatpush.bf16.msra.mxu0 0
  %3964 = vmatpush.bf16.msra.mxu0 0
  %3965 = vmatpush.bf16.msra.mxu0 0
  %3966 = vmatpush.bf16.msra.mxu0 0
  %3967 = vmatpush.bf16.msra.mxu0 0
  %3968 = vmatpush.bf16.msra.mxu0 %v3956
  %3969 = vmatmul.bf16.gmra.mxu0 %v3959
  %v3970 = vpop.f32.mrf.mxu0
  %v3971 = vadd.f32 0.0, %v3970
  %v3972 = vpop.f32.mrf.mxu0
  %v3973 = vadd.f32 0.0, %v3972
  %3974 = vdwg.mxu0
  %3975 = vrot.lane.b32.xlu0 %v1213, 96
  %v3976 = vpop.permute.xlu0 %3975
  %3977 = vrot.lane.b32.xlu0 %v1214, 96
  %v3978 = vpop.permute.xlu0 %3977
  %v3979 = vrot.slane %v3976, 4
  %v3980 = vrot.slane %v3978, 4
  %v3983 = vunpack.c.l.b16 %v3899
  %v3984 = vunpack.c.l.b16 %v3900
  %v3985 = vpack.c.b16 %v3984, %v3983
  %v3986 = vunpack.c.l.b16 %v3979
  %v3987 = vunpack.c.l.b16 %v3980
  %v3988 = vpack.c.b16 %v3987, %v3986
  %v3991 = vsel %vm1255, %v3985, 0
  %3993 = vmatpush.bf16.msra.mxu0 0
  %3994 = vmatpush.bf16.msra.mxu0 0
  %3995 = vmatpush.bf16.msra.mxu0 0
  %3996 = vmatpush.bf16.msra.mxu0 0
  %3997 = vmatpush.bf16.msra.mxu0 0
  %3998 = vmatpush.bf16.msra.mxu0 0
  %3999 = vmatpush.bf16.msra.mxu0 0
  %4000 = vmatpush.bf16.msra.mxu0 %v3988
  %4001 = vmatmul.bf16.gmra.mxu0 %v3991
  %v4002 = vpop.f32.mrf.mxu0
  %v4003 = vadd.f32 0.0, %v4002
  %v4004 = vpop.f32.mrf.mxu0
  %v4005 = vadd.f32 0.0, %v4004
  %4006 = vdwg.mxu0
  %4007 = vrot.lane.b32.xlu0 %v1217, 96
  %v4008 = vpop.permute.xlu0 %4007
  %4009 = vrot.lane.b32.xlu0 %v1218, 96
  %v4010 = vpop.permute.xlu0 %4009
  %v4011 = vrot.slane %v4008, 4
  %v4012 = vrot.slane %v4010, 4
  %v4015 = vunpack.c.l.b16 %v3901
  %v4016 = vunpack.c.l.b16 %v3902
  %v4017 = vpack.c.b16 %v4016, %v4015
  %v4018 = vunpack.c.l.b16 %v4011
  %v4019 = vunpack.c.l.b16 %v4012
  %v4020 = vpack.c.b16 %v4019, %v4018
  %v4023 = vsel %vm1255, %v4017, 0
  %4025 = vmatpush.bf16.msra.mxu0 0
  %4026 = vmatpush.bf16.msra.mxu0 0
  %4027 = vmatpush.bf16.msra.mxu0 0
  %4028 = vmatpush.bf16.msra.mxu0 0
  %4029 = vmatpush.bf16.msra.mxu0 0
  %4030 = vmatpush.bf16.msra.mxu0 0
  %4031 = vmatpush.bf16.msra.mxu0 0
  %4032 = vmatpush.bf16.msra.mxu0 %v4020
  %4033 = vmatmul.bf16.gmra.mxu0 %v4023
  %v4034 = vpop.f32.mrf.mxu0
  %v4035 = vadd.f32 0.0, %v4034
  %v4036 = vpop.f32.mrf.mxu0
  %v4037 = vadd.f32 0.0, %v4036
  %4038 = vdwg.mxu0
  %4039 = vrot.lane.b32.xlu0 %v1221, 96
  %v4040 = vpop.permute.xlu0 %4039
  %4041 = vrot.lane.b32.xlu0 %v1222, 96
  %v4042 = vpop.permute.xlu0 %4041
  %v4043 = vrot.slane %v4040, 4
  %v4044 = vrot.slane %v4042, 4
  %v4047 = vunpack.c.l.b16 %v3903
  %v4048 = vunpack.c.l.b16 %v3904
  %v4049 = vpack.c.b16 %v4048, %v4047
  %v4050 = vunpack.c.l.b16 %v4043
  %v4051 = vunpack.c.l.b16 %v4044
  %v4052 = vpack.c.b16 %v4051, %v4050
  %v4055 = vsel %vm1255, %v4049, 0
  %4057 = vmatpush.bf16.msra.mxu0 0
  %4058 = vmatpush.bf16.msra.mxu0 0
  %4059 = vmatpush.bf16.msra.mxu0 0
  %4060 = vmatpush.bf16.msra.mxu0 0
  %4061 = vmatpush.bf16.msra.mxu0 0
  %4062 = vmatpush.bf16.msra.mxu0 0
  %4063 = vmatpush.bf16.msra.mxu0 0
  %4064 = vmatpush.bf16.msra.mxu0 %v4052
  %4065 = vmatmul.bf16.gmra.mxu0 %v4055
  %v4066 = vpop.f32.mrf.mxu0
  %v4067 = vadd.f32 0.0, %v4066
  %v4068 = vpop.f32.mrf.mxu0
  %v4069 = vadd.f32 0.0, %v4068
  %4070 = vdwg.mxu0
  %4071 = vrot.lane.b32.xlu0 %v1225, 96
  %v4072 = vpop.permute.xlu0 %4071
  %4073 = vrot.lane.b32.xlu0 %v1226, 96
  %v4074 = vpop.permute.xlu0 %4073
  %v4075 = vrot.slane %v4072, 4
  %v4076 = vrot.slane %v4074, 4
  %v4079 = vunpack.c.l.b16 %v3905
  %v4080 = vunpack.c.l.b16 %v3906
  %v4081 = vpack.c.b16 %v4080, %v4079
  %v4082 = vunpack.c.l.b16 %v4075
  %v4083 = vunpack.c.l.b16 %v4076
  %v4084 = vpack.c.b16 %v4083, %v4082
  %v4087 = vsel %vm1255, %v4081, 0
  %4089 = vmatpush.bf16.msra.mxu0 0
  %4090 = vmatpush.bf16.msra.mxu0 0
  %4091 = vmatpush.bf16.msra.mxu0 0
  %4092 = vmatpush.bf16.msra.mxu0 0
  %4093 = vmatpush.bf16.msra.mxu0 0
  %4094 = vmatpush.bf16.msra.mxu0 0
  %4095 = vmatpush.bf16.msra.mxu0 0
  %4096 = vmatpush.bf16.msra.mxu0 %v4084
  %4097 = vmatmul.bf16.gmra.mxu0 %v4087
  %v4098 = vpop.f32.mrf.mxu0
  %v4099 = vadd.f32 0.0, %v4098
  %v4100 = vpop.f32.mrf.mxu0
  %v4101 = vadd.f32 0.0, %v4100
  %4102 = vdwg.mxu0
  %4103 = vrot.lane.b32.xlu0 %v1229, 96
  %v4104 = vpop.permute.xlu0 %4103
  %4105 = vrot.lane.b32.xlu0 %v1230, 96
  %v4106 = vpop.permute.xlu0 %4105
  %v4107 = vrot.slane %v4104, 4
  %v4108 = vrot.slane %v4106, 4
  %v4111 = vunpack.c.l.b16 %v3907
  %v4112 = vunpack.c.l.b16 %v3908
  %v4113 = vpack.c.b16 %v4112, %v4111
  %v4114 = vunpack.c.l.b16 %v4107
  %v4115 = vunpack.c.l.b16 %v4108
  %v4116 = vpack.c.b16 %v4115, %v4114
  %v4119 = vsel %vm1255, %v4113, 0
  %4121 = vmatpush.bf16.msra.mxu0 0
  %4122 = vmatpush.bf16.msra.mxu0 0
  %4123 = vmatpush.bf16.msra.mxu0 0
  %4124 = vmatpush.bf16.msra.mxu0 0
  %4125 = vmatpush.bf16.msra.mxu0 0
  %4126 = vmatpush.bf16.msra.mxu0 0
  %4127 = vmatpush.bf16.msra.mxu0 0
  %4128 = vmatpush.bf16.msra.mxu0 %v4116
  %4129 = vmatmul.bf16.gmra.mxu0 %v4119
  %v4130 = vpop.f32.mrf.mxu0
  %v4131 = vadd.f32 0.0, %v4130
  %v4132 = vpop.f32.mrf.mxu0
  %v4133 = vadd.f32 0.0, %v4132
  %4134 = vdwg.mxu0
  %4135 = vrot.lane.b32.xlu0 %v1233, 96
  %v4136 = vpop.permute.xlu0 %4135
  %4137 = vrot.lane.b32.xlu0 %v1234, 96
  %v4138 = vpop.permute.xlu0 %4137
  %v4139 = vrot.slane %v4136, 4
  %v4140 = vrot.slane %v4138, 4
  %v4143 = vunpack.c.l.b16 %v3909
  %v4144 = vunpack.c.l.b16 %v3910
  %v4145 = vpack.c.b16 %v4144, %v4143
  %v4146 = vunpack.c.l.b16 %v4139
  %v4147 = vunpack.c.l.b16 %v4140
  %v4148 = vpack.c.b16 %v4147, %v4146
  %v4151 = vsel %vm1255, %v4145, 0
  %4153 = vmatpush.bf16.msra.mxu0 0
  %4154 = vmatpush.bf16.msra.mxu0 0
  %4155 = vmatpush.bf16.msra.mxu0 0
  %4156 = vmatpush.bf16.msra.mxu0 0
  %4157 = vmatpush.bf16.msra.mxu0 0
  %4158 = vmatpush.bf16.msra.mxu0 0
  %4159 = vmatpush.bf16.msra.mxu0 0
  %4160 = vmatpush.bf16.msra.mxu0 %v4148
  %4161 = vmatmul.bf16.gmra.mxu0 %v4151
  %v4162 = vpop.f32.mrf.mxu0
  %v4163 = vadd.f32 0.0, %v4162
  %v4164 = vpop.f32.mrf.mxu0
  %v4165 = vadd.f32 0.0, %v4164
  %4166 = vdwg.mxu0
  %v4167 = vrot.slane %v1207, 4
  %v4168 = vrot.slane %v1208, 4
  %4169 = vrot.lane.b32.xlu0 %v1249, 32
  %v4170 = vpop.permute.xlu0 %4169
  %v4171 = vunpack.c.l.b16 %v4167
  %v4172 = vunpack.c.l.b16 %v4168
  %v4173 = vpack.c.b16 %v4172, %v4171
  %v4175 = vsel %vm1255, %v4170, 0
  %v4178 = vsel %vm1255, %v4173, 0
  %4180 = vmatpush.bf16.xpose.msra.mxu0 0
  %4181 = vmatpush.bf16.xpose.msra.mxu0 0
  %4182 = vmatpush.bf16.xpose.msra.mxu0 0
  %4183 = vmatpush.bf16.xpose.msra.mxu0 0
  %4184 = vmatpush.bf16.xpose.msra.mxu0 0
  %4185 = vmatpush.bf16.xpose.msra.mxu0 0
  %4186 = vmatpush.bf16.xpose.msra.mxu0 0
  %4187 = vmatpush.bf16.xpose.msra.mxu0 %v4178
  %4188 = vmatmul.bf16.gmra.mxu0 %v4175
  %v4189 = vpop.f32.mrf.mxu0
  %v4190 = vadd.f32 0.0, %v4189
  %v4191 = vpop.f32.mrf.mxu0
  %v4192 = vadd.f32 0.0, %v4191
  %4193 = vdwg.mxu0
  %v4194 = vrot.slane %v1211, 4
  %v4195 = vrot.slane %v1212, 4
  %4196 = vrot.lane.b32.xlu0 %v1295, 32
  %v4197 = vpop.permute.xlu0 %4196
  %v4198 = vunpack.c.l.b16 %v4194
  %v4199 = vunpack.c.l.b16 %v4195
  %v4200 = vpack.c.b16 %v4199, %v4198
  %v4202 = vsel %vm1255, %v4197, 0
  %v4205 = vsel %vm1255, %v4200, 0
  %4207 = vmatpush.bf16.xpose.msra.mxu0 0
  %4208 = vmatpush.bf16.xpose.msra.mxu0 0
  %4209 = vmatpush.bf16.xpose.msra.mxu0 0
  %4210 = vmatpush.bf16.xpose.msra.mxu0 0
  %4211 = vmatpush.bf16.xpose.msra.mxu0 0
  %4212 = vmatpush.bf16.xpose.msra.mxu0 0
  %4213 = vmatpush.bf16.xpose.msra.mxu0 0
  %4214 = vmatpush.bf16.xpose.msra.mxu0 %v4205
  %4215 = vmatmul.bf16.gmra.mxu0 %v4202
  %v4216 = vpop.f32.mrf.mxu0
  %v4217 = vadd.f32 0.0, %v4216
  %v4218 = vpop.f32.mrf.mxu0
  %v4219 = vadd.f32 0.0, %v4218
  %4220 = vdwg.mxu0
  %v4221 = vrot.slane %v1215, 4
  %v4222 = vrot.slane %v1216, 4
  %4223 = vrot.lane.b32.xlu0 %v1340, 32
  %v4224 = vpop.permute.xlu0 %4223
  %v4225 = vunpack.c.l.b16 %v4221
  %v4226 = vunpack.c.l.b16 %v4222
  %v4227 = vpack.c.b16 %v4226, %v4225
  %v4229 = vsel %vm1255, %v4224, 0
  %v4232 = vsel %vm1255, %v4227, 0
  %4234 = vmatpush.bf16.xpose.msra.mxu0 0
  %4235 = vmatpush.bf16.xpose.msra.mxu0 0
  %4236 = vmatpush.bf16.xpose.msra.mxu0 0
  %4237 = vmatpush.bf16.xpose.msra.mxu0 0
  %4238 = vmatpush.bf16.xpose.msra.mxu0 0
  %4239 = vmatpush.bf16.xpose.msra.mxu0 0
  %4240 = vmatpush.bf16.xpose.msra.mxu0 0
  %4241 = vmatpush.bf16.xpose.msra.mxu0 %v4232
  %4242 = vmatmul.bf16.gmra.mxu0 %v4229
  %v4243 = vpop.f32.mrf.mxu0
  %v4244 = vadd.f32 0.0, %v4243
  %v4245 = vpop.f32.mrf.mxu0
  %v4246 = vadd.f32 0.0, %v4245
  %4247 = vdwg.mxu0
  %v4248 = vrot.slane %v1219, 4
  %v4249 = vrot.slane %v1220, 4
  %4250 = vrot.lane.b32.xlu0 %v1385, 32
  %v4251 = vpop.permute.xlu0 %4250
  %v4252 = vunpack.c.l.b16 %v4248
  %v4253 = vunpack.c.l.b16 %v4249
  %v4254 = vpack.c.b16 %v4253, %v4252
  %v4256 = vsel %vm1255, %v4251, 0
  %v4259 = vsel %vm1255, %v4254, 0
  %4261 = vmatpush.bf16.xpose.msra.mxu0 0
  %4262 = vmatpush.bf16.xpose.msra.mxu0 0
  %4263 = vmatpush.bf16.xpose.msra.mxu0 0
  %4264 = vmatpush.bf16.xpose.msra.mxu0 0
  %4265 = vmatpush.bf16.xpose.msra.mxu0 0
  %4266 = vmatpush.bf16.xpose.msra.mxu0 0
  %4267 = vmatpush.bf16.xpose.msra.mxu0 0
  %4268 = vmatpush.bf16.xpose.msra.mxu0 %v4259
  %4269 = vmatmul.bf16.gmra.mxu0 %v4256
  %v4270 = vpop.f32.mrf.mxu0
  %v4271 = vadd.f32 0.0, %v4270
  %v4272 = vpop.f32.mrf.mxu0
  %v4273 = vadd.f32 0.0, %v4272
  %4274 = vdwg.mxu0
  %v4275 = vrot.slane %v1223, 4
  %v4276 = vrot.slane %v1224, 4
  %4277 = vrot.lane.b32.xlu0 %v1430, 32
  %v4278 = vpop.permute.xlu0 %4277
  %v4279 = vunpack.c.l.b16 %v4275
  %v4280 = vunpack.c.l.b16 %v4276
  %v4281 = vpack.c.b16 %v4280, %v4279
  %v4283 = vsel %vm1255, %v4278, 0
  %v4286 = vsel %vm1255, %v4281, 0
  %4288 = vmatpush.bf16.xpose.msra.mxu0 0
  %4289 = vmatpush.bf16.xpose.msra.mxu0 0
  %4290 = vmatpush.bf16.xpose.msra.mxu0 0
  %4291 = vmatpush.bf16.xpose.msra.mxu0 0
  %4292 = vmatpush.bf16.xpose.msra.mxu0 0
  %4293 = vmatpush.bf16.xpose.msra.mxu0 0
  %4294 = vmatpush.bf16.xpose.msra.mxu0 0
  %4295 = vmatpush.bf16.xpose.msra.mxu0 %v4286
  %4296 = vmatmul.bf16.gmra.mxu0 %v4283
  %v4297 = vpop.f32.mrf.mxu0
  %v4298 = vadd.f32 0.0, %v4297
  %v4299 = vpop.f32.mrf.mxu0
  %v4300 = vadd.f32 0.0, %v4299
  %4301 = vdwg.mxu0
  %v4302 = vrot.slane %v1227, 4
  %v4303 = vrot.slane %v1228, 4
  %4304 = vrot.lane.b32.xlu0 %v1475, 32
  %v4305 = vpop.permute.xlu0 %4304
  %v4306 = vunpack.c.l.b16 %v4302
  %v4307 = vunpack.c.l.b16 %v4303
  %v4308 = vpack.c.b16 %v4307, %v4306
  %v4310 = vsel %vm1255, %v4305, 0
  %v4313 = vsel %vm1255, %v4308, 0
  %4315 = vmatpush.bf16.xpose.msra.mxu0 0
  %4316 = vmatpush.bf16.xpose.msra.mxu0 0
  %4317 = vmatpush.bf16.xpose.msra.mxu0 0
  %4318 = vmatpush.bf16.xpose.msra.mxu0 0
  %4319 = vmatpush.bf16.xpose.msra.mxu0 0
  %4320 = vmatpush.bf16.xpose.msra.mxu0 0
  %4321 = vmatpush.bf16.xpose.msra.mxu0 0
  %4322 = vmatpush.bf16.xpose.msra.mxu0 %v4313
  %4323 = vmatmul.bf16.gmra.mxu0 %v4310
  %v4324 = vpop.f32.mrf.mxu0
  %v4325 = vadd.f32 0.0, %v4324
  %v4326 = vpop.f32.mrf.mxu0
  %v4327 = vadd.f32 0.0, %v4326
  %4328 = vdwg.mxu0
  %v4329 = vrot.slane %v1231, 4
  %v4330 = vrot.slane %v1232, 4
  %4331 = vrot.lane.b32.xlu0 %v1520, 32
  %v4332 = vpop.permute.xlu0 %4331
  %v4333 = vunpack.c.l.b16 %v4329
  %v4334 = vunpack.c.l.b16 %v4330
  %v4335 = vpack.c.b16 %v4334, %v4333
  %v4337 = vsel %vm1255, %v4332, 0
  %v4340 = vsel %vm1255, %v4335, 0
  %4342 = vmatpush.bf16.xpose.msra.mxu0 0
  %4343 = vmatpush.bf16.xpose.msra.mxu0 0
  %4344 = vmatpush.bf16.xpose.msra.mxu0 0
  %4345 = vmatpush.bf16.xpose.msra.mxu0 0
  %4346 = vmatpush.bf16.xpose.msra.mxu0 0
  %4347 = vmatpush.bf16.xpose.msra.mxu0 0
  %4348 = vmatpush.bf16.xpose.msra.mxu0 0
  %4349 = vmatpush.bf16.xpose.msra.mxu0 %v4340
  %4350 = vmatmul.bf16.gmra.mxu0 %v4337
  %v4351 = vpop.f32.mrf.mxu0
  %v4352 = vadd.f32 0.0, %v4351
  %v4353 = vpop.f32.mrf.mxu0
  %v4354 = vadd.f32 0.0, %v4353
  %4355 = vdwg.mxu0
  %v4356 = vrot.slane %v1235, 4
  %v4357 = vrot.slane %v1236, 4
  %4358 = vrot.lane.b32.xlu0 %v1565, 32
  %v4359 = vpop.permute.xlu0 %4358
  %v4360 = vunpack.c.l.b16 %v4356
  %v4361 = vunpack.c.l.b16 %v4357
  %v4362 = vpack.c.b16 %v4361, %v4360
  %v4364 = vsel %vm1255, %v4359, 0
  %v4367 = vsel %vm1255, %v4362, 0
  %4369 = vmatpush.bf16.xpose.msra.mxu0 0
  %4370 = vmatpush.bf16.xpose.msra.mxu0 0
  %4371 = vmatpush.bf16.xpose.msra.mxu0 0
  %4372 = vmatpush.bf16.xpose.msra.mxu0 0
  %4373 = vmatpush.bf16.xpose.msra.mxu0 0
  %4374 = vmatpush.bf16.xpose.msra.mxu0 0
  %4375 = vmatpush.bf16.xpose.msra.mxu0 0
  %4376 = vmatpush.bf16.xpose.msra.mxu0 %v4367
  %4377 = vmatmul.bf16.gmra.mxu0 %v4364
  %v4378 = vpop.f32.mrf.mxu0
  %v4379 = vadd.f32 0.0, %v4378
  %v4380 = vpop.f32.mrf.mxu0
  %v4381 = vadd.f32 0.0, %v4380
  %4382 = vdwg.mxu0
  %v4383 = vsel %vm1255, %v4190, -inf
  %4384 = vmax.xlane.f32.xlu0 %v4383
  %v4385 = vpop.xlane.xlu0 %4384
  %v4386 = vsel %vm1255, %v4192, -inf
  %4387 = vmax.xlane.f32.xlu0 %v4386
  %v4388 = vpop.xlane.xlu0 %4387
  %v4389 = vsel %vm1255, %v4217, -inf
  %4390 = vmax.xlane.f32.xlu0 %v4389
  %v4391 = vpop.xlane.xlu0 %4390
  %v4392 = vsel %vm1255, %v4219, -inf
  %4393 = vmax.xlane.f32.xlu0 %v4392
  %v4394 = vpop.xlane.xlu0 %4393
  %v4395 = vsel %vm1255, %v4244, -inf
  %4396 = vmax.xlane.f32.xlu0 %v4395
  %v4397 = vpop.xlane.xlu0 %4396
  %v4398 = vsel %vm1255, %v4246, -inf
  %4399 = vmax.xlane.f32.xlu0 %v4398
  %v4400 = vpop.xlane.xlu0 %4399
  %v4401 = vsel %vm1255, %v4271, -inf
  %4402 = vmax.xlane.f32.xlu0 %v4401
  %v4403 = vpop.xlane.xlu0 %4402
  %v4404 = vsel %vm1255, %v4273, -inf
  %4405 = vmax.xlane.f32.xlu0 %v4404
  %v4406 = vpop.xlane.xlu0 %4405
  %v4407 = vsel %vm1255, %v4298, -inf
  %4408 = vmax.xlane.f32.xlu0 %v4407
  %v4409 = vpop.xlane.xlu0 %4408
  %v4410 = vsel %vm1255, %v4300, -inf
  %4411 = vmax.xlane.f32.xlu0 %v4410
  %v4412 = vpop.xlane.xlu0 %4411
  %v4413 = vsel %vm1255, %v4325, -inf
  %4414 = vmax.xlane.f32.xlu0 %v4413
  %v4415 = vpop.xlane.xlu0 %4414
  %v4416 = vsel %vm1255, %v4327, -inf
  %4417 = vmax.xlane.f32.xlu0 %v4416
  %v4418 = vpop.xlane.xlu0 %4417
  %v4419 = vsel %vm1255, %v4352, -inf
  %4420 = vmax.xlane.f32.xlu0 %v4419
  %v4421 = vpop.xlane.xlu0 %4420
  %v4422 = vsel %vm1255, %v4354, -inf
  %4423 = vmax.xlane.f32.xlu0 %v4422
  %v4424 = vpop.xlane.xlu0 %4423
  %v4425 = vsel %vm1255, %v4379, -inf
  %4426 = vmax.xlane.f32.xlu0 %v4425
  %v4427 = vpop.xlane.xlu0 %4426
  %v4428 = vsel %vm1255, %v4381, -inf
  %4429 = vmax.xlane.f32.xlu0 %v4428
  %v4430 = vpop.xlane.xlu0 %4429
  %v4431 = vsub.f32 %v4190, %v4385
  %v4432 = vsub.f32 %v4192, %v4388
  %v4433 = vsub.f32 %v4217, %v4391
  %v4434 = vsub.f32 %v4219, %v4394
  %v4435 = vsub.f32 %v4244, %v4397
  %v4436 = vsub.f32 %v4246, %v4400
  %v4437 = vsub.f32 %v4271, %v4403
  %v4438 = vsub.f32 %v4273, %v4406
  %v4439 = vsub.f32 %v4298, %v4409
  %v4440 = vsub.f32 %v4300, %v4412
  %v4441 = vsub.f32 %v4325, %v4415
  %v4442 = vsub.f32 %v4327, %v4418
  %v4443 = vsub.f32 %v4352, %v4421
  %v4444 = vsub.f32 %v4354, %v4424
  %v4445 = vsub.f32 %v4379, %v4427
  %v4446 = vsub.f32 %v4381, %v4430
  %v4447 = vmul.f32 %v4431, 1.442695
  %v4448 = vpow.pop %v4447
  %v4449 = vmul.f32 %v4432, 1.442695
  %v4450 = vpow.pop %v4449
  %v4451 = vmul.f32 %v4433, 1.442695
  %v4452 = vpow.pop %v4451
  %v4453 = vmul.f32 %v4434, 1.442695
  %v4454 = vpow.pop %v4453
  %v4455 = vmul.f32 %v4435, 1.442695
  %v4456 = vpow.pop %v4455
  %v4457 = vmul.f32 %v4436, 1.442695
  %v4458 = vpow.pop %v4457
  %v4459 = vmul.f32 %v4437, 1.442695
  %v4460 = vpow.pop %v4459
  %v4461 = vmul.f32 %v4438, 1.442695
  %v4462 = vpow.pop %v4461
  %v4463 = vmul.f32 %v4439, 1.442695
  %v4464 = vpow.pop %v4463
  %v4465 = vmul.f32 %v4440, 1.442695
  %v4466 = vpow.pop %v4465
  %v4467 = vmul.f32 %v4441, 1.442695
  %v4468 = vpow.pop %v4467
  %v4469 = vmul.f32 %v4442, 1.442695
  %v4470 = vpow.pop %v4469
  %v4471 = vmul.f32 %v4443, 1.442695
  %v4472 = vpow.pop %v4471
  %v4473 = vmul.f32 %v4444, 1.442695
  %v4474 = vpow.pop %v4473
  %v4475 = vmul.f32 %v4445, 1.442695
  %v4476 = vpow.pop %v4475
  %v4477 = vmul.f32 %v4446, 1.442695
  %v4478 = vpow.pop %v4477
  %v4479 = vsel %vm1255, %v4448, 0.0
  %4480 = vadd.xlane.f32.xlu0 %v4479
  %v4481 = vpop.xlane.xlu0 %4480
  %v4482 = vsel %vm1255, %v4450, 0.0
  %4483 = vadd.xlane.f32.xlu0 %v4482
  %v4484 = vpop.xlane.xlu0 %4483
  %v4485 = vsel %vm1255, %v4452, 0.0
  %4486 = vadd.xlane.f32.xlu0 %v4485
  %v4487 = vpop.xlane.xlu0 %4486
  %v4488 = vsel %vm1255, %v4454, 0.0
  %4489 = vadd.xlane.f32.xlu0 %v4488
  %v4490 = vpop.xlane.xlu0 %4489
  %v4491 = vsel %vm1255, %v4456, 0.0
  %4492 = vadd.xlane.f32.xlu0 %v4491
  %v4493 = vpop.xlane.xlu0 %4492
  %v4494 = vsel %vm1255, %v4458, 0.0
  %4495 = vadd.xlane.f32.xlu0 %v4494
  %v4496 = vpop.xlane.xlu0 %4495
  %v4497 = vsel %vm1255, %v4460, 0.0
  %4498 = vadd.xlane.f32.xlu0 %v4497
  %v4499 = vpop.xlane.xlu0 %4498
  %v4500 = vsel %vm1255, %v4462, 0.0
  %4501 = vadd.xlane.f32.xlu0 %v4500
  %v4502 = vpop.xlane.xlu0 %4501
  %v4503 = vsel %vm1255, %v4464, 0.0
  %4504 = vadd.xlane.f32.xlu0 %v4503
  %v4505 = vpop.xlane.xlu0 %4504
  %v4506 = vsel %vm1255, %v4466, 0.0
  %4507 = vadd.xlane.f32.xlu0 %v4506
  %v4508 = vpop.xlane.xlu0 %4507
  %v4509 = vsel %vm1255, %v4468, 0.0
  %4510 = vadd.xlane.f32.xlu0 %v4509
  %v4511 = vpop.xlane.xlu0 %4510
  %v4512 = vsel %vm1255, %v4470, 0.0
  %4513 = vadd.xlane.f32.xlu0 %v4512
  %v4514 = vpop.xlane.xlu0 %4513
  %v4515 = vsel %vm1255, %v4472, 0.0
  %4516 = vadd.xlane.f32.xlu0 %v4515
  %v4517 = vpop.xlane.xlu0 %4516
  %v4518 = vsel %vm1255, %v4474, 0.0
  %4519 = vadd.xlane.f32.xlu0 %v4518
  %v4520 = vpop.xlane.xlu0 %4519
  %v4521 = vsel %vm1255, %v4476, 0.0
  %4522 = vadd.xlane.f32.xlu0 %v4521
  %v4523 = vpop.xlane.xlu0 %4522
  %v4524 = vsel %vm1255, %v4478, 0.0
  %4525 = vadd.xlane.f32.xlu0 %v4524
  %v4526 = vpop.xlane.xlu0 %4525
  %v4527 = vrcp.pop %v4481
  %v4528 = vrcp.pop %v4484
  %v4529 = vrcp.pop %v4487
  %v4530 = vrcp.pop %v4490
  %v4531 = vrcp.pop %v4493
  %v4532 = vrcp.pop %v4496
  %v4533 = vrcp.pop %v4499
  %v4534 = vrcp.pop %v4502
  %v4535 = vrcp.pop %v4505
  %v4536 = vrcp.pop %v4508
  %v4537 = vrcp.pop %v4511
  %v4538 = vrcp.pop %v4514
  %v4539 = vrcp.pop %v4517
  %v4540 = vrcp.pop %v4520
  %v4541 = vrcp.pop %v4523
  %v4542 = vrcp.pop %v4526
  %v4543 = vmul.f32 %v4448, %v4527
  %v4544 = vmul.f32 %v4450, %v4528
  %v4545 = vmul.f32 %v4452, %v4529
  %v4546 = vmul.f32 %v4454, %v4530
  %v4547 = vmul.f32 %v4456, %v4531
  %v4548 = vmul.f32 %v4458, %v4532
  %v4549 = vmul.f32 %v4460, %v4533
  %v4550 = vmul.f32 %v4462, %v4534
  %v4551 = vmul.f32 %v4464, %v4535
  %v4552 = vmul.f32 %v4466, %v4536
  %v4553 = vmul.f32 %v4468, %v4537
  %v4554 = vmul.f32 %v4470, %v4538
  %v4555 = vmul.f32 %v4472, %v4539
  %v4556 = vmul.f32 %v4474, %v4540
  %v4557 = vmul.f32 %v4476, %v4541
  %v4558 = vmul.f32 %v4478, %v4542
  %v4559 = vpack.c.bf16 %v4543, %v4543
  %v4560 = vpack.c.bf16 %v4544, %v4544
  %v4561 = vpack.c.bf16 %v4545, %v4545
  %v4562 = vpack.c.bf16 %v4546, %v4546
  %v4563 = vpack.c.bf16 %v4547, %v4547
  %v4564 = vpack.c.bf16 %v4548, %v4548
  %v4565 = vpack.c.bf16 %v4549, %v4549
  %v4566 = vpack.c.bf16 %v4550, %v4550
  %v4567 = vpack.c.bf16 %v4551, %v4551
  %v4568 = vpack.c.bf16 %v4552, %v4552
  %v4569 = vpack.c.bf16 %v4553, %v4553
  %v4570 = vpack.c.bf16 %v4554, %v4554
  %v4571 = vpack.c.bf16 %v4555, %v4555
  %v4572 = vpack.c.bf16 %v4556, %v4556
  %v4573 = vpack.c.bf16 %v4557, %v4557
  %v4574 = vpack.c.bf16 %v4558, %v4558
  %4575 = vrot.lane.b32.xlu0 %v1207, 96
  %v4576 = vpop.permute.xlu0 %4575
  %4577 = vrot.lane.b32.xlu0 %v1208, 96
  %v4578 = vpop.permute.xlu0 %4577
  %v4579 = vrot.slane %v4576, 4
  %v4580 = vrot.slane %v4578, 4
  %v4583 = vunpack.c.l.b16 %v4559
  %v4584 = vunpack.c.l.b16 %v4560
  %v4585 = vpack.c.b16 %v4584, %v4583
  %v4586 = vunpack.c.l.b16 %v4579
  %v4587 = vunpack.c.l.b16 %v4580
  %v4588 = vpack.c.b16 %v4587, %v4586
  %v4591 = vsel %vm1255, %v4585, 0
  %4593 = vmatpush.bf16.msra.mxu0 0
  %4594 = vmatpush.bf16.msra.mxu0 0
  %4595 = vmatpush.bf16.msra.mxu0 0
  %4596 = vmatpush.bf16.msra.mxu0 0
  %4597 = vmatpush.bf16.msra.mxu0 0
  %4598 = vmatpush.bf16.msra.mxu0 0
  %4599 = vmatpush.bf16.msra.mxu0 0
  %4600 = vmatpush.bf16.msra.mxu0 %v4588
  %4601 = vmatmul.bf16.gmra.mxu0 %v4591
  %v4602 = vpop.f32.mrf.mxu0
  %v4603 = vadd.f32 0.0, %v4602
  %v4604 = vpop.f32.mrf.mxu0
  %v4605 = vadd.f32 0.0, %v4604
  %4606 = vdwg.mxu0
  %4607 = vrot.lane.b32.xlu0 %v1211, 96
  %v4608 = vpop.permute.xlu0 %4607
  %4609 = vrot.lane.b32.xlu0 %v1212, 96
  %v4610 = vpop.permute.xlu0 %4609
  %v4611 = vrot.slane %v4608, 4
  %v4612 = vrot.slane %v4610, 4
  %v4615 = vunpack.c.l.b16 %v4561
  %v4616 = vunpack.c.l.b16 %v4562
  %v4617 = vpack.c.b16 %v4616, %v4615
  %v4618 = vunpack.c.l.b16 %v4611
  %v4619 = vunpack.c.l.b16 %v4612
  %v4620 = vpack.c.b16 %v4619, %v4618
  %v4623 = vsel %vm1255, %v4617, 0
  %4625 = vmatpush.bf16.msra.mxu0 0
  %4626 = vmatpush.bf16.msra.mxu0 0
  %4627 = vmatpush.bf16.msra.mxu0 0
  %4628 = vmatpush.bf16.msra.mxu0 0
  %4629 = vmatpush.bf16.msra.mxu0 0
  %4630 = vmatpush.bf16.msra.mxu0 0
  %4631 = vmatpush.bf16.msra.mxu0 0
  %4632 = vmatpush.bf16.msra.mxu0 %v4620
  %4633 = vmatmul.bf16.gmra.mxu0 %v4623
  %v4634 = vpop.f32.mrf.mxu0
  %v4635 = vadd.f32 0.0, %v4634
  %v4636 = vpop.f32.mrf.mxu0
  %v4637 = vadd.f32 0.0, %v4636
  %4638 = vdwg.mxu0
  %4639 = vrot.lane.b32.xlu0 %v1215, 96
  %v4640 = vpop.permute.xlu0 %4639
  %4641 = vrot.lane.b32.xlu0 %v1216, 96
  %v4642 = vpop.permute.xlu0 %4641
  %v4643 = vrot.slane %v4640, 4
  %v4644 = vrot.slane %v4642, 4
  %v4647 = vunpack.c.l.b16 %v4563
  %v4648 = vunpack.c.l.b16 %v4564
  %v4649 = vpack.c.b16 %v4648, %v4647
  %v4650 = vunpack.c.l.b16 %v4643
  %v4651 = vunpack.c.l.b16 %v4644
  %v4652 = vpack.c.b16 %v4651, %v4650
  %v4655 = vsel %vm1255, %v4649, 0
  %4657 = vmatpush.bf16.msra.mxu0 0
  %4658 = vmatpush.bf16.msra.mxu0 0
  %4659 = vmatpush.bf16.msra.mxu0 0
  %4660 = vmatpush.bf16.msra.mxu0 0
  %4661 = vmatpush.bf16.msra.mxu0 0
  %4662 = vmatpush.bf16.msra.mxu0 0
  %4663 = vmatpush.bf16.msra.mxu0 0
  %4664 = vmatpush.bf16.msra.mxu0 %v4652
  %4665 = vmatmul.bf16.gmra.mxu0 %v4655
  %v4666 = vpop.f32.mrf.mxu0
  %v4667 = vadd.f32 0.0, %v4666
  %v4668 = vpop.f32.mrf.mxu0
  %v4669 = vadd.f32 0.0, %v4668
  %4670 = vdwg.mxu0
  %4671 = vrot.lane.b32.xlu0 %v1219, 96
  %v4672 = vpop.permute.xlu0 %4671
  %4673 = vrot.lane.b32.xlu0 %v1220, 96
  %v4674 = vpop.permute.xlu0 %4673
  %v4675 = vrot.slane %v4672, 4
  %v4676 = vrot.slane %v4674, 4
  %v4679 = vunpack.c.l.b16 %v4565
  %v4680 = vunpack.c.l.b16 %v4566
  %v4681 = vpack.c.b16 %v4680, %v4679
  %v4682 = vunpack.c.l.b16 %v4675
  %v4683 = vunpack.c.l.b16 %v4676
  %v4684 = vpack.c.b16 %v4683, %v4682
  %v4687 = vsel %vm1255, %v4681, 0
  %4689 = vmatpush.bf16.msra.mxu0 0
  %4690 = vmatpush.bf16.msra.mxu0 0
  %4691 = vmatpush.bf16.msra.mxu0 0
  %4692 = vmatpush.bf16.msra.mxu0 0
  %4693 = vmatpush.bf16.msra.mxu0 0
  %4694 = vmatpush.bf16.msra.mxu0 0
  %4695 = vmatpush.bf16.msra.mxu0 0
  %4696 = vmatpush.bf16.msra.mxu0 %v4684
  %4697 = vmatmul.bf16.gmra.mxu0 %v4687
  %v4698 = vpop.f32.mrf.mxu0
  %v4699 = vadd.f32 0.0, %v4698
  %v4700 = vpop.f32.mrf.mxu0
  %v4701 = vadd.f32 0.0, %v4700
  %4702 = vdwg.mxu0
  %4703 = vrot.lane.b32.xlu0 %v1223, 96
  %v4704 = vpop.permute.xlu0 %4703
  %4705 = vrot.lane.b32.xlu0 %v1224, 96
  %v4706 = vpop.permute.xlu0 %4705
  %v4707 = vrot.slane %v4704, 4
  %v4708 = vrot.slane %v4706, 4
  %v4711 = vunpack.c.l.b16 %v4567
  %v4712 = vunpack.c.l.b16 %v4568
  %v4713 = vpack.c.b16 %v4712, %v4711
  %v4714 = vunpack.c.l.b16 %v4707
  %v4715 = vunpack.c.l.b16 %v4708
  %v4716 = vpack.c.b16 %v4715, %v4714
  %v4719 = vsel %vm1255, %v4713, 0
  %4721 = vmatpush.bf16.msra.mxu0 0
  %4722 = vmatpush.bf16.msra.mxu0 0
  %4723 = vmatpush.bf16.msra.mxu0 0
  %4724 = vmatpush.bf16.msra.mxu0 0
  %4725 = vmatpush.bf16.msra.mxu0 0
  %4726 = vmatpush.bf16.msra.mxu0 0
  %4727 = vmatpush.bf16.msra.mxu0 0
  %4728 = vmatpush.bf16.msra.mxu0 %v4716
  %4729 = vmatmul.bf16.gmra.mxu0 %v4719
  %v4730 = vpop.f32.mrf.mxu0
  %v4731 = vadd.f32 0.0, %v4730
  %v4732 = vpop.f32.mrf.mxu0
  %v4733 = vadd.f32 0.0, %v4732
  %4734 = vdwg.mxu0
  %4735 = vrot.lane.b32.xlu0 %v1227, 96
  %v4736 = vpop.permute.xlu0 %4735
  %4737 = vrot.lane.b32.xlu0 %v1228, 96
  %v4738 = vpop.permute.xlu0 %4737
  %v4739 = vrot.slane %v4736, 4
  %v4740 = vrot.slane %v4738, 4
  %v4743 = vunpack.c.l.b16 %v4569
  %v4744 = vunpack.c.l.b16 %v4570
  %v4745 = vpack.c.b16 %v4744, %v4743
  %v4746 = vunpack.c.l.b16 %v4739
  %v4747 = vunpack.c.l.b16 %v4740
  %v4748 = vpack.c.b16 %v4747, %v4746
  %v4751 = vsel %vm1255, %v4745, 0
  %4753 = vmatpush.bf16.msra.mxu0 0
  %4754 = vmatpush.bf16.msra.mxu0 0
  %4755 = vmatpush.bf16.msra.mxu0 0
  %4756 = vmatpush.bf16.msra.mxu0 0
  %4757 = vmatpush.bf16.msra.mxu0 0
  %4758 = vmatpush.bf16.msra.mxu0 0
  %4759 = vmatpush.bf16.msra.mxu0 0
  %4760 = vmatpush.bf16.msra.mxu0 %v4748
  %4761 = vmatmul.bf16.gmra.mxu0 %v4751
  %v4762 = vpop.f32.mrf.mxu0
  %v4763 = vadd.f32 0.0, %v4762
  %v4764 = vpop.f32.mrf.mxu0
  %v4765 = vadd.f32 0.0, %v4764
  %4766 = vdwg.mxu0
  %4767 = vrot.lane.b32.xlu0 %v1231, 96
  %v4768 = vpop.permute.xlu0 %4767
  %4769 = vrot.lane.b32.xlu0 %v1232, 96
  %v4770 = vpop.permute.xlu0 %4769
  %v4771 = vrot.slane %v4768, 4
  %v4772 = vrot.slane %v4770, 4
  %v4775 = vunpack.c.l.b16 %v4571
  %v4776 = vunpack.c.l.b16 %v4572
  %v4777 = vpack.c.b16 %v4776, %v4775
  %v4778 = vunpack.c.l.b16 %v4771
  %v4779 = vunpack.c.l.b16 %v4772
  %v4780 = vpack.c.b16 %v4779, %v4778
  %v4783 = vsel %vm1255, %v4777, 0
  %4785 = vmatpush.bf16.msra.mxu0 0
  %4786 = vmatpush.bf16.msra.mxu0 0
  %4787 = vmatpush.bf16.msra.mxu0 0
  %4788 = vmatpush.bf16.msra.mxu0 0
  %4789 = vmatpush.bf16.msra.mxu0 0
  %4790 = vmatpush.bf16.msra.mxu0 0
  %4791 = vmatpush.bf16.msra.mxu0 0
  %4792 = vmatpush.bf16.msra.mxu0 %v4780
  %4793 = vmatmul.bf16.gmra.mxu0 %v4783
  %v4794 = vpop.f32.mrf.mxu0
  %v4795 = vadd.f32 0.0, %v4794
  %v4796 = vpop.f32.mrf.mxu0
  %v4797 = vadd.f32 0.0, %v4796
  %4798 = vdwg.mxu0
  %4799 = vrot.lane.b32.xlu0 %v1235, 96
  %v4800 = vpop.permute.xlu0 %4799
  %4801 = vrot.lane.b32.xlu0 %v1236, 96
  %v4802 = vpop.permute.xlu0 %4801
  %v4803 = vrot.slane %v4800, 4
  %v4804 = vrot.slane %v4802, 4
  %v4807 = vunpack.c.l.b16 %v4573
  %v4808 = vunpack.c.l.b16 %v4574
  %v4809 = vpack.c.b16 %v4808, %v4807
  %v4810 = vunpack.c.l.b16 %v4803
  %v4811 = vunpack.c.l.b16 %v4804
  %v4812 = vpack.c.b16 %v4811, %v4810
  %v4815 = vsel %vm1255, %v4809, 0
  %4817 = vmatpush.bf16.msra.mxu0 0
  %4818 = vmatpush.bf16.msra.mxu0 0
  %4819 = vmatpush.bf16.msra.mxu0 0
  %4820 = vmatpush.bf16.msra.mxu0 0
  %4821 = vmatpush.bf16.msra.mxu0 0
  %4822 = vmatpush.bf16.msra.mxu0 0
  %4823 = vmatpush.bf16.msra.mxu0 0
  %4824 = vmatpush.bf16.msra.mxu0 %v4812
  %4825 = vmatmul.bf16.gmra.mxu0 %v4815
  %v4826 = vpop.f32.mrf.mxu0
  %v4827 = vadd.f32 0.0, %v4826
  %v4828 = vpop.f32.mrf.mxu0
  %v4829 = vadd.f32 0.0, %v4828
  %4830 = vdwg.mxu0
  %4831 = vrot.lane.b32.xlu0 %v1205, 112
  %v4832 = vpop.permute.xlu0 %4831
  %4833 = vrot.lane.b32.xlu0 %v1206, 112
  %v4834 = vpop.permute.xlu0 %4833
  %v4835 = vrot.slane %v4832, 4
  %v4836 = vrot.slane %v4834, 4
  %4837 = vrot.lane.b32.xlu0 %v1250, 16
  %v4838 = vpop.permute.xlu0 %4837
  %v4839 = vunpack.c.l.b16 %v4835
  %v4840 = vunpack.c.l.b16 %v4836
  %v4841 = vpack.c.b16 %v4840, %v4839
  %v4843 = vsel %vm1255, %v4838, 0
  %v4846 = vsel %vm1255, %v4841, 0
  %4848 = vmatpush.bf16.xpose.msra.mxu0 0
  %4849 = vmatpush.bf16.xpose.msra.mxu0 0
  %4850 = vmatpush.bf16.xpose.msra.mxu0 0
  %4851 = vmatpush.bf16.xpose.msra.mxu0 0
  %4852 = vmatpush.bf16.xpose.msra.mxu0 0
  %4853 = vmatpush.bf16.xpose.msra.mxu0 0
  %4854 = vmatpush.bf16.xpose.msra.mxu0 0
  %4855 = vmatpush.bf16.xpose.msra.mxu0 %v4846
  %4856 = vmatmul.bf16.gmra.mxu0 %v4843
  %v4857 = vpop.f32.mrf.mxu0
  %v4858 = vadd.f32 0.0, %v4857
  %v4859 = vpop.f32.mrf.mxu0
  %v4860 = vadd.f32 0.0, %v4859
  %4861 = vdwg.mxu0
  %4862 = vrot.lane.b32.xlu0 %v1209, 112
  %v4863 = vpop.permute.xlu0 %4862
  %4864 = vrot.lane.b32.xlu0 %v1210, 112
  %v4865 = vpop.permute.xlu0 %4864
  %v4866 = vrot.slane %v4863, 4
  %v4867 = vrot.slane %v4865, 4
  %4868 = vrot.lane.b32.xlu0 %v1296, 16
  %v4869 = vpop.permute.xlu0 %4868
  %v4870 = vunpack.c.l.b16 %v4866
  %v4871 = vunpack.c.l.b16 %v4867
  %v4872 = vpack.c.b16 %v4871, %v4870
  %v4874 = vsel %vm1255, %v4869, 0
  %v4877 = vsel %vm1255, %v4872, 0
  %4879 = vmatpush.bf16.xpose.msra.mxu0 0
  %4880 = vmatpush.bf16.xpose.msra.mxu0 0
  %4881 = vmatpush.bf16.xpose.msra.mxu0 0
  %4882 = vmatpush.bf16.xpose.msra.mxu0 0
  %4883 = vmatpush.bf16.xpose.msra.mxu0 0
  %4884 = vmatpush.bf16.xpose.msra.mxu0 0
  %4885 = vmatpush.bf16.xpose.msra.mxu0 0
  %4886 = vmatpush.bf16.xpose.msra.mxu0 %v4877
  %4887 = vmatmul.bf16.gmra.mxu0 %v4874
  %v4888 = vpop.f32.mrf.mxu0
  %v4889 = vadd.f32 0.0, %v4888
  %v4890 = vpop.f32.mrf.mxu0
  %v4891 = vadd.f32 0.0, %v4890
  %4892 = vdwg.mxu0
  %4893 = vrot.lane.b32.xlu0 %v1213, 112
  %v4894 = vpop.permute.xlu0 %4893
  %4895 = vrot.lane.b32.xlu0 %v1214, 112
  %v4896 = vpop.permute.xlu0 %4895
  %v4897 = vrot.slane %v4894, 4
  %v4898 = vrot.slane %v4896, 4
  %4899 = vrot.lane.b32.xlu0 %v1341, 16
  %v4900 = vpop.permute.xlu0 %4899
  %v4901 = vunpack.c.l.b16 %v4897
  %v4902 = vunpack.c.l.b16 %v4898
  %v4903 = vpack.c.b16 %v4902, %v4901
  %v4905 = vsel %vm1255, %v4900, 0
  %v4908 = vsel %vm1255, %v4903, 0
  %4910 = vmatpush.bf16.xpose.msra.mxu0 0
  %4911 = vmatpush.bf16.xpose.msra.mxu0 0
  %4912 = vmatpush.bf16.xpose.msra.mxu0 0
  %4913 = vmatpush.bf16.xpose.msra.mxu0 0
  %4914 = vmatpush.bf16.xpose.msra.mxu0 0
  %4915 = vmatpush.bf16.xpose.msra.mxu0 0
  %4916 = vmatpush.bf16.xpose.msra.mxu0 0
  %4917 = vmatpush.bf16.xpose.msra.mxu0 %v4908
  %4918 = vmatmul.bf16.gmra.mxu0 %v4905
  %v4919 = vpop.f32.mrf.mxu0
  %v4920 = vadd.f32 0.0, %v4919
  %v4921 = vpop.f32.mrf.mxu0
  %v4922 = vadd.f32 0.0, %v4921
  %4923 = vdwg.mxu0
  %4924 = vrot.lane.b32.xlu0 %v1217, 112
  %v4925 = vpop.permute.xlu0 %4924
  %4926 = vrot.lane.b32.xlu0 %v1218, 112
  %v4927 = vpop.permute.xlu0 %4926
  %v4928 = vrot.slane %v4925, 4
  %v4929 = vrot.slane %v4927, 4
  %4930 = vrot.lane.b32.xlu0 %v1386, 16
  %v4931 = vpop.permute.xlu0 %4930
  %v4932 = vunpack.c.l.b16 %v4928
  %v4933 = vunpack.c.l.b16 %v4929
  %v4934 = vpack.c.b16 %v4933, %v4932
  %v4936 = vsel %vm1255, %v4931, 0
  %v4939 = vsel %vm1255, %v4934, 0
  %4941 = vmatpush.bf16.xpose.msra.mxu0 0
  %4942 = vmatpush.bf16.xpose.msra.mxu0 0
  %4943 = vmatpush.bf16.xpose.msra.mxu0 0
  %4944 = vmatpush.bf16.xpose.msra.mxu0 0
  %4945 = vmatpush.bf16.xpose.msra.mxu0 0
  %4946 = vmatpush.bf16.xpose.msra.mxu0 0
  %4947 = vmatpush.bf16.xpose.msra.mxu0 0
  %4948 = vmatpush.bf16.xpose.msra.mxu0 %v4939
  %4949 = vmatmul.bf16.gmra.mxu0 %v4936
  %v4950 = vpop.f32.mrf.mxu0
  %v4951 = vadd.f32 0.0, %v4950
  %v4952 = vpop.f32.mrf.mxu0
  %v4953 = vadd.f32 0.0, %v4952
  %4954 = vdwg.mxu0
  %4955 = vrot.lane.b32.xlu0 %v1221, 112
  %v4956 = vpop.permute.xlu0 %4955
  %4957 = vrot.lane.b32.xlu0 %v1222, 112
  %v4958 = vpop.permute.xlu0 %4957
  %v4959 = vrot.slane %v4956, 4
  %v4960 = vrot.slane %v4958, 4
  %4961 = vrot.lane.b32.xlu0 %v1431, 16
  %v4962 = vpop.permute.xlu0 %4961
  %v4963 = vunpack.c.l.b16 %v4959
  %v4964 = vunpack.c.l.b16 %v4960
  %v4965 = vpack.c.b16 %v4964, %v4963
  %v4967 = vsel %vm1255, %v4962, 0
  %v4970 = vsel %vm1255, %v4965, 0
  %4972 = vmatpush.bf16.xpose.msra.mxu0 0
  %4973 = vmatpush.bf16.xpose.msra.mxu0 0
  %4974 = vmatpush.bf16.xpose.msra.mxu0 0
  %4975 = vmatpush.bf16.xpose.msra.mxu0 0
  %4976 = vmatpush.bf16.xpose.msra.mxu0 0
  %4977 = vmatpush.bf16.xpose.msra.mxu0 0
  %4978 = vmatpush.bf16.xpose.msra.mxu0 0
  %4979 = vmatpush.bf16.xpose.msra.mxu0 %v4970
  %4980 = vmatmul.bf16.gmra.mxu0 %v4967
  %v4981 = vpop.f32.mrf.mxu0
  %v4982 = vadd.f32 0.0, %v4981
  %v4983 = vpop.f32.mrf.mxu0
  %v4984 = vadd.f32 0.0, %v4983
  %4985 = vdwg.mxu0
  %4986 = vrot.lane.b32.xlu0 %v1225, 112
  %v4987 = vpop.permute.xlu0 %4986
  %4988 = vrot.lane.b32.xlu0 %v1226, 112
  %v4989 = vpop.permute.xlu0 %4988
  %v4990 = vrot.slane %v4987, 4
  %v4991 = vrot.slane %v4989, 4
  %4992 = vrot.lane.b32.xlu0 %v1476, 16
  %v4993 = vpop.permute.xlu0 %4992
  %v4994 = vunpack.c.l.b16 %v4990
  %v4995 = vunpack.c.l.b16 %v4991
  %v4996 = vpack.c.b16 %v4995, %v4994
  %v4998 = vsel %vm1255, %v4993, 0
  %v5001 = vsel %vm1255, %v4996, 0
  %5003 = vmatpush.bf16.xpose.msra.mxu0 0
  %5004 = vmatpush.bf16.xpose.msra.mxu0 0
  %5005 = vmatpush.bf16.xpose.msra.mxu0 0
  %5006 = vmatpush.bf16.xpose.msra.mxu0 0
  %5007 = vmatpush.bf16.xpose.msra.mxu0 0
  %5008 = vmatpush.bf16.xpose.msra.mxu0 0
  %5009 = vmatpush.bf16.xpose.msra.mxu0 0
  %5010 = vmatpush.bf16.xpose.msra.mxu0 %v5001
  %5011 = vmatmul.bf16.gmra.mxu0 %v4998
  %v5012 = vpop.f32.mrf.mxu0
  %v5013 = vadd.f32 0.0, %v5012
  %v5014 = vpop.f32.mrf.mxu0
  %v5015 = vadd.f32 0.0, %v5014
  %5016 = vdwg.mxu0
  %5017 = vrot.lane.b32.xlu0 %v1229, 112
  %v5018 = vpop.permute.xlu0 %5017
  %5019 = vrot.lane.b32.xlu0 %v1230, 112
  %v5020 = vpop.permute.xlu0 %5019
  %v5021 = vrot.slane %v5018, 4
  %v5022 = vrot.slane %v5020, 4
  %5023 = vrot.lane.b32.xlu0 %v1521, 16
  %v5024 = vpop.permute.xlu0 %5023
  %v5025 = vunpack.c.l.b16 %v5021
  %v5026 = vunpack.c.l.b16 %v5022
  %v5027 = vpack.c.b16 %v5026, %v5025
  %v5029 = vsel %vm1255, %v5024, 0
  %v5032 = vsel %vm1255, %v5027, 0
  %5034 = vmatpush.bf16.xpose.msra.mxu0 0
  %5035 = vmatpush.bf16.xpose.msra.mxu0 0
  %5036 = vmatpush.bf16.xpose.msra.mxu0 0
  %5037 = vmatpush.bf16.xpose.msra.mxu0 0
  %5038 = vmatpush.bf16.xpose.msra.mxu0 0
  %5039 = vmatpush.bf16.xpose.msra.mxu0 0
  %5040 = vmatpush.bf16.xpose.msra.mxu0 0
  %5041 = vmatpush.bf16.xpose.msra.mxu0 %v5032
  %5042 = vmatmul.bf16.gmra.mxu0 %v5029
  %v5043 = vpop.f32.mrf.mxu0
  %v5044 = vadd.f32 0.0, %v5043
  %v5045 = vpop.f32.mrf.mxu0
  %v5046 = vadd.f32 0.0, %v5045
  %5047 = vdwg.mxu0
  %5048 = vrot.lane.b32.xlu0 %v1233, 112
  %v5049 = vpop.permute.xlu0 %5048
  %5050 = vrot.lane.b32.xlu0 %v1234, 112
  %v5051 = vpop.permute.xlu0 %5050
  %v5052 = vrot.slane %v5049, 4
  %v5053 = vrot.slane %v5051, 4
  %5054 = vrot.lane.b32.xlu0 %v1566, 16
  %v5055 = vpop.permute.xlu0 %5054
  %v5056 = vunpack.c.l.b16 %v5052
  %v5057 = vunpack.c.l.b16 %v5053
  %v5058 = vpack.c.b16 %v5057, %v5056
  %v5060 = vsel %vm1255, %v5055, 0
  %v5063 = vsel %vm1255, %v5058, 0
  %5065 = vmatpush.bf16.xpose.msra.mxu0 0
  %5066 = vmatpush.bf16.xpose.msra.mxu0 0
  %5067 = vmatpush.bf16.xpose.msra.mxu0 0
  %5068 = vmatpush.bf16.xpose.msra.mxu0 0
  %5069 = vmatpush.bf16.xpose.msra.mxu0 0
  %5070 = vmatpush.bf16.xpose.msra.mxu0 0
  %5071 = vmatpush.bf16.xpose.msra.mxu0 0
  %5072 = vmatpush.bf16.xpose.msra.mxu0 %v5063
  %5073 = vmatmul.bf16.gmra.mxu0 %v5060
  %v5074 = vpop.f32.mrf.mxu0
  %v5075 = vadd.f32 0.0, %v5074
  %v5076 = vpop.f32.mrf.mxu0
  %v5077 = vadd.f32 0.0, %v5076
  %5078 = vdwg.mxu0
  %v5079 = vsel %vm1255, %v4858, -inf
  %5080 = vmax.xlane.f32.xlu0 %v5079
  %v5081 = vpop.xlane.xlu0 %5080
  %v5082 = vsel %vm1255, %v4860, -inf
  %5083 = vmax.xlane.f32.xlu0 %v5082
  %v5084 = vpop.xlane.xlu0 %5083
  %v5085 = vsel %vm1255, %v4889, -inf
  %5086 = vmax.xlane.f32.xlu0 %v5085
  %v5087 = vpop.xlane.xlu0 %5086
  %v5088 = vsel %vm1255, %v4891, -inf
  %5089 = vmax.xlane.f32.xlu0 %v5088
  %v5090 = vpop.xlane.xlu0 %5089
  %v5091 = vsel %vm1255, %v4920, -inf
  %5092 = vmax.xlane.f32.xlu0 %v5091
  %v5093 = vpop.xlane.xlu0 %5092
  %v5094 = vsel %vm1255, %v4922, -inf
  %5095 = vmax.xlane.f32.xlu0 %v5094
  %v5096 = vpop.xlane.xlu0 %5095
  %v5097 = vsel %vm1255, %v4951, -inf
  %5098 = vmax.xlane.f32.xlu0 %v5097
  %v5099 = vpop.xlane.xlu0 %5098
  %v5100 = vsel %vm1255, %v4953, -inf
  %5101 = vmax.xlane.f32.xlu0 %v5100
  %v5102 = vpop.xlane.xlu0 %5101
  %v5103 = vsel %vm1255, %v4982, -inf
  %5104 = vmax.xlane.f32.xlu0 %v5103
  %v5105 = vpop.xlane.xlu0 %5104
  %v5106 = vsel %vm1255, %v4984, -inf
  %5107 = vmax.xlane.f32.xlu0 %v5106
  %v5108 = vpop.xlane.xlu0 %5107
  %v5109 = vsel %vm1255, %v5013, -inf
  %5110 = vmax.xlane.f32.xlu0 %v5109
  %v5111 = vpop.xlane.xlu0 %5110
  %v5112 = vsel %vm1255, %v5015, -inf
  %5113 = vmax.xlane.f32.xlu0 %v5112
  %v5114 = vpop.xlane.xlu0 %5113
  %v5115 = vsel %vm1255, %v5044, -inf
  %5116 = vmax.xlane.f32.xlu0 %v5115
  %v5117 = vpop.xlane.xlu0 %5116
  %v5118 = vsel %vm1255, %v5046, -inf
  %5119 = vmax.xlane.f32.xlu0 %v5118
  %v5120 = vpop.xlane.xlu0 %5119
  %v5121 = vsel %vm1255, %v5075, -inf
  %5122 = vmax.xlane.f32.xlu0 %v5121
  %v5123 = vpop.xlane.xlu0 %5122
  %v5124 = vsel %vm1255, %v5077, -inf
  %5125 = vmax.xlane.f32.xlu0 %v5124
  %v5126 = vpop.xlane.xlu0 %5125
  %v5127 = vsub.f32 %v4858, %v5081
  %v5128 = vsub.f32 %v4860, %v5084
  %v5129 = vsub.f32 %v4889, %v5087
  %v5130 = vsub.f32 %v4891, %v5090
  %v5131 = vsub.f32 %v4920, %v5093
  %v5132 = vsub.f32 %v4922, %v5096
  %v5133 = vsub.f32 %v4951, %v5099
  %v5134 = vsub.f32 %v4953, %v5102
  %v5135 = vsub.f32 %v4982, %v5105
  %v5136 = vsub.f32 %v4984, %v5108
  %v5137 = vsub.f32 %v5013, %v5111
  %v5138 = vsub.f32 %v5015, %v5114
  %v5139 = vsub.f32 %v5044, %v5117
  %v5140 = vsub.f32 %v5046, %v5120
  %v5141 = vsub.f32 %v5075, %v5123
  %v5142 = vsub.f32 %v5077, %v5126
  %v5143 = vmul.f32 %v5127, 1.442695
  %v5144 = vpow.pop %v5143
  %v5145 = vmul.f32 %v5128, 1.442695
  %v5146 = vpow.pop %v5145
  %v5147 = vmul.f32 %v5129, 1.442695
  %v5148 = vpow.pop %v5147
  %v5149 = vmul.f32 %v5130, 1.442695
  %v5150 = vpow.pop %v5149
  %v5151 = vmul.f32 %v5131, 1.442695
  %v5152 = vpow.pop %v5151
  %v5153 = vmul.f32 %v5132, 1.442695
  %v5154 = vpow.pop %v5153
  %v5155 = vmul.f32 %v5133, 1.442695
  %v5156 = vpow.pop %v5155
  %v5157 = vmul.f32 %v5134, 1.442695
  %v5158 = vpow.pop %v5157
  %v5159 = vmul.f32 %v5135, 1.442695
  %v5160 = vpow.pop %v5159
  %v5161 = vmul.f32 %v5136, 1.442695
  %v5162 = vpow.pop %v5161
  %v5163 = vmul.f32 %v5137, 1.442695
  %v5164 = vpow.pop %v5163
  %v5165 = vmul.f32 %v5138, 1.442695
  %v5166 = vpow.pop %v5165
  %v5167 = vmul.f32 %v5139, 1.442695
  %v5168 = vpow.pop %v5167
  %v5169 = vmul.f32 %v5140, 1.442695
  %v5170 = vpow.pop %v5169
  %v5171 = vmul.f32 %v5141, 1.442695
  %v5172 = vpow.pop %v5171
  %v5173 = vmul.f32 %v5142, 1.442695
  %v5174 = vpow.pop %v5173
  %v5175 = vsel %vm1255, %v5144, 0.0
  %5176 = vadd.xlane.f32.xlu0 %v5175
  %v5177 = vpop.xlane.xlu0 %5176
  %v5178 = vsel %vm1255, %v5146, 0.0
  %5179 = vadd.xlane.f32.xlu0 %v5178
  %v5180 = vpop.xlane.xlu0 %5179
  %v5181 = vsel %vm1255, %v5148, 0.0
  %5182 = vadd.xlane.f32.xlu0 %v5181
  %v5183 = vpop.xlane.xlu0 %5182
  %v5184 = vsel %vm1255, %v5150, 0.0
  %5185 = vadd.xlane.f32.xlu0 %v5184
  %v5186 = vpop.xlane.xlu0 %5185
  %v5187 = vsel %vm1255, %v5152, 0.0
  %5188 = vadd.xlane.f32.xlu0 %v5187
  %v5189 = vpop.xlane.xlu0 %5188
  %v5190 = vsel %vm1255, %v5154, 0.0
  %5191 = vadd.xlane.f32.xlu0 %v5190
  %v5192 = vpop.xlane.xlu0 %5191
  %v5193 = vsel %vm1255, %v5156, 0.0
  %5194 = vadd.xlane.f32.xlu0 %v5193
  %v5195 = vpop.xlane.xlu0 %5194
  %v5196 = vsel %vm1255, %v5158, 0.0
  %5197 = vadd.xlane.f32.xlu0 %v5196
  %v5198 = vpop.xlane.xlu0 %5197
  %v5199 = vsel %vm1255, %v5160, 0.0
  %5200 = vadd.xlane.f32.xlu0 %v5199
  %v5201 = vpop.xlane.xlu0 %5200
  %v5202 = vsel %vm1255, %v5162, 0.0
  %5203 = vadd.xlane.f32.xlu0 %v5202
  %v5204 = vpop.xlane.xlu0 %5203
  %v5205 = vsel %vm1255, %v5164, 0.0
  %5206 = vadd.xlane.f32.xlu0 %v5205
  %v5207 = vpop.xlane.xlu0 %5206
  %v5208 = vsel %vm1255, %v5166, 0.0
  %5209 = vadd.xlane.f32.xlu0 %v5208
  %v5210 = vpop.xlane.xlu0 %5209
  %v5211 = vsel %vm1255, %v5168, 0.0
  %5212 = vadd.xlane.f32.xlu0 %v5211
  %v5213 = vpop.xlane.xlu0 %5212
  %v5214 = vsel %vm1255, %v5170, 0.0
  %5215 = vadd.xlane.f32.xlu0 %v5214
  %v5216 = vpop.xlane.xlu0 %5215
  %v5217 = vsel %vm1255, %v5172, 0.0
  %5218 = vadd.xlane.f32.xlu0 %v5217
  %v5219 = vpop.xlane.xlu0 %5218
  %v5220 = vsel %vm1255, %v5174, 0.0
  %5221 = vadd.xlane.f32.xlu0 %v5220
  %v5222 = vpop.xlane.xlu0 %5221
  %v5223 = vrcp.pop %v5177
  %v5224 = vrcp.pop %v5180
  %v5225 = vrcp.pop %v5183
  %v5226 = vrcp.pop %v5186
  %v5227 = vrcp.pop %v5189
  %v5228 = vrcp.pop %v5192
  %v5229 = vrcp.pop %v5195
  %v5230 = vrcp.pop %v5198
  %v5231 = vrcp.pop %v5201
  %v5232 = vrcp.pop %v5204
  %v5233 = vrcp.pop %v5207
  %v5234 = vrcp.pop %v5210
  %v5235 = vrcp.pop %v5213
  %v5236 = vrcp.pop %v5216
  %v5237 = vrcp.pop %v5219
  %v5238 = vrcp.pop %v5222
  %v5239 = vmul.f32 %v5144, %v5223
  %v5240 = vmul.f32 %v5146, %v5224
  %v5241 = vmul.f32 %v5148, %v5225
  %v5242 = vmul.f32 %v5150, %v5226
  %v5243 = vmul.f32 %v5152, %v5227
  %v5244 = vmul.f32 %v5154, %v5228
  %v5245 = vmul.f32 %v5156, %v5229
  %v5246 = vmul.f32 %v5158, %v5230
  %v5247 = vmul.f32 %v5160, %v5231
  %v5248 = vmul.f32 %v5162, %v5232
  %v5249 = vmul.f32 %v5164, %v5233
  %v5250 = vmul.f32 %v5166, %v5234
  %v5251 = vmul.f32 %v5168, %v5235
  %v5252 = vmul.f32 %v5170, %v5236
  %v5253 = vmul.f32 %v5172, %v5237
  %v5254 = vmul.f32 %v5174, %v5238
  %v5255 = vpack.c.bf16 %v5239, %v5239
  %v5256 = vpack.c.bf16 %v5240, %v5240
  %v5257 = vpack.c.bf16 %v5241, %v5241
  %v5258 = vpack.c.bf16 %v5242, %v5242
  %v5259 = vpack.c.bf16 %v5243, %v5243
  %v5260 = vpack.c.bf16 %v5244, %v5244
  %v5261 = vpack.c.bf16 %v5245, %v5245
  %v5262 = vpack.c.bf16 %v5246, %v5246
  %v5263 = vpack.c.bf16 %v5247, %v5247
  %v5264 = vpack.c.bf16 %v5248, %v5248
  %v5265 = vpack.c.bf16 %v5249, %v5249
  %v5266 = vpack.c.bf16 %v5250, %v5250
  %v5267 = vpack.c.bf16 %v5251, %v5251
  %v5268 = vpack.c.bf16 %v5252, %v5252
  %v5269 = vpack.c.bf16 %v5253, %v5253
  %v5270 = vpack.c.bf16 %v5254, %v5254
  %5271 = vrot.lane.b32.xlu0 %v1205, 80
  %v5272 = vpop.permute.xlu0 %5271
  %5273 = vrot.lane.b32.xlu0 %v1206, 80
  %v5274 = vpop.permute.xlu0 %5273
  %v5275 = vrot.slane %v5272, 4
  %v5276 = vrot.slane %v5274, 4
  %v5279 = vunpack.c.l.b16 %v5255
  %v5280 = vunpack.c.l.b16 %v5256
  %v5281 = vpack.c.b16 %v5280, %v5279
  %v5282 = vunpack.c.l.b16 %v5275
  %v5283 = vunpack.c.l.b16 %v5276
  %v5284 = vpack.c.b16 %v5283, %v5282
  %v5287 = vsel %vm1255, %v5281, 0
  %5289 = vmatpush.bf16.msra.mxu0 0
  %5290 = vmatpush.bf16.msra.mxu0 0
  %5291 = vmatpush.bf16.msra.mxu0 0
  %5292 = vmatpush.bf16.msra.mxu0 0
  %5293 = vmatpush.bf16.msra.mxu0 0
  %5294 = vmatpush.bf16.msra.mxu0 0
  %5295 = vmatpush.bf16.msra.mxu0 0
  %5296 = vmatpush.bf16.msra.mxu0 %v5284
  %5297 = vmatmul.bf16.gmra.mxu0 %v5287
  %v5298 = vpop.f32.mrf.mxu0
  %v5299 = vadd.f32 0.0, %v5298
  %v5300 = vpop.f32.mrf.mxu0
  %v5301 = vadd.f32 0.0, %v5300
  %5302 = vdwg.mxu0
  %5303 = vrot.lane.b32.xlu0 %v1209, 80
  %v5304 = vpop.permute.xlu0 %5303
  %5305 = vrot.lane.b32.xlu0 %v1210, 80
  %v5306 = vpop.permute.xlu0 %5305
  %v5307 = vrot.slane %v5304, 4
  %v5308 = vrot.slane %v5306, 4
  %v5311 = vunpack.c.l.b16 %v5257
  %v5312 = vunpack.c.l.b16 %v5258
  %v5313 = vpack.c.b16 %v5312, %v5311
  %v5314 = vunpack.c.l.b16 %v5307
  %v5315 = vunpack.c.l.b16 %v5308
  %v5316 = vpack.c.b16 %v5315, %v5314
  %v5319 = vsel %vm1255, %v5313, 0
  %5321 = vmatpush.bf16.msra.mxu0 0
  %5322 = vmatpush.bf16.msra.mxu0 0
  %5323 = vmatpush.bf16.msra.mxu0 0
  %5324 = vmatpush.bf16.msra.mxu0 0
  %5325 = vmatpush.bf16.msra.mxu0 0
  %5326 = vmatpush.bf16.msra.mxu0 0
  %5327 = vmatpush.bf16.msra.mxu0 0
  %5328 = vmatpush.bf16.msra.mxu0 %v5316
  %5329 = vmatmul.bf16.gmra.mxu0 %v5319
  %v5330 = vpop.f32.mrf.mxu0
  %v5331 = vadd.f32 0.0, %v5330
  %v5332 = vpop.f32.mrf.mxu0
  %v5333 = vadd.f32 0.0, %v5332
  %5334 = vdwg.mxu0
  %5335 = vrot.lane.b32.xlu0 %v1213, 80
  %v5336 = vpop.permute.xlu0 %5335
  %5337 = vrot.lane.b32.xlu0 %v1214, 80
  %v5338 = vpop.permute.xlu0 %5337
  %v5339 = vrot.slane %v5336, 4
  %v5340 = vrot.slane %v5338, 4
  %v5343 = vunpack.c.l.b16 %v5259
  %v5344 = vunpack.c.l.b16 %v5260
  %v5345 = vpack.c.b16 %v5344, %v5343
  %v5346 = vunpack.c.l.b16 %v5339
  %v5347 = vunpack.c.l.b16 %v5340
  %v5348 = vpack.c.b16 %v5347, %v5346
  %v5351 = vsel %vm1255, %v5345, 0
  %5353 = vmatpush.bf16.msra.mxu0 0
  %5354 = vmatpush.bf16.msra.mxu0 0
  %5355 = vmatpush.bf16.msra.mxu0 0
  %5356 = vmatpush.bf16.msra.mxu0 0
  %5357 = vmatpush.bf16.msra.mxu0 0
  %5358 = vmatpush.bf16.msra.mxu0 0
  %5359 = vmatpush.bf16.msra.mxu0 0
  %5360 = vmatpush.bf16.msra.mxu0 %v5348
  %5361 = vmatmul.bf16.gmra.mxu0 %v5351
  %v5362 = vpop.f32.mrf.mxu0
  %v5363 = vadd.f32 0.0, %v5362
  %v5364 = vpop.f32.mrf.mxu0
  %v5365 = vadd.f32 0.0, %v5364
  %5366 = vdwg.mxu0
  %5367 = vrot.lane.b32.xlu0 %v1217, 80
  %v5368 = vpop.permute.xlu0 %5367
  %5369 = vrot.lane.b32.xlu0 %v1218, 80
  %v5370 = vpop.permute.xlu0 %5369
  %v5371 = vrot.slane %v5368, 4
  %v5372 = vrot.slane %v5370, 4
  %v5375 = vunpack.c.l.b16 %v5261
  %v5376 = vunpack.c.l.b16 %v5262
  %v5377 = vpack.c.b16 %v5376, %v5375
  %v5378 = vunpack.c.l.b16 %v5371
  %v5379 = vunpack.c.l.b16 %v5372
  %v5380 = vpack.c.b16 %v5379, %v5378
  %v5383 = vsel %vm1255, %v5377, 0
  %5385 = vmatpush.bf16.msra.mxu0 0
  %5386 = vmatpush.bf16.msra.mxu0 0
  %5387 = vmatpush.bf16.msra.mxu0 0
  %5388 = vmatpush.bf16.msra.mxu0 0
  %5389 = vmatpush.bf16.msra.mxu0 0
  %5390 = vmatpush.bf16.msra.mxu0 0
  %5391 = vmatpush.bf16.msra.mxu0 0
  %5392 = vmatpush.bf16.msra.mxu0 %v5380
  %5393 = vmatmul.bf16.gmra.mxu0 %v5383
  %v5394 = vpop.f32.mrf.mxu0
  %v5395 = vadd.f32 0.0, %v5394
  %v5396 = vpop.f32.mrf.mxu0
  %v5397 = vadd.f32 0.0, %v5396
  %5398 = vdwg.mxu0
  %5399 = vrot.lane.b32.xlu0 %v1221, 80
  %v5400 = vpop.permute.xlu0 %5399
  %5401 = vrot.lane.b32.xlu0 %v1222, 80
  %v5402 = vpop.permute.xlu0 %5401
  %v5403 = vrot.slane %v5400, 4
  %v5404 = vrot.slane %v5402, 4
  %v5407 = vunpack.c.l.b16 %v5263
  %v5408 = vunpack.c.l.b16 %v5264
  %v5409 = vpack.c.b16 %v5408, %v5407
  %v5410 = vunpack.c.l.b16 %v5403
  %v5411 = vunpack.c.l.b16 %v5404
  %v5412 = vpack.c.b16 %v5411, %v5410
  %v5415 = vsel %vm1255, %v5409, 0
  %5417 = vmatpush.bf16.msra.mxu0 0
  %5418 = vmatpush.bf16.msra.mxu0 0
  %5419 = vmatpush.bf16.msra.mxu0 0
  %5420 = vmatpush.bf16.msra.mxu0 0
  %5421 = vmatpush.bf16.msra.mxu0 0
  %5422 = vmatpush.bf16.msra.mxu0 0
  %5423 = vmatpush.bf16.msra.mxu0 0
  %5424 = vmatpush.bf16.msra.mxu0 %v5412
  %5425 = vmatmul.bf16.gmra.mxu0 %v5415
  %v5426 = vpop.f32.mrf.mxu0
  %v5427 = vadd.f32 0.0, %v5426
  %v5428 = vpop.f32.mrf.mxu0
  %v5429 = vadd.f32 0.0, %v5428
  %5430 = vdwg.mxu0
  %5431 = vrot.lane.b32.xlu0 %v1225, 80
  %v5432 = vpop.permute.xlu0 %5431
  %5433 = vrot.lane.b32.xlu0 %v1226, 80
  %v5434 = vpop.permute.xlu0 %5433
  %v5435 = vrot.slane %v5432, 4
  %v5436 = vrot.slane %v5434, 4
  %v5439 = vunpack.c.l.b16 %v5265
  %v5440 = vunpack.c.l.b16 %v5266
  %v5441 = vpack.c.b16 %v5440, %v5439
  %v5442 = vunpack.c.l.b16 %v5435
  %v5443 = vunpack.c.l.b16 %v5436
  %v5444 = vpack.c.b16 %v5443, %v5442
  %v5447 = vsel %vm1255, %v5441, 0
  %5449 = vmatpush.bf16.msra.mxu0 0
  %5450 = vmatpush.bf16.msra.mxu0 0
  %5451 = vmatpush.bf16.msra.mxu0 0
  %5452 = vmatpush.bf16.msra.mxu0 0
  %5453 = vmatpush.bf16.msra.mxu0 0
  %5454 = vmatpush.bf16.msra.mxu0 0
  %5455 = vmatpush.bf16.msra.mxu0 0
  %5456 = vmatpush.bf16.msra.mxu0 %v5444
  %5457 = vmatmul.bf16.gmra.mxu0 %v5447
  %v5458 = vpop.f32.mrf.mxu0
  %v5459 = vadd.f32 0.0, %v5458
  %v5460 = vpop.f32.mrf.mxu0
  %v5461 = vadd.f32 0.0, %v5460
  %5462 = vdwg.mxu0
  %5463 = vrot.lane.b32.xlu0 %v1229, 80
  %v5464 = vpop.permute.xlu0 %5463
  %5465 = vrot.lane.b32.xlu0 %v1230, 80
  %v5466 = vpop.permute.xlu0 %5465
  %v5467 = vrot.slane %v5464, 4
  %v5468 = vrot.slane %v5466, 4
  %v5471 = vunpack.c.l.b16 %v5267
  %v5472 = vunpack.c.l.b16 %v5268
  %v5473 = vpack.c.b16 %v5472, %v5471
  %v5474 = vunpack.c.l.b16 %v5467
  %v5475 = vunpack.c.l.b16 %v5468
  %v5476 = vpack.c.b16 %v5475, %v5474
  %v5479 = vsel %vm1255, %v5473, 0
  %5481 = vmatpush.bf16.msra.mxu0 0
  %5482 = vmatpush.bf16.msra.mxu0 0
  %5483 = vmatpush.bf16.msra.mxu0 0
  %5484 = vmatpush.bf16.msra.mxu0 0
  %5485 = vmatpush.bf16.msra.mxu0 0
  %5486 = vmatpush.bf16.msra.mxu0 0
  %5487 = vmatpush.bf16.msra.mxu0 0
  %5488 = vmatpush.bf16.msra.mxu0 %v5476
  %5489 = vmatmul.bf16.gmra.mxu0 %v5479
  %v5490 = vpop.f32.mrf.mxu0
  %v5491 = vadd.f32 0.0, %v5490
  %v5492 = vpop.f32.mrf.mxu0
  %v5493 = vadd.f32 0.0, %v5492
  %5494 = vdwg.mxu0
  %5495 = vrot.lane.b32.xlu0 %v1233, 80
  %v5496 = vpop.permute.xlu0 %5495
  %5497 = vrot.lane.b32.xlu0 %v1234, 80
  %v5498 = vpop.permute.xlu0 %5497
  %v5499 = vrot.slane %v5496, 4
  %v5500 = vrot.slane %v5498, 4
  %v5503 = vunpack.c.l.b16 %v5269
  %v5504 = vunpack.c.l.b16 %v5270
  %v5505 = vpack.c.b16 %v5504, %v5503
  %v5506 = vunpack.c.l.b16 %v5499
  %v5507 = vunpack.c.l.b16 %v5500
  %v5508 = vpack.c.b16 %v5507, %v5506
  %v5511 = vsel %vm1255, %v5505, 0
  %5513 = vmatpush.bf16.msra.mxu0 0
  %5514 = vmatpush.bf16.msra.mxu0 0
  %5515 = vmatpush.bf16.msra.mxu0 0
  %5516 = vmatpush.bf16.msra.mxu0 0
  %5517 = vmatpush.bf16.msra.mxu0 0
  %5518 = vmatpush.bf16.msra.mxu0 0
  %5519 = vmatpush.bf16.msra.mxu0 0
  %5520 = vmatpush.bf16.msra.mxu0 %v5508
  %5521 = vmatmul.bf16.gmra.mxu0 %v5511
  %v5522 = vpop.f32.mrf.mxu0
  %v5523 = vadd.f32 0.0, %v5522
  %v5524 = vpop.f32.mrf.mxu0
  %v5525 = vadd.f32 0.0, %v5524
  %5526 = vdwg.mxu0
  %5527 = vrot.lane.b32.xlu0 %v1207, 112
  %v5528 = vpop.permute.xlu0 %5527
  %5529 = vrot.lane.b32.xlu0 %v1208, 112
  %v5530 = vpop.permute.xlu0 %5529
  %v5531 = vrot.slane %v5528, 4
  %v5532 = vrot.slane %v5530, 4
  %5533 = vrot.lane.b32.xlu0 %v1249, 16
  %v5534 = vpop.permute.xlu0 %5533
  %v5535 = vunpack.c.l.b16 %v5531
  %v5536 = vunpack.c.l.b16 %v5532
  %v5537 = vpack.c.b16 %v5536, %v5535
  %v5539 = vsel %vm1255, %v5534, 0
  %v5542 = vsel %vm1255, %v5537, 0
  %5544 = vmatpush.bf16.xpose.msra.mxu0 0
  %5545 = vmatpush.bf16.xpose.msra.mxu0 0
  %5546 = vmatpush.bf16.xpose.msra.mxu0 0
  %5547 = vmatpush.bf16.xpose.msra.mxu0 0
  %5548 = vmatpush.bf16.xpose.msra.mxu0 0
  %5549 = vmatpush.bf16.xpose.msra.mxu0 0
  %5550 = vmatpush.bf16.xpose.msra.mxu0 0
  %5551 = vmatpush.bf16.xpose.msra.mxu0 %v5542
  %5552 = vmatmul.bf16.gmra.mxu0 %v5539
  %v5553 = vpop.f32.mrf.mxu0
  %v5554 = vadd.f32 0.0, %v5553
  %v5555 = vpop.f32.mrf.mxu0
  %v5556 = vadd.f32 0.0, %v5555
  %5557 = vdwg.mxu0
  %5558 = vrot.lane.b32.xlu0 %v1211, 112
  %v5559 = vpop.permute.xlu0 %5558
  %5560 = vrot.lane.b32.xlu0 %v1212, 112
  %v5561 = vpop.permute.xlu0 %5560
  %v5562 = vrot.slane %v5559, 4
  %v5563 = vrot.slane %v5561, 4
  %5564 = vrot.lane.b32.xlu0 %v1295, 16
  %v5565 = vpop.permute.xlu0 %5564
  %v5566 = vunpack.c.l.b16 %v5562
  %v5567 = vunpack.c.l.b16 %v5563
  %v5568 = vpack.c.b16 %v5567, %v5566
  %v5570 = vsel %vm1255, %v5565, 0
  %v5573 = vsel %vm1255, %v5568, 0
  %5575 = vmatpush.bf16.xpose.msra.mxu0 0
  %5576 = vmatpush.bf16.xpose.msra.mxu0 0
  %5577 = vmatpush.bf16.xpose.msra.mxu0 0
  %5578 = vmatpush.bf16.xpose.msra.mxu0 0
  %5579 = vmatpush.bf16.xpose.msra.mxu0 0
  %5580 = vmatpush.bf16.xpose.msra.mxu0 0
  %5581 = vmatpush.bf16.xpose.msra.mxu0 0
  %5582 = vmatpush.bf16.xpose.msra.mxu0 %v5573
  %5583 = vmatmul.bf16.gmra.mxu0 %v5570
  %v5584 = vpop.f32.mrf.mxu0
  %v5585 = vadd.f32 0.0, %v5584
  %v5586 = vpop.f32.mrf.mxu0
  %v5587 = vadd.f32 0.0, %v5586
  %5588 = vdwg.mxu0
  %5589 = vrot.lane.b32.xlu0 %v1215, 112
  %v5590 = vpop.permute.xlu0 %5589
  %5591 = vrot.lane.b32.xlu0 %v1216, 112
  %v5592 = vpop.permute.xlu0 %5591
  %v5593 = vrot.slane %v5590, 4
  %v5594 = vrot.slane %v5592, 4
  %5595 = vrot.lane.b32.xlu0 %v1340, 16
  %v5596 = vpop.permute.xlu0 %5595
  %v5597 = vunpack.c.l.b16 %v5593
  %v5598 = vunpack.c.l.b16 %v5594
  %v5599 = vpack.c.b16 %v5598, %v5597
  %v5601 = vsel %vm1255, %v5596, 0
  %v5604 = vsel %vm1255, %v5599, 0
  %5606 = vmatpush.bf16.xpose.msra.mxu0 0
  %5607 = vmatpush.bf16.xpose.msra.mxu0 0
  %5608 = vmatpush.bf16.xpose.msra.mxu0 0
  %5609 = vmatpush.bf16.xpose.msra.mxu0 0
  %5610 = vmatpush.bf16.xpose.msra.mxu0 0
  %5611 = vmatpush.bf16.xpose.msra.mxu0 0
  %5612 = vmatpush.bf16.xpose.msra.mxu0 0
  %5613 = vmatpush.bf16.xpose.msra.mxu0 %v5604
  %5614 = vmatmul.bf16.gmra.mxu0 %v5601
  %v5615 = vpop.f32.mrf.mxu0
  %v5616 = vadd.f32 0.0, %v5615
  %v5617 = vpop.f32.mrf.mxu0
  %v5618 = vadd.f32 0.0, %v5617
  %5619 = vdwg.mxu0
  %5620 = vrot.lane.b32.xlu0 %v1219, 112
  %v5621 = vpop.permute.xlu0 %5620
  %5622 = vrot.lane.b32.xlu0 %v1220, 112
  %v5623 = vpop.permute.xlu0 %5622
  %v5624 = vrot.slane %v5621, 4
  %v5625 = vrot.slane %v5623, 4
  %5626 = vrot.lane.b32.xlu0 %v1385, 16
  %v5627 = vpop.permute.xlu0 %5626
  %v5628 = vunpack.c.l.b16 %v5624
  %v5629 = vunpack.c.l.b16 %v5625
  %v5630 = vpack.c.b16 %v5629, %v5628
  %v5632 = vsel %vm1255, %v5627, 0
  %v5635 = vsel %vm1255, %v5630, 0
  %5637 = vmatpush.bf16.xpose.msra.mxu0 0
  %5638 = vmatpush.bf16.xpose.msra.mxu0 0
  %5639 = vmatpush.bf16.xpose.msra.mxu0 0
  %5640 = vmatpush.bf16.xpose.msra.mxu0 0
  %5641 = vmatpush.bf16.xpose.msra.mxu0 0
  %5642 = vmatpush.bf16.xpose.msra.mxu0 0
  %5643 = vmatpush.bf16.xpose.msra.mxu0 0
  %5644 = vmatpush.bf16.xpose.msra.mxu0 %v5635
  %5645 = vmatmul.bf16.gmra.mxu0 %v5632
  %v5646 = vpop.f32.mrf.mxu0
  %v5647 = vadd.f32 0.0, %v5646
  %v5648 = vpop.f32.mrf.mxu0
  %v5649 = vadd.f32 0.0, %v5648
  %5650 = vdwg.mxu0
  %5651 = vrot.lane.b32.xlu0 %v1223, 112
  %v5652 = vpop.permute.xlu0 %5651
  %5653 = vrot.lane.b32.xlu0 %v1224, 112
  %v5654 = vpop.permute.xlu0 %5653
  %v5655 = vrot.slane %v5652, 4
  %v5656 = vrot.slane %v5654, 4
  %5657 = vrot.lane.b32.xlu0 %v1430, 16
  %v5658 = vpop.permute.xlu0 %5657
  %v5659 = vunpack.c.l.b16 %v5655
  %v5660 = vunpack.c.l.b16 %v5656
  %v5661 = vpack.c.b16 %v5660, %v5659
  %v5663 = vsel %vm1255, %v5658, 0
  %v5666 = vsel %vm1255, %v5661, 0
  %5668 = vmatpush.bf16.xpose.msra.mxu0 0
  %5669 = vmatpush.bf16.xpose.msra.mxu0 0
  %5670 = vmatpush.bf16.xpose.msra.mxu0 0
  %5671 = vmatpush.bf16.xpose.msra.mxu0 0
  %5672 = vmatpush.bf16.xpose.msra.mxu0 0
  %5673 = vmatpush.bf16.xpose.msra.mxu0 0
  %5674 = vmatpush.bf16.xpose.msra.mxu0 0
  %5675 = vmatpush.bf16.xpose.msra.mxu0 %v5666
  %5676 = vmatmul.bf16.gmra.mxu0 %v5663
  %v5677 = vpop.f32.mrf.mxu0
  %v5678 = vadd.f32 0.0, %v5677
  %v5679 = vpop.f32.mrf.mxu0
  %v5680 = vadd.f32 0.0, %v5679
  %5681 = vdwg.mxu0
  %5682 = vrot.lane.b32.xlu0 %v1227, 112
  %v5683 = vpop.permute.xlu0 %5682
  %5684 = vrot.lane.b32.xlu0 %v1228, 112
  %v5685 = vpop.permute.xlu0 %5684
  %v5686 = vrot.slane %v5683, 4
  %v5687 = vrot.slane %v5685, 4
  %5688 = vrot.lane.b32.xlu0 %v1475, 16
  %v5689 = vpop.permute.xlu0 %5688
  %v5690 = vunpack.c.l.b16 %v5686
  %v5691 = vunpack.c.l.b16 %v5687
  %v5692 = vpack.c.b16 %v5691, %v5690
  %v5694 = vsel %vm1255, %v5689, 0
  %v5697 = vsel %vm1255, %v5692, 0
  %5699 = vmatpush.bf16.xpose.msra.mxu0 0
  %5700 = vmatpush.bf16.xpose.msra.mxu0 0
  %5701 = vmatpush.bf16.xpose.msra.mxu0 0
  %5702 = vmatpush.bf16.xpose.msra.mxu0 0
  %5703 = vmatpush.bf16.xpose.msra.mxu0 0
  %5704 = vmatpush.bf16.xpose.msra.mxu0 0
  %5705 = vmatpush.bf16.xpose.msra.mxu0 0
  %5706 = vmatpush.bf16.xpose.msra.mxu0 %v5697
  %5707 = vmatmul.bf16.gmra.mxu0 %v5694
  %v5708 = vpop.f32.mrf.mxu0
  %v5709 = vadd.f32 0.0, %v5708
  %v5710 = vpop.f32.mrf.mxu0
  %v5711 = vadd.f32 0.0, %v5710
  %5712 = vdwg.mxu0
  %5713 = vrot.lane.b32.xlu0 %v1231, 112
  %v5714 = vpop.permute.xlu0 %5713
  %5715 = vrot.lane.b32.xlu0 %v1232, 112
  %v5716 = vpop.permute.xlu0 %5715
  %v5717 = vrot.slane %v5714, 4
  %v5718 = vrot.slane %v5716, 4
  %5719 = vrot.lane.b32.xlu0 %v1520, 16
  %v5720 = vpop.permute.xlu0 %5719
  %v5721 = vunpack.c.l.b16 %v5717
  %v5722 = vunpack.c.l.b16 %v5718
  %v5723 = vpack.c.b16 %v5722, %v5721
  %v5725 = vsel %vm1255, %v5720, 0
  %v5728 = vsel %vm1255, %v5723, 0
  %5730 = vmatpush.bf16.xpose.msra.mxu0 0
  %5731 = vmatpush.bf16.xpose.msra.mxu0 0
  %5732 = vmatpush.bf16.xpose.msra.mxu0 0
  %5733 = vmatpush.bf16.xpose.msra.mxu0 0
  %5734 = vmatpush.bf16.xpose.msra.mxu0 0
  %5735 = vmatpush.bf16.xpose.msra.mxu0 0
  %5736 = vmatpush.bf16.xpose.msra.mxu0 0
  %5737 = vmatpush.bf16.xpose.msra.mxu0 %v5728
  %5738 = vmatmul.bf16.gmra.mxu0 %v5725
  %v5739 = vpop.f32.mrf.mxu0
  %v5740 = vadd.f32 0.0, %v5739
  %v5741 = vpop.f32.mrf.mxu0
  %v5742 = vadd.f32 0.0, %v5741
  %5743 = vdwg.mxu0
  %5744 = vrot.lane.b32.xlu0 %v1235, 112
  %v5745 = vpop.permute.xlu0 %5744
  %5746 = vrot.lane.b32.xlu0 %v1236, 112
  %v5747 = vpop.permute.xlu0 %5746
  %v5748 = vrot.slane %v5745, 4
  %v5749 = vrot.slane %v5747, 4
  %5750 = vrot.lane.b32.xlu0 %v1565, 16
  %v5751 = vpop.permute.xlu0 %5750
  %v5752 = vunpack.c.l.b16 %v5748
  %v5753 = vunpack.c.l.b16 %v5749
  %v5754 = vpack.c.b16 %v5753, %v5752
  %v5756 = vsel %vm1255, %v5751, 0
  %v5759 = vsel %vm1255, %v5754, 0
  %5761 = vmatpush.bf16.xpose.msra.mxu0 0
  %5762 = vmatpush.bf16.xpose.msra.mxu0 0
  %5763 = vmatpush.bf16.xpose.msra.mxu0 0
  %5764 = vmatpush.bf16.xpose.msra.mxu0 0
  %5765 = vmatpush.bf16.xpose.msra.mxu0 0
  %5766 = vmatpush.bf16.xpose.msra.mxu0 0
  %5767 = vmatpush.bf16.xpose.msra.mxu0 0
  %5768 = vmatpush.bf16.xpose.msra.mxu0 %v5759
  %5769 = vmatmul.bf16.gmra.mxu0 %v5756
  %v5770 = vpop.f32.mrf.mxu0
  %v5771 = vadd.f32 0.0, %v5770
  %v5772 = vpop.f32.mrf.mxu0
  %v5773 = vadd.f32 0.0, %v5772
  %5774 = vdwg.mxu0
  %v5775 = vsel %vm1255, %v5554, -inf
  %5776 = vmax.xlane.f32.xlu0 %v5775
  %v5777 = vpop.xlane.xlu0 %5776
  %v5778 = vsel %vm1255, %v5556, -inf
  %5779 = vmax.xlane.f32.xlu0 %v5778
  %v5780 = vpop.xlane.xlu0 %5779
  %v5781 = vsel %vm1255, %v5585, -inf
  %5782 = vmax.xlane.f32.xlu0 %v5781
  %v5783 = vpop.xlane.xlu0 %5782
  %v5784 = vsel %vm1255, %v5587, -inf
  %5785 = vmax.xlane.f32.xlu0 %v5784
  %v5786 = vpop.xlane.xlu0 %5785
  %v5787 = vsel %vm1255, %v5616, -inf
  %5788 = vmax.xlane.f32.xlu0 %v5787
  %v5789 = vpop.xlane.xlu0 %5788
  %v5790 = vsel %vm1255, %v5618, -inf
  %5791 = vmax.xlane.f32.xlu0 %v5790
  %v5792 = vpop.xlane.xlu0 %5791
  %v5793 = vsel %vm1255, %v5647, -inf
  %5794 = vmax.xlane.f32.xlu0 %v5793
  %v5795 = vpop.xlane.xlu0 %5794
  %v5796 = vsel %vm1255, %v5649, -inf
  %5797 = vmax.xlane.f32.xlu0 %v5796
  %v5798 = vpop.xlane.xlu0 %5797
  %v5799 = vsel %vm1255, %v5678, -inf
  %5800 = vmax.xlane.f32.xlu0 %v5799
  %v5801 = vpop.xlane.xlu0 %5800
  %v5802 = vsel %vm1255, %v5680, -inf
  %5803 = vmax.xlane.f32.xlu0 %v5802
  %v5804 = vpop.xlane.xlu0 %5803
  %v5805 = vsel %vm1255, %v5709, -inf
  %5806 = vmax.xlane.f32.xlu0 %v5805
  %v5807 = vpop.xlane.xlu0 %5806
  %v5808 = vsel %vm1255, %v5711, -inf
  %5809 = vmax.xlane.f32.xlu0 %v5808
  %v5810 = vpop.xlane.xlu0 %5809
  %v5811 = vsel %vm1255, %v5740, -inf
  %5812 = vmax.xlane.f32.xlu0 %v5811
  %v5813 = vpop.xlane.xlu0 %5812
  %v5814 = vsel %vm1255, %v5742, -inf
  %5815 = vmax.xlane.f32.xlu0 %v5814
  %v5816 = vpop.xlane.xlu0 %5815
  %v5817 = vsel %vm1255, %v5771, -inf
  %5818 = vmax.xlane.f32.xlu0 %v5817
  %v5819 = vpop.xlane.xlu0 %5818
  %v5820 = vsel %vm1255, %v5773, -inf
  %5821 = vmax.xlane.f32.xlu0 %v5820
  %v5822 = vpop.xlane.xlu0 %5821
  %v5823 = vsub.f32 %v5554, %v5777
  %v5824 = vsub.f32 %v5556, %v5780
  %v5825 = vsub.f32 %v5585, %v5783
  %v5826 = vsub.f32 %v5587, %v5786
  %v5827 = vsub.f32 %v5616, %v5789
  %v5828 = vsub.f32 %v5618, %v5792
  %v5829 = vsub.f32 %v5647, %v5795
  %v5830 = vsub.f32 %v5649, %v5798
  %v5831 = vsub.f32 %v5678, %v5801
  %v5832 = vsub.f32 %v5680, %v5804
  %v5833 = vsub.f32 %v5709, %v5807
  %v5834 = vsub.f32 %v5711, %v5810
  %v5835 = vsub.f32 %v5740, %v5813
  %v5836 = vsub.f32 %v5742, %v5816
  %v5837 = vsub.f32 %v5771, %v5819
  %v5838 = vsub.f32 %v5773, %v5822
  %v5839 = vmul.f32 %v5823, 1.442695
  %v5840 = vpow.pop %v5839
  %v5841 = vmul.f32 %v5824, 1.442695
  %v5842 = vpow.pop %v5841
  %v5843 = vmul.f32 %v5825, 1.442695
  %v5844 = vpow.pop %v5843
  %v5845 = vmul.f32 %v5826, 1.442695
  %v5846 = vpow.pop %v5845
  %v5847 = vmul.f32 %v5827, 1.442695
  %v5848 = vpow.pop %v5847
  %v5849 = vmul.f32 %v5828, 1.442695
  %v5850 = vpow.pop %v5849
  %v5851 = vmul.f32 %v5829, 1.442695
  %v5852 = vpow.pop %v5851
  %v5853 = vmul.f32 %v5830, 1.442695
  %v5854 = vpow.pop %v5853
  %v5855 = vmul.f32 %v5831, 1.442695
  %v5856 = vpow.pop %v5855
  %v5857 = vmul.f32 %v5832, 1.442695
  %v5858 = vpow.pop %v5857
  %v5859 = vmul.f32 %v5833, 1.442695
  %v5860 = vpow.pop %v5859
  %v5861 = vmul.f32 %v5834, 1.442695
  %v5862 = vpow.pop %v5861
  %v5863 = vmul.f32 %v5835, 1.442695
  %v5864 = vpow.pop %v5863
  %v5865 = vmul.f32 %v5836, 1.442695
  %v5866 = vpow.pop %v5865
  %v5867 = vmul.f32 %v5837, 1.442695
  %v5868 = vpow.pop %v5867
  %v5869 = vmul.f32 %v5838, 1.442695
  %v5870 = vpow.pop %v5869
  %v5871 = vsel %vm1255, %v5840, 0.0
  %5872 = vadd.xlane.f32.xlu0 %v5871
  %v5873 = vpop.xlane.xlu0 %5872
  %v5874 = vsel %vm1255, %v5842, 0.0
  %5875 = vadd.xlane.f32.xlu0 %v5874
  %v5876 = vpop.xlane.xlu0 %5875
  %v5877 = vsel %vm1255, %v5844, 0.0
  %5878 = vadd.xlane.f32.xlu0 %v5877
  %v5879 = vpop.xlane.xlu0 %5878
  %v5880 = vsel %vm1255, %v5846, 0.0
  %5881 = vadd.xlane.f32.xlu0 %v5880
  %v5882 = vpop.xlane.xlu0 %5881
  %v5883 = vsel %vm1255, %v5848, 0.0
  %5884 = vadd.xlane.f32.xlu0 %v5883
  %v5885 = vpop.xlane.xlu0 %5884
  %v5886 = vsel %vm1255, %v5850, 0.0
  %5887 = vadd.xlane.f32.xlu0 %v5886
  %v5888 = vpop.xlane.xlu0 %5887
  %v5889 = vsel %vm1255, %v5852, 0.0
  %5890 = vadd.xlane.f32.xlu0 %v5889
  %v5891 = vpop.xlane.xlu0 %5890
  %v5892 = vsel %vm1255, %v5854, 0.0
  %5893 = vadd.xlane.f32.xlu0 %v5892
  %v5894 = vpop.xlane.xlu0 %5893
  %v5895 = vsel %vm1255, %v5856, 0.0
  %5896 = vadd.xlane.f32.xlu0 %v5895
  %v5897 = vpop.xlane.xlu0 %5896
  %v5898 = vsel %vm1255, %v5858, 0.0
  %5899 = vadd.xlane.f32.xlu0 %v5898
  %v5900 = vpop.xlane.xlu0 %5899
  %v5901 = vsel %vm1255, %v5860, 0.0
  %5902 = vadd.xlane.f32.xlu0 %v5901
  %v5903 = vpop.xlane.xlu0 %5902
  %v5904 = vsel %vm1255, %v5862, 0.0
  %5905 = vadd.xlane.f32.xlu0 %v5904
  %v5906 = vpop.xlane.xlu0 %5905
  %v5907 = vsel %vm1255, %v5864, 0.0
  %5908 = vadd.xlane.f32.xlu0 %v5907
  %v5909 = vpop.xlane.xlu0 %5908
  %v5910 = vsel %vm1255, %v5866, 0.0
  %5911 = vadd.xlane.f32.xlu0 %v5910
  %v5912 = vpop.xlane.xlu0 %5911
  %v5913 = vsel %vm1255, %v5868, 0.0
  %5914 = vadd.xlane.f32.xlu0 %v5913
  %v5915 = vpop.xlane.xlu0 %5914
  %v5916 = vsel %vm1255, %v5870, 0.0
  %5917 = vadd.xlane.f32.xlu0 %v5916
  %v5918 = vpop.xlane.xlu0 %5917
  %v5919 = vrcp.pop %v5873
  %v5920 = vrcp.pop %v5876
  %v5921 = vrcp.pop %v5879
  %v5922 = vrcp.pop %v5882
  %v5923 = vrcp.pop %v5885
  %v5924 = vrcp.pop %v5888
  %v5925 = vrcp.pop %v5891
  %v5926 = vrcp.pop %v5894
  %v5927 = vrcp.pop %v5897
  %v5928 = vrcp.pop %v5900
  %v5929 = vrcp.pop %v5903
  %v5930 = vrcp.pop %v5906
  %v5931 = vrcp.pop %v5909
  %v5932 = vrcp.pop %v5912
  %v5933 = vrcp.pop %v5915
  %v5934 = vrcp.pop %v5918
  %v5935 = vmul.f32 %v5840, %v5919
  %v5936 = vmul.f32 %v5842, %v5920
  %v5937 = vmul.f32 %v5844, %v5921
  %v5938 = vmul.f32 %v5846, %v5922
  %v5939 = vmul.f32 %v5848, %v5923
  %v5940 = vmul.f32 %v5850, %v5924
  %v5941 = vmul.f32 %v5852, %v5925
  %v5942 = vmul.f32 %v5854, %v5926
  %v5943 = vmul.f32 %v5856, %v5927
  %v5944 = vmul.f32 %v5858, %v5928
  %v5945 = vmul.f32 %v5860, %v5929
  %v5946 = vmul.f32 %v5862, %v5930
  %v5947 = vmul.f32 %v5864, %v5931
  %v5948 = vmul.f32 %v5866, %v5932
  %v5949 = vmul.f32 %v5868, %v5933
  %v5950 = vmul.f32 %v5870, %v5934
  %v5951 = vpack.c.bf16 %v5935, %v5935
  %v5952 = vpack.c.bf16 %v5936, %v5936
  %v5953 = vpack.c.bf16 %v5937, %v5937
  %v5954 = vpack.c.bf16 %v5938, %v5938
  %v5955 = vpack.c.bf16 %v5939, %v5939
  %v5956 = vpack.c.bf16 %v5940, %v5940
  %v5957 = vpack.c.bf16 %v5941, %v5941
  %v5958 = vpack.c.bf16 %v5942, %v5942
  %v5959 = vpack.c.bf16 %v5943, %v5943
  %v5960 = vpack.c.bf16 %v5944, %v5944
  %v5961 = vpack.c.bf16 %v5945, %v5945
  %v5962 = vpack.c.bf16 %v5946, %v5946
  %v5963 = vpack.c.bf16 %v5947, %v5947
  %v5964 = vpack.c.bf16 %v5948, %v5948
  %v5965 = vpack.c.bf16 %v5949, %v5949
  %v5966 = vpack.c.bf16 %v5950, %v5950
  %5967 = vrot.lane.b32.xlu0 %v1207, 80
  %v5968 = vpop.permute.xlu0 %5967
  %5969 = vrot.lane.b32.xlu0 %v1208, 80
  %v5970 = vpop.permute.xlu0 %5969
  %v5971 = vrot.slane %v5968, 4
  %v5972 = vrot.slane %v5970, 4
  %v5975 = vunpack.c.l.b16 %v5951
  %v5976 = vunpack.c.l.b16 %v5952
  %v5977 = vpack.c.b16 %v5976, %v5975
  %v5978 = vunpack.c.l.b16 %v5971
  %v5979 = vunpack.c.l.b16 %v5972
  %v5980 = vpack.c.b16 %v5979, %v5978
  %v5983 = vsel %vm1255, %v5977, 0
  %5985 = vmatpush.bf16.msra.mxu0 0
  %5986 = vmatpush.bf16.msra.mxu0 0
  %5987 = vmatpush.bf16.msra.mxu0 0
  %5988 = vmatpush.bf16.msra.mxu0 0
  %5989 = vmatpush.bf16.msra.mxu0 0
  %5990 = vmatpush.bf16.msra.mxu0 0
  %5991 = vmatpush.bf16.msra.mxu0 0
  %5992 = vmatpush.bf16.msra.mxu0 %v5980
  %5993 = vmatmul.bf16.gmra.mxu0 %v5983
  %v5994 = vpop.f32.mrf.mxu0
  %v5995 = vadd.f32 0.0, %v5994
  %v5996 = vpop.f32.mrf.mxu0
  %v5997 = vadd.f32 0.0, %v5996
  %5998 = vdwg.mxu0
  %5999 = vrot.lane.b32.xlu0 %v1211, 80
  %v6000 = vpop.permute.xlu0 %5999
  %6001 = vrot.lane.b32.xlu0 %v1212, 80
  %v6002 = vpop.permute.xlu0 %6001
  %v6003 = vrot.slane %v6000, 4
  %v6004 = vrot.slane %v6002, 4
  %v6007 = vunpack.c.l.b16 %v5953
  %v6008 = vunpack.c.l.b16 %v5954
  %v6009 = vpack.c.b16 %v6008, %v6007
  %v6010 = vunpack.c.l.b16 %v6003
  %v6011 = vunpack.c.l.b16 %v6004
  %v6012 = vpack.c.b16 %v6011, %v6010
  %v6015 = vsel %vm1255, %v6009, 0
  %6017 = vmatpush.bf16.msra.mxu0 0
  %6018 = vmatpush.bf16.msra.mxu0 0
  %6019 = vmatpush.bf16.msra.mxu0 0
  %6020 = vmatpush.bf16.msra.mxu0 0
  %6021 = vmatpush.bf16.msra.mxu0 0
  %6022 = vmatpush.bf16.msra.mxu0 0
  %6023 = vmatpush.bf16.msra.mxu0 0
  %6024 = vmatpush.bf16.msra.mxu0 %v6012
  %6025 = vmatmul.bf16.gmra.mxu0 %v6015
  %v6026 = vpop.f32.mrf.mxu0
  %v6027 = vadd.f32 0.0, %v6026
  %v6028 = vpop.f32.mrf.mxu0
  %v6029 = vadd.f32 0.0, %v6028
  %6030 = vdwg.mxu0
  %6031 = vrot.lane.b32.xlu0 %v1215, 80
  %v6032 = vpop.permute.xlu0 %6031
  %6033 = vrot.lane.b32.xlu0 %v1216, 80
  %v6034 = vpop.permute.xlu0 %6033
  %v6035 = vrot.slane %v6032, 4
  %v6036 = vrot.slane %v6034, 4
  %v6039 = vunpack.c.l.b16 %v5955
  %v6040 = vunpack.c.l.b16 %v5956
  %v6041 = vpack.c.b16 %v6040, %v6039
  %v6042 = vunpack.c.l.b16 %v6035
  %v6043 = vunpack.c.l.b16 %v6036
  %v6044 = vpack.c.b16 %v6043, %v6042
  %v6047 = vsel %vm1255, %v6041, 0
  %6049 = vmatpush.bf16.msra.mxu0 0
  %6050 = vmatpush.bf16.msra.mxu0 0
  %6051 = vmatpush.bf16.msra.mxu0 0
  %6052 = vmatpush.bf16.msra.mxu0 0
  %6053 = vmatpush.bf16.msra.mxu0 0
  %6054 = vmatpush.bf16.msra.mxu0 0
  %6055 = vmatpush.bf16.msra.mxu0 0
  %6056 = vmatpush.bf16.msra.mxu0 %v6044
  %6057 = vmatmul.bf16.gmra.mxu0 %v6047
  %v6058 = vpop.f32.mrf.mxu0
  %v6059 = vadd.f32 0.0, %v6058
  %v6060 = vpop.f32.mrf.mxu0
  %v6061 = vadd.f32 0.0, %v6060
  %6062 = vdwg.mxu0
  %6063 = vrot.lane.b32.xlu0 %v1219, 80
  %v6064 = vpop.permute.xlu0 %6063
  %6065 = vrot.lane.b32.xlu0 %v1220, 80
  %v6066 = vpop.permute.xlu0 %6065
  %v6067 = vrot.slane %v6064, 4
  %v6068 = vrot.slane %v6066, 4
  %v6071 = vunpack.c.l.b16 %v5957
  %v6072 = vunpack.c.l.b16 %v5958
  %v6073 = vpack.c.b16 %v6072, %v6071
  %v6074 = vunpack.c.l.b16 %v6067
  %v6075 = vunpack.c.l.b16 %v6068
  %v6076 = vpack.c.b16 %v6075, %v6074
  %v6079 = vsel %vm1255, %v6073, 0
  %6081 = vmatpush.bf16.msra.mxu0 0
  %6082 = vmatpush.bf16.msra.mxu0 0
  %6083 = vmatpush.bf16.msra.mxu0 0
  %6084 = vmatpush.bf16.msra.mxu0 0
  %6085 = vmatpush.bf16.msra.mxu0 0
  %6086 = vmatpush.bf16.msra.mxu0 0
  %6087 = vmatpush.bf16.msra.mxu0 0
  %6088 = vmatpush.bf16.msra.mxu0 %v6076
  %6089 = vmatmul.bf16.gmra.mxu0 %v6079
  %v6090 = vpop.f32.mrf.mxu0
  %v6091 = vadd.f32 0.0, %v6090
  %v6092 = vpop.f32.mrf.mxu0
  %v6093 = vadd.f32 0.0, %v6092
  %6094 = vdwg.mxu0
  %6095 = vrot.lane.b32.xlu0 %v1223, 80
  %v6096 = vpop.permute.xlu0 %6095
  %6097 = vrot.lane.b32.xlu0 %v1224, 80
  %v6098 = vpop.permute.xlu0 %6097
  %v6099 = vrot.slane %v6096, 4
  %v6100 = vrot.slane %v6098, 4
  %v6103 = vunpack.c.l.b16 %v5959
  %v6104 = vunpack.c.l.b16 %v5960
  %v6105 = vpack.c.b16 %v6104, %v6103
  %v6106 = vunpack.c.l.b16 %v6099
  %v6107 = vunpack.c.l.b16 %v6100
  %v6108 = vpack.c.b16 %v6107, %v6106
  %v6111 = vsel %vm1255, %v6105, 0
  %6113 = vmatpush.bf16.msra.mxu0 0
  %6114 = vmatpush.bf16.msra.mxu0 0
  %6115 = vmatpush.bf16.msra.mxu0 0
  %6116 = vmatpush.bf16.msra.mxu0 0
  %6117 = vmatpush.bf16.msra.mxu0 0
  %6118 = vmatpush.bf16.msra.mxu0 0
  %6119 = vmatpush.bf16.msra.mxu0 0
  %6120 = vmatpush.bf16.msra.mxu0 %v6108
  %6121 = vmatmul.bf16.gmra.mxu0 %v6111
  %v6122 = vpop.f32.mrf.mxu0
  %v6123 = vadd.f32 0.0, %v6122
  %v6124 = vpop.f32.mrf.mxu0
  %v6125 = vadd.f32 0.0, %v6124
  %6126 = vdwg.mxu0
  %6127 = vrot.lane.b32.xlu0 %v1227, 80
  %v6128 = vpop.permute.xlu0 %6127
  %6129 = vrot.lane.b32.xlu0 %v1228, 80
  %v6130 = vpop.permute.xlu0 %6129
  %v6131 = vrot.slane %v6128, 4
  %v6132 = vrot.slane %v6130, 4
  %v6135 = vunpack.c.l.b16 %v5961
  %v6136 = vunpack.c.l.b16 %v5962
  %v6137 = vpack.c.b16 %v6136, %v6135
  %v6138 = vunpack.c.l.b16 %v6131
  %v6139 = vunpack.c.l.b16 %v6132
  %v6140 = vpack.c.b16 %v6139, %v6138
  %v6143 = vsel %vm1255, %v6137, 0
  %6145 = vmatpush.bf16.msra.mxu0 0
  %6146 = vmatpush.bf16.msra.mxu0 0
  %6147 = vmatpush.bf16.msra.mxu0 0
  %6148 = vmatpush.bf16.msra.mxu0 0
  %6149 = vmatpush.bf16.msra.mxu0 0
  %6150 = vmatpush.bf16.msra.mxu0 0
  %6151 = vmatpush.bf16.msra.mxu0 0
  %6152 = vmatpush.bf16.msra.mxu0 %v6140
  %6153 = vmatmul.bf16.gmra.mxu0 %v6143
  %v6154 = vpop.f32.mrf.mxu0
  %v6155 = vadd.f32 0.0, %v6154
  %v6156 = vpop.f32.mrf.mxu0
  %v6157 = vadd.f32 0.0, %v6156
  %6158 = vdwg.mxu0
  %6159 = vrot.lane.b32.xlu0 %v1231, 80
  %v6160 = vpop.permute.xlu0 %6159
  %6161 = vrot.lane.b32.xlu0 %v1232, 80
  %v6162 = vpop.permute.xlu0 %6161
  %v6163 = vrot.slane %v6160, 4
  %v6164 = vrot.slane %v6162, 4
  %v6167 = vunpack.c.l.b16 %v5963
  %v6168 = vunpack.c.l.b16 %v5964
  %v6169 = vpack.c.b16 %v6168, %v6167
  %v6170 = vunpack.c.l.b16 %v6163
  %v6171 = vunpack.c.l.b16 %v6164
  %v6172 = vpack.c.b16 %v6171, %v6170
  %v6175 = vsel %vm1255, %v6169, 0
  %6177 = vmatpush.bf16.msra.mxu0 0
  %6178 = vmatpush.bf16.msra.mxu0 0
  %6179 = vmatpush.bf16.msra.mxu0 0
  %6180 = vmatpush.bf16.msra.mxu0 0
  %6181 = vmatpush.bf16.msra.mxu0 0
  %6182 = vmatpush.bf16.msra.mxu0 0
  %6183 = vmatpush.bf16.msra.mxu0 0
  %6184 = vmatpush.bf16.msra.mxu0 %v6172
  %6185 = vmatmul.bf16.gmra.mxu0 %v6175
  %v6186 = vpop.f32.mrf.mxu0
  %v6187 = vadd.f32 0.0, %v6186
  %v6188 = vpop.f32.mrf.mxu0
  %v6189 = vadd.f32 0.0, %v6188
  %6190 = vdwg.mxu0
  %6191 = vrot.lane.b32.xlu0 %v1235, 80
  %v6192 = vpop.permute.xlu0 %6191
  %6193 = vrot.lane.b32.xlu0 %v1236, 80
  %v6194 = vpop.permute.xlu0 %6193
  %v6195 = vrot.slane %v6192, 4
  %v6196 = vrot.slane %v6194, 4
  %v6199 = vunpack.c.l.b16 %v5965
  %v6200 = vunpack.c.l.b16 %v5966
  %v6201 = vpack.c.b16 %v6200, %v6199
  %v6202 = vunpack.c.l.b16 %v6195
  %v6203 = vunpack.c.l.b16 %v6196
  %v6204 = vpack.c.b16 %v6203, %v6202
  %v6207 = vsel %vm1255, %v6201, 0
  %6209 = vmatpush.bf16.msra.mxu0 0
  %6210 = vmatpush.bf16.msra.mxu0 0
  %6211 = vmatpush.bf16.msra.mxu0 0
  %6212 = vmatpush.bf16.msra.mxu0 0
  %6213 = vmatpush.bf16.msra.mxu0 0
  %6214 = vmatpush.bf16.msra.mxu0 0
  %6215 = vmatpush.bf16.msra.mxu0 0
  %6216 = vmatpush.bf16.msra.mxu0 %v6204
  %6217 = vmatmul.bf16.gmra.mxu0 %v6207
  %v6218 = vpop.f32.mrf.mxu0
  %v6219 = vadd.f32 0.0, %v6218
  %v6220 = vpop.f32.mrf.mxu0
  %v6221 = vadd.f32 0.0, %v6220
  %6222 = vdwg.mxu0
  %6239 = vrot.lane.b32.xlu0 %v5299, 16
  %v6240 = vpop.permute.xlu0 %6239
  %6241 = vrot.lane.b32.xlu0 %v5301, 16
  %v6242 = vpop.permute.xlu0 %6241
  %6243 = vrot.lane.b32.xlu0 %v5331, 16
  %v6244 = vpop.permute.xlu0 %6243
  %6245 = vrot.lane.b32.xlu0 %v5333, 16
  %v6246 = vpop.permute.xlu0 %6245
  %6247 = vrot.lane.b32.xlu0 %v5363, 16
  %v6248 = vpop.permute.xlu0 %6247
  %6249 = vrot.lane.b32.xlu0 %v5365, 16
  %v6250 = vpop.permute.xlu0 %6249
  %6251 = vrot.lane.b32.xlu0 %v5395, 16
  %v6252 = vpop.permute.xlu0 %6251
  %6253 = vrot.lane.b32.xlu0 %v5397, 16
  %v6254 = vpop.permute.xlu0 %6253
  %6255 = vrot.lane.b32.xlu0 %v5427, 16
  %v6256 = vpop.permute.xlu0 %6255
  %6257 = vrot.lane.b32.xlu0 %v5429, 16
  %v6258 = vpop.permute.xlu0 %6257
  %6259 = vrot.lane.b32.xlu0 %v5459, 16
  %v6260 = vpop.permute.xlu0 %6259
  %6261 = vrot.lane.b32.xlu0 %v5461, 16
  %v6262 = vpop.permute.xlu0 %6261
  %6263 = vrot.lane.b32.xlu0 %v5491, 16
  %v6264 = vpop.permute.xlu0 %6263
  %6265 = vrot.lane.b32.xlu0 %v5493, 16
  %v6266 = vpop.permute.xlu0 %6265
  %6267 = vrot.lane.b32.xlu0 %v5523, 16
  %v6268 = vpop.permute.xlu0 %6267
  %6269 = vrot.lane.b32.xlu0 %v5525, 16
  %v6270 = vpop.permute.xlu0 %6269
  %v6287 = vsel %vm1255, %v3939, %v6240
  %v6288 = vsel %vm1255, %v3941, %v6242
  %v6289 = vsel %vm1255, %v3971, %v6244
  %v6290 = vsel %vm1255, %v3973, %v6246
  %v6291 = vsel %vm1255, %v4003, %v6248
  %v6292 = vsel %vm1255, %v4005, %v6250
  %v6293 = vsel %vm1255, %v4035, %v6252
  %v6294 = vsel %vm1255, %v4037, %v6254
  %v6295 = vsel %vm1255, %v4067, %v6256
  %v6296 = vsel %vm1255, %v4069, %v6258
  %v6297 = vsel %vm1255, %v4099, %v6260
  %v6298 = vsel %vm1255, %v4101, %v6262
  %v6299 = vsel %vm1255, %v4131, %v6264
  %v6300 = vsel %vm1255, %v4133, %v6266
  %v6301 = vsel %vm1255, %v4163, %v6268
  %v6302 = vsel %vm1255, %v4165, %v6270
  %6319 = vrot.lane.b32.xlu0 %v5995, 16
  %v6320 = vpop.permute.xlu0 %6319
  %6321 = vrot.lane.b32.xlu0 %v5997, 16
  %v6322 = vpop.permute.xlu0 %6321
  %6323 = vrot.lane.b32.xlu0 %v6027, 16
  %v6324 = vpop.permute.xlu0 %6323
  %6325 = vrot.lane.b32.xlu0 %v6029, 16
  %v6326 = vpop.permute.xlu0 %6325
  %6327 = vrot.lane.b32.xlu0 %v6059, 16
  %v6328 = vpop.permute.xlu0 %6327
  %6329 = vrot.lane.b32.xlu0 %v6061, 16
  %v6330 = vpop.permute.xlu0 %6329
  %6331 = vrot.lane.b32.xlu0 %v6091, 16
  %v6332 = vpop.permute.xlu0 %6331
  %6333 = vrot.lane.b32.xlu0 %v6093, 16
  %v6334 = vpop.permute.xlu0 %6333
  %6335 = vrot.lane.b32.xlu0 %v6123, 16
  %v6336 = vpop.permute.xlu0 %6335
  %6337 = vrot.lane.b32.xlu0 %v6125, 16
  %v6338 = vpop.permute.xlu0 %6337
  %6339 = vrot.lane.b32.xlu0 %v6155, 16
  %v6340 = vpop.permute.xlu0 %6339
  %6341 = vrot.lane.b32.xlu0 %v6157, 16
  %v6342 = vpop.permute.xlu0 %6341
  %6343 = vrot.lane.b32.xlu0 %v6187, 16
  %v6344 = vpop.permute.xlu0 %6343
  %6345 = vrot.lane.b32.xlu0 %v6189, 16
  %v6346 = vpop.permute.xlu0 %6345
  %6347 = vrot.lane.b32.xlu0 %v6219, 16
  %v6348 = vpop.permute.xlu0 %6347
  %6349 = vrot.lane.b32.xlu0 %v6221, 16
  %v6350 = vpop.permute.xlu0 %6349
  %v6367 = vsel %vm1255, %v4603, %v6320
  %v6368 = vsel %vm1255, %v4605, %v6322
  %v6369 = vsel %vm1255, %v4635, %v6324
  %v6370 = vsel %vm1255, %v4637, %v6326
  %v6371 = vsel %vm1255, %v4667, %v6328
  %v6372 = vsel %vm1255, %v4669, %v6330
  %v6373 = vsel %vm1255, %v4699, %v6332
  %v6374 = vsel %vm1255, %v4701, %v6334
  %v6375 = vsel %vm1255, %v4731, %v6336
  %v6376 = vsel %vm1255, %v4733, %v6338
  %v6377 = vsel %vm1255, %v4763, %v6340
  %v6378 = vsel %vm1255, %v4765, %v6342
  %v6379 = vsel %vm1255, %v4795, %v6344
  %v6380 = vsel %vm1255, %v4797, %v6346
  %v6381 = vsel %vm1255, %v4827, %v6348
  %v6382 = vsel %vm1255, %v4829, %v6350
  %v6383 = vpack.c.bf16 %v6288, %v6287
  %v6384 = vpack.c.bf16 %v6368, %v6367
  %v6385 = vpack.c.bf16 %v6290, %v6289
  %v6386 = vpack.c.bf16 %v6370, %v6369
  %v6387 = vpack.c.bf16 %v6292, %v6291
  %v6388 = vpack.c.bf16 %v6372, %v6371
  %v6389 = vpack.c.bf16 %v6294, %v6293
  %v6390 = vpack.c.bf16 %v6374, %v6373
  %v6391 = vpack.c.bf16 %v6296, %v6295
  %v6392 = vpack.c.bf16 %v6376, %v6375
  %v6393 = vpack.c.bf16 %v6298, %v6297
  %v6394 = vpack.c.bf16 %v6378, %v6377
  %v6395 = vpack.c.bf16 %v6300, %v6299
  %v6396 = vpack.c.bf16 %v6380, %v6379
  %v6397 = vpack.c.bf16 %v6302, %v6301
  %v6398 = vpack.c.bf16 %v6382, %v6381
  %v6399 = vld [vmem:[%s6] sm:$0xf]
  %v6400 = vld [vmem:[%s6 + $0x4] sm:$0xf]
  %v6401 = vld [vmem:[%s6 + $0x8] sm:$0xf]
  %v6402 = vld [vmem:[%s6 + $0xc] sm:$0xf]
  %v6403 = vpack.c.bf16 %v3472, %v3471
  %v6404 = vpack.c.bf16 %v3474, %v3473
  %v6405 = vpack.c.bf16 %v3476, %v3475
  %v6406 = vpack.c.bf16 %v3478, %v3477
  %v6407 = vpack.c.bf16 %v3480, %v3479
  %v6408 = vpack.c.bf16 %v3482, %v3481
  %v6409 = vpack.c.bf16 %v3484, %v3483
  %v6410 = vpack.c.bf16 %v3486, %v3485
  %v6411 = vpack.c.bf16 %v3488, %v3487
  %v6412 = vpack.c.bf16 %v3490, %v3489
  %v6413 = vpack.c.bf16 %v3492, %v3491
  %v6414 = vpack.c.bf16 %v3494, %v3493
  %v6415 = vpack.c.bf16 %v3496, %v3495
  %v6416 = vpack.c.bf16 %v3498, %v3497
  %v6417 = vpack.c.bf16 %v3500, %v3499
  %v6418 = vpack.c.bf16 %v3502, %v3501
  %v6419 = vld [vmem:[%s7] sm:$0xf]
  %v6420 = vld [vmem:[%s7 + $0x4] sm:$0xf]
  %v6421 = vld [vmem:[%s7 + $0x8] sm:$0xf]
  %v6422 = vld [vmem:[%s7 + $0xc] sm:$0xf]
  %v6427 = vunpack.c.l.b16 %v6419
  %v6428 = vunpack.c.l.b16 %v6420
  %v6429 = vunpack.c.l.b16 %v6421
  %v6430 = vunpack.c.l.b16 %v6422
  %v6431 = vpack.c.b16 %v6428, %v6427
  %v6432 = vpack.c.b16 %v6430, %v6429
  %v6436 = vsel %vm85, %v6403, 0
  %v6439 = vsel %vm85, %v6404, 0
  %v6442 = vsel %vm85, %v6405, 0
  %v6445 = vsel %vm85, %v6406, 0
  %v6448 = vsel %vm85, %v6407, 0
  %v6451 = vsel %vm85, %v6408, 0
  %v6454 = vsel %vm85, %v6409, 0
  %v6457 = vsel %vm85, %v6410, 0
  %v6460 = vsel %vm85, %v6411, 0
  %v6463 = vsel %vm85, %v6412, 0
  %v6466 = vsel %vm85, %v6413, 0
  %v6469 = vsel %vm85, %v6414, 0
  %v6472 = vsel %vm85, %v6415, 0
  %v6475 = vsel %vm85, %v6416, 0
  %v6478 = vsel %vm85, %v6417, 0
  %v6481 = vsel %vm85, %v6418, 0
  %6483 = vmatpush.bf16.msra.mxu0 0
  %6484 = vmatpush.bf16.msra.mxu0 0
  %6485 = vmatpush.bf16.msra.mxu0 0
  %6486 = vmatpush.bf16.msra.mxu0 0
  %6487 = vmatpush.bf16.msra.mxu0 0
  %6488 = vmatpush.bf16.msra.mxu0 0
  %6489 = vmatpush.bf16.msra.mxu0 %v6432
  %6490 = vmatpush.bf16.msra.mxu0 %v6431
  %6491 = vmatmul.bf16.gmra.mxu0 %v6436
  %v6492 = vpop.f32.mrf.mxu0
  %v6493 = vadd.f32 0.0, %v6492
  %v6494 = vpop.f32.mrf.mxu0
  %v6495 = vadd.f32 0.0, %v6494
  %6496 = vmatmul.bf16.gmra.mxu0 %v6439
  %v6497 = vpop.f32.mrf.mxu0
  %v6498 = vadd.f32 0.0, %v6497
  %v6499 = vpop.f32.mrf.mxu0
  %v6500 = vadd.f32 0.0, %v6499
  %6501 = vmatmul.bf16.gmra.mxu0 %v6442
  %v6502 = vpop.f32.mrf.mxu0
  %v6503 = vadd.f32 0.0, %v6502
  %v6504 = vpop.f32.mrf.mxu0
  %v6505 = vadd.f32 0.0, %v6504
  %6506 = vmatmul.bf16.gmra.mxu0 %v6445
  %v6507 = vpop.f32.mrf.mxu0
  %v6508 = vadd.f32 0.0, %v6507
  %v6509 = vpop.f32.mrf.mxu0
  %v6510 = vadd.f32 0.0, %v6509
  %6511 = vmatmul.bf16.gmra.mxu0 %v6448
  %v6512 = vpop.f32.mrf.mxu0
  %v6513 = vadd.f32 0.0, %v6512
  %v6514 = vpop.f32.mrf.mxu0
  %v6515 = vadd.f32 0.0, %v6514
  %6516 = vmatmul.bf16.gmra.mxu0 %v6451
  %v6517 = vpop.f32.mrf.mxu0
  %v6518 = vadd.f32 0.0, %v6517
  %v6519 = vpop.f32.mrf.mxu0
  %v6520 = vadd.f32 0.0, %v6519
  %6521 = vmatmul.bf16.gmra.mxu0 %v6454
  %v6522 = vpop.f32.mrf.mxu0
  %v6523 = vadd.f32 0.0, %v6522
  %v6524 = vpop.f32.mrf.mxu0
  %v6525 = vadd.f32 0.0, %v6524
  %6526 = vmatmul.bf16.gmra.mxu0 %v6457
  %v6527 = vpop.f32.mrf.mxu0
  %v6528 = vadd.f32 0.0, %v6527
  %v6529 = vpop.f32.mrf.mxu0
  %v6530 = vadd.f32 0.0, %v6529
  %6531 = vmatmul.bf16.gmra.mxu0 %v6460
  %v6532 = vpop.f32.mrf.mxu0
  %v6533 = vadd.f32 0.0, %v6532
  %v6534 = vpop.f32.mrf.mxu0
  %v6535 = vadd.f32 0.0, %v6534
  %6536 = vmatmul.bf16.gmra.mxu0 %v6463
  %v6537 = vpop.f32.mrf.mxu0
  %v6538 = vadd.f32 0.0, %v6537
  %v6539 = vpop.f32.mrf.mxu0
  %v6540 = vadd.f32 0.0, %v6539
  %6541 = vmatmul.bf16.gmra.mxu0 %v6466
  %v6542 = vpop.f32.mrf.mxu0
  %v6543 = vadd.f32 0.0, %v6542
  %v6544 = vpop.f32.mrf.mxu0
  %v6545 = vadd.f32 0.0, %v6544
  %6546 = vmatmul.bf16.gmra.mxu0 %v6469
  %v6547 = vpop.f32.mrf.mxu0
  %v6548 = vadd.f32 0.0, %v6547
  %v6549 = vpop.f32.mrf.mxu0
  %v6550 = vadd.f32 0.0, %v6549
  %6551 = vmatmul.bf16.gmra.mxu0 %v6472
  %v6552 = vpop.f32.mrf.mxu0
  %v6553 = vadd.f32 0.0, %v6552
  %v6554 = vpop.f32.mrf.mxu0
  %v6555 = vadd.f32 0.0, %v6554
  %6556 = vmatmul.bf16.gmra.mxu0 %v6475
  %v6557 = vpop.f32.mrf.mxu0
  %v6558 = vadd.f32 0.0, %v6557
  %v6559 = vpop.f32.mrf.mxu0
  %v6560 = vadd.f32 0.0, %v6559
  %6561 = vmatmul.bf16.gmra.mxu0 %v6478
  %v6562 = vpop.f32.mrf.mxu0
  %v6563 = vadd.f32 0.0, %v6562
  %v6564 = vpop.f32.mrf.mxu0
  %v6565 = vadd.f32 0.0, %v6564
  %6566 = vmatmul.bf16.gmra.mxu0 %v6481
  %v6567 = vpop.f32.mrf.mxu0
  %v6568 = vadd.f32 0.0, %v6567
  %v6569 = vpop.f32.mrf.mxu0
  %v6570 = vadd.f32 0.0, %v6569
  %6571 = vdwg.mxu0
  %v6576 = vunpack.c.l.b16 %v6399
  %v6577 = vunpack.c.l.b16 %v6400
  %v6578 = vunpack.c.l.b16 %v6401
  %v6579 = vunpack.c.l.b16 %v6402
  %v6580 = vpack.c.b16 %v6577, %v6576
  %v6581 = vpack.c.b16 %v6579, %v6578
  %v6585 = vsel %vm85, %v6383, 0
  %v6588 = vsel %vm85, %v6384, 0
  %v6591 = vsel %vm85, %v6385, 0
  %v6594 = vsel %vm85, %v6386, 0
  %v6597 = vsel %vm85, %v6387, 0
  %v6600 = vsel %vm85, %v6388, 0
  %v6603 = vsel %vm85, %v6389, 0
  %v6606 = vsel %vm85, %v6390, 0
  %v6609 = vsel %vm85, %v6391, 0
  %v6612 = vsel %vm85, %v6392, 0
  %v6615 = vsel %vm85, %v6393, 0
  %v6618 = vsel %vm85, %v6394, 0
  %v6621 = vsel %vm85, %v6395, 0
  %v6624 = vsel %vm85, %v6396, 0
  %v6627 = vsel %vm85, %v6397, 0
  %v6630 = vsel %vm85, %v6398, 0
  %6632 = vmatpush.bf16.msra.mxu0 0
  %6633 = vmatpush.bf16.msra.mxu0 0
  %6634 = vmatpush.bf16.msra.mxu0 0
  %6635 = vmatpush.bf16.msra.mxu0 0
  %6636 = vmatpush.bf16.msra.mxu0 0
  %6637 = vmatpush.bf16.msra.mxu0 0
  %6638 = vmatpush.bf16.msra.mxu0 %v6581
  %6639 = vmatpush.bf16.msra.mxu0 %v6580
  %6640 = vmatmul.bf16.gmra.mxu0 %v6585
  %v6641 = vpop.f32.mrf.mxu0
  %v6642 = vadd.f32 %v6493, %v6641
  %v6643 = vpop.f32.mrf.mxu0
  %v6644 = vadd.f32 %v6495, %v6643
  %6645 = vmatmul.bf16.gmra.mxu0 %v6588
  %v6646 = vpop.f32.mrf.mxu0
  %v6647 = vadd.f32 %v6498, %v6646
  %v6648 = vpop.f32.mrf.mxu0
  %v6649 = vadd.f32 %v6500, %v6648
  %6650 = vmatmul.bf16.gmra.mxu0 %v6591
  %v6651 = vpop.f32.mrf.mxu0
  %v6652 = vadd.f32 %v6503, %v6651
  %v6653 = vpop.f32.mrf.mxu0
  %v6654 = vadd.f32 %v6505, %v6653
  %6655 = vmatmul.bf16.gmra.mxu0 %v6594
  %v6656 = vpop.f32.mrf.mxu0
  %v6657 = vadd.f32 %v6508, %v6656
  %v6658 = vpop.f32.mrf.mxu0
  %v6659 = vadd.f32 %v6510, %v6658
  %6660 = vmatmul.bf16.gmra.mxu0 %v6597
  %v6661 = vpop.f32.mrf.mxu0
  %v6662 = vadd.f32 %v6513, %v6661
  %v6663 = vpop.f32.mrf.mxu0
  %v6664 = vadd.f32 %v6515, %v6663
  %6665 = vmatmul.bf16.gmra.mxu0 %v6600
  %v6666 = vpop.f32.mrf.mxu0
  %v6667 = vadd.f32 %v6518, %v6666
  %v6668 = vpop.f32.mrf.mxu0
  %v6669 = vadd.f32 %v6520, %v6668
  %6670 = vmatmul.bf16.gmra.mxu0 %v6603
  %v6671 = vpop.f32.mrf.mxu0
  %v6672 = vadd.f32 %v6523, %v6671
  %v6673 = vpop.f32.mrf.mxu0
  %v6674 = vadd.f32 %v6525, %v6673
  %6675 = vmatmul.bf16.gmra.mxu0 %v6606
  %v6676 = vpop.f32.mrf.mxu0
  %v6677 = vadd.f32 %v6528, %v6676
  %v6678 = vpop.f32.mrf.mxu0
  %v6679 = vadd.f32 %v6530, %v6678
  %6680 = vmatmul.bf16.gmra.mxu0 %v6609
  %v6681 = vpop.f32.mrf.mxu0
  %v6682 = vadd.f32 %v6533, %v6681
  %v6683 = vpop.f32.mrf.mxu0
  %v6684 = vadd.f32 %v6535, %v6683
  %6685 = vmatmul.bf16.gmra.mxu0 %v6612
  %v6686 = vpop.f32.mrf.mxu0
  %v6687 = vadd.f32 %v6538, %v6686
  %v6688 = vpop.f32.mrf.mxu0
  %v6689 = vadd.f32 %v6540, %v6688
  %6690 = vmatmul.bf16.gmra.mxu0 %v6615
  %v6691 = vpop.f32.mrf.mxu0
  %v6692 = vadd.f32 %v6543, %v6691
  %v6693 = vpop.f32.mrf.mxu0
  %v6694 = vadd.f32 %v6545, %v6693
  %6695 = vmatmul.bf16.gmra.mxu0 %v6618
  %v6696 = vpop.f32.mrf.mxu0
  %v6697 = vadd.f32 %v6548, %v6696
  %v6698 = vpop.f32.mrf.mxu0
  %v6699 = vadd.f32 %v6550, %v6698
  %6700 = vmatmul.bf16.gmra.mxu0 %v6621
  %v6701 = vpop.f32.mrf.mxu0
  %v6702 = vadd.f32 %v6553, %v6701
  %v6703 = vpop.f32.mrf.mxu0
  %v6704 = vadd.f32 %v6555, %v6703
  %6705 = vmatmul.bf16.gmra.mxu0 %v6624
  %v6706 = vpop.f32.mrf.mxu0
  %v6707 = vadd.f32 %v6558, %v6706
  %v6708 = vpop.f32.mrf.mxu0
  %v6709 = vadd.f32 %v6560, %v6708
  %6710 = vmatmul.bf16.gmra.mxu0 %v6627
  %v6711 = vpop.f32.mrf.mxu0
  %v6712 = vadd.f32 %v6563, %v6711
  %v6713 = vpop.f32.mrf.mxu0
  %v6714 = vadd.f32 %v6565, %v6713
  %6715 = vmatmul.bf16.gmra.mxu0 %v6630
  %v6716 = vpop.f32.mrf.mxu0
  %v6717 = vadd.f32 %v6568, %v6716
  %v6718 = vpop.f32.mrf.mxu0
  %v6719 = vadd.f32 %v6570, %v6718
  %6720 = vdwg.mxu0
  %v6721 = vld [vmem:[%s8] sm:$0x1]
  %v6723 = vperm.slane %v6721, 0
  %v6725 = vadd.f32 %v6642, %v6723
  %v6726 = vadd.f32 %v6644, %v6723
  %v6727 = vadd.f32 %v6647, %v6723
  %v6728 = vadd.f32 %v6649, %v6723
  %v6729 = vadd.f32 %v6652, %v6723
  %v6730 = vadd.f32 %v6654, %v6723
  %v6731 = vadd.f32 %v6657, %v6723
  %v6732 = vadd.f32 %v6659, %v6723
  %v6733 = vadd.f32 %v6662, %v6723
  %v6734 = vadd.f32 %v6664, %v6723
  %v6735 = vadd.f32 %v6667, %v6723
  %v6736 = vadd.f32 %v6669, %v6723
  %v6737 = vadd.f32 %v6672, %v6723
  %v6738 = vadd.f32 %v6674, %v6723
  %v6739 = vadd.f32 %v6677, %v6723
  %v6740 = vadd.f32 %v6679, %v6723
  %v6741 = vadd.f32 %v6682, %v6723
  %v6742 = vadd.f32 %v6684, %v6723
  %v6743 = vadd.f32 %v6687, %v6723
  %v6744 = vadd.f32 %v6689, %v6723
  %v6745 = vadd.f32 %v6692, %v6723
  %v6746 = vadd.f32 %v6694, %v6723
  %v6747 = vadd.f32 %v6697, %v6723
  %v6748 = vadd.f32 %v6699, %v6723
  %v6749 = vadd.f32 %v6702, %v6723
  %v6750 = vadd.f32 %v6704, %v6723
  %v6751 = vadd.f32 %v6707, %v6723
  %v6752 = vadd.f32 %v6709, %v6723
  %v6753 = vadd.f32 %v6712, %v6723
  %v6754 = vadd.f32 %v6714, %v6723
  %v6755 = vadd.f32 %v6717, %v6723
  %v6756 = vadd.f32 %v6719, %v6723
  %v6757 = vadd.f32 %v51, %v6725
  %v6758 = vadd.f32 %v52, %v6726
  %v6759 = vadd.f32 %v53, %v6727
  %v6760 = vadd.f32 %v54, %v6728
  %v6761 = vadd.f32 %v55, %v6729
  %v6762 = vadd.f32 %v56, %v6730
  %v6763 = vadd.f32 %v57, %v6731
  %v6764 = vadd.f32 %v58, %v6732
  %v6765 = vadd.f32 %v59, %v6733
  %v6766 = vadd.f32 %v60, %v6734
  %v6767 = vadd.f32 %v61, %v6735
  %v6768 = vadd.f32 %v62, %v6736
  %v6769 = vadd.f32 %v63, %v6737
  %v6770 = vadd.f32 %v64, %v6738
  %v6771 = vadd.f32 %v65, %v6739
  %v6772 = vadd.f32 %v66, %v6740
  %v6773 = vadd.f32 %v67, %v6741
  %v6774 = vadd.f32 %v68, %v6742
  %v6775 = vadd.f32 %v69, %v6743
  %v6776 = vadd.f32 %v70, %v6744
  %v6777 = vadd.f32 %v71, %v6745
  %v6778 = vadd.f32 %v72, %v6746
  %v6779 = vadd.f32 %v73, %v6747
  %v6780 = vadd.f32 %v74, %v6748
  %v6781 = vadd.f32 %v75, %v6749
  %v6782 = vadd.f32 %v76, %v6750
  %v6783 = vadd.f32 %v77, %v6751
  %v6784 = vadd.f32 %v78, %v6752
  %v6785 = vadd.f32 %v79, %v6753
  %v6786 = vadd.f32 %v80, %v6754
  %v6787 = vadd.f32 %v81, %v6755
  %v6788 = vadd.f32 %v82, %v6756
  %v6789 = vld [vmem:[%s9] sm:$0x1]
  %v6790 = vld [vmem:[%s10] sm:$0x1]
  %v6791 = vsel %vm85, %v6757, 0.0
  %6792 = vadd.xlane.f32.xlu0 %v6791
  %v6793 = vpop.xlane.xlu0 %6792
  %v6794 = vsel %vm85, %v6758, 0.0
  %6795 = vadd.xlane.f32.xlu0 %v6794
  %v6796 = vpop.xlane.xlu0 %6795
  %v6797 = vsel %vm85, %v6759, 0.0
  %6798 = vadd.xlane.f32.xlu0 %v6797
  %v6799 = vpop.xlane.xlu0 %6798
  %v6800 = vsel %vm85, %v6760, 0.0
  %6801 = vadd.xlane.f32.xlu0 %v6800
  %v6802 = vpop.xlane.xlu0 %6801
  %v6803 = vsel %vm85, %v6761, 0.0
  %6804 = vadd.xlane.f32.xlu0 %v6803
  %v6805 = vpop.xlane.xlu0 %6804
  %v6806 = vsel %vm85, %v6762, 0.0
  %6807 = vadd.xlane.f32.xlu0 %v6806
  %v6808 = vpop.xlane.xlu0 %6807
  %v6809 = vsel %vm85, %v6763, 0.0
  %6810 = vadd.xlane.f32.xlu0 %v6809
  %v6811 = vpop.xlane.xlu0 %6810
  %v6812 = vsel %vm85, %v6764, 0.0
  %6813 = vadd.xlane.f32.xlu0 %v6812
  %v6814 = vpop.xlane.xlu0 %6813
  %v6815 = vsel %vm85, %v6765, 0.0
  %6816 = vadd.xlane.f32.xlu0 %v6815
  %v6817 = vpop.xlane.xlu0 %6816
  %v6818 = vsel %vm85, %v6766, 0.0
  %6819 = vadd.xlane.f32.xlu0 %v6818
  %v6820 = vpop.xlane.xlu0 %6819
  %v6821 = vsel %vm85, %v6767, 0.0
  %6822 = vadd.xlane.f32.xlu0 %v6821
  %v6823 = vpop.xlane.xlu0 %6822
  %v6824 = vsel %vm85, %v6768, 0.0
  %6825 = vadd.xlane.f32.xlu0 %v6824
  %v6826 = vpop.xlane.xlu0 %6825
  %v6827 = vsel %vm85, %v6769, 0.0
  %6828 = vadd.xlane.f32.xlu0 %v6827
  %v6829 = vpop.xlane.xlu0 %6828
  %v6830 = vsel %vm85, %v6770, 0.0
  %6831 = vadd.xlane.f32.xlu0 %v6830
  %v6832 = vpop.xlane.xlu0 %6831
  %v6833 = vsel %vm85, %v6771, 0.0
  %6834 = vadd.xlane.f32.xlu0 %v6833
  %v6835 = vpop.xlane.xlu0 %6834
  %v6836 = vsel %vm85, %v6772, 0.0
  %6837 = vadd.xlane.f32.xlu0 %v6836
  %v6838 = vpop.xlane.xlu0 %6837
  %v6839 = vsel %vm85, %v6773, 0.0
  %6840 = vadd.xlane.f32.xlu0 %v6839
  %v6841 = vpop.xlane.xlu0 %6840
  %v6842 = vsel %vm85, %v6774, 0.0
  %6843 = vadd.xlane.f32.xlu0 %v6842
  %v6844 = vpop.xlane.xlu0 %6843
  %v6845 = vsel %vm85, %v6775, 0.0
  %6846 = vadd.xlane.f32.xlu0 %v6845
  %v6847 = vpop.xlane.xlu0 %6846
  %v6848 = vsel %vm85, %v6776, 0.0
  %6849 = vadd.xlane.f32.xlu0 %v6848
  %v6850 = vpop.xlane.xlu0 %6849
  %v6851 = vsel %vm85, %v6777, 0.0
  %6852 = vadd.xlane.f32.xlu0 %v6851
  %v6853 = vpop.xlane.xlu0 %6852
  %v6854 = vsel %vm85, %v6778, 0.0
  %6855 = vadd.xlane.f32.xlu0 %v6854
  %v6856 = vpop.xlane.xlu0 %6855
  %v6857 = vsel %vm85, %v6779, 0.0
  %6858 = vadd.xlane.f32.xlu0 %v6857
  %v6859 = vpop.xlane.xlu0 %6858
  %v6860 = vsel %vm85, %v6780, 0.0
  %6861 = vadd.xlane.f32.xlu0 %v6860
  %v6862 = vpop.xlane.xlu0 %6861
  %v6863 = vsel %vm85, %v6781, 0.0
  %6864 = vadd.xlane.f32.xlu0 %v6863
  %v6865 = vpop.xlane.xlu0 %6864
  %v6866 = vsel %vm85, %v6782, 0.0
  %6867 = vadd.xlane.f32.xlu0 %v6866
  %v6868 = vpop.xlane.xlu0 %6867
  %v6869 = vsel %vm85, %v6783, 0.0
  %6870 = vadd.xlane.f32.xlu0 %v6869
  %v6871 = vpop.xlane.xlu0 %6870
  %v6872 = vsel %vm85, %v6784, 0.0
  %6873 = vadd.xlane.f32.xlu0 %v6872
  %v6874 = vpop.xlane.xlu0 %6873
  %v6875 = vsel %vm85, %v6785, 0.0
  %6876 = vadd.xlane.f32.xlu0 %v6875
  %v6877 = vpop.xlane.xlu0 %6876
  %v6878 = vsel %vm85, %v6786, 0.0
  %6879 = vadd.xlane.f32.xlu0 %v6878
  %v6880 = vpop.xlane.xlu0 %6879
  %v6881 = vsel %vm85, %v6787, 0.0
  %6882 = vadd.xlane.f32.xlu0 %v6881
  %v6883 = vpop.xlane.xlu0 %6882
  %v6884 = vsel %vm85, %v6788, 0.0
  %6885 = vadd.xlane.f32.xlu0 %v6884
  %v6886 = vpop.xlane.xlu0 %6885
  %v6887 = vmul.f32 %v6793, %v188
  %v6888 = vmul.f32 %v6796, %v188
  %v6889 = vmul.f32 %v6799, %v188
  %v6890 = vmul.f32 %v6802, %v188
  %v6891 = vmul.f32 %v6805, %v188
  %v6892 = vmul.f32 %v6808, %v188
  %v6893 = vmul.f32 %v6811, %v188
  %v6894 = vmul.f32 %v6814, %v188
  %v6895 = vmul.f32 %v6817, %v188
  %v6896 = vmul.f32 %v6820, %v188
  %v6897 = vmul.f32 %v6823, %v188
  %v6898 = vmul.f32 %v6826, %v188
  %v6899 = vmul.f32 %v6829, %v188
  %v6900 = vmul.f32 %v6832, %v188
  %v6901 = vmul.f32 %v6835, %v188
  %v6902 = vmul.f32 %v6838, %v188
  %v6903 = vmul.f32 %v6841, %v188
  %v6904 = vmul.f32 %v6844, %v188
  %v6905 = vmul.f32 %v6847, %v188
  %v6906 = vmul.f32 %v6850, %v188
  %v6907 = vmul.f32 %v6853, %v188
  %v6908 = vmul.f32 %v6856, %v188
  %v6909 = vmul.f32 %v6859, %v188
  %v6910 = vmul.f32 %v6862, %v188
  %v6911 = vmul.f32 %v6865, %v188
  %v6912 = vmul.f32 %v6868, %v188
  %v6913 = vmul.f32 %v6871, %v188
  %v6914 = vmul.f32 %v6874, %v188
  %v6915 = vmul.f32 %v6877, %v188
  %v6916 = vmul.f32 %v6880, %v188
  %v6917 = vmul.f32 %v6883, %v188
  %v6918 = vmul.f32 %v6886, %v188
  %v6919 = vsub.f32 %v6757, %v6887
  %v6920 = vsub.f32 %v6758, %v6888
  %v6921 = vsub.f32 %v6759, %v6889
  %v6922 = vsub.f32 %v6760, %v6890
  %v6923 = vsub.f32 %v6761, %v6891
  %v6924 = vsub.f32 %v6762, %v6892
  %v6925 = vsub.f32 %v6763, %v6893
  %v6926 = vsub.f32 %v6764, %v6894
  %v6927 = vsub.f32 %v6765, %v6895
  %v6928 = vsub.f32 %v6766, %v6896
  %v6929 = vsub.f32 %v6767, %v6897
  %v6930 = vsub.f32 %v6768, %v6898
  %v6931 = vsub.f32 %v6769, %v6899
  %v6932 = vsub.f32 %v6770, %v6900
  %v6933 = vsub.f32 %v6771, %v6901
  %v6934 = vsub.f32 %v6772, %v6902
  %v6935 = vsub.f32 %v6773, %v6903
  %v6936 = vsub.f32 %v6774, %v6904
  %v6937 = vsub.f32 %v6775, %v6905
  %v6938 = vsub.f32 %v6776, %v6906
  %v6939 = vsub.f32 %v6777, %v6907
  %v6940 = vsub.f32 %v6778, %v6908
  %v6941 = vsub.f32 %v6779, %v6909
  %v6942 = vsub.f32 %v6780, %v6910
  %v6943 = vsub.f32 %v6781, %v6911
  %v6944 = vsub.f32 %v6782, %v6912
  %v6945 = vsub.f32 %v6783, %v6913
  %v6946 = vsub.f32 %v6784, %v6914
  %v6947 = vsub.f32 %v6785, %v6915
  %v6948 = vsub.f32 %v6786, %v6916
  %v6949 = vsub.f32 %v6787, %v6917
  %v6950 = vsub.f32 %v6788, %v6918
  %v6951 = vmul.f32 %v6919, %v6919
  %v6952 = vmul.f32 %v6920, %v6920
  %v6953 = vmul.f32 %v6921, %v6921
  %v6954 = vmul.f32 %v6922, %v6922
  %v6955 = vmul.f32 %v6923, %v6923
  %v6956 = vmul.f32 %v6924, %v6924
  %v6957 = vmul.f32 %v6925, %v6925
  %v6958 = vmul.f32 %v6926, %v6926
  %v6959 = vmul.f32 %v6927, %v6927
  %v6960 = vmul.f32 %v6928, %v6928
  %v6961 = vmul.f32 %v6929, %v6929
  %v6962 = vmul.f32 %v6930, %v6930
  %v6963 = vmul.f32 %v6931, %v6931
  %v6964 = vmul.f32 %v6932, %v6932
  %v6965 = vmul.f32 %v6933, %v6933
  %v6966 = vmul.f32 %v6934, %v6934
  %v6967 = vmul.f32 %v6935, %v6935
  %v6968 = vmul.f32 %v6936, %v6936
  %v6969 = vmul.f32 %v6937, %v6937
  %v6970 = vmul.f32 %v6938, %v6938
  %v6971 = vmul.f32 %v6939, %v6939
  %v6972 = vmul.f32 %v6940, %v6940
  %v6973 = vmul.f32 %v6941, %v6941
  %v6974 = vmul.f32 %v6942, %v6942
  %v6975 = vmul.f32 %v6943, %v6943
  %v6976 = vmul.f32 %v6944, %v6944
  %v6977 = vmul.f32 %v6945, %v6945
  %v6978 = vmul.f32 %v6946, %v6946
  %v6979 = vmul.f32 %v6947, %v6947
  %v6980 = vmul.f32 %v6948, %v6948
  %v6981 = vmul.f32 %v6949, %v6949
  %v6982 = vmul.f32 %v6950, %v6950
  %v6983 = vsel %vm85, %v6951, 0.0
  %6984 = vadd.xlane.f32.xlu0 %v6983
  %v6985 = vpop.xlane.xlu0 %6984
  %v6986 = vsel %vm85, %v6952, 0.0
  %6987 = vadd.xlane.f32.xlu0 %v6986
  %v6988 = vpop.xlane.xlu0 %6987
  %v6989 = vsel %vm85, %v6953, 0.0
  %6990 = vadd.xlane.f32.xlu0 %v6989
  %v6991 = vpop.xlane.xlu0 %6990
  %v6992 = vsel %vm85, %v6954, 0.0
  %6993 = vadd.xlane.f32.xlu0 %v6992
  %v6994 = vpop.xlane.xlu0 %6993
  %v6995 = vsel %vm85, %v6955, 0.0
  %6996 = vadd.xlane.f32.xlu0 %v6995
  %v6997 = vpop.xlane.xlu0 %6996
  %v6998 = vsel %vm85, %v6956, 0.0
  %6999 = vadd.xlane.f32.xlu0 %v6998
  %v7000 = vpop.xlane.xlu0 %6999
  %v7001 = vsel %vm85, %v6957, 0.0
  %7002 = vadd.xlane.f32.xlu0 %v7001
  %v7003 = vpop.xlane.xlu0 %7002
  %v7004 = vsel %vm85, %v6958, 0.0
  %7005 = vadd.xlane.f32.xlu0 %v7004
  %v7006 = vpop.xlane.xlu0 %7005
  %v7007 = vsel %vm85, %v6959, 0.0
  %7008 = vadd.xlane.f32.xlu0 %v7007
  %v7009 = vpop.xlane.xlu0 %7008
  %v7010 = vsel %vm85, %v6960, 0.0
  %7011 = vadd.xlane.f32.xlu0 %v7010
  %v7012 = vpop.xlane.xlu0 %7011
  %v7013 = vsel %vm85, %v6961, 0.0
  %7014 = vadd.xlane.f32.xlu0 %v7013
  %v7015 = vpop.xlane.xlu0 %7014
  %v7016 = vsel %vm85, %v6962, 0.0
  %7017 = vadd.xlane.f32.xlu0 %v7016
  %v7018 = vpop.xlane.xlu0 %7017
  %v7019 = vsel %vm85, %v6963, 0.0
  %7020 = vadd.xlane.f32.xlu0 %v7019
  %v7021 = vpop.xlane.xlu0 %7020
  %v7022 = vsel %vm85, %v6964, 0.0
  %7023 = vadd.xlane.f32.xlu0 %v7022
  %v7024 = vpop.xlane.xlu0 %7023
  %v7025 = vsel %vm85, %v6965, 0.0
  %7026 = vadd.xlane.f32.xlu0 %v7025
  %v7027 = vpop.xlane.xlu0 %7026
  %v7028 = vsel %vm85, %v6966, 0.0
  %7029 = vadd.xlane.f32.xlu0 %v7028
  %v7030 = vpop.xlane.xlu0 %7029
  %v7031 = vsel %vm85, %v6967, 0.0
  %7032 = vadd.xlane.f32.xlu0 %v7031
  %v7033 = vpop.xlane.xlu0 %7032
  %v7034 = vsel %vm85, %v6968, 0.0
  %7035 = vadd.xlane.f32.xlu0 %v7034
  %v7036 = vpop.xlane.xlu0 %7035
  %v7037 = vsel %vm85, %v6969, 0.0
  %7038 = vadd.xlane.f32.xlu0 %v7037
  %v7039 = vpop.xlane.xlu0 %7038
  %v7040 = vsel %vm85, %v6970, 0.0
  %7041 = vadd.xlane.f32.xlu0 %v7040
  %v7042 = vpop.xlane.xlu0 %7041
  %v7043 = vsel %vm85, %v6971, 0.0
  %7044 = vadd.xlane.f32.xlu0 %v7043
  %v7045 = vpop.xlane.xlu0 %7044
  %v7046 = vsel %vm85, %v6972, 0.0
  %7047 = vadd.xlane.f32.xlu0 %v7046
  %v7048 = vpop.xlane.xlu0 %7047
  %v7049 = vsel %vm85, %v6973, 0.0
  %7050 = vadd.xlane.f32.xlu0 %v7049
  %v7051 = vpop.xlane.xlu0 %7050
  %v7052 = vsel %vm85, %v6974, 0.0
  %7053 = vadd.xlane.f32.xlu0 %v7052
  %v7054 = vpop.xlane.xlu0 %7053
  %v7055 = vsel %vm85, %v6975, 0.0
  %7056 = vadd.xlane.f32.xlu0 %v7055
  %v7057 = vpop.xlane.xlu0 %7056
  %v7058 = vsel %vm85, %v6976, 0.0
  %7059 = vadd.xlane.f32.xlu0 %v7058
  %v7060 = vpop.xlane.xlu0 %7059
  %v7061 = vsel %vm85, %v6977, 0.0
  %7062 = vadd.xlane.f32.xlu0 %v7061
  %v7063 = vpop.xlane.xlu0 %7062
  %v7064 = vsel %vm85, %v6978, 0.0
  %7065 = vadd.xlane.f32.xlu0 %v7064
  %v7066 = vpop.xlane.xlu0 %7065
  %v7067 = vsel %vm85, %v6979, 0.0
  %7068 = vadd.xlane.f32.xlu0 %v7067
  %v7069 = vpop.xlane.xlu0 %7068
  %v7070 = vsel %vm85, %v6980, 0.0
  %7071 = vadd.xlane.f32.xlu0 %v7070
  %v7072 = vpop.xlane.xlu0 %7071
  %v7073 = vsel %vm85, %v6981, 0.0
  %7074 = vadd.xlane.f32.xlu0 %v7073
  %v7075 = vpop.xlane.xlu0 %7074
  %v7076 = vsel %vm85, %v6982, 0.0
  %7077 = vadd.xlane.f32.xlu0 %v7076
  %v7078 = vpop.xlane.xlu0 %7077
  %v7079 = vmul.f32 %v6985, %v188
  %v7080 = vmul.f32 %v6988, %v188
  %v7081 = vmul.f32 %v6991, %v188
  %v7082 = vmul.f32 %v6994, %v188
  %v7083 = vmul.f32 %v6997, %v188
  %v7084 = vmul.f32 %v7000, %v188
  %v7085 = vmul.f32 %v7003, %v188
  %v7086 = vmul.f32 %v7006, %v188
  %v7087 = vmul.f32 %v7009, %v188
  %v7088 = vmul.f32 %v7012, %v188
  %v7089 = vmul.f32 %v7015, %v188
  %v7090 = vmul.f32 %v7018, %v188
  %v7091 = vmul.f32 %v7021, %v188
  %v7092 = vmul.f32 %v7024, %v188
  %v7093 = vmul.f32 %v7027, %v188
  %v7094 = vmul.f32 %v7030, %v188
  %v7095 = vmul.f32 %v7033, %v188
  %v7096 = vmul.f32 %v7036, %v188
  %v7097 = vmul.f32 %v7039, %v188
  %v7098 = vmul.f32 %v7042, %v188
  %v7099 = vmul.f32 %v7045, %v188
  %v7100 = vmul.f32 %v7048, %v188
  %v7101 = vmul.f32 %v7051, %v188
  %v7102 = vmul.f32 %v7054, %v188
  %v7103 = vmul.f32 %v7057, %v188
  %v7104 = vmul.f32 %v7060, %v188
  %v7105 = vmul.f32 %v7063, %v188
  %v7106 = vmul.f32 %v7066, %v188
  %v7107 = vmul.f32 %v7069, %v188
  %v7108 = vmul.f32 %v7072, %v188
  %v7109 = vmul.f32 %v7075, %v188
  %v7110 = vmul.f32 %v7078, %v188
  %v7111 = vadd.f32 %v7079, 1e-05
  %v7112 = vadd.f32 %v7080, 1e-05
  %v7113 = vadd.f32 %v7081, 1e-05
  %v7114 = vadd.f32 %v7082, 1e-05
  %v7115 = vadd.f32 %v7083, 1e-05
  %v7116 = vadd.f32 %v7084, 1e-05
  %v7117 = vadd.f32 %v7085, 1e-05
  %v7118 = vadd.f32 %v7086, 1e-05
  %v7119 = vadd.f32 %v7087, 1e-05
  %v7120 = vadd.f32 %v7088, 1e-05
  %v7121 = vadd.f32 %v7089, 1e-05
  %v7122 = vadd.f32 %v7090, 1e-05
  %v7123 = vadd.f32 %v7091, 1e-05
  %v7124 = vadd.f32 %v7092, 1e-05
  %v7125 = vadd.f32 %v7093, 1e-05
  %v7126 = vadd.f32 %v7094, 1e-05
  %v7127 = vadd.f32 %v7095, 1e-05
  %v7128 = vadd.f32 %v7096, 1e-05
  %v7129 = vadd.f32 %v7097, 1e-05
  %v7130 = vadd.f32 %v7098, 1e-05
  %v7131 = vadd.f32 %v7099, 1e-05
  %v7132 = vadd.f32 %v7100, 1e-05
  %v7133 = vadd.f32 %v7101, 1e-05
  %v7134 = vadd.f32 %v7102, 1e-05
  %v7135 = vadd.f32 %v7103, 1e-05
  %v7136 = vadd.f32 %v7104, 1e-05
  %v7137 = vadd.f32 %v7105, 1e-05
  %v7138 = vadd.f32 %v7106, 1e-05
  %v7139 = vadd.f32 %v7107, 1e-05
  %v7140 = vadd.f32 %v7108, 1e-05
  %v7141 = vadd.f32 %v7109, 1e-05
  %v7142 = vadd.f32 %v7110, 1e-05
  %v7143 = vrsqrt.pop %v7111
  %v7144 = vmul.f32 %v7143, %v7111
  %v7145 = vmul.f32 %v7144, %v7143
  %v7146 = vmul.f32 0.5, %v7145
  %v7147 = vsub.f32 1.5, %v7146
  %v7148 = vmul.f32 %v7143, %v7147
  %vm7149 = vweird.f32 %v7111
  %vm7150 = vweird.f32 %v7143
  %vm7151 = vmor %vm7149, %vm7150
  %v7152 = vsel %vm7151, %v7143, %v7148
  %v7153 = vrsqrt.pop %v7112
  %v7154 = vmul.f32 %v7153, %v7112
  %v7155 = vmul.f32 %v7154, %v7153
  %v7156 = vmul.f32 0.5, %v7155
  %v7157 = vsub.f32 1.5, %v7156
  %v7158 = vmul.f32 %v7153, %v7157
  %vm7159 = vweird.f32 %v7112
  %vm7160 = vweird.f32 %v7153
  %vm7161 = vmor %vm7159, %vm7160
  %v7162 = vsel %vm7161, %v7153, %v7158
  %v7163 = vrsqrt.pop %v7113
  %v7164 = vmul.f32 %v7163, %v7113
  %v7165 = vmul.f32 %v7164, %v7163
  %v7166 = vmul.f32 0.5, %v7165
  %v7167 = vsub.f32 1.5, %v7166
  %v7168 = vmul.f32 %v7163, %v7167
  %vm7169 = vweird.f32 %v7113
  %vm7170 = vweird.f32 %v7163
  %vm7171 = vmor %vm7169, %vm7170
  %v7172 = vsel %vm7171, %v7163, %v7168
  %v7173 = vrsqrt.pop %v7114
  %v7174 = vmul.f32 %v7173, %v7114
  %v7175 = vmul.f32 %v7174, %v7173
  %v7176 = vmul.f32 0.5, %v7175
  %v7177 = vsub.f32 1.5, %v7176
  %v7178 = vmul.f32 %v7173, %v7177
  %vm7179 = vweird.f32 %v7114
  %vm7180 = vweird.f32 %v7173
  %vm7181 = vmor %vm7179, %vm7180
  %v7182 = vsel %vm7181, %v7173, %v7178
  %v7183 = vrsqrt.pop %v7115
  %v7184 = vmul.f32 %v7183, %v7115
  %v7185 = vmul.f32 %v7184, %v7183
  %v7186 = vmul.f32 0.5, %v7185
  %v7187 = vsub.f32 1.5, %v7186
  %v7188 = vmul.f32 %v7183, %v7187
  %vm7189 = vweird.f32 %v7115
  %vm7190 = vweird.f32 %v7183
  %vm7191 = vmor %vm7189, %vm7190
  %v7192 = vsel %vm7191, %v7183, %v7188
  %v7193 = vrsqrt.pop %v7116
  %v7194 = vmul.f32 %v7193, %v7116
  %v7195 = vmul.f32 %v7194, %v7193
  %v7196 = vmul.f32 0.5, %v7195
  %v7197 = vsub.f32 1.5, %v7196
  %v7198 = vmul.f32 %v7193, %v7197
  %vm7199 = vweird.f32 %v7116
  %vm7200 = vweird.f32 %v7193
  %vm7201 = vmor %vm7199, %vm7200
  %v7202 = vsel %vm7201, %v7193, %v7198
  %v7203 = vrsqrt.pop %v7117
  %v7204 = vmul.f32 %v7203, %v7117
  %v7205 = vmul.f32 %v7204, %v7203
  %v7206 = vmul.f32 0.5, %v7205
  %v7207 = vsub.f32 1.5, %v7206
  %v7208 = vmul.f32 %v7203, %v7207
  %vm7209 = vweird.f32 %v7117
  %vm7210 = vweird.f32 %v7203
  %vm7211 = vmor %vm7209, %vm7210
  %v7212 = vsel %vm7211, %v7203, %v7208
  %v7213 = vrsqrt.pop %v7118
  %v7214 = vmul.f32 %v7213, %v7118
  %v7215 = vmul.f32 %v7214, %v7213
  %v7216 = vmul.f32 0.5, %v7215
  %v7217 = vsub.f32 1.5, %v7216
  %v7218 = vmul.f32 %v7213, %v7217
  %vm7219 = vweird.f32 %v7118
  %vm7220 = vweird.f32 %v7213
  %vm7221 = vmor %vm7219, %vm7220
  %v7222 = vsel %vm7221, %v7213, %v7218
  %v7223 = vrsqrt.pop %v7119
  %v7224 = vmul.f32 %v7223, %v7119
  %v7225 = vmul.f32 %v7224, %v7223
  %v7226 = vmul.f32 0.5, %v7225
  %v7227 = vsub.f32 1.5, %v7226
  %v7228 = vmul.f32 %v7223, %v7227
  %vm7229 = vweird.f32 %v7119
  %vm7230 = vweird.f32 %v7223
  %vm7231 = vmor %vm7229, %vm7230
  %v7232 = vsel %vm7231, %v7223, %v7228
  %v7233 = vrsqrt.pop %v7120
  %v7234 = vmul.f32 %v7233, %v7120
  %v7235 = vmul.f32 %v7234, %v7233
  %v7236 = vmul.f32 0.5, %v7235
  %v7237 = vsub.f32 1.5, %v7236
  %v7238 = vmul.f32 %v7233, %v7237
  %vm7239 = vweird.f32 %v7120
  %vm7240 = vweird.f32 %v7233
  %vm7241 = vmor %vm7239, %vm7240
  %v7242 = vsel %vm7241, %v7233, %v7238
  %v7243 = vrsqrt.pop %v7121
  %v7244 = vmul.f32 %v7243, %v7121
  %v7245 = vmul.f32 %v7244, %v7243
  %v7246 = vmul.f32 0.5, %v7245
  %v7247 = vsub.f32 1.5, %v7246
  %v7248 = vmul.f32 %v7243, %v7247
  %vm7249 = vweird.f32 %v7121
  %vm7250 = vweird.f32 %v7243
  %vm7251 = vmor %vm7249, %vm7250
  %v7252 = vsel %vm7251, %v7243, %v7248
  %v7253 = vrsqrt.pop %v7122
  %v7254 = vmul.f32 %v7253, %v7122
  %v7255 = vmul.f32 %v7254, %v7253
  %v7256 = vmul.f32 0.5, %v7255
  %v7257 = vsub.f32 1.5, %v7256
  %v7258 = vmul.f32 %v7253, %v7257
  %vm7259 = vweird.f32 %v7122
  %vm7260 = vweird.f32 %v7253
  %vm7261 = vmor %vm7259, %vm7260
  %v7262 = vsel %vm7261, %v7253, %v7258
  %v7263 = vrsqrt.pop %v7123
  %v7264 = vmul.f32 %v7263, %v7123
  %v7265 = vmul.f32 %v7264, %v7263
  %v7266 = vmul.f32 0.5, %v7265
  %v7267 = vsub.f32 1.5, %v7266
  %v7268 = vmul.f32 %v7263, %v7267
  %vm7269 = vweird.f32 %v7123
  %vm7270 = vweird.f32 %v7263
  %vm7271 = vmor %vm7269, %vm7270
  %v7272 = vsel %vm7271, %v7263, %v7268
  %v7273 = vrsqrt.pop %v7124
  %v7274 = vmul.f32 %v7273, %v7124
  %v7275 = vmul.f32 %v7274, %v7273
  %v7276 = vmul.f32 0.5, %v7275
  %v7277 = vsub.f32 1.5, %v7276
  %v7278 = vmul.f32 %v7273, %v7277
  %vm7279 = vweird.f32 %v7124
  %vm7280 = vweird.f32 %v7273
  %vm7281 = vmor %vm7279, %vm7280
  %v7282 = vsel %vm7281, %v7273, %v7278
  %v7283 = vrsqrt.pop %v7125
  %v7284 = vmul.f32 %v7283, %v7125
  %v7285 = vmul.f32 %v7284, %v7283
  %v7286 = vmul.f32 0.5, %v7285
  %v7287 = vsub.f32 1.5, %v7286
  %v7288 = vmul.f32 %v7283, %v7287
  %vm7289 = vweird.f32 %v7125
  %vm7290 = vweird.f32 %v7283
  %vm7291 = vmor %vm7289, %vm7290
  %v7292 = vsel %vm7291, %v7283, %v7288
  %v7293 = vrsqrt.pop %v7126
  %v7294 = vmul.f32 %v7293, %v7126
  %v7295 = vmul.f32 %v7294, %v7293
  %v7296 = vmul.f32 0.5, %v7295
  %v7297 = vsub.f32 1.5, %v7296
  %v7298 = vmul.f32 %v7293, %v7297
  %vm7299 = vweird.f32 %v7126
  %vm7300 = vweird.f32 %v7293
  %vm7301 = vmor %vm7299, %vm7300
  %v7302 = vsel %vm7301, %v7293, %v7298
  %v7303 = vrsqrt.pop %v7127
  %v7304 = vmul.f32 %v7303, %v7127
  %v7305 = vmul.f32 %v7304, %v7303
  %v7306 = vmul.f32 0.5, %v7305
  %v7307 = vsub.f32 1.5, %v7306
  %v7308 = vmul.f32 %v7303, %v7307
  %vm7309 = vweird.f32 %v7127
  %vm7310 = vweird.f32 %v7303
  %vm7311 = vmor %vm7309, %vm7310
  %v7312 = vsel %vm7311, %v7303, %v7308
  %v7313 = vrsqrt.pop %v7128
  %v7314 = vmul.f32 %v7313, %v7128
  %v7315 = vmul.f32 %v7314, %v7313
  %v7316 = vmul.f32 0.5, %v7315
  %v7317 = vsub.f32 1.5, %v7316
  %v7318 = vmul.f32 %v7313, %v7317
  %vm7319 = vweird.f32 %v7128
  %vm7320 = vweird.f32 %v7313
  %vm7321 = vmor %vm7319, %vm7320
  %v7322 = vsel %vm7321, %v7313, %v7318
  %v7323 = vrsqrt.pop %v7129
  %v7324 = vmul.f32 %v7323, %v7129
  %v7325 = vmul.f32 %v7324, %v7323
  %v7326 = vmul.f32 0.5, %v7325
  %v7327 = vsub.f32 1.5, %v7326
  %v7328 = vmul.f32 %v7323, %v7327
  %vm7329 = vweird.f32 %v7129
  %vm7330 = vweird.f32 %v7323
  %vm7331 = vmor %vm7329, %vm7330
  %v7332 = vsel %vm7331, %v7323, %v7328
  %v7333 = vrsqrt.pop %v7130
  %v7334 = vmul.f32 %v7333, %v7130
  %v7335 = vmul.f32 %v7334, %v7333
  %v7336 = vmul.f32 0.5, %v7335
  %v7337 = vsub.f32 1.5, %v7336
  %v7338 = vmul.f32 %v7333, %v7337
  %vm7339 = vweird.f32 %v7130
  %vm7340 = vweird.f32 %v7333
  %vm7341 = vmor %vm7339, %vm7340
  %v7342 = vsel %vm7341, %v7333, %v7338
  %v7343 = vrsqrt.pop %v7131
  %v7344 = vmul.f32 %v7343, %v7131
  %v7345 = vmul.f32 %v7344, %v7343
  %v7346 = vmul.f32 0.5, %v7345
  %v7347 = vsub.f32 1.5, %v7346
  %v7348 = vmul.f32 %v7343, %v7347
  %vm7349 = vweird.f32 %v7131
  %vm7350 = vweird.f32 %v7343
  %vm7351 = vmor %vm7349, %vm7350
  %v7352 = vsel %vm7351, %v7343, %v7348
  %v7353 = vrsqrt.pop %v7132
  %v7354 = vmul.f32 %v7353, %v7132
  %v7355 = vmul.f32 %v7354, %v7353
  %v7356 = vmul.f32 0.5, %v7355
  %v7357 = vsub.f32 1.5, %v7356
  %v7358 = vmul.f32 %v7353, %v7357
  %vm7359 = vweird.f32 %v7132
  %vm7360 = vweird.f32 %v7353
  %vm7361 = vmor %vm7359, %vm7360
  %v7362 = vsel %vm7361, %v7353, %v7358
  %v7363 = vrsqrt.pop %v7133
  %v7364 = vmul.f32 %v7363, %v7133
  %v7365 = vmul.f32 %v7364, %v7363
  %v7366 = vmul.f32 0.5, %v7365
  %v7367 = vsub.f32 1.5, %v7366
  %v7368 = vmul.f32 %v7363, %v7367
  %vm7369 = vweird.f32 %v7133
  %vm7370 = vweird.f32 %v7363
  %vm7371 = vmor %vm7369, %vm7370
  %v7372 = vsel %vm7371, %v7363, %v7368
  %v7373 = vrsqrt.pop %v7134
  %v7374 = vmul.f32 %v7373, %v7134
  %v7375 = vmul.f32 %v7374, %v7373
  %v7376 = vmul.f32 0.5, %v7375
  %v7377 = vsub.f32 1.5, %v7376
  %v7378 = vmul.f32 %v7373, %v7377
  %vm7379 = vweird.f32 %v7134
  %vm7380 = vweird.f32 %v7373
  %vm7381 = vmor %vm7379, %vm7380
  %v7382 = vsel %vm7381, %v7373, %v7378
  %v7383 = vrsqrt.pop %v7135
  %v7384 = vmul.f32 %v7383, %v7135
  %v7385 = vmul.f32 %v7384, %v7383
  %v7386 = vmul.f32 0.5, %v7385
  %v7387 = vsub.f32 1.5, %v7386
  %v7388 = vmul.f32 %v7383, %v7387
  %vm7389 = vweird.f32 %v7135
  %vm7390 = vweird.f32 %v7383
  %vm7391 = vmor %vm7389, %vm7390
  %v7392 = vsel %vm7391, %v7383, %v7388
  %v7393 = vrsqrt.pop %v7136
  %v7394 = vmul.f32 %v7393, %v7136
  %v7395 = vmul.f32 %v7394, %v7393
  %v7396 = vmul.f32 0.5, %v7395
  %v7397 = vsub.f32 1.5, %v7396
  %v7398 = vmul.f32 %v7393, %v7397
  %vm7399 = vweird.f32 %v7136
  %vm7400 = vweird.f32 %v7393
  %vm7401 = vmor %vm7399, %vm7400
  %v7402 = vsel %vm7401, %v7393, %v7398
  %v7403 = vrsqrt.pop %v7137
  %v7404 = vmul.f32 %v7403, %v7137
  %v7405 = vmul.f32 %v7404, %v7403
  %v7406 = vmul.f32 0.5, %v7405
  %v7407 = vsub.f32 1.5, %v7406
  %v7408 = vmul.f32 %v7403, %v7407
  %vm7409 = vweird.f32 %v7137
  %vm7410 = vweird.f32 %v7403
  %vm7411 = vmor %vm7409, %vm7410
  %v7412 = vsel %vm7411, %v7403, %v7408
  %v7413 = vrsqrt.pop %v7138
  %v7414 = vmul.f32 %v7413, %v7138
  %v7415 = vmul.f32 %v7414, %v7413
  %v7416 = vmul.f32 0.5, %v7415
  %v7417 = vsub.f32 1.5, %v7416
  %v7418 = vmul.f32 %v7413, %v7417
  %vm7419 = vweird.f32 %v7138
  %vm7420 = vweird.f32 %v7413
  %vm7421 = vmor %vm7419, %vm7420
  %v7422 = vsel %vm7421, %v7413, %v7418
  %v7423 = vrsqrt.pop %v7139
  %v7424 = vmul.f32 %v7423, %v7139
  %v7425 = vmul.f32 %v7424, %v7423
  %v7426 = vmul.f32 0.5, %v7425
  %v7427 = vsub.f32 1.5, %v7426
  %v7428 = vmul.f32 %v7423, %v7427
  %vm7429 = vweird.f32 %v7139
  %vm7430 = vweird.f32 %v7423
  %vm7431 = vmor %vm7429, %vm7430
  %v7432 = vsel %vm7431, %v7423, %v7428
  %v7433 = vrsqrt.pop %v7140
  %v7434 = vmul.f32 %v7433, %v7140
  %v7435 = vmul.f32 %v7434, %v7433
  %v7436 = vmul.f32 0.5, %v7435
  %v7437 = vsub.f32 1.5, %v7436
  %v7438 = vmul.f32 %v7433, %v7437
  %vm7439 = vweird.f32 %v7140
  %vm7440 = vweird.f32 %v7433
  %vm7441 = vmor %vm7439, %vm7440
  %v7442 = vsel %vm7441, %v7433, %v7438
  %v7443 = vrsqrt.pop %v7141
  %v7444 = vmul.f32 %v7443, %v7141
  %v7445 = vmul.f32 %v7444, %v7443
  %v7446 = vmul.f32 0.5, %v7445
  %v7447 = vsub.f32 1.5, %v7446
  %v7448 = vmul.f32 %v7443, %v7447
  %vm7449 = vweird.f32 %v7141
  %vm7450 = vweird.f32 %v7443
  %vm7451 = vmor %vm7449, %vm7450
  %v7452 = vsel %vm7451, %v7443, %v7448
  %v7453 = vrsqrt.pop %v7142
  %v7454 = vmul.f32 %v7453, %v7142
  %v7455 = vmul.f32 %v7454, %v7453
  %v7456 = vmul.f32 0.5, %v7455
  %v7457 = vsub.f32 1.5, %v7456
  %v7458 = vmul.f32 %v7453, %v7457
  %vm7459 = vweird.f32 %v7142
  %vm7460 = vweird.f32 %v7453
  %vm7461 = vmor %vm7459, %vm7460
  %v7462 = vsel %vm7461, %v7453, %v7458
  %v7463 = vmul.f32 %v6919, %v7152
  %v7464 = vmul.f32 %v6920, %v7162
  %v7465 = vmul.f32 %v6921, %v7172
  %v7466 = vmul.f32 %v6922, %v7182
  %v7467 = vmul.f32 %v6923, %v7192
  %v7468 = vmul.f32 %v6924, %v7202
  %v7469 = vmul.f32 %v6925, %v7212
  %v7470 = vmul.f32 %v6926, %v7222
  %v7471 = vmul.f32 %v6927, %v7232
  %v7472 = vmul.f32 %v6928, %v7242
  %v7473 = vmul.f32 %v6929, %v7252
  %v7474 = vmul.f32 %v6930, %v7262
  %v7475 = vmul.f32 %v6931, %v7272
  %v7476 = vmul.f32 %v6932, %v7282
  %v7477 = vmul.f32 %v6933, %v7292
  %v7478 = vmul.f32 %v6934, %v7302
  %v7479 = vmul.f32 %v6935, %v7312
  %v7480 = vmul.f32 %v6936, %v7322
  %v7481 = vmul.f32 %v6937, %v7332
  %v7482 = vmul.f32 %v6938, %v7342
  %v7483 = vmul.f32 %v6939, %v7352
  %v7484 = vmul.f32 %v6940, %v7362
  %v7485 = vmul.f32 %v6941, %v7372
  %v7486 = vmul.f32 %v6942, %v7382
  %v7487 = vmul.f32 %v6943, %v7392
  %v7488 = vmul.f32 %v6944, %v7402
  %v7489 = vmul.f32 %v6945, %v7412
  %v7490 = vmul.f32 %v6946, %v7422
  %v7491 = vmul.f32 %v6947, %v7432
  %v7492 = vmul.f32 %v6948, %v7442
  %v7493 = vmul.f32 %v6949, %v7452
  %v7494 = vmul.f32 %v6950, %v7462
  %v7496 = vperm.slane %v6789, 0
  %v7498 = vmul.f32 %v7463, %v7496
  %v7499 = vmul.f32 %v7464, %v7496
  %v7500 = vmul.f32 %v7465, %v7496
  %v7501 = vmul.f32 %v7466, %v7496
  %v7502 = vmul.f32 %v7467, %v7496
  %v7503 = vmul.f32 %v7468, %v7496
  %v7504 = vmul.f32 %v7469, %v7496
  %v7505 = vmul.f32 %v7470, %v7496
  %v7506 = vmul.f32 %v7471, %v7496
  %v7507 = vmul.f32 %v7472, %v7496
  %v7508 = vmul.f32 %v7473, %v7496
  %v7509 = vmul.f32 %v7474, %v7496
  %v7510 = vmul.f32 %v7475, %v7496
  %v7511 = vmul.f32 %v7476, %v7496
  %v7512 = vmul.f32 %v7477, %v7496
  %v7513 = vmul.f32 %v7478, %v7496
  %v7514 = vmul.f32 %v7479, %v7496
  %v7515 = vmul.f32 %v7480, %v7496
  %v7516 = vmul.f32 %v7481, %v7496
  %v7517 = vmul.f32 %v7482, %v7496
  %v7518 = vmul.f32 %v7483, %v7496
  %v7519 = vmul.f32 %v7484, %v7496
  %v7520 = vmul.f32 %v7485, %v7496
  %v7521 = vmul.f32 %v7486, %v7496
  %v7522 = vmul.f32 %v7487, %v7496
  %v7523 = vmul.f32 %v7488, %v7496
  %v7524 = vmul.f32 %v7489, %v7496
  %v7525 = vmul.f32 %v7490, %v7496
  %v7526 = vmul.f32 %v7491, %v7496
  %v7527 = vmul.f32 %v7492, %v7496
  %v7528 = vmul.f32 %v7493, %v7496
  %v7529 = vmul.f32 %v7494, %v7496
  %v7531 = vperm.slane %v6790, 0
  %v7533 = vadd.f32 %v7498, %v7531
  %v7534 = vadd.f32 %v7499, %v7531
  %v7535 = vadd.f32 %v7500, %v7531
  %v7536 = vadd.f32 %v7501, %v7531
  %v7537 = vadd.f32 %v7502, %v7531
  %v7538 = vadd.f32 %v7503, %v7531
  %v7539 = vadd.f32 %v7504, %v7531
  %v7540 = vadd.f32 %v7505, %v7531
  %v7541 = vadd.f32 %v7506, %v7531
  %v7542 = vadd.f32 %v7507, %v7531
  %v7543 = vadd.f32 %v7508, %v7531
  %v7544 = vadd.f32 %v7509, %v7531
  %v7545 = vadd.f32 %v7510, %v7531
  %v7546 = vadd.f32 %v7511, %v7531
  %v7547 = vadd.f32 %v7512, %v7531
  %v7548 = vadd.f32 %v7513, %v7531
  %v7549 = vadd.f32 %v7514, %v7531
  %v7550 = vadd.f32 %v7515, %v7531
  %v7551 = vadd.f32 %v7516, %v7531
  %v7552 = vadd.f32 %v7517, %v7531
  %v7553 = vadd.f32 %v7518, %v7531
  %v7554 = vadd.f32 %v7519, %v7531
  %v7555 = vadd.f32 %v7520, %v7531
  %v7556 = vadd.f32 %v7521, %v7531
  %v7557 = vadd.f32 %v7522, %v7531
  %v7558 = vadd.f32 %v7523, %v7531
  %v7559 = vadd.f32 %v7524, %v7531
  %v7560 = vadd.f32 %v7525, %v7531
  %v7561 = vadd.f32 %v7526, %v7531
  %v7562 = vadd.f32 %v7527, %v7531
  %v7563 = vadd.f32 %v7528, %v7531
  %v7564 = vadd.f32 %v7529, %v7531
  %v7565 = vpack.c.bf16 %v7534, %v7533
  %v7566 = vpack.c.bf16 %v7536, %v7535
  %v7567 = vpack.c.bf16 %v7538, %v7537
  %v7568 = vpack.c.bf16 %v7540, %v7539
  %v7569 = vpack.c.bf16 %v7542, %v7541
  %v7570 = vpack.c.bf16 %v7544, %v7543
  %v7571 = vpack.c.bf16 %v7546, %v7545
  %v7572 = vpack.c.bf16 %v7548, %v7547
  %v7573 = vpack.c.bf16 %v7550, %v7549
  %v7574 = vpack.c.bf16 %v7552, %v7551
  %v7575 = vpack.c.bf16 %v7554, %v7553
  %v7576 = vpack.c.bf16 %v7556, %v7555
  %v7577 = vpack.c.bf16 %v7558, %v7557
  %v7578 = vpack.c.bf16 %v7560, %v7559
  %v7579 = vpack.c.bf16 %v7562, %v7561
  %v7580 = vpack.c.bf16 %v7564, %v7563
  %v7581 = vld [vmem:[%s11] sm:$0xf]
  %v7582 = vld [vmem:[%s11 + $0x4] sm:$0xf]
  %v7583 = vld [vmem:[%s11 + $0x8] sm:$0xf]
  %v7584 = vld [vmem:[%s11 + $0xc] sm:$0xf]
  %v7585 = vld [vmem:[%s12] sm:$0x1]
  %v7587 = vperm.slane %v7585, 0
  %v7593 = vunpack.c.l.b16 %v7581
  %v7594 = vunpack.c.l.b16 %v7582
  %v7595 = vunpack.c.l.b16 %v7583
  %v7596 = vunpack.c.l.b16 %v7584
  %v7597 = vpack.c.b16 %v7594, %v7593
  %v7598 = vpack.c.b16 %v7596, %v7595
  %v7602 = vsel %vm85, %v7565, 0
  %v7605 = vsel %vm85, %v7566, 0
  %v7608 = vsel %vm85, %v7567, 0
  %v7611 = vsel %vm85, %v7568, 0
  %v7614 = vsel %vm85, %v7569, 0
  %v7617 = vsel %vm85, %v7570, 0
  %v7620 = vsel %vm85, %v7571, 0
  %v7623 = vsel %vm85, %v7572, 0
  %v7626 = vsel %vm85, %v7573, 0
  %v7629 = vsel %vm85, %v7574, 0
  %v7632 = vsel %vm85, %v7575, 0
  %v7635 = vsel %vm85, %v7576, 0
  %v7638 = vsel %vm85, %v7577, 0
  %v7641 = vsel %vm85, %v7578, 0
  %v7644 = vsel %vm85, %v7579, 0
  %v7647 = vsel %vm85, %v7580, 0
  %7649 = vmatpush.bf16.msra.mxu0 0
  %7650 = vmatpush.bf16.msra.mxu0 0
  %7651 = vmatpush.bf16.msra.mxu0 0
  %7652 = vmatpush.bf16.msra.mxu0 0
  %7653 = vmatpush.bf16.msra.mxu0 0
  %7654 = vmatpush.bf16.msra.mxu0 0
  %7655 = vmatpush.bf16.msra.mxu0 %v7598
  %7656 = vmatpush.bf16.msra.mxu0 %v7597
  %7657 = vmatmul.bf16.gmra.mxu0 %v7602
  %v7658 = vpop.f32.mrf.mxu0
  %v7659 = vadd.f32 %v7587, %v7658
  %v7660 = vpop.f32.mrf.mxu0
  %v7661 = vadd.f32 %v7587, %v7660
  %7662 = vmatmul.bf16.gmra.mxu0 %v7605
  %v7663 = vpop.f32.mrf.mxu0
  %v7664 = vadd.f32 %v7587, %v7663
  %v7665 = vpop.f32.mrf.mxu0
  %v7666 = vadd.f32 %v7587, %v7665
  %7667 = vmatmul.bf16.gmra.mxu0 %v7608
  %v7668 = vpop.f32.mrf.mxu0
  %v7669 = vadd.f32 %v7587, %v7668
  %v7670 = vpop.f32.mrf.mxu0
  %v7671 = vadd.f32 %v7587, %v7670
  %7672 = vmatmul.bf16.gmra.mxu0 %v7611
  %v7673 = vpop.f32.mrf.mxu0
  %v7674 = vadd.f32 %v7587, %v7673
  %v7675 = vpop.f32.mrf.mxu0
  %v7676 = vadd.f32 %v7587, %v7675
  %7677 = vmatmul.bf16.gmra.mxu0 %v7614
  %v7678 = vpop.f32.mrf.mxu0
  %v7679 = vadd.f32 %v7587, %v7678
  %v7680 = vpop.f32.mrf.mxu0
  %v7681 = vadd.f32 %v7587, %v7680
  %7682 = vmatmul.bf16.gmra.mxu0 %v7617
  %v7683 = vpop.f32.mrf.mxu0
  %v7684 = vadd.f32 %v7587, %v7683
  %v7685 = vpop.f32.mrf.mxu0
  %v7686 = vadd.f32 %v7587, %v7685
  %7687 = vmatmul.bf16.gmra.mxu0 %v7620
  %v7688 = vpop.f32.mrf.mxu0
  %v7689 = vadd.f32 %v7587, %v7688
  %v7690 = vpop.f32.mrf.mxu0
  %v7691 = vadd.f32 %v7587, %v7690
  %7692 = vmatmul.bf16.gmra.mxu0 %v7623
  %v7693 = vpop.f32.mrf.mxu0
  %v7694 = vadd.f32 %v7587, %v7693
  %v7695 = vpop.f32.mrf.mxu0
  %v7696 = vadd.f32 %v7587, %v7695
  %7697 = vmatmul.bf16.gmra.mxu0 %v7626
  %v7698 = vpop.f32.mrf.mxu0
  %v7699 = vadd.f32 %v7587, %v7698
  %v7700 = vpop.f32.mrf.mxu0
  %v7701 = vadd.f32 %v7587, %v7700
  %7702 = vmatmul.bf16.gmra.mxu0 %v7629
  %v7703 = vpop.f32.mrf.mxu0
  %v7704 = vadd.f32 %v7587, %v7703
  %v7705 = vpop.f32.mrf.mxu0
  %v7706 = vadd.f32 %v7587, %v7705
  %7707 = vmatmul.bf16.gmra.mxu0 %v7632
  %v7708 = vpop.f32.mrf.mxu0
  %v7709 = vadd.f32 %v7587, %v7708
  %v7710 = vpop.f32.mrf.mxu0
  %v7711 = vadd.f32 %v7587, %v7710
  %7712 = vmatmul.bf16.gmra.mxu0 %v7635
  %v7713 = vpop.f32.mrf.mxu0
  %v7714 = vadd.f32 %v7587, %v7713
  %v7715 = vpop.f32.mrf.mxu0
  %v7716 = vadd.f32 %v7587, %v7715
  %7717 = vmatmul.bf16.gmra.mxu0 %v7638
  %v7718 = vpop.f32.mrf.mxu0
  %v7719 = vadd.f32 %v7587, %v7718
  %v7720 = vpop.f32.mrf.mxu0
  %v7721 = vadd.f32 %v7587, %v7720
  %7722 = vmatmul.bf16.gmra.mxu0 %v7641
  %v7723 = vpop.f32.mrf.mxu0
  %v7724 = vadd.f32 %v7587, %v7723
  %v7725 = vpop.f32.mrf.mxu0
  %v7726 = vadd.f32 %v7587, %v7725
  %7727 = vmatmul.bf16.gmra.mxu0 %v7644
  %v7728 = vpop.f32.mrf.mxu0
  %v7729 = vadd.f32 %v7587, %v7728
  %v7730 = vpop.f32.mrf.mxu0
  %v7731 = vadd.f32 %v7587, %v7730
  %7732 = vmatmul.bf16.gmra.mxu0 %v7647
  %v7733 = vpop.f32.mrf.mxu0
  %v7734 = vadd.f32 %v7587, %v7733
  %v7735 = vpop.f32.mrf.mxu0
  %v7736 = vadd.f32 %v7587, %v7735
  %7737 = vdwg.mxu0
  %v7738 = vmul.f32 %v7659, 0.5
  %v7739 = vmul.f32 %v7661, 0.5
  %v7740 = vmul.f32 %v7664, 0.5
  %v7741 = vmul.f32 %v7666, 0.5
  %v7742 = vmul.f32 %v7669, 0.5
  %v7743 = vmul.f32 %v7671, 0.5
  %v7744 = vmul.f32 %v7674, 0.5
  %v7745 = vmul.f32 %v7676, 0.5
  %v7746 = vmul.f32 %v7679, 0.5
  %v7747 = vmul.f32 %v7681, 0.5
  %v7748 = vmul.f32 %v7684, 0.5
  %v7749 = vmul.f32 %v7686, 0.5
  %v7750 = vmul.f32 %v7689, 0.5
  %v7751 = vmul.f32 %v7691, 0.5
  %v7752 = vmul.f32 %v7694, 0.5
  %v7753 = vmul.f32 %v7696, 0.5
  %v7754 = vmul.f32 %v7699, 0.5
  %v7755 = vmul.f32 %v7701, 0.5
  %v7756 = vmul.f32 %v7704, 0.5
  %v7757 = vmul.f32 %v7706, 0.5
  %v7758 = vmul.f32 %v7709, 0.5
  %v7759 = vmul.f32 %v7711, 0.5
  %v7760 = vmul.f32 %v7714, 0.5
  %v7761 = vmul.f32 %v7716, 0.5
  %v7762 = vmul.f32 %v7719, 0.5
  %v7763 = vmul.f32 %v7721, 0.5
  %v7764 = vmul.f32 %v7724, 0.5
  %v7765 = vmul.f32 %v7726, 0.5
  %v7766 = vmul.f32 %v7729, 0.5
  %v7767 = vmul.f32 %v7731, 0.5
  %v7768 = vmul.f32 %v7734, 0.5
  %v7769 = vmul.f32 %v7736, 0.5
  %v7770 = vmul.f32 %v7659, 0.70710677
  %v7771 = vmul.f32 %v7661, 0.70710677
  %v7772 = vmul.f32 %v7664, 0.70710677
  %v7773 = vmul.f32 %v7666, 0.70710677
  %v7774 = vmul.f32 %v7669, 0.70710677
  %v7775 = vmul.f32 %v7671, 0.70710677
  %v7776 = vmul.f32 %v7674, 0.70710677
  %v7777 = vmul.f32 %v7676, 0.70710677
  %v7778 = vmul.f32 %v7679, 0.70710677
  %v7779 = vmul.f32 %v7681, 0.70710677
  %v7780 = vmul.f32 %v7684, 0.70710677
  %v7781 = vmul.f32 %v7686, 0.70710677
  %v7782 = vmul.f32 %v7689, 0.70710677
  %v7783 = vmul.f32 %v7691, 0.70710677
  %v7784 = vmul.f32 %v7694, 0.70710677
  %v7785 = vmul.f32 %v7696, 0.70710677
  %v7786 = vmul.f32 %v7699, 0.70710677
  %v7787 = vmul.f32 %v7701, 0.70710677
  %v7788 = vmul.f32 %v7704, 0.70710677
  %v7789 = vmul.f32 %v7706, 0.70710677
  %v7790 = vmul.f32 %v7709, 0.70710677
  %v7791 = vmul.f32 %v7711, 0.70710677
  %v7792 = vmul.f32 %v7714, 0.70710677
  %v7793 = vmul.f32 %v7716, 0.70710677
  %v7794 = vmul.f32 %v7719, 0.70710677
  %v7795 = vmul.f32 %v7721, 0.70710677
  %v7796 = vmul.f32 %v7724, 0.70710677
  %v7797 = vmul.f32 %v7726, 0.70710677
  %v7798 = vmul.f32 %v7729, 0.70710677
  %v7799 = vmul.f32 %v7731, 0.70710677
  %v7800 = vmul.f32 %v7734, 0.70710677
  %v7801 = vmul.f32 %v7736, 0.70710677
  %vm7802 = vcmp.ge.f32.partialorder %v7770, 0.0
  %vm7803 = vcmp.ge.f32.partialorder %v7771, 0.0
  %vm7804 = vcmp.ge.f32.partialorder %v7772, 0.0
  %vm7805 = vcmp.ge.f32.partialorder %v7773, 0.0
  %vm7806 = vcmp.ge.f32.partialorder %v7774, 0.0
  %vm7807 = vcmp.ge.f32.partialorder %v7775, 0.0
  %vm7808 = vcmp.ge.f32.partialorder %v7776, 0.0
  %vm7809 = vcmp.ge.f32.partialorder %v7777, 0.0
  %vm7810 = vcmp.ge.f32.partialorder %v7778, 0.0
  %vm7811 = vcmp.ge.f32.partialorder %v7779, 0.0
  %vm7812 = vcmp.ge.f32.partialorder %v7780, 0.0
  %vm7813 = vcmp.ge.f32.partialorder %v7781, 0.0
  %vm7814 = vcmp.ge.f32.partialorder %v7782, 0.0
  %vm7815 = vcmp.ge.f32.partialorder %v7783, 0.0
  %vm7816 = vcmp.ge.f32.partialorder %v7784, 0.0
  %vm7817 = vcmp.ge.f32.partialorder %v7785, 0.0
  %vm7818 = vcmp.ge.f32.partialorder %v7786, 0.0
  %vm7819 = vcmp.ge.f32.partialorder %v7787, 0.0
  %vm7820 = vcmp.ge.f32.partialorder %v7788, 0.0
  %vm7821 = vcmp.ge.f32.partialorder %v7789, 0.0
  %vm7822 = vcmp.ge.f32.partialorder %v7790, 0.0
  %vm7823 = vcmp.ge.f32.partialorder %v7791, 0.0
  %vm7824 = vcmp.ge.f32.partialorder %v7792, 0.0
  %vm7825 = vcmp.ge.f32.partialorder %v7793, 0.0
  %vm7826 = vcmp.ge.f32.partialorder %v7794, 0.0
  %vm7827 = vcmp.ge.f32.partialorder %v7795, 0.0
  %vm7828 = vcmp.ge.f32.partialorder %v7796, 0.0
  %vm7829 = vcmp.ge.f32.partialorder %v7797, 0.0
  %vm7830 = vcmp.ge.f32.partialorder %v7798, 0.0
  %vm7831 = vcmp.ge.f32.partialorder %v7799, 0.0
  %vm7832 = vcmp.ge.f32.partialorder %v7800, 0.0
  %vm7833 = vcmp.ge.f32.partialorder %v7801, 0.0
  %v7834 = vsel %vm7802, 1.0, -1.0
  %v7835 = vsel %vm7803, 1.0, -1.0
  %v7836 = vsel %vm7804, 1.0, -1.0
  %v7837 = vsel %vm7805, 1.0, -1.0
  %v7838 = vsel %vm7806, 1.0, -1.0
  %v7839 = vsel %vm7807, 1.0, -1.0
  %v7840 = vsel %vm7808, 1.0, -1.0
  %v7841 = vsel %vm7809, 1.0, -1.0
  %v7842 = vsel %vm7810, 1.0, -1.0
  %v7843 = vsel %vm7811, 1.0, -1.0
  %v7844 = vsel %vm7812, 1.0, -1.0
  %v7845 = vsel %vm7813, 1.0, -1.0
  %v7846 = vsel %vm7814, 1.0, -1.0
  %v7847 = vsel %vm7815, 1.0, -1.0
  %v7848 = vsel %vm7816, 1.0, -1.0
  %v7849 = vsel %vm7817, 1.0, -1.0
  %v7850 = vsel %vm7818, 1.0, -1.0
  %v7851 = vsel %vm7819, 1.0, -1.0
  %v7852 = vsel %vm7820, 1.0, -1.0
  %v7853 = vsel %vm7821, 1.0, -1.0
  %v7854 = vsel %vm7822, 1.0, -1.0
  %v7855 = vsel %vm7823, 1.0, -1.0
  %v7856 = vsel %vm7824, 1.0, -1.0
  %v7857 = vsel %vm7825, 1.0, -1.0
  %v7858 = vsel %vm7826, 1.0, -1.0
  %v7859 = vsel %vm7827, 1.0, -1.0
  %v7860 = vsel %vm7828, 1.0, -1.0
  %v7861 = vsel %vm7829, 1.0, -1.0
  %v7862 = vsel %vm7830, 1.0, -1.0
  %v7863 = vsel %vm7831, 1.0, -1.0
  %v7864 = vsel %vm7832, 1.0, -1.0
  %v7865 = vsel %vm7833, 1.0, -1.0
  %v7866 = vand.u32 2147483647, %v7770
  %v7867 = vand.u32 2147483647, %v7771
  %v7868 = vand.u32 2147483647, %v7772
  %v7869 = vand.u32 2147483647, %v7773
  %v7870 = vand.u32 2147483647, %v7774
  %v7871 = vand.u32 2147483647, %v7775
  %v7872 = vand.u32 2147483647, %v7776
  %v7873 = vand.u32 2147483647, %v7777
  %v7874 = vand.u32 2147483647, %v7778
  %v7875 = vand.u32 2147483647, %v7779
  %v7876 = vand.u32 2147483647, %v7780
  %v7877 = vand.u32 2147483647, %v7781
  %v7878 = vand.u32 2147483647, %v7782
  %v7879 = vand.u32 2147483647, %v7783
  %v7880 = vand.u32 2147483647, %v7784
  %v7881 = vand.u32 2147483647, %v7785
  %v7882 = vand.u32 2147483647, %v7786
  %v7883 = vand.u32 2147483647, %v7787
  %v7884 = vand.u32 2147483647, %v7788
  %v7885 = vand.u32 2147483647, %v7789
  %v7886 = vand.u32 2147483647, %v7790
  %v7887 = vand.u32 2147483647, %v7791
  %v7888 = vand.u32 2147483647, %v7792
  %v7889 = vand.u32 2147483647, %v7793
  %v7890 = vand.u32 2147483647, %v7794
  %v7891 = vand.u32 2147483647, %v7795
  %v7892 = vand.u32 2147483647, %v7796
  %v7893 = vand.u32 2147483647, %v7797
  %v7894 = vand.u32 2147483647, %v7798
  %v7895 = vand.u32 2147483647, %v7799
  %v7896 = vand.u32 2147483647, %v7800
  %v7897 = vand.u32 2147483647, %v7801
  %v7898 = vmul.f32 %v7866, 0.3275911
  %v7899 = vmul.f32 %v7867, 0.3275911
  %v7900 = vmul.f32 %v7868, 0.3275911
  %v7901 = vmul.f32 %v7869, 0.3275911
  %v7902 = vmul.f32 %v7870, 0.3275911
  %v7903 = vmul.f32 %v7871, 0.3275911
  %v7904 = vmul.f32 %v7872, 0.3275911
  %v7905 = vmul.f32 %v7873, 0.3275911
  %v7906 = vmul.f32 %v7874, 0.3275911
  %v7907 = vmul.f32 %v7875, 0.3275911
  %v7908 = vmul.f32 %v7876, 0.3275911
  %v7909 = vmul.f32 %v7877, 0.3275911
  %v7910 = vmul.f32 %v7878, 0.3275911
  %v7911 = vmul.f32 %v7879, 0.3275911
  %v7912 = vmul.f32 %v7880, 0.3275911
  %v7913 = vmul.f32 %v7881, 0.3275911
  %v7914 = vmul.f32 %v7882, 0.3275911
  %v7915 = vmul.f32 %v7883, 0.3275911
  %v7916 = vmul.f32 %v7884, 0.3275911
  %v7917 = vmul.f32 %v7885, 0.3275911
  %v7918 = vmul.f32 %v7886, 0.3275911
  %v7919 = vmul.f32 %v7887, 0.3275911
  %v7920 = vmul.f32 %v7888, 0.3275911
  %v7921 = vmul.f32 %v7889, 0.3275911
  %v7922 = vmul.f32 %v7890, 0.3275911
  %v7923 = vmul.f32 %v7891, 0.3275911
  %v7924 = vmul.f32 %v7892, 0.3275911
  %v7925 = vmul.f32 %v7893, 0.3275911
  %v7926 = vmul.f32 %v7894, 0.3275911
  %v7927 = vmul.f32 %v7895, 0.3275911
  %v7928 = vmul.f32 %v7896, 0.3275911
  %v7929 = vmul.f32 %v7897, 0.3275911
  %v7930 = vadd.f32 %v7898, 1.0
  %v7931 = vadd.f32 %v7899, 1.0
  %v7932 = vadd.f32 %v7900, 1.0
  %v7933 = vadd.f32 %v7901, 1.0
  %v7934 = vadd.f32 %v7902, 1.0
  %v7935 = vadd.f32 %v7903, 1.0
  %v7936 = vadd.f32 %v7904, 1.0
  %v7937 = vadd.f32 %v7905, 1.0
  %v7938 = vadd.f32 %v7906, 1.0
  %v7939 = vadd.f32 %v7907, 1.0
  %v7940 = vadd.f32 %v7908, 1.0
  %v7941 = vadd.f32 %v7909, 1.0
  %v7942 = vadd.f32 %v7910, 1.0
  %v7943 = vadd.f32 %v7911, 1.0
  %v7944 = vadd.f32 %v7912, 1.0
  %v7945 = vadd.f32 %v7913, 1.0
  %v7946 = vadd.f32 %v7914, 1.0
  %v7947 = vadd.f32 %v7915, 1.0
  %v7948 = vadd.f32 %v7916, 1.0
  %v7949 = vadd.f32 %v7917, 1.0
  %v7950 = vadd.f32 %v7918, 1.0
  %v7951 = vadd.f32 %v7919, 1.0
  %v7952 = vadd.f32 %v7920, 1.0
  %v7953 = vadd.f32 %v7921, 1.0
  %v7954 = vadd.f32 %v7922, 1.0
  %v7955 = vadd.f32 %v7923, 1.0
  %v7956 = vadd.f32 %v7924, 1.0
  %v7957 = vadd.f32 %v7925, 1.0
  %v7958 = vadd.f32 %v7926, 1.0
  %v7959 = vadd.f32 %v7927, 1.0
  %v7960 = vadd.f32 %v7928, 1.0
  %v7961 = vadd.f32 %v7929, 1.0
  %v7962 = vrcp.pop %v7930
  %v7963 = vmul.f32 %v7930, %v7962
  %v7964 = vsub.f32 1.0, %v7963
  %v7965 = vmul.f32 %v7962, %v7964
  %v7966 = vadd.f32 %v7962, %v7965
  %vm7967 = vweird.f32 %v7930
  %vm7968 = vweird.f32 %v7962
  %vm7969 = vmor %vm7967, %vm7968
  %v7970 = vsel %vm7969, %v7962, %v7966
  %v7971 = vand.u32 2147483647, %v7930
  %vm7972 = vcmp.eq.f32.partialorder %v7971, 8.507059e+37
  %v7973 = vand.u32 %v7930, 2147483648
  %v7974 = vor.u32 1.1754944e-38, %v7973
  %v7975 = vsel %vm7972, %v7974, %v7970
  %v7976 = vmul.f32 1.0, %v7975
  %v7977 = vrcp.pop %v7931
  %v7978 = vmul.f32 %v7931, %v7977
  %v7979 = vsub.f32 1.0, %v7978
  %v7980 = vmul.f32 %v7977, %v7979
  %v7981 = vadd.f32 %v7977, %v7980
  %vm7982 = vweird.f32 %v7931
  %vm7983 = vweird.f32 %v7977
  %vm7984 = vmor %vm7982, %vm7983
  %v7985 = vsel %vm7984, %v7977, %v7981
  %v7986 = vand.u32 2147483647, %v7931
  %vm7987 = vcmp.eq.f32.partialorder %v7986, 8.507059e+37
  %v7988 = vand.u32 %v7931, 2147483648
  %v7989 = vor.u32 1.1754944e-38, %v7988
  %v7990 = vsel %vm7987, %v7989, %v7985
  %v7991 = vmul.f32 1.0, %v7990
  %v7992 = vrcp.pop %v7932
  %v7993 = vmul.f32 %v7932, %v7992
  %v7994 = vsub.f32 1.0, %v7993
  %v7995 = vmul.f32 %v7992, %v7994
  %v7996 = vadd.f32 %v7992, %v7995
  %vm7997 = vweird.f32 %v7932
  %vm7998 = vweird.f32 %v7992
  %vm7999 = vmor %vm7997, %vm7998
  %v8000 = vsel %vm7999, %v7992, %v7996
  %v8001 = vand.u32 2147483647, %v7932
  %vm8002 = vcmp.eq.f32.partialorder %v8001, 8.507059e+37
  %v8003 = vand.u32 %v7932, 2147483648
  %v8004 = vor.u32 1.1754944e-38, %v8003
  %v8005 = vsel %vm8002, %v8004, %v8000
  %v8006 = vmul.f32 1.0, %v8005
  %v8007 = vrcp.pop %v7933
  %v8008 = vmul.f32 %v7933, %v8007
  %v8009 = vsub.f32 1.0, %v8008
  %v8010 = vmul.f32 %v8007, %v8009
  %v8011 = vadd.f32 %v8007, %v8010
  %vm8012 = vweird.f32 %v7933
  %vm8013 = vweird.f32 %v8007
  %vm8014 = vmor %vm8012, %vm8013
  %v8015 = vsel %vm8014, %v8007, %v8011
  %v8016 = vand.u32 2147483647, %v7933
  %vm8017 = vcmp.eq.f32.partialorder %v8016, 8.507059e+37
  %v8018 = vand.u32 %v7933, 2147483648
  %v8019 = vor.u32 1.1754944e-38, %v8018
  %v8020 = vsel %vm8017, %v8019, %v8015
  %v8021 = vmul.f32 1.0, %v8020
  %v8022 = vrcp.pop %v7934
  %v8023 = vmul.f32 %v7934, %v8022
  %v8024 = vsub.f32 1.0, %v8023
  %v8025 = vmul.f32 %v8022, %v8024
  %v8026 = vadd.f32 %v8022, %v8025
  %vm8027 = vweird.f32 %v7934
  %vm8028 = vweird.f32 %v8022
  %vm8029 = vmor %vm8027, %vm8028
  %v8030 = vsel %vm8029, %v8022, %v8026
  %v8031 = vand.u32 2147483647, %v7934
  %vm8032 = vcmp.eq.f32.partialorder %v8031, 8.507059e+37
  %v8033 = vand.u32 %v7934, 2147483648
  %v8034 = vor.u32 1.1754944e-38, %v8033
  %v8035 = vsel %vm8032, %v8034, %v8030
  %v8036 = vmul.f32 1.0, %v8035
  %v8037 = vrcp.pop %v7935
  %v8038 = vmul.f32 %v7935, %v8037
  %v8039 = vsub.f32 1.0, %v8038
  %v8040 = vmul.f32 %v8037, %v8039
  %v8041 = vadd.f32 %v8037, %v8040
  %vm8042 = vweird.f32 %v7935
  %vm8043 = vweird.f32 %v8037
  %vm8044 = vmor %vm8042, %vm8043
  %v8045 = vsel %vm8044, %v8037, %v8041
  %v8046 = vand.u32 2147483647, %v7935
  %vm8047 = vcmp.eq.f32.partialorder %v8046, 8.507059e+37
  %v8048 = vand.u32 %v7935, 2147483648
  %v8049 = vor.u32 1.1754944e-38, %v8048
  %v8050 = vsel %vm8047, %v8049, %v8045
  %v8051 = vmul.f32 1.0, %v8050
  %v8052 = vrcp.pop %v7936
  %v8053 = vmul.f32 %v7936, %v8052
  %v8054 = vsub.f32 1.0, %v8053
  %v8055 = vmul.f32 %v8052, %v8054
  %v8056 = vadd.f32 %v8052, %v8055
  %vm8057 = vweird.f32 %v7936
  %vm8058 = vweird.f32 %v8052
  %vm8059 = vmor %vm8057, %vm8058
  %v8060 = vsel %vm8059, %v8052, %v8056
  %v8061 = vand.u32 2147483647, %v7936
  %vm8062 = vcmp.eq.f32.partialorder %v8061, 8.507059e+37
  %v8063 = vand.u32 %v7936, 2147483648
  %v8064 = vor.u32 1.1754944e-38, %v8063
  %v8065 = vsel %vm8062, %v8064, %v8060
  %v8066 = vmul.f32 1.0, %v8065
  %v8067 = vrcp.pop %v7937
  %v8068 = vmul.f32 %v7937, %v8067
  %v8069 = vsub.f32 1.0, %v8068
  %v8070 = vmul.f32 %v8067, %v8069
  %v8071 = vadd.f32 %v8067, %v8070
  %vm8072 = vweird.f32 %v7937
  %vm8073 = vweird.f32 %v8067
  %vm8074 = vmor %vm8072, %vm8073
  %v8075 = vsel %vm8074, %v8067, %v8071
  %v8076 = vand.u32 2147483647, %v7937
  %vm8077 = vcmp.eq.f32.partialorder %v8076, 8.507059e+37
  %v8078 = vand.u32 %v7937, 2147483648
  %v8079 = vor.u32 1.1754944e-38, %v8078
  %v8080 = vsel %vm8077, %v8079, %v8075
  %v8081 = vmul.f32 1.0, %v8080
  %v8082 = vrcp.pop %v7938
  %v8083 = vmul.f32 %v7938, %v8082
  %v8084 = vsub.f32 1.0, %v8083
  %v8085 = vmul.f32 %v8082, %v8084
  %v8086 = vadd.f32 %v8082, %v8085
  %vm8087 = vweird.f32 %v7938
  %vm8088 = vweird.f32 %v8082
  %vm8089 = vmor %vm8087, %vm8088
  %v8090 = vsel %vm8089, %v8082, %v8086
  %v8091 = vand.u32 2147483647, %v7938
  %vm8092 = vcmp.eq.f32.partialorder %v8091, 8.507059e+37
  %v8093 = vand.u32 %v7938, 2147483648
  %v8094 = vor.u32 1.1754944e-38, %v8093
  %v8095 = vsel %vm8092, %v8094, %v8090
  %v8096 = vmul.f32 1.0, %v8095
  %v8097 = vrcp.pop %v7939
  %v8098 = vmul.f32 %v7939, %v8097
  %v8099 = vsub.f32 1.0, %v8098
  %v8100 = vmul.f32 %v8097, %v8099
  %v8101 = vadd.f32 %v8097, %v8100
  %vm8102 = vweird.f32 %v7939
  %vm8103 = vweird.f32 %v8097
  %vm8104 = vmor %vm8102, %vm8103
  %v8105 = vsel %vm8104, %v8097, %v8101
  %v8106 = vand.u32 2147483647, %v7939
  %vm8107 = vcmp.eq.f32.partialorder %v8106, 8.507059e+37
  %v8108 = vand.u32 %v7939, 2147483648
  %v8109 = vor.u32 1.1754944e-38, %v8108
  %v8110 = vsel %vm8107, %v8109, %v8105
  %v8111 = vmul.f32 1.0, %v8110
  %v8112 = vrcp.pop %v7940
  %v8113 = vmul.f32 %v7940, %v8112
  %v8114 = vsub.f32 1.0, %v8113
  %v8115 = vmul.f32 %v8112, %v8114
  %v8116 = vadd.f32 %v8112, %v8115
  %vm8117 = vweird.f32 %v7940
  %vm8118 = vweird.f32 %v8112
  %vm8119 = vmor %vm8117, %vm8118
  %v8120 = vsel %vm8119, %v8112, %v8116
  %v8121 = vand.u32 2147483647, %v7940
  %vm8122 = vcmp.eq.f32.partialorder %v8121, 8.507059e+37
  %v8123 = vand.u32 %v7940, 2147483648
  %v8124 = vor.u32 1.1754944e-38, %v8123
  %v8125 = vsel %vm8122, %v8124, %v8120
  %v8126 = vmul.f32 1.0, %v8125
  %v8127 = vrcp.pop %v7941
  %v8128 = vmul.f32 %v7941, %v8127
  %v8129 = vsub.f32 1.0, %v8128
  %v8130 = vmul.f32 %v8127, %v8129
  %v8131 = vadd.f32 %v8127, %v8130
  %vm8132 = vweird.f32 %v7941
  %vm8133 = vweird.f32 %v8127
  %vm8134 = vmor %vm8132, %vm8133
  %v8135 = vsel %vm8134, %v8127, %v8131
  %v8136 = vand.u32 2147483647, %v7941
  %vm8137 = vcmp.eq.f32.partialorder %v8136, 8.507059e+37
  %v8138 = vand.u32 %v7941, 2147483648
  %v8139 = vor.u32 1.1754944e-38, %v8138
  %v8140 = vsel %vm8137, %v8139, %v8135
  %v8141 = vmul.f32 1.0, %v8140
  %v8142 = vrcp.pop %v7942
  %v8143 = vmul.f32 %v7942, %v8142
  %v8144 = vsub.f32 1.0, %v8143
  %v8145 = vmul.f32 %v8142, %v8144
  %v8146 = vadd.f32 %v8142, %v8145
  %vm8147 = vweird.f32 %v7942
  %vm8148 = vweird.f32 %v8142
  %vm8149 = vmor %vm8147, %vm8148
  %v8150 = vsel %vm8149, %v8142, %v8146
  %v8151 = vand.u32 2147483647, %v7942
  %vm8152 = vcmp.eq.f32.partialorder %v8151, 8.507059e+37
  %v8153 = vand.u32 %v7942, 2147483648
  %v8154 = vor.u32 1.1754944e-38, %v8153
  %v8155 = vsel %vm8152, %v8154, %v8150
  %v8156 = vmul.f32 1.0, %v8155
  %v8157 = vrcp.pop %v7943
  %v8158 = vmul.f32 %v7943, %v8157
  %v8159 = vsub.f32 1.0, %v8158
  %v8160 = vmul.f32 %v8157, %v8159
  %v8161 = vadd.f32 %v8157, %v8160
  %vm8162 = vweird.f32 %v7943
  %vm8163 = vweird.f32 %v8157
  %vm8164 = vmor %vm8162, %vm8163
  %v8165 = vsel %vm8164, %v8157, %v8161
  %v8166 = vand.u32 2147483647, %v7943
  %vm8167 = vcmp.eq.f32.partialorder %v8166, 8.507059e+37
  %v8168 = vand.u32 %v7943, 2147483648
  %v8169 = vor.u32 1.1754944e-38, %v8168
  %v8170 = vsel %vm8167, %v8169, %v8165
  %v8171 = vmul.f32 1.0, %v8170
  %v8172 = vrcp.pop %v7944
  %v8173 = vmul.f32 %v7944, %v8172
  %v8174 = vsub.f32 1.0, %v8173
  %v8175 = vmul.f32 %v8172, %v8174
  %v8176 = vadd.f32 %v8172, %v8175
  %vm8177 = vweird.f32 %v7944
  %vm8178 = vweird.f32 %v8172
  %vm8179 = vmor %vm8177, %vm8178
  %v8180 = vsel %vm8179, %v8172, %v8176
  %v8181 = vand.u32 2147483647, %v7944
  %vm8182 = vcmp.eq.f32.partialorder %v8181, 8.507059e+37
  %v8183 = vand.u32 %v7944, 2147483648
  %v8184 = vor.u32 1.1754944e-38, %v8183
  %v8185 = vsel %vm8182, %v8184, %v8180
  %v8186 = vmul.f32 1.0, %v8185
  %v8187 = vrcp.pop %v7945
  %v8188 = vmul.f32 %v7945, %v8187
  %v8189 = vsub.f32 1.0, %v8188
  %v8190 = vmul.f32 %v8187, %v8189
  %v8191 = vadd.f32 %v8187, %v8190
  %vm8192 = vweird.f32 %v7945
  %vm8193 = vweird.f32 %v8187
  %vm8194 = vmor %vm8192, %vm8193
  %v8195 = vsel %vm8194, %v8187, %v8191
  %v8196 = vand.u32 2147483647, %v7945
  %vm8197 = vcmp.eq.f32.partialorder %v8196, 8.507059e+37
  %v8198 = vand.u32 %v7945, 2147483648
  %v8199 = vor.u32 1.1754944e-38, %v8198
  %v8200 = vsel %vm8197, %v8199, %v8195
  %v8201 = vmul.f32 1.0, %v8200
  %v8202 = vrcp.pop %v7946
  %v8203 = vmul.f32 %v7946, %v8202
  %v8204 = vsub.f32 1.0, %v8203
  %v8205 = vmul.f32 %v8202, %v8204
  %v8206 = vadd.f32 %v8202, %v8205
  %vm8207 = vweird.f32 %v7946
  %vm8208 = vweird.f32 %v8202
  %vm8209 = vmor %vm8207, %vm8208
  %v8210 = vsel %vm8209, %v8202, %v8206
  %v8211 = vand.u32 2147483647, %v7946
  %vm8212 = vcmp.eq.f32.partialorder %v8211, 8.507059e+37
  %v8213 = vand.u32 %v7946, 2147483648
  %v8214 = vor.u32 1.1754944e-38, %v8213
  %v8215 = vsel %vm8212, %v8214, %v8210
  %v8216 = vmul.f32 1.0, %v8215
  %v8217 = vrcp.pop %v7947
  %v8218 = vmul.f32 %v7947, %v8217
  %v8219 = vsub.f32 1.0, %v8218
  %v8220 = vmul.f32 %v8217, %v8219
  %v8221 = vadd.f32 %v8217, %v8220
  %vm8222 = vweird.f32 %v7947
  %vm8223 = vweird.f32 %v8217
  %vm8224 = vmor %vm8222, %vm8223
  %v8225 = vsel %vm8224, %v8217, %v8221
  %v8226 = vand.u32 2147483647, %v7947
  %vm8227 = vcmp.eq.f32.partialorder %v8226, 8.507059e+37
  %v8228 = vand.u32 %v7947, 2147483648
  %v8229 = vor.u32 1.1754944e-38, %v8228
  %v8230 = vsel %vm8227, %v8229, %v8225
  %v8231 = vmul.f32 1.0, %v8230
  %v8232 = vrcp.pop %v7948
  %v8233 = vmul.f32 %v7948, %v8232
  %v8234 = vsub.f32 1.0, %v8233
  %v8235 = vmul.f32 %v8232, %v8234
  %v8236 = vadd.f32 %v8232, %v8235
  %vm8237 = vweird.f32 %v7948
  %vm8238 = vweird.f32 %v8232
  %vm8239 = vmor %vm8237, %vm8238
  %v8240 = vsel %vm8239, %v8232, %v8236
  %v8241 = vand.u32 2147483647, %v7948
  %vm8242 = vcmp.eq.f32.partialorder %v8241, 8.507059e+37
  %v8243 = vand.u32 %v7948, 2147483648
  %v8244 = vor.u32 1.1754944e-38, %v8243
  %v8245 = vsel %vm8242, %v8244, %v8240
  %v8246 = vmul.f32 1.0, %v8245
  %v8247 = vrcp.pop %v7949
  %v8248 = vmul.f32 %v7949, %v8247
  %v8249 = vsub.f32 1.0, %v8248
  %v8250 = vmul.f32 %v8247, %v8249
  %v8251 = vadd.f32 %v8247, %v8250
  %vm8252 = vweird.f32 %v7949
  %vm8253 = vweird.f32 %v8247
  %vm8254 = vmor %vm8252, %vm8253
  %v8255 = vsel %vm8254, %v8247, %v8251
  %v8256 = vand.u32 2147483647, %v7949
  %vm8257 = vcmp.eq.f32.partialorder %v8256, 8.507059e+37
  %v8258 = vand.u32 %v7949, 2147483648
  %v8259 = vor.u32 1.1754944e-38, %v8258
  %v8260 = vsel %vm8257, %v8259, %v8255
  %v8261 = vmul.f32 1.0, %v8260
  %v8262 = vrcp.pop %v7950
  %v8263 = vmul.f32 %v7950, %v8262
  %v8264 = vsub.f32 1.0, %v8263
  %v8265 = vmul.f32 %v8262, %v8264
  %v8266 = vadd.f32 %v8262, %v8265
  %vm8267 = vweird.f32 %v7950
  %vm8268 = vweird.f32 %v8262
  %vm8269 = vmor %vm8267, %vm8268
  %v8270 = vsel %vm8269, %v8262, %v8266
  %v8271 = vand.u32 2147483647, %v7950
  %vm8272 = vcmp.eq.f32.partialorder %v8271, 8.507059e+37
  %v8273 = vand.u32 %v7950, 2147483648
  %v8274 = vor.u32 1.1754944e-38, %v8273
  %v8275 = vsel %vm8272, %v8274, %v8270
  %v8276 = vmul.f32 1.0, %v8275
  %v8277 = vrcp.pop %v7951
  %v8278 = vmul.f32 %v7951, %v8277
  %v8279 = vsub.f32 1.0, %v8278
  %v8280 = vmul.f32 %v8277, %v8279
  %v8281 = vadd.f32 %v8277, %v8280
  %vm8282 = vweird.f32 %v7951
  %vm8283 = vweird.f32 %v8277
  %vm8284 = vmor %vm8282, %vm8283
  %v8285 = vsel %vm8284, %v8277, %v8281
  %v8286 = vand.u32 2147483647, %v7951
  %vm8287 = vcmp.eq.f32.partialorder %v8286, 8.507059e+37
  %v8288 = vand.u32 %v7951, 2147483648
  %v8289 = vor.u32 1.1754944e-38, %v8288
  %v8290 = vsel %vm8287, %v8289, %v8285
  %v8291 = vmul.f32 1.0, %v8290
  %v8292 = vrcp.pop %v7952
  %v8293 = vmul.f32 %v7952, %v8292
  %v8294 = vsub.f32 1.0, %v8293
  %v8295 = vmul.f32 %v8292, %v8294
  %v8296 = vadd.f32 %v8292, %v8295
  %vm8297 = vweird.f32 %v7952
  %vm8298 = vweird.f32 %v8292
  %vm8299 = vmor %vm8297, %vm8298
  %v8300 = vsel %vm8299, %v8292, %v8296
  %v8301 = vand.u32 2147483647, %v7952
  %vm8302 = vcmp.eq.f32.partialorder %v8301, 8.507059e+37
  %v8303 = vand.u32 %v7952, 2147483648
  %v8304 = vor.u32 1.1754944e-38, %v8303
  %v8305 = vsel %vm8302, %v8304, %v8300
  %v8306 = vmul.f32 1.0, %v8305
  %v8307 = vrcp.pop %v7953
  %v8308 = vmul.f32 %v7953, %v8307
  %v8309 = vsub.f32 1.0, %v8308
  %v8310 = vmul.f32 %v8307, %v8309
  %v8311 = vadd.f32 %v8307, %v8310
  %vm8312 = vweird.f32 %v7953
  %vm8313 = vweird.f32 %v8307
  %vm8314 = vmor %vm8312, %vm8313
  %v8315 = vsel %vm8314, %v8307, %v8311
  %v8316 = vand.u32 2147483647, %v7953
  %vm8317 = vcmp.eq.f32.partialorder %v8316, 8.507059e+37
  %v8318 = vand.u32 %v7953, 2147483648
  %v8319 = vor.u32 1.1754944e-38, %v8318
  %v8320 = vsel %vm8317, %v8319, %v8315
  %v8321 = vmul.f32 1.0, %v8320
  %v8322 = vrcp.pop %v7954
  %v8323 = vmul.f32 %v7954, %v8322
  %v8324 = vsub.f32 1.0, %v8323
  %v8325 = vmul.f32 %v8322, %v8324
  %v8326 = vadd.f32 %v8322, %v8325
  %vm8327 = vweird.f32 %v7954
  %vm8328 = vweird.f32 %v8322
  %vm8329 = vmor %vm8327, %vm8328
  %v8330 = vsel %vm8329, %v8322, %v8326
  %v8331 = vand.u32 2147483647, %v7954
  %vm8332 = vcmp.eq.f32.partialorder %v8331, 8.507059e+37
  %v8333 = vand.u32 %v7954, 2147483648
  %v8334 = vor.u32 1.1754944e-38, %v8333
  %v8335 = vsel %vm8332, %v8334, %v8330
  %v8336 = vmul.f32 1.0, %v8335
  %v8337 = vrcp.pop %v7955
  %v8338 = vmul.f32 %v7955, %v8337
  %v8339 = vsub.f32 1.0, %v8338
  %v8340 = vmul.f32 %v8337, %v8339
  %v8341 = vadd.f32 %v8337, %v8340
  %vm8342 = vweird.f32 %v7955
  %vm8343 = vweird.f32 %v8337
  %vm8344 = vmor %vm8342, %vm8343
  %v8345 = vsel %vm8344, %v8337, %v8341
  %v8346 = vand.u32 2147483647, %v7955
  %vm8347 = vcmp.eq.f32.partialorder %v8346, 8.507059e+37
  %v8348 = vand.u32 %v7955, 2147483648
  %v8349 = vor.u32 1.1754944e-38, %v8348
  %v8350 = vsel %vm8347, %v8349, %v8345
  %v8351 = vmul.f32 1.0, %v8350
  %v8352 = vrcp.pop %v7956
  %v8353 = vmul.f32 %v7956, %v8352
  %v8354 = vsub.f32 1.0, %v8353
  %v8355 = vmul.f32 %v8352, %v8354
  %v8356 = vadd.f32 %v8352, %v8355
  %vm8357 = vweird.f32 %v7956
  %vm8358 = vweird.f32 %v8352
  %vm8359 = vmor %vm8357, %vm8358
  %v8360 = vsel %vm8359, %v8352, %v8356
  %v8361 = vand.u32 2147483647, %v7956
  %vm8362 = vcmp.eq.f32.partialorder %v8361, 8.507059e+37
  %v8363 = vand.u32 %v7956, 2147483648
  %v8364 = vor.u32 1.1754944e-38, %v8363
  %v8365 = vsel %vm8362, %v8364, %v8360
  %v8366 = vmul.f32 1.0, %v8365
  %v8367 = vrcp.pop %v7957
  %v8368 = vmul.f32 %v7957, %v8367
  %v8369 = vsub.f32 1.0, %v8368
  %v8370 = vmul.f32 %v8367, %v8369
  %v8371 = vadd.f32 %v8367, %v8370
  %vm8372 = vweird.f32 %v7957
  %vm8373 = vweird.f32 %v8367
  %vm8374 = vmor %vm8372, %vm8373
  %v8375 = vsel %vm8374, %v8367, %v8371
  %v8376 = vand.u32 2147483647, %v7957
  %vm8377 = vcmp.eq.f32.partialorder %v8376, 8.507059e+37
  %v8378 = vand.u32 %v7957, 2147483648
  %v8379 = vor.u32 1.1754944e-38, %v8378
  %v8380 = vsel %vm8377, %v8379, %v8375
  %v8381 = vmul.f32 1.0, %v8380
  %v8382 = vrcp.pop %v7958
  %v8383 = vmul.f32 %v7958, %v8382
  %v8384 = vsub.f32 1.0, %v8383
  %v8385 = vmul.f32 %v8382, %v8384
  %v8386 = vadd.f32 %v8382, %v8385
  %vm8387 = vweird.f32 %v7958
  %vm8388 = vweird.f32 %v8382
  %vm8389 = vmor %vm8387, %vm8388
  %v8390 = vsel %vm8389, %v8382, %v8386
  %v8391 = vand.u32 2147483647, %v7958
  %vm8392 = vcmp.eq.f32.partialorder %v8391, 8.507059e+37
  %v8393 = vand.u32 %v7958, 2147483648
  %v8394 = vor.u32 1.1754944e-38, %v8393
  %v8395 = vsel %vm8392, %v8394, %v8390
  %v8396 = vmul.f32 1.0, %v8395
  %v8397 = vrcp.pop %v7959
  %v8398 = vmul.f32 %v7959, %v8397
  %v8399 = vsub.f32 1.0, %v8398
  %v8400 = vmul.f32 %v8397, %v8399
  %v8401 = vadd.f32 %v8397, %v8400
  %vm8402 = vweird.f32 %v7959
  %vm8403 = vweird.f32 %v8397
  %vm8404 = vmor %vm8402, %vm8403
  %v8405 = vsel %vm8404, %v8397, %v8401
  %v8406 = vand.u32 2147483647, %v7959
  %vm8407 = vcmp.eq.f32.partialorder %v8406, 8.507059e+37
  %v8408 = vand.u32 %v7959, 2147483648
  %v8409 = vor.u32 1.1754944e-38, %v8408
  %v8410 = vsel %vm8407, %v8409, %v8405
  %v8411 = vmul.f32 1.0, %v8410
  %v8412 = vrcp.pop %v7960
  %v8413 = vmul.f32 %v7960, %v8412
  %v8414 = vsub.f32 1.0, %v8413
  %v8415 = vmul.f32 %v8412, %v8414
  %v8416 = vadd.f32 %v8412, %v8415
  %vm8417 = vweird.f32 %v7960
  %vm8418 = vweird.f32 %v8412
  %vm8419 = vmor %vm8417, %vm8418
  %v8420 = vsel %vm8419, %v8412, %v8416
  %v8421 = vand.u32 2147483647, %v7960
  %vm8422 = vcmp.eq.f32.partialorder %v8421, 8.507059e+37
  %v8423 = vand.u32 %v7960, 2147483648
  %v8424 = vor.u32 1.1754944e-38, %v8423
  %v8425 = vsel %vm8422, %v8424, %v8420
  %v8426 = vmul.f32 1.0, %v8425
  %v8427 = vrcp.pop %v7961
  %v8428 = vmul.f32 %v7961, %v8427
  %v8429 = vsub.f32 1.0, %v8428
  %v8430 = vmul.f32 %v8427, %v8429
  %v8431 = vadd.f32 %v8427, %v8430
  %vm8432 = vweird.f32 %v7961
  %vm8433 = vweird.f32 %v8427
  %vm8434 = vmor %vm8432, %vm8433
  %v8435 = vsel %vm8434, %v8427, %v8431
  %v8436 = vand.u32 2147483647, %v7961
  %vm8437 = vcmp.eq.f32.partialorder %v8436, 8.507059e+37
  %v8438 = vand.u32 %v7961, 2147483648
  %v8439 = vor.u32 1.1754944e-38, %v8438
  %v8440 = vsel %vm8437, %v8439, %v8435
  %v8441 = vmul.f32 1.0, %v8440
  %v8442 = vmul.f32 %v7976, 1.0614054
  %v8443 = vmul.f32 %v7991, 1.0614054
  %v8444 = vmul.f32 %v8006, 1.0614054
  %v8445 = vmul.f32 %v8021, 1.0614054
  %v8446 = vmul.f32 %v8036, 1.0614054
  %v8447 = vmul.f32 %v8051, 1.0614054
  %v8448 = vmul.f32 %v8066, 1.0614054
  %v8449 = vmul.f32 %v8081, 1.0614054
  %v8450 = vmul.f32 %v8096, 1.0614054
  %v8451 = vmul.f32 %v8111, 1.0614054
  %v8452 = vmul.f32 %v8126, 1.0614054
  %v8453 = vmul.f32 %v8141, 1.0614054
  %v8454 = vmul.f32 %v8156, 1.0614054
  %v8455 = vmul.f32 %v8171, 1.0614054
  %v8456 = vmul.f32 %v8186, 1.0614054
  %v8457 = vmul.f32 %v8201, 1.0614054
  %v8458 = vmul.f32 %v8216, 1.0614054
  %v8459 = vmul.f32 %v8231, 1.0614054
  %v8460 = vmul.f32 %v8246, 1.0614054
  %v8461 = vmul.f32 %v8261, 1.0614054
  %v8462 = vmul.f32 %v8276, 1.0614054
  %v8463 = vmul.f32 %v8291, 1.0614054
  %v8464 = vmul.f32 %v8306, 1.0614054
  %v8465 = vmul.f32 %v8321, 1.0614054
  %v8466 = vmul.f32 %v8336, 1.0614054
  %v8467 = vmul.f32 %v8351, 1.0614054
  %v8468 = vmul.f32 %v8366, 1.0614054
  %v8469 = vmul.f32 %v8381, 1.0614054
  %v8470 = vmul.f32 %v8396, 1.0614054
  %v8471 = vmul.f32 %v8411, 1.0614054
  %v8472 = vmul.f32 %v8426, 1.0614054
  %v8473 = vmul.f32 %v8441, 1.0614054
  %v8474 = vadd.f32 %v8442, -1.4531521
  %v8475 = vadd.f32 %v8443, -1.4531521
  %v8476 = vadd.f32 %v8444, -1.4531521
  %v8477 = vadd.f32 %v8445, -1.4531521
  %v8478 = vadd.f32 %v8446, -1.4531521
  %v8479 = vadd.f32 %v8447, -1.4531521
  %v8480 = vadd.f32 %v8448, -1.4531521
  %v8481 = vadd.f32 %v8449, -1.4531521
  %v8482 = vadd.f32 %v8450, -1.4531521
  %v8483 = vadd.f32 %v8451, -1.4531521
  %v8484 = vadd.f32 %v8452, -1.4531521
  %v8485 = vadd.f32 %v8453, -1.4531521
  %v8486 = vadd.f32 %v8454, -1.4531521
  %v8487 = vadd.f32 %v8455, -1.4531521
  %v8488 = vadd.f32 %v8456, -1.4531521
  %v8489 = vadd.f32 %v8457, -1.4531521
  %v8490 = vadd.f32 %v8458, -1.4531521
  %v8491 = vadd.f32 %v8459, -1.4531521
  %v8492 = vadd.f32 %v8460, -1.4531521
  %v8493 = vadd.f32 %v8461, -1.4531521
  %v8494 = vadd.f32 %v8462, -1.4531521
  %v8495 = vadd.f32 %v8463, -1.4531521
  %v8496 = vadd.f32 %v8464, -1.4531521
  %v8497 = vadd.f32 %v8465, -1.4531521
  %v8498 = vadd.f32 %v8466, -1.4531521
  %v8499 = vadd.f32 %v8467, -1.4531521
  %v8500 = vadd.f32 %v8468, -1.4531521
  %v8501 = vadd.f32 %v8469, -1.4531521
  %v8502 = vadd.f32 %v8470, -1.4531521
  %v8503 = vadd.f32 %v8471, -1.4531521
  %v8504 = vadd.f32 %v8472, -1.4531521
  %v8505 = vadd.f32 %v8473, -1.4531521
  %v8506 = vmul.f32 %v8474, %v7976
  %v8507 = vmul.f32 %v8475, %v7991
  %v8508 = vmul.f32 %v8476, %v8006
  %v8509 = vmul.f32 %v8477, %v8021
  %v8510 = vmul.f32 %v8478, %v8036
  %v8511 = vmul.f32 %v8479, %v8051
  %v8512 = vmul.f32 %v8480, %v8066
  %v8513 = vmul.f32 %v8481, %v8081
  %v8514 = vmul.f32 %v8482, %v8096
  %v8515 = vmul.f32 %v8483, %v8111
  %v8516 = vmul.f32 %v8484, %v8126
  %v8517 = vmul.f32 %v8485, %v8141
  %v8518 = vmul.f32 %v8486, %v8156
  %v8519 = vmul.f32 %v8487, %v8171
  %v8520 = vmul.f32 %v8488, %v8186
  %v8521 = vmul.f32 %v8489, %v8201
  %v8522 = vmul.f32 %v8490, %v8216
  %v8523 = vmul.f32 %v8491, %v8231
  %v8524 = vmul.f32 %v8492, %v8246
  %v8525 = vmul.f32 %v8493, %v8261
  %v8526 = vmul.f32 %v8494, %v8276
  %v8527 = vmul.f32 %v8495, %v8291
  %v8528 = vmul.f32 %v8496, %v8306
  %v8529 = vmul.f32 %v8497, %v8321
  %v8530 = vmul.f32 %v8498, %v8336
  %v8531 = vmul.f32 %v8499, %v8351
  %v8532 = vmul.f32 %v8500, %v8366
  %v8533 = vmul.f32 %v8501, %v8381
  %v8534 = vmul.f32 %v8502, %v8396
  %v8535 = vmul.f32 %v8503, %v8411
  %v8536 = vmul.f32 %v8504, %v8426
  %v8537 = vmul.f32 %v8505, %v8441
  %v8538 = vadd.f32 %v8506, 1.4214138
  %v8539 = vadd.f32 %v8507, 1.4214138
  %v8540 = vadd.f32 %v8508, 1.4214138
  %v8541 = vadd.f32 %v8509, 1.4214138
  %v8542 = vadd.f32 %v8510, 1.4214138
  %v8543 = vadd.f32 %v8511, 1.4214138
  %v8544 = vadd.f32 %v8512, 1.4214138
  %v8545 = vadd.f32 %v8513, 1.4214138
  %v8546 = vadd.f32 %v8514, 1.4214138
  %v8547 = vadd.f32 %v8515, 1.4214138
  %v8548 = vadd.f32 %v8516, 1.4214138
  %v8549 = vadd.f32 %v8517, 1.4214138
  %v8550 = vadd.f32 %v8518, 1.4214138
  %v8551 = vadd.f32 %v8519, 1.4214138
  %v8552 = vadd.f32 %v8520, 1.4214138
  %v8553 = vadd.f32 %v8521, 1.4214138
  %v8554 = vadd.f32 %v8522, 1.4214138
  %v8555 = vadd.f32 %v8523, 1.4214138
  %v8556 = vadd.f32 %v8524, 1.4214138
  %v8557 = vadd.f32 %v8525, 1.4214138
  %v8558 = vadd.f32 %v8526, 1.4214138
  %v8559 = vadd.f32 %v8527, 1.4214138
  %v8560 = vadd.f32 %v8528, 1.4214138
  %v8561 = vadd.f32 %v8529, 1.4214138
  %v8562 = vadd.f32 %v8530, 1.4214138
  %v8563 = vadd.f32 %v8531, 1.4214138
  %v8564 = vadd.f32 %v8532, 1.4214138
  %v8565 = vadd.f32 %v8533, 1.4214138
  %v8566 = vadd.f32 %v8534, 1.4214138
  %v8567 = vadd.f32 %v8535, 1.4214138
  %v8568 = vadd.f32 %v8536, 1.4214138
  %v8569 = vadd.f32 %v8537, 1.4214138
  %v8570 = vmul.f32 %v8538, %v7976
  %v8571 = vmul.f32 %v8539, %v7991
  %v8572 = vmul.f32 %v8540, %v8006
  %v8573 = vmul.f32 %v8541, %v8021
  %v8574 = vmul.f32 %v8542, %v8036
  %v8575 = vmul.f32 %v8543, %v8051
  %v8576 = vmul.f32 %v8544, %v8066
  %v8577 = vmul.f32 %v8545, %v8081
  %v8578 = vmul.f32 %v8546, %v8096
  %v8579 = vmul.f32 %v8547, %v8111
  %v8580 = vmul.f32 %v8548, %v8126
  %v8581 = vmul.f32 %v8549, %v8141
  %v8582 = vmul.f32 %v8550, %v8156
  %v8583 = vmul.f32 %v8551, %v8171
  %v8584 = vmul.f32 %v8552, %v8186
  %v8585 = vmul.f32 %v8553, %v8201
  %v8586 = vmul.f32 %v8554, %v8216
  %v8587 = vmul.f32 %v8555, %v8231
  %v8588 = vmul.f32 %v8556, %v8246
  %v8589 = vmul.f32 %v8557, %v8261
  %v8590 = vmul.f32 %v8558, %v8276
  %v8591 = vmul.f32 %v8559, %v8291
  %v8592 = vmul.f32 %v8560, %v8306
  %v8593 = vmul.f32 %v8561, %v8321
  %v8594 = vmul.f32 %v8562, %v8336
  %v8595 = vmul.f32 %v8563, %v8351
  %v8596 = vmul.f32 %v8564, %v8366
  %v8597 = vmul.f32 %v8565, %v8381
  %v8598 = vmul.f32 %v8566, %v8396
  %v8599 = vmul.f32 %v8567, %v8411
  %v8600 = vmul.f32 %v8568, %v8426
  %v8601 = vmul.f32 %v8569, %v8441
  %v8602 = vadd.f32 %v8570, -0.28449672
  %v8603 = vadd.f32 %v8571, -0.28449672
  %v8604 = vadd.f32 %v8572, -0.28449672
  %v8605 = vadd.f32 %v8573, -0.28449672
  %v8606 = vadd.f32 %v8574, -0.28449672
  %v8607 = vadd.f32 %v8575, -0.28449672
  %v8608 = vadd.f32 %v8576, -0.28449672
  %v8609 = vadd.f32 %v8577, -0.28449672
  %v8610 = vadd.f32 %v8578, -0.28449672
  %v8611 = vadd.f32 %v8579, -0.28449672
  %v8612 = vadd.f32 %v8580, -0.28449672
  %v8613 = vadd.f32 %v8581, -0.28449672
  %v8614 = vadd.f32 %v8582, -0.28449672
  %v8615 = vadd.f32 %v8583, -0.28449672
  %v8616 = vadd.f32 %v8584, -0.28449672
  %v8617 = vadd.f32 %v8585, -0.28449672
  %v8618 = vadd.f32 %v8586, -0.28449672
  %v8619 = vadd.f32 %v8587, -0.28449672
  %v8620 = vadd.f32 %v8588, -0.28449672
  %v8621 = vadd.f32 %v8589, -0.28449672
  %v8622 = vadd.f32 %v8590, -0.28449672
  %v8623 = vadd.f32 %v8591, -0.28449672
  %v8624 = vadd.f32 %v8592, -0.28449672
  %v8625 = vadd.f32 %v8593, -0.28449672
  %v8626 = vadd.f32 %v8594, -0.28449672
  %v8627 = vadd.f32 %v8595, -0.28449672
  %v8628 = vadd.f32 %v8596, -0.28449672
  %v8629 = vadd.f32 %v8597, -0.28449672
  %v8630 = vadd.f32 %v8598, -0.28449672
  %v8631 = vadd.f32 %v8599, -0.28449672
  %v8632 = vadd.f32 %v8600, -0.28449672
  %v8633 = vadd.f32 %v8601, -0.28449672
  %v8634 = vmul.f32 %v8602, %v7976
  %v8635 = vmul.f32 %v8603, %v7991
  %v8636 = vmul.f32 %v8604, %v8006
  %v8637 = vmul.f32 %v8605, %v8021
  %v8638 = vmul.f32 %v8606, %v8036
  %v8639 = vmul.f32 %v8607, %v8051
  %v8640 = vmul.f32 %v8608, %v8066
  %v8641 = vmul.f32 %v8609, %v8081
  %v8642 = vmul.f32 %v8610, %v8096
  %v8643 = vmul.f32 %v8611, %v8111
  %v8644 = vmul.f32 %v8612, %v8126
  %v8645 = vmul.f32 %v8613, %v8141
  %v8646 = vmul.f32 %v8614, %v8156
  %v8647 = vmul.f32 %v8615, %v8171
  %v8648 = vmul.f32 %v8616, %v8186
  %v8649 = vmul.f32 %v8617, %v8201
  %v8650 = vmul.f32 %v8618, %v8216
  %v8651 = vmul.f32 %v8619, %v8231
  %v8652 = vmul.f32 %v8620, %v8246
  %v8653 = vmul.f32 %v8621, %v8261
  %v8654 = vmul.f32 %v8622, %v8276
  %v8655 = vmul.f32 %v8623, %v8291
  %v8656 = vmul.f32 %v8624, %v8306
  %v8657 = vmul.f32 %v8625, %v8321
  %v8658 = vmul.f32 %v8626, %v8336
  %v8659 = vmul.f32 %v8627, %v8351
  %v8660 = vmul.f32 %v8628, %v8366
  %v8661 = vmul.f32 %v8629, %v8381
  %v8662 = vmul.f32 %v8630, %v8396
  %v8663 = vmul.f32 %v8631, %v8411
  %v8664 = vmul.f32 %v8632, %v8426
  %v8665 = vmul.f32 %v8633, %v8441
  %v8666 = vadd.f32 %v8634, 0.2548296
  %v8667 = vadd.f32 %v8635, 0.2548296
  %v8668 = vadd.f32 %v8636, 0.2548296
  %v8669 = vadd.f32 %v8637, 0.2548296
  %v8670 = vadd.f32 %v8638, 0.2548296
  %v8671 = vadd.f32 %v8639, 0.2548296
  %v8672 = vadd.f32 %v8640, 0.2548296
  %v8673 = vadd.f32 %v8641, 0.2548296
  %v8674 = vadd.f32 %v8642, 0.2548296
  %v8675 = vadd.f32 %v8643, 0.2548296
  %v8676 = vadd.f32 %v8644, 0.2548296
  %v8677 = vadd.f32 %v8645, 0.2548296
  %v8678 = vadd.f32 %v8646, 0.2548296
  %v8679 = vadd.f32 %v8647, 0.2548296
  %v8680 = vadd.f32 %v8648, 0.2548296
  %v8681 = vadd.f32 %v8649, 0.2548296
  %v8682 = vadd.f32 %v8650, 0.2548296
  %v8683 = vadd.f32 %v8651, 0.2548296
  %v8684 = vadd.f32 %v8652, 0.2548296
  %v8685 = vadd.f32 %v8653, 0.2548296
  %v8686 = vadd.f32 %v8654, 0.2548296
  %v8687 = vadd.f32 %v8655, 0.2548296
  %v8688 = vadd.f32 %v8656, 0.2548296
  %v8689 = vadd.f32 %v8657, 0.2548296
  %v8690 = vadd.f32 %v8658, 0.2548296
  %v8691 = vadd.f32 %v8659, 0.2548296
  %v8692 = vadd.f32 %v8660, 0.2548296
  %v8693 = vadd.f32 %v8661, 0.2548296
  %v8694 = vadd.f32 %v8662, 0.2548296
  %v8695 = vadd.f32 %v8663, 0.2548296
  %v8696 = vadd.f32 %v8664, 0.2548296
  %v8697 = vadd.f32 %v8665, 0.2548296
  %v8698 = vmul.f32 %v8666, %v7976
  %v8699 = vmul.f32 %v8667, %v7991
  %v8700 = vmul.f32 %v8668, %v8006
  %v8701 = vmul.f32 %v8669, %v8021
  %v8702 = vmul.f32 %v8670, %v8036
  %v8703 = vmul.f32 %v8671, %v8051
  %v8704 = vmul.f32 %v8672, %v8066
  %v8705 = vmul.f32 %v8673, %v8081
  %v8706 = vmul.f32 %v8674, %v8096
  %v8707 = vmul.f32 %v8675, %v8111
  %v8708 = vmul.f32 %v8676, %v8126
  %v8709 = vmul.f32 %v8677, %v8141
  %v8710 = vmul.f32 %v8678, %v8156
  %v8711 = vmul.f32 %v8679, %v8171
  %v8712 = vmul.f32 %v8680, %v8186
  %v8713 = vmul.f32 %v8681, %v8201
  %v8714 = vmul.f32 %v8682, %v8216
  %v8715 = vmul.f32 %v8683, %v8231
  %v8716 = vmul.f32 %v8684, %v8246
  %v8717 = vmul.f32 %v8685, %v8261
  %v8718 = vmul.f32 %v8686, %v8276
  %v8719 = vmul.f32 %v8687, %v8291
  %v8720 = vmul.f32 %v8688, %v8306
  %v8721 = vmul.f32 %v8689, %v8321
  %v8722 = vmul.f32 %v8690, %v8336
  %v8723 = vmul.f32 %v8691, %v8351
  %v8724 = vmul.f32 %v8692, %v8366
  %v8725 = vmul.f32 %v8693, %v8381
  %v8726 = vmul.f32 %v8694, %v8396
  %v8727 = vmul.f32 %v8695, %v8411
  %v8728 = vmul.f32 %v8696, %v8426
  %v8729 = vmul.f32 %v8697, %v8441
  %v8730 = vsub.f32 0.0, %v7866
  %v8731 = vsub.f32 0.0, %v7867
  %v8732 = vsub.f32 0.0, %v7868
  %v8733 = vsub.f32 0.0, %v7869
  %v8734 = vsub.f32 0.0, %v7870
  %v8735 = vsub.f32 0.0, %v7871
  %v8736 = vsub.f32 0.0, %v7872
  %v8737 = vsub.f32 0.0, %v7873
  %v8738 = vsub.f32 0.0, %v7874
  %v8739 = vsub.f32 0.0, %v7875
  %v8740 = vsub.f32 0.0, %v7876
  %v8741 = vsub.f32 0.0, %v7877
  %v8742 = vsub.f32 0.0, %v7878
  %v8743 = vsub.f32 0.0, %v7879
  %v8744 = vsub.f32 0.0, %v7880
  %v8745 = vsub.f32 0.0, %v7881
  %v8746 = vsub.f32 0.0, %v7882
  %v8747 = vsub.f32 0.0, %v7883
  %v8748 = vsub.f32 0.0, %v7884
  %v8749 = vsub.f32 0.0, %v7885
  %v8750 = vsub.f32 0.0, %v7886
  %v8751 = vsub.f32 0.0, %v7887
  %v8752 = vsub.f32 0.0, %v7888
  %v8753 = vsub.f32 0.0, %v7889
  %v8754 = vsub.f32 0.0, %v7890
  %v8755 = vsub.f32 0.0, %v7891
  %v8756 = vsub.f32 0.0, %v7892
  %v8757 = vsub.f32 0.0, %v7893
  %v8758 = vsub.f32 0.0, %v7894
  %v8759 = vsub.f32 0.0, %v7895
  %v8760 = vsub.f32 0.0, %v7896
  %v8761 = vsub.f32 0.0, %v7897
  %v8762 = vmul.f32 %v8730, %v7866
  %v8763 = vmul.f32 %v8731, %v7867
  %v8764 = vmul.f32 %v8732, %v7868
  %v8765 = vmul.f32 %v8733, %v7869
  %v8766 = vmul.f32 %v8734, %v7870
  %v8767 = vmul.f32 %v8735, %v7871
  %v8768 = vmul.f32 %v8736, %v7872
  %v8769 = vmul.f32 %v8737, %v7873
  %v8770 = vmul.f32 %v8738, %v7874
  %v8771 = vmul.f32 %v8739, %v7875
  %v8772 = vmul.f32 %v8740, %v7876
  %v8773 = vmul.f32 %v8741, %v7877
  %v8774 = vmul.f32 %v8742, %v7878
  %v8775 = vmul.f32 %v8743, %v7879
  %v8776 = vmul.f32 %v8744, %v7880
  %v8777 = vmul.f32 %v8745, %v7881
  %v8778 = vmul.f32 %v8746, %v7882
  %v8779 = vmul.f32 %v8747, %v7883
  %v8780 = vmul.f32 %v8748, %v7884
  %v8781 = vmul.f32 %v8749, %v7885
  %v8782 = vmul.f32 %v8750, %v7886
  %v8783 = vmul.f32 %v8751, %v7887
  %v8784 = vmul.f32 %v8752, %v7888
  %v8785 = vmul.f32 %v8753, %v7889
  %v8786 = vmul.f32 %v8754, %v7890
  %v8787 = vmul.f32 %v8755, %v7891
  %v8788 = vmul.f32 %v8756, %v7892
  %v8789 = vmul.f32 %v8757, %v7893
  %v8790 = vmul.f32 %v8758, %v7894
  %v8791 = vmul.f32 %v8759, %v7895
  %v8792 = vmul.f32 %v8760, %v7896
  %v8793 = vmul.f32 %v8761, %v7897
  %v8794 = vmul.f32 %v8762, 1.442695
  %v8795 = vpow.pop %v8794
  %v8796 = vmul.f32 %v8763, 1.442695
  %v8797 = vpow.pop %v8796
  %v8798 = vmul.f32 %v8764, 1.442695
  %v8799 = vpow.pop %v8798
  %v8800 = vmul.f32 %v8765, 1.442695
  %v8801 = vpow.pop %v8800
  %v8802 = vmul.f32 %v8766, 1.442695
  %v8803 = vpow.pop %v8802
  %v8804 = vmul.f32 %v8767, 1.442695
  %v8805 = vpow.pop %v8804
  %v8806 = vmul.f32 %v8768, 1.442695
  %v8807 = vpow.pop %v8806
  %v8808 = vmul.f32 %v8769, 1.442695
  %v8809 = vpow.pop %v8808
  %v8810 = vmul.f32 %v8770, 1.442695
  %v8811 = vpow.pop %v8810
  %v8812 = vmul.f32 %v8771, 1.442695
  %v8813 = vpow.pop %v8812
  %v8814 = vmul.f32 %v8772, 1.442695
  %v8815 = vpow.pop %v8814
  %v8816 = vmul.f32 %v8773, 1.442695
  %v8817 = vpow.pop %v8816
  %v8818 = vmul.f32 %v8774, 1.442695
  %v8819 = vpow.pop %v8818
  %v8820 = vmul.f32 %v8775, 1.442695
  %v8821 = vpow.pop %v8820
  %v8822 = vmul.f32 %v8776, 1.442695
  %v8823 = vpow.pop %v8822
  %v8824 = vmul.f32 %v8777, 1.442695
  %v8825 = vpow.pop %v8824
  %v8826 = vmul.f32 %v8778, 1.442695
  %v8827 = vpow.pop %v8826
  %v8828 = vmul.f32 %v8779, 1.442695
  %v8829 = vpow.pop %v8828
  %v8830 = vmul.f32 %v8780, 1.442695
  %v8831 = vpow.pop %v8830
  %v8832 = vmul.f32 %v8781, 1.442695
  %v8833 = vpow.pop %v8832
  %v8834 = vmul.f32 %v8782, 1.442695
  %v8835 = vpow.pop %v8834
  %v8836 = vmul.f32 %v8783, 1.442695
  %v8837 = vpow.pop %v8836
  %v8838 = vmul.f32 %v8784, 1.442695
  %v8839 = vpow.pop %v8838
  %v8840 = vmul.f32 %v8785, 1.442695
  %v8841 = vpow.pop %v8840
  %v8842 = vmul.f32 %v8786, 1.442695
  %v8843 = vpow.pop %v8842
  %v8844 = vmul.f32 %v8787, 1.442695
  %v8845 = vpow.pop %v8844
  %v8846 = vmul.f32 %v8788, 1.442695
  %v8847 = vpow.pop %v8846
  %v8848 = vmul.f32 %v8789, 1.442695
  %v8849 = vpow.pop %v8848
  %v8850 = vmul.f32 %v8790, 1.442695
  %v8851 = vpow.pop %v8850
  %v8852 = vmul.f32 %v8791, 1.442695
  %v8853 = vpow.pop %v8852
  %v8854 = vmul.f32 %v8792, 1.442695
  %v8855 = vpow.pop %v8854
  %v8856 = vmul.f32 %v8793, 1.442695
  %v8857 = vpow.pop %v8856
  %v8858 = vmul.f32 %v8698, %v8795
  %v8859 = vmul.f32 %v8699, %v8797
  %v8860 = vmul.f32 %v8700, %v8799
  %v8861 = vmul.f32 %v8701, %v8801
  %v8862 = vmul.f32 %v8702, %v8803
  %v8863 = vmul.f32 %v8703, %v8805
  %v8864 = vmul.f32 %v8704, %v8807
  %v8865 = vmul.f32 %v8705, %v8809
  %v8866 = vmul.f32 %v8706, %v8811
  %v8867 = vmul.f32 %v8707, %v8813
  %v8868 = vmul.f32 %v8708, %v8815
  %v8869 = vmul.f32 %v8709, %v8817
  %v8870 = vmul.f32 %v8710, %v8819
  %v8871 = vmul.f32 %v8711, %v8821
  %v8872 = vmul.f32 %v8712, %v8823
  %v8873 = vmul.f32 %v8713, %v8825
  %v8874 = vmul.f32 %v8714, %v8827
  %v8875 = vmul.f32 %v8715, %v8829
  %v8876 = vmul.f32 %v8716, %v8831
  %v8877 = vmul.f32 %v8717, %v8833
  %v8878 = vmul.f32 %v8718, %v8835
  %v8879 = vmul.f32 %v8719, %v8837
  %v8880 = vmul.f32 %v8720, %v8839
  %v8881 = vmul.f32 %v8721, %v8841
  %v8882 = vmul.f32 %v8722, %v8843
  %v8883 = vmul.f32 %v8723, %v8845
  %v8884 = vmul.f32 %v8724, %v8847
  %v8885 = vmul.f32 %v8725, %v8849
  %v8886 = vmul.f32 %v8726, %v8851
  %v8887 = vmul.f32 %v8727, %v8853
  %v8888 = vmul.f32 %v8728, %v8855
  %v8889 = vmul.f32 %v8729, %v8857
  %v8890 = vsub.f32 1.0, %v8858
  %v8891 = vsub.f32 1.0, %v8859
  %v8892 = vsub.f32 1.0, %v8860
  %v8893 = vsub.f32 1.0, %v8861
  %v8894 = vsub.f32 1.0, %v8862
  %v8895 = vsub.f32 1.0, %v8863
  %v8896 = vsub.f32 1.0, %v8864
  %v8897 = vsub.f32 1.0, %v8865
  %v8898 = vsub.f32 1.0, %v8866
  %v8899 = vsub.f32 1.0, %v8867
  %v8900 = vsub.f32 1.0, %v8868
  %v8901 = vsub.f32 1.0, %v8869
  %v8902 = vsub.f32 1.0, %v8870
  %v8903 = vsub.f32 1.0, %v8871
  %v8904 = vsub.f32 1.0, %v8872
  %v8905 = vsub.f32 1.0, %v8873
  %v8906 = vsub.f32 1.0, %v8874
  %v8907 = vsub.f32 1.0, %v8875
  %v8908 = vsub.f32 1.0, %v8876
  %v8909 = vsub.f32 1.0, %v8877
  %v8910 = vsub.f32 1.0, %v8878
  %v8911 = vsub.f32 1.0, %v8879
  %v8912 = vsub.f32 1.0, %v8880
  %v8913 = vsub.f32 1.0, %v8881
  %v8914 = vsub.f32 1.0, %v8882
  %v8915 = vsub.f32 1.0, %v8883
  %v8916 = vsub.f32 1.0, %v8884
  %v8917 = vsub.f32 1.0, %v8885
  %v8918 = vsub.f32 1.0, %v8886
  %v8919 = vsub.f32 1.0, %v8887
  %v8920 = vsub.f32 1.0, %v8888
  %v8921 = vsub.f32 1.0, %v8889
  %v8922 = vmul.f32 %v7834, %v8890
  %v8923 = vmul.f32 %v7835, %v8891
  %v8924 = vmul.f32 %v7836, %v8892
  %v8925 = vmul.f32 %v7837, %v8893
  %v8926 = vmul.f32 %v7838, %v8894
  %v8927 = vmul.f32 %v7839, %v8895
  %v8928 = vmul.f32 %v7840, %v8896
  %v8929 = vmul.f32 %v7841, %v8897
  %v8930 = vmul.f32 %v7842, %v8898
  %v8931 = vmul.f32 %v7843, %v8899
  %v8932 = vmul.f32 %v7844, %v8900
  %v8933 = vmul.f32 %v7845, %v8901
  %v8934 = vmul.f32 %v7846, %v8902
  %v8935 = vmul.f32 %v7847, %v8903
  %v8936 = vmul.f32 %v7848, %v8904
  %v8937 = vmul.f32 %v7849, %v8905
  %v8938 = vmul.f32 %v7850, %v8906
  %v8939 = vmul.f32 %v7851, %v8907
  %v8940 = vmul.f32 %v7852, %v8908
  %v8941 = vmul.f32 %v7853, %v8909
  %v8942 = vmul.f32 %v7854, %v8910
  %v8943 = vmul.f32 %v7855, %v8911
  %v8944 = vmul.f32 %v7856, %v8912
  %v8945 = vmul.f32 %v7857, %v8913
  %v8946 = vmul.f32 %v7858, %v8914
  %v8947 = vmul.f32 %v7859, %v8915
  %v8948 = vmul.f32 %v7860, %v8916
  %v8949 = vmul.f32 %v7861, %v8917
  %v8950 = vmul.f32 %v7862, %v8918
  %v8951 = vmul.f32 %v7863, %v8919
  %v8952 = vmul.f32 %v7864, %v8920
  %v8953 = vmul.f32 %v7865, %v8921
  %v8954 = vadd.f32 %v8922, 1.0
  %v8955 = vadd.f32 %v8923, 1.0
  %v8956 = vadd.f32 %v8924, 1.0
  %v8957 = vadd.f32 %v8925, 1.0
  %v8958 = vadd.f32 %v8926, 1.0
  %v8959 = vadd.f32 %v8927, 1.0
  %v8960 = vadd.f32 %v8928, 1.0
  %v8961 = vadd.f32 %v8929, 1.0
  %v8962 = vadd.f32 %v8930, 1.0
  %v8963 = vadd.f32 %v8931, 1.0
  %v8964 = vadd.f32 %v8932, 1.0
  %v8965 = vadd.f32 %v8933, 1.0
  %v8966 = vadd.f32 %v8934, 1.0
  %v8967 = vadd.f32 %v8935, 1.0
  %v8968 = vadd.f32 %v8936, 1.0
  %v8969 = vadd.f32 %v8937, 1.0
  %v8970 = vadd.f32 %v8938, 1.0
  %v8971 = vadd.f32 %v8939, 1.0
  %v8972 = vadd.f32 %v8940, 1.0
  %v8973 = vadd.f32 %v8941, 1.0
  %v8974 = vadd.f32 %v8942, 1.0
  %v8975 = vadd.f32 %v8943, 1.0
  %v8976 = vadd.f32 %v8944, 1.0
  %v8977 = vadd.f32 %v8945, 1.0
  %v8978 = vadd.f32 %v8946, 1.0
  %v8979 = vadd.f32 %v8947, 1.0
  %v8980 = vadd.f32 %v8948, 1.0
  %v8981 = vadd.f32 %v8949, 1.0
  %v8982 = vadd.f32 %v8950, 1.0
  %v8983 = vadd.f32 %v8951, 1.0
  %v8984 = vadd.f32 %v8952, 1.0
  %v8985 = vadd.f32 %v8953, 1.0
  %v8986 = vmul.f32 %v7738, %v8954
  %v8987 = vmul.f32 %v7739, %v8955
  %v8988 = vmul.f32 %v7740, %v8956
  %v8989 = vmul.f32 %v7741, %v8957
  %v8990 = vmul.f32 %v7742, %v8958
  %v8991 = vmul.f32 %v7743, %v8959
  %v8992 = vmul.f32 %v7744, %v8960
  %v8993 = vmul.f32 %v7745, %v8961
  %v8994 = vmul.f32 %v7746, %v8962
  %v8995 = vmul.f32 %v7747, %v8963
  %v8996 = vmul.f32 %v7748, %v8964
  %v8997 = vmul.f32 %v7749, %v8965
  %v8998 = vmul.f32 %v7750, %v8966
  %v8999 = vmul.f32 %v7751, %v8967
  %v9000 = vmul.f32 %v7752, %v8968
  %v9001 = vmul.f32 %v7753, %v8969
  %v9002 = vmul.f32 %v7754, %v8970
  %v9003 = vmul.f32 %v7755, %v8971
  %v9004 = vmul.f32 %v7756, %v8972
  %v9005 = vmul.f32 %v7757, %v8973
  %v9006 = vmul.f32 %v7758, %v8974
  %v9007 = vmul.f32 %v7759, %v8975
  %v9008 = vmul.f32 %v7760, %v8976
  %v9009 = vmul.f32 %v7761, %v8977
  %v9010 = vmul.f32 %v7762, %v8978
  %v9011 = vmul.f32 %v7763, %v8979
  %v9012 = vmul.f32 %v7764, %v8980
  %v9013 = vmul.f32 %v7765, %v8981
  %v9014 = vmul.f32 %v7766, %v8982
  %v9015 = vmul.f32 %v7767, %v8983
  %v9016 = vmul.f32 %v7768, %v8984
  %v9017 = vmul.f32 %v7769, %v8985
  %9050 = vrot.lane.b32.xlu0 %v7659, 64
  %v9051 = vpop.permute.xlu0 %9050
  %9052 = vrot.lane.b32.xlu0 %v7661, 64
  %v9053 = vpop.permute.xlu0 %9052
  %9054 = vrot.lane.b32.xlu0 %v7664, 64
  %v9055 = vpop.permute.xlu0 %9054
  %9056 = vrot.lane.b32.xlu0 %v7666, 64
  %v9057 = vpop.permute.xlu0 %9056
  %9058 = vrot.lane.b32.xlu0 %v7669, 64
  %v9059 = vpop.permute.xlu0 %9058
  %9060 = vrot.lane.b32.xlu0 %v7671, 64
  %v9061 = vpop.permute.xlu0 %9060
  %9062 = vrot.lane.b32.xlu0 %v7674, 64
  %v9063 = vpop.permute.xlu0 %9062
  %9064 = vrot.lane.b32.xlu0 %v7676, 64
  %v9065 = vpop.permute.xlu0 %9064
  %9066 = vrot.lane.b32.xlu0 %v7679, 64
  %v9067 = vpop.permute.xlu0 %9066
  %9068 = vrot.lane.b32.xlu0 %v7681, 64
  %v9069 = vpop.permute.xlu0 %9068
  %9070 = vrot.lane.b32.xlu0 %v7684, 64
  %v9071 = vpop.permute.xlu0 %9070
  %9072 = vrot.lane.b32.xlu0 %v7686, 64
  %v9073 = vpop.permute.xlu0 %9072
  %9074 = vrot.lane.b32.xlu0 %v7689, 64
  %v9075 = vpop.permute.xlu0 %9074
  %9076 = vrot.lane.b32.xlu0 %v7691, 64
  %v9077 = vpop.permute.xlu0 %9076
  %9078 = vrot.lane.b32.xlu0 %v7694, 64
  %v9079 = vpop.permute.xlu0 %9078
  %9080 = vrot.lane.b32.xlu0 %v7696, 64
  %v9081 = vpop.permute.xlu0 %9080
  %9082 = vrot.lane.b32.xlu0 %v7699, 64
  %v9083 = vpop.permute.xlu0 %9082
  %9084 = vrot.lane.b32.xlu0 %v7701, 64
  %v9085 = vpop.permute.xlu0 %9084
  %9086 = vrot.lane.b32.xlu0 %v7704, 64
  %v9087 = vpop.permute.xlu0 %9086
  %9088 = vrot.lane.b32.xlu0 %v7706, 64
  %v9089 = vpop.permute.xlu0 %9088
  %9090 = vrot.lane.b32.xlu0 %v7709, 64
  %v9091 = vpop.permute.xlu0 %9090
  %9092 = vrot.lane.b32.xlu0 %v7711, 64
  %v9093 = vpop.permute.xlu0 %9092
  %9094 = vrot.lane.b32.xlu0 %v7714, 64
  %v9095 = vpop.permute.xlu0 %9094
  %9096 = vrot.lane.b32.xlu0 %v7716, 64
  %v9097 = vpop.permute.xlu0 %9096
  %9098 = vrot.lane.b32.xlu0 %v7719, 64
  %v9099 = vpop.permute.xlu0 %9098
  %9100 = vrot.lane.b32.xlu0 %v7721, 64
  %v9101 = vpop.permute.xlu0 %9100
  %9102 = vrot.lane.b32.xlu0 %v7724, 64
  %v9103 = vpop.permute.xlu0 %9102
  %9104 = vrot.lane.b32.xlu0 %v7726, 64
  %v9105 = vpop.permute.xlu0 %9104
  %9106 = vrot.lane.b32.xlu0 %v7729, 64
  %v9107 = vpop.permute.xlu0 %9106
  %9108 = vrot.lane.b32.xlu0 %v7731, 64
  %v9109 = vpop.permute.xlu0 %9108
  %9110 = vrot.lane.b32.xlu0 %v7734, 64
  %v9111 = vpop.permute.xlu0 %9110
  %9112 = vrot.lane.b32.xlu0 %v7736, 64
  %v9113 = vpop.permute.xlu0 %9112
  %v9146 = vmul.f32 %v8986, %v9051
  %v9147 = vmul.f32 %v8987, %v9053
  %v9148 = vmul.f32 %v8988, %v9055
  %v9149 = vmul.f32 %v8989, %v9057
  %v9150 = vmul.f32 %v8990, %v9059
  %v9151 = vmul.f32 %v8991, %v9061
  %v9152 = vmul.f32 %v8992, %v9063
  %v9153 = vmul.f32 %v8993, %v9065
  %v9154 = vmul.f32 %v8994, %v9067
  %v9155 = vmul.f32 %v8995, %v9069
  %v9156 = vmul.f32 %v8996, %v9071
  %v9157 = vmul.f32 %v8997, %v9073
  %v9158 = vmul.f32 %v8998, %v9075
  %v9159 = vmul.f32 %v8999, %v9077
  %v9160 = vmul.f32 %v9000, %v9079
  %v9161 = vmul.f32 %v9001, %v9081
  %v9162 = vmul.f32 %v9002, %v9083
  %v9163 = vmul.f32 %v9003, %v9085
  %v9164 = vmul.f32 %v9004, %v9087
  %v9165 = vmul.f32 %v9005, %v9089
  %v9166 = vmul.f32 %v9006, %v9091
  %v9167 = vmul.f32 %v9007, %v9093
  %v9168 = vmul.f32 %v9008, %v9095
  %v9169 = vmul.f32 %v9009, %v9097
  %v9170 = vmul.f32 %v9010, %v9099
  %v9171 = vmul.f32 %v9011, %v9101
  %v9172 = vmul.f32 %v9012, %v9103
  %v9173 = vmul.f32 %v9013, %v9105
  %v9174 = vmul.f32 %v9014, %v9107
  %v9175 = vmul.f32 %v9015, %v9109
  %v9176 = vmul.f32 %v9016, %v9111
  %v9177 = vmul.f32 %v9017, %v9113
  %v9178 = vpack.c.bf16 %v9147, %v9146
  %v9179 = vpack.c.bf16 %v9149, %v9148
  %v9180 = vpack.c.bf16 %v9151, %v9150
  %v9181 = vpack.c.bf16 %v9153, %v9152
  %v9182 = vpack.c.bf16 %v9155, %v9154
  %v9183 = vpack.c.bf16 %v9157, %v9156
  %v9184 = vpack.c.bf16 %v9159, %v9158
  %v9185 = vpack.c.bf16 %v9161, %v9160
  %v9186 = vpack.c.bf16 %v9163, %v9162
  %v9187 = vpack.c.bf16 %v9165, %v9164
  %v9188 = vpack.c.bf16 %v9167, %v9166
  %v9189 = vpack.c.bf16 %v9169, %v9168
  %v9190 = vpack.c.bf16 %v9171, %v9170
  %v9191 = vpack.c.bf16 %v9173, %v9172
  %v9192 = vpack.c.bf16 %v9175, %v9174
  %v9193 = vpack.c.bf16 %v9177, %v9176
  %v9194 = vld [vmem:[%s13] sm:$0xf]
  %v9195 = vld [vmem:[%s13 + $0x4] sm:$0xf]
  %v9196 = vld [vmem:[%s13 + $0x8] sm:$0xf]
  %v9197 = vld [vmem:[%s13 + $0xc] sm:$0xf]
  %v9198 = vld [vmem:[%s13 + $0x10] sm:$0xf]
  %v9199 = vld [vmem:[%s13 + $0x14] sm:$0xf]
  %v9200 = vld [vmem:[%s13 + $0x18] sm:$0xf]
  %v9201 = vld [vmem:[%s13 + $0x1c] sm:$0xf]
  %v9202 = vld [vmem:[%s14] sm:$0x1]
  %v9204 = vperm.slane %v9202, 0
  %v9214 = vunpack.c.l.b16 %v9194
  %v9215 = vunpack.c.l.b16 %v9195
  %v9216 = vunpack.c.l.b16 %v9196
  %v9217 = vunpack.c.l.b16 %v9197
  %v9218 = vunpack.c.l.b16 %v9198
  %v9219 = vunpack.c.l.b16 %v9199
  %v9220 = vunpack.c.l.b16 %v9200
  %v9221 = vunpack.c.l.b16 %v9201
  %v9222 = vpack.c.b16 %v9215, %v9214
  %v9223 = vpack.c.b16 %v9217, %v9216
  %v9224 = vpack.c.b16 %v9219, %v9218
  %v9225 = vpack.c.b16 %v9221, %v9220
  %vm9230 = vcmask 523264
  %v9232 = vsel %vm9230, %v9178, 0
  %v9235 = vsel %vm9230, %v9179, 0
  %v9238 = vsel %vm9230, %v9180, 0
  %v9241 = vsel %vm9230, %v9181, 0
  %v9244 = vsel %vm9230, %v9182, 0
  %v9247 = vsel %vm9230, %v9183, 0
  %v9250 = vsel %vm9230, %v9184, 0
  %v9253 = vsel %vm9230, %v9185, 0
  %v9256 = vsel %vm9230, %v9186, 0
  %v9259 = vsel %vm9230, %v9187, 0
  %v9262 = vsel %vm9230, %v9188, 0
  %v9265 = vsel %vm9230, %v9189, 0
  %v9268 = vsel %vm9230, %v9190, 0
  %v9271 = vsel %vm9230, %v9191, 0
  %v9274 = vsel %vm9230, %v9192, 0
  %v9277 = vsel %vm9230, %v9193, 0
  %9279 = vmatpush.bf16.msra.mxu0 0
  %9280 = vmatpush.bf16.msra.mxu0 0
  %9281 = vmatpush.bf16.msra.mxu0 0
  %9282 = vmatpush.bf16.msra.mxu0 0
  %9283 = vmatpush.bf16.msra.mxu0 %v9225
  %9284 = vmatpush.bf16.msra.mxu0 %v9224
  %9285 = vmatpush.bf16.msra.mxu0 %v9223
  %9286 = vmatpush.bf16.msra.mxu0 %v9222
  %9287 = vmatmul.bf16.gmra.mxu0 %v9232
  %v9288 = vpop.f32.mrf.mxu0
  %v9289 = vadd.f32 %v9204, %v9288
  %v9290 = vpop.f32.mrf.mxu0
  %v9291 = vadd.f32 %v9204, %v9290
  %9292 = vmatmul.bf16.gmra.mxu0 %v9235
  %v9293 = vpop.f32.mrf.mxu0
  %v9294 = vadd.f32 %v9204, %v9293
  %v9295 = vpop.f32.mrf.mxu0
  %v9296 = vadd.f32 %v9204, %v9295
  %9297 = vmatmul.bf16.gmra.mxu0 %v9238
  %v9298 = vpop.f32.mrf.mxu0
  %v9299 = vadd.f32 %v9204, %v9298
  %v9300 = vpop.f32.mrf.mxu0
  %v9301 = vadd.f32 %v9204, %v9300
  %9302 = vmatmul.bf16.gmra.mxu0 %v9241
  %v9303 = vpop.f32.mrf.mxu0
  %v9304 = vadd.f32 %v9204, %v9303
  %v9305 = vpop.f32.mrf.mxu0
  %v9306 = vadd.f32 %v9204, %v9305
  %9307 = vmatmul.bf16.gmra.mxu0 %v9244
  %v9308 = vpop.f32.mrf.mxu0
  %v9309 = vadd.f32 %v9204, %v9308
  %v9310 = vpop.f32.mrf.mxu0
  %v9311 = vadd.f32 %v9204, %v9310
  %9312 = vmatmul.bf16.gmra.mxu0 %v9247
  %v9313 = vpop.f32.mrf.mxu0
  %v9314 = vadd.f32 %v9204, %v9313
  %v9315 = vpop.f32.mrf.mxu0
  %v9316 = vadd.f32 %v9204, %v9315
  %9317 = vmatmul.bf16.gmra.mxu0 %v9250
  %v9318 = vpop.f32.mrf.mxu0
  %v9319 = vadd.f32 %v9204, %v9318
  %v9320 = vpop.f32.mrf.mxu0
  %v9321 = vadd.f32 %v9204, %v9320
  %9322 = vmatmul.bf16.gmra.mxu0 %v9253
  %v9323 = vpop.f32.mrf.mxu0
  %v9324 = vadd.f32 %v9204, %v9323
  %v9325 = vpop.f32.mrf.mxu0
  %v9326 = vadd.f32 %v9204, %v9325
  %9327 = vmatmul.bf16.gmra.mxu0 %v9256
  %v9328 = vpop.f32.mrf.mxu0
  %v9329 = vadd.f32 %v9204, %v9328
  %v9330 = vpop.f32.mrf.mxu0
  %v9331 = vadd.f32 %v9204, %v9330
  %9332 = vmatmul.bf16.gmra.mxu0 %v9259
  %v9333 = vpop.f32.mrf.mxu0
  %v9334 = vadd.f32 %v9204, %v9333
  %v9335 = vpop.f32.mrf.mxu0
  %v9336 = vadd.f32 %v9204, %v9335
  %9337 = vmatmul.bf16.gmra.mxu0 %v9262
  %v9338 = vpop.f32.mrf.mxu0
  %v9339 = vadd.f32 %v9204, %v9338
  %v9340 = vpop.f32.mrf.mxu0
  %v9341 = vadd.f32 %v9204, %v9340
  %9342 = vmatmul.bf16.gmra.mxu0 %v9265
  %v9343 = vpop.f32.mrf.mxu0
  %v9344 = vadd.f32 %v9204, %v9343
  %v9345 = vpop.f32.mrf.mxu0
  %v9346 = vadd.f32 %v9204, %v9345
  %9347 = vmatmul.bf16.gmra.mxu0 %v9268
  %v9348 = vpop.f32.mrf.mxu0
  %v9349 = vadd.f32 %v9204, %v9348
  %v9350 = vpop.f32.mrf.mxu0
  %v9351 = vadd.f32 %v9204, %v9350
  %9352 = vmatmul.bf16.gmra.mxu0 %v9271
  %v9353 = vpop.f32.mrf.mxu0
  %v9354 = vadd.f32 %v9204, %v9353
  %v9355 = vpop.f32.mrf.mxu0
  %v9356 = vadd.f32 %v9204, %v9355
  %9357 = vmatmul.bf16.gmra.mxu0 %v9274
  %v9358 = vpop.f32.mrf.mxu0
  %v9359 = vadd.f32 %v9204, %v9358
  %v9360 = vpop.f32.mrf.mxu0
  %v9361 = vadd.f32 %v9204, %v9360
  %9362 = vmatmul.bf16.gmra.mxu0 %v9277
  %v9363 = vpop.f32.mrf.mxu0
  %v9364 = vadd.f32 %v9204, %v9363
  %v9365 = vpop.f32.mrf.mxu0
  %v9366 = vadd.f32 %v9204, %v9365
  %9367 = vdwg.mxu0
  %v9368 = vadd.f32 %v6757, %v9289
  %v9369 = vadd.f32 %v6758, %v9291
  %v9370 = vadd.f32 %v6759, %v9294
  %v9371 = vadd.f32 %v6760, %v9296
  %v9372 = vadd.f32 %v6761, %v9299
  %v9373 = vadd.f32 %v6762, %v9301
  %v9374 = vadd.f32 %v6763, %v9304
  %v9375 = vadd.f32 %v6764, %v9306
  %v9376 = vadd.f32 %v6765, %v9309
  %v9377 = vadd.f32 %v6766, %v9311
  %v9378 = vadd.f32 %v6767, %v9314
  %v9379 = vadd.f32 %v6768, %v9316
  %v9380 = vadd.f32 %v6769, %v9319
  %v9381 = vadd.f32 %v6770, %v9321
  %v9382 = vadd.f32 %v6771, %v9324
  %v9383 = vadd.f32 %v6772, %v9326
  %v9384 = vadd.f32 %v6773, %v9329
  %v9385 = vadd.f32 %v6774, %v9331
  %v9386 = vadd.f32 %v6775, %v9334
  %v9387 = vadd.f32 %v6776, %v9336
  %v9388 = vadd.f32 %v6777, %v9339
  %v9389 = vadd.f32 %v6778, %v9341
  %v9390 = vadd.f32 %v6779, %v9344
  %v9391 = vadd.f32 %v6780, %v9346
  %v9392 = vadd.f32 %v6781, %v9349
  %v9393 = vadd.f32 %v6782, %v9351
  %v9394 = vadd.f32 %v6783, %v9354
  %v9395 = vadd.f32 %v6784, %v9356
  %v9396 = vadd.f32 %v6785, %v9359
  %v9397 = vadd.f32 %v6786, %v9361
  %v9398 = vadd.f32 %v6787, %v9364
  %v9399 = vadd.f32 %v6788, %v9366
  %9400 = vst.msk [vmem:[%s15] sm:$0xff] %vm85, %v9368
  %9401 = vst.msk [vmem:[%s15 + $0x8] sm:$0xff] %vm85, %v9369
  %9402 = vst.msk [vmem:[%s15 + $0x10] sm:$0xff] %vm85, %v9370
  %9403 = vst.msk [vmem:[%s15 + $0x18] sm:$0xff] %vm85, %v9371
  %9404 = vst.msk [vmem:[%s15 + $0x20] sm:$0xff] %vm85, %v9372
  %9405 = vst.msk [vmem:[%s15 + $0x28] sm:$0xff] %vm85, %v9373
  %9406 = vst.msk [vmem:[%s15 + $0x30] sm:$0xff] %vm85, %v9374
  %9407 = vst.msk [vmem:[%s15 + $0x38] sm:$0xff] %vm85, %v9375
  %9408 = vst.msk [vmem:[%s15 + $0x40] sm:$0xff] %vm85, %v9376
  %9409 = vst.msk [vmem:[%s15 + $0x48] sm:$0xff] %vm85, %v9377
  %9410 = vst.msk [vmem:[%s15 + $0x50] sm:$0xff] %vm85, %v9378
  %9411 = vst.msk [vmem:[%s15 + $0x58] sm:$0xff] %vm85, %v9379
  %9412 = vst.msk [vmem:[%s15 + $0x60] sm:$0xff] %vm85, %v9380
  %9413 = vst.msk [vmem:[%s15 + $0x68] sm:$0xff] %vm85, %v9381
  %9414 = vst.msk [vmem:[%s15 + $0x70] sm:$0xff] %vm85, %v9382
  %9415 = vst.msk [vmem:[%s15 + $0x78] sm:$0xff] %vm85, %v9383
  %9416 = vst.msk [vmem:[%s15 + $0x80] sm:$0xff] %vm85, %v9384
  %9417 = vst.msk [vmem:[%s15 + $0x88] sm:$0xff] %vm85, %v9385
  %9418 = vst.msk [vmem:[%s15 + $0x90] sm:$0xff] %vm85, %v9386
  %9419 = vst.msk [vmem:[%s15 + $0x98] sm:$0xff] %vm85, %v9387
  %9420 = vst.msk [vmem:[%s15 + $0xa0] sm:$0xff] %vm85, %v9388
  %9421 = vst.msk [vmem:[%s15 + $0xa8] sm:$0xff] %vm85, %v9389
  %9422 = vst.msk [vmem:[%s15 + $0xb0] sm:$0xff] %vm85, %v9390
  %9423 = vst.msk [vmem:[%s15 + $0xb8] sm:$0xff] %vm85, %v9391
  %9424 = vst.msk [vmem:[%s15 + $0xc0] sm:$0xff] %vm85, %v9392
  %9425 = vst.msk [vmem:[%s15 + $0xc8] sm:$0xff] %vm85, %v9393
  %9426 = vst.msk [vmem:[%s15 + $0xd0] sm:$0xff] %vm85, %v9394
  %9427 = vst.msk [vmem:[%s15 + $0xd8] sm:$0xff] %vm85, %v9395
  %9428 = vst.msk [vmem:[%s15 + $0xe0] sm:$0xff] %vm85, %v9396
  %9429 = vst.msk [vmem:[%s15 + $0xe8] sm:$0xff] %vm85, %v9397
  %9430 = vst.msk [vmem:[%s15 + $0xf0] sm:$0xff] %vm85, %v9398
  %9431 = vst.msk [vmem:[%s15 + $0xf8] sm:$0xff] %vm85, %v9399
  // Predicated region
  $region62: #{_lambda_.1} parent=0 // pred_check
    _
  $region63: #{_lambda_.1} parent=0 // pred_check_branch
    %9433 = sbr.rel (0) target = $region65
  $region64: #{_lambda_.1} parent=0 // pred_region
    _
  $region65: #{_lambda_.1} parent=0 // pred_fallthru
    _
  // Predicated region
  $region66: #{_lambda_.1} parent=0 // pred_check
    _
  $region67: #{_lambda_.1} parent=0 // pred_check_branch
    %9435 = sbr.rel (0) target = $region69
  $region68: #{_lambda_.1} parent=0 // pred_region
    _
  $region69: #{_lambda_.1} parent=0 // pred_fallthru
    _

</llo_original>
